<compile_context>
chip_gen: v6e
topology: v6e:2x2x1
jax: 0.10.0
libtpu: 0.0.40
codegen_flags: <defaults>
</compile_context>

<pallas_src>
import math

import jax
import jax.numpy as jnp
from jax.experimental import pallas as pl
from jax.experimental.pallas import tpu as pltpu

# --- synthetic mini-BERT config (structurally identical to bert-base, tiny dims) ---
VOCAB = 50
TYPE_VOCAB = 2
MAX_POS = 16
HIDDEN = 32
NUM_HEADS = 4
HEAD_DIM = HIDDEN // NUM_HEADS
INTERMEDIATE = 64
NUM_LAYERS = 2
NUM_LABELS = 3          # use_three_labels = True
LN_EPS = 1e-12
DOUT = 0.3              # dropout prob; identity at inference (eval mode)
OUT_LANES = 128         # packed lane-dense output width: [reps (H) | logits (padded)]


def _gelu(x):
    # TODO(synk): HF BERT uses erf-gelu; tanh approximation used for EUP-friendly lowering.
    c = math.sqrt(2.0 / math.pi)
    return 0.5 * x * (1.0 + jnp.tanh(c * (x + 0.044715 * x * x * x)))


def _layernorm(x, g, b):
    mu = jnp.mean(x, axis=-1, keepdims=True)
    xc = x - mu
    var = jnp.mean(xc * xc, axis=-1, keepdims=True)
    return xc * jax.lax.rsqrt(var + LN_EPS) * g + b


# ----------------------------- fused Pallas kernel --------------------------------

def _fused_bert_kernel(emb_ref, maskb_ref, embln_ref,
                       wqkv_ref, bqkv_ref, wo_ref, lnb_ref,
                       w1_ref, b1_ref, w2_ref,
                       poolw_ref, poolb_ref, clsw_ref, clsb_ref,
                       out_ref):
    """Whole batch, whole network, one invocation; everything stays in VMEM/vregs."""
    bnh, _, seq = maskb_ref.shape            # bnh = batch * NUM_HEADS
    batch = bnh // NUM_HEADS
    rows = batch * seq
    bf16 = jnp.bfloat16

    mask_bias = maskb_ref[...]                                       # (B*NH, 1, S)

    # Embedding LayerNorm (no residual input); x stays row-flattened (B*S, H) f32.
    x = _layernorm(emb_ref[...], embln_ref[0:1, :], embln_ref[1:2, :])

    for l in range(NUM_LAYERS):
        # TODO(synk): at real BERT dims, stream per-layer weights via an 'arbitrary' grid
        # axis instead of holding the whole (tiny) weight stack resident in VMEM.

        # ---- attention: head-batched (batch dim = B*NUM_HEADS), no per-head loop ----
        x3 = x.reshape(batch, seq, HIDDEN)
        xr = jnp.broadcast_to(x3[:, None, :, :], (batch, NUM_HEADS, seq, HIDDEN))
        xr = xr.reshape(bnh, seq, HIDDEN).astype(bf16)               # n = b*NUM_HEADS + h

        wq = wqkv_ref[l, 0:bnh]                                      # (B*NH, H, HD) bf16
        wk = wqkv_ref[l, bnh:2 * bnh]
        wv = wqkv_ref[l, 2 * bnh:3 * bnh]
        bq = bqkv_ref[l, 0:bnh]                                      # (B*NH, 1, HD) f32
        bk = bqkv_ref[l, bnh:2 * bnh]
        bv = bqkv_ref[l, 2 * bnh:3 * bnh]

        # Single batched dot_general per projection; softmax scale is folded into Q.
        q = jnp.einsum('nsh,nhd->nsd', xr, wq, preferred_element_type=jnp.float32) + bq
        k = jnp.einsum('nsh,nhd->nsd', xr, wk, preferred_element_type=jnp.float32) + bk
        v = jnp.einsum('nsh,nhd->nsd', xr, wv, preferred_element_type=jnp.float32) + bv

        s = jnp.einsum('nqd,nkd->nqk', q.astype(bf16), k.astype(bf16),
                       preferred_element_type=jnp.float32)           # (B*NH, S, S)
        s = s + mask_bias                                            # additive key mask
        s = s - jnp.max(s, axis=-1, keepdims=True)
        p = jnp.exp(s)                                               # softmax math in f32
        p = p * pl.reciprocal(jnp.sum(p, axis=-1, keepdims=True), approx=True)

        ctx = jnp.einsum('nqk,nkd->nqd', p.astype(bf16), v.astype(bf16),
                         preferred_element_type=jnp.float32)         # (B*NH, S, HD)
        proj = jnp.einsum('nsd,nde->nse', ctx.astype(bf16), wo_ref[l],
                          preferred_element_type=jnp.float32)        # (B*NH, S, H)

        # Merge heads: explicit small sum over the leading head axis.
        proj = proj.reshape(batch, NUM_HEADS, seq, HIDDEN)
        attn = proj[:, 0]
        for h in range(1, NUM_HEADS):
            attn = attn + proj[:, h]
        attn = attn.reshape(rows, HIDDEN) + lnb_ref[l, 0:1, :]       # + output-proj bias

        x = _layernorm(attn + x, lnb_ref[l, 2:3, :], lnb_ref[l, 3:4, :])

        # ---- feed-forward: row-batched (B*S, H) GEMMs, bf16 weights, f32 accumulate ----
        h1 = _gelu(jnp.dot(x.astype(bf16), w1_ref[l],
                           preferred_element_type=jnp.float32) + b1_ref[l])
        ffn = jnp.dot(h1.astype(bf16), w2_ref[l],
                      preferred_element_type=jnp.float32) + lnb_ref[l, 1:2, :]
        x = _layernorm(ffn + x, lnb_ref[l, 4:5, :], lnb_ref[l, 5:6, :])

    # Pooler (tanh on CLS token) + classifier, packed into one lane-dense (B, 128) store.
    cls = x.reshape(batch, seq, HIDDEN)[:, 0, :]                     # (B, H)
    reps = jnp.tanh(jnp.dot(cls.astype(bf16), poolw_ref[...],
                            preferred_element_type=jnp.float32) + poolb_ref[...])
    # self.l2 = Dropout(DOUT): identity at inference (eval mode).
    logits_pad = jnp.dot(reps.astype(bf16), clsw_ref[...],
                         preferred_element_type=jnp.float32) + clsb_ref[...]  # (B, 96)
    out_ref[...] = jnp.concatenate([reps, logits_pad], axis=-1)      # (B, 128) dense store


def fused_bert_forward(emb, mask_bias, params):
    """emb: (B, S, H) f32 summed embeddings; mask_bias: (B, S) additive key-mask values."""
    B, S, H = emb.shape
    bnh = B * NUM_HEADS

    emb_flat = emb.reshape(B * S, H)
    maskb = jnp.broadcast_to(mask_bias.reshape(B, 1, 1, S),
                             (B, NUM_HEADS, 1, S)).reshape(bnh, 1, S)

    def rep(w):
        # (L, G*NUM_HEADS, ...) -> (L, G*B*NUM_HEADS, ...), index = g*B*NH + b*NH + h.
        L = w.shape[0]
        G = w.shape[1] // NUM_HEADS
        tail = tuple(w.shape[2:])
        w = w.reshape((L, G, 1, NUM_HEADS) + tail)
        w = jnp.broadcast_to(w, (L, G, B, NUM_HEADS) + tail)
        return w.reshape((L, G * B * NUM_HEADS) + tail)

    args = (emb_flat, maskb, params["emb_ln"],
            rep(params["wqkv_hm"]), rep(params["bqkv_hm"]), rep(params["wo_hm"]),
            params["lnb"], params["w1"], params["b1"], params["w2"],
            params["pool_w"], params["pool_b"], params["cls_w_pad"], params["cls_b_pad"])

    vmem = lambda: pl.BlockSpec(memory_space=pltpu.MemorySpace.VMEM)
    packed = pl.pallas_call(
        _fused_bert_kernel,
        out_shape=jax.ShapeDtypeStruct((B, OUT_LANES), jnp.float32),
        in_specs=[vmem() for _ in args],
        out_specs=vmem(),
    )(*args)
    return packed


# ----------------------------- parameters & forward -------------------------------

def init_params(key):
    scale = 1.0 / math.sqrt(HEAD_DIM)

    def dense(k, fan_in, fan_out):
        kw, kb = jax.random.split(k)
        return (0.02 * jax.random.normal(kw, (fan_in, fan_out), jnp.float32),
                0.02 * jax.random.normal(kb, (fan_out,), jnp.float32))

    def head_major(w, b, fold_scale=False):
        # (H, H), (H,) -> (NH, H, HD), (NH, 1, HD); optionally fold softmax scale.
        if fold_scale:
            w = w * scale
            b = b * scale
        w_hm = jnp.transpose(w.reshape(HIDDEN, NUM_HEADS, HEAD_DIM), (1, 0, 2))
        b_hm = b.reshape(NUM_HEADS, 1, HEAD_DIM)
        return w_hm, b_hm

    keys = jax.random.split(key, 5 + NUM_LAYERS)
    params = {
        "word_emb": 0.02 * jax.random.normal(keys[0], (VOCAB, HIDDEN), jnp.float32),
        "pos_emb": 0.02 * jax.random.normal(keys[1], (MAX_POS, HIDDEN), jnp.float32),
        "type_emb": 0.02 * jax.random.normal(keys[2], (TYPE_VOCAB, HIDDEN), jnp.float32),
        "emb_ln": jnp.stack([jnp.ones((HIDDEN,), jnp.float32),
                             jnp.zeros((HIDDEN,), jnp.float32)]),        # (2, H): [g; b]
    }

    wqkv_hm, bqkv_hm, wo_hm, lnb, w1s, b1s, w2s = ([] for _ in range(7))
    ones = jnp.ones((HIDDEN,), jnp.float32)
    zeros = jnp.zeros((HIDDEN,), jnp.float32)
    for l in range(NUM_LAYERS):
        lk = jax.random.split(keys[3 + l], 6)
        wq, bq = dense(lk[0], HIDDEN, HIDDEN)
        wk, bk = dense(lk[1], HIDDEN, HIDDEN)
        wv, bv = dense(lk[2], HIDDEN, HIDDEN)
        wq_hm, bq_hm = head_major(wq, bq, fold_scale=True)   # 1/sqrt(HD) folded into Q
        wk_hm, bk_hm = head_major(wk, bk)
        wv_hm, bv_hm = head_major(wv, bv)
        wqkv_hm.append(jnp.concatenate([wq_hm, wk_hm, wv_hm], axis=0))   # (3*NH, H, HD)
        bqkv_hm.append(jnp.concatenate([bq_hm, bk_hm, bv_hm], axis=0))   # (3*NH, 1, HD)

        wo, bo = dense(lk[3], HIDDEN, HIDDEN)
        wo_hm.append(wo.reshape(NUM_HEADS, HEAD_DIM, HIDDEN))            # (NH, HD, H)

        w1, b1 = dense(lk[4], HIDDEN, INTERMEDIATE)
        w2, b2 = dense(lk[5], INTERMEDIATE, HIDDEN)
        w1s.append(w1)
        b1s.append(b1.reshape(1, INTERMEDIATE))
        w2s.append(w2)
        # Packed per-layer H-wide vectors: [bo, b2, ln1_g, ln1_b, ln2_g, ln2_b].
        lnb.append(jnp.stack([bo, b2, ones, zeros, ones, zeros]))        # (6, H)

    params.update({
        "wqkv_hm": jnp.stack(wqkv_hm).astype(jnp.bfloat16),   # (L, 3*NH, H, HD)
        "bqkv_hm": jnp.stack(bqkv_hm),                        # (L, 3*NH, 1, HD) f32
        "wo_hm":   jnp.stack(wo_hm).astype(jnp.bfloat16),     # (L, NH, HD, H)
        "lnb":     jnp.stack(lnb),                            # (L, 6, H) f32
        "w1":      jnp.stack(w1s).astype(jnp.bfloat16),       # (L, H, I)
        "b1":      jnp.stack(b1s),                            # (L, 1, I) f32
        "w2":      jnp.stack(w2s).astype(jnp.bfloat16),       # (L, I, H)
    })

    pw, pb = dense(keys[3 + NUM_LAYERS], HIDDEN, HIDDEN)
    cw, cb = dense(keys[4 + NUM_LAYERS], HIDDEN, NUM_LABELS)
    params["pool_w"] = pw.astype(jnp.bfloat16)
    params["pool_b"] = pb.reshape(1, HIDDEN)
    # Classifier padded so the kernel's packed output row is a dense 128-lane store.
    pad = OUT_LANES - HIDDEN
    params["cls_w_pad"] = (jnp.zeros((HIDDEN, pad), jnp.float32)
                           .at[:, :NUM_LABELS].set(cw).astype(jnp.bfloat16))
    params["cls_b_pad"] = jnp.zeros((1, pad), jnp.float32).at[0, :NUM_LABELS].set(cb)
    return params


def bert_class_forward(params, ids, mask, token_type_ids):
    B, S = ids.shape

    # Embedding gathers are XLA glue (jnp.take); everything after the summed embedding
    # lookup runs inside the single fused Pallas kernel.
    emb = (jnp.take(params["word_emb"], ids, axis=0)
           + params["pos_emb"][None, :S, :]
           + jnp.take(params["type_emb"], token_type_ids, axis=0)).astype(jnp.float32)

    # HF-style extended attention mask: (1 - mask) * -10000, applied over key positions.
    mask_bias = (1.0 - mask.astype(jnp.float32)) * -10000.0          # (B, S)

    packed = fused_bert_forward(emb, mask_bias, params)              # (B, 128)
    reps = packed[:, :HIDDEN]
    logits = packed[:, HIDDEN:HIDDEN + NUM_LABELS]
    return logits, reps


if __name__ == "__main__":
    key = jax.random.PRNGKey(0)
    pkey, ikey = jax.random.split(key)
    params = init_params(pkey)

    B, S = 2, 8
    ids = jax.random.randint(ikey, (B, S), 0, VOCAB, dtype=jnp.int32)
    mask = jnp.ones((B, S), jnp.int32).at[1, 6:].set(0)              # pad last 2 tokens of ex 1
    token_type_ids = jnp.zeros((B, S), jnp.int32).at[:, S // 2:].set(1)

    logits, reps = jax.jit(bert_class_forward)(params, ids, mask, token_type_ids)
    jax.block_until_ready((logits, reps))
    assert logits.shape == (B, NUM_LABELS) and reps.shape == (B, HIDDEN)
    assert jnp.all(jnp.isfinite(logits)) and jnp.all(jnp.isfinite(reps))
    print("KERNEL_OK")
</pallas_src>

<mosaic_0001>
module attributes {stable_mosaic.version = 11 : i64} {
  func.func @_fused_bert_kernel(%arg0: memref<16x32xf32, #tpu.memory_space<vmem>>, %arg1: memref<8x1x8xf32, #tpu.memory_space<vmem>>, %arg2: memref<2x32xf32, #tpu.memory_space<vmem>>, %arg3: memref<2x24x32x8xbf16, #tpu.memory_space<vmem>>, %arg4: memref<2x24x1x8xf32, #tpu.memory_space<vmem>>, %arg5: memref<2x8x8x32xbf16, #tpu.memory_space<vmem>>, %arg6: memref<2x6x32xf32, #tpu.memory_space<vmem>>, %arg7: memref<2x32x64xbf16, #tpu.memory_space<vmem>>, %arg8: memref<2x1x64xf32, #tpu.memory_space<vmem>>, %arg9: memref<2x64x32xbf16, #tpu.memory_space<vmem>>, %arg10: memref<32x32xbf16, #tpu.memory_space<vmem>>, %arg11: memref<1x32xf32, #tpu.memory_space<vmem>>, %arg12: memref<32x96xbf16, #tpu.memory_space<vmem>>, %arg13: memref<1x96xf32, #tpu.memory_space<vmem>>, %arg14: memref<2x128xf32, #tpu.memory_space<vmem>>) attributes {dimension_semantics = [], scalar_prefetch = 0 : i64, scratch_operands = 0 : i64, tpu.core_type = #tpu.core_type<tc>} {
    %c0 = arith.constant 0 : index
    %c0_0 = arith.constant 0 : index
    %c0_1 = arith.constant 0 : index
    %0 = vector.load %arg1[%c0, %c0_0, %c0_1] : memref<8x1x8xf32, #tpu.memory_space<vmem>>, vector<8x1x8xf32>
    %c0_2 = arith.constant 0 : index
    %c0_3 = arith.constant 0 : index
    %1 = vector.load %arg0[%c0_2, %c0_3] : memref<16x32xf32, #tpu.memory_space<vmem>>, vector<16x32xf32>
    %c0_4 = arith.constant 0 : index
    %c0_5 = arith.constant 0 : index
    %2 = vector.load %arg2[%c0_4, %c0_5] : memref<2x32xf32, #tpu.memory_space<vmem>>, vector<1x32xf32>
    %c1 = arith.constant 1 : index
    %c0_6 = arith.constant 0 : index
    %3 = vector.load %arg2[%c1, %c0_6] : memref<2x32xf32, #tpu.memory_space<vmem>>, vector<1x32xf32>
    %cst = arith.constant dense<0.000000e+00> : vector<16xf32>
    %4 = vector.multi_reduction <add>, %1, %cst [1] : vector<16x32xf32> to vector<16xf32>
    %5 = vector.shape_cast %4 : vector<16xf32> to vector<16x1xf32>
    %cst_7 = arith.constant 3.200000e+01 : f32
    %6 = vector.broadcast %cst_7 : f32 to vector<16x1xf32>
    %7 = arith.divf %5, %6 : vector<16x1xf32>
    %8 = vector.broadcast %7 : vector<16x1xf32> to vector<16x32xf32>
    %9 = arith.subf %1, %8 : vector<16x32xf32>
    %10 = arith.mulf %9, %9 : vector<16x32xf32>
    %cst_8 = arith.constant dense<0.000000e+00> : vector<16xf32>
    %11 = vector.multi_reduction <add>, %10, %cst_8 [1] : vector<16x32xf32> to vector<16xf32>
    %12 = vector.shape_cast %11 : vector<16xf32> to vector<16x1xf32>
    %cst_9 = arith.constant 3.200000e+01 : f32
    %13 = vector.broadcast %cst_9 : f32 to vector<16x1xf32>
    %14 = arith.divf %12, %13 : vector<16x1xf32>
    %cst_10 = arith.constant 9.99999996E-13 : f32
    %15 = vector.broadcast %cst_10 : f32 to vector<16x1xf32>
    %16 = arith.addf %14, %15 : vector<16x1xf32>
    %17 = math.rsqrt %16 : vector<16x1xf32>
    %18 = vector.broadcast %17 : vector<16x1xf32> to vector<16x32xf32>
    %19 = arith.mulf %9, %18 : vector<16x32xf32>
    %20 = vector.broadcast %2 : vector<1x32xf32> to vector<16x32xf32>
    %21 = arith.mulf %19, %20 : vector<16x32xf32>
    %22 = vector.broadcast %3 : vector<1x32xf32> to vector<16x32xf32>
    %23 = arith.addf %21, %22 : vector<16x32xf32>
    %24 = vector.shape_cast %23 : vector<16x32xf32> to vector<2x8x32xf32>
    %25 = vector.shape_cast %24 : vector<2x8x32xf32> to vector<2x1x8x32xf32>
    %26 = vector.shape_cast %25 : vector<2x1x8x32xf32> to vector<2x1x8x32xf32>
    %27 = vector.broadcast %26 : vector<2x1x8x32xf32> to vector<2x4x8x32xf32>
    %28 = vector.shape_cast %27 : vector<2x4x8x32xf32> to vector<8x8x32xf32>
    %29 = arith.truncf %28 : vector<8x8x32xf32> to vector<8x8x32xbf16>
    %c0_11 = arith.constant 0 : index
    %c0_12 = arith.constant 0 : index
    %c0_13 = arith.constant 0 : index
    %c0_14 = arith.constant 0 : index
    %30 = vector.load %arg3[%c0_11, %c0_12, %c0_13, %c0_14] : memref<2x24x32x8xbf16, #tpu.memory_space<vmem>>, vector<1x8x32x8xbf16>
    %31 = vector.shape_cast %30 : vector<1x8x32x8xbf16> to vector<8x32x8xbf16>
    %c0_15 = arith.constant 0 : index
    %c8 = arith.constant 8 : index
    %c0_16 = arith.constant 0 : index
    %c0_17 = arith.constant 0 : index
    %32 = vector.load %arg3[%c0_15, %c8, %c0_16, %c0_17] : memref<2x24x32x8xbf16, #tpu.memory_space<vmem>>, vector<1x8x32x8xbf16>
    %33 = vector.shape_cast %32 : vector<1x8x32x8xbf16> to vector<8x32x8xbf16>
    %c0_18 = arith.constant 0 : index
    %c16 = arith.constant 16 : index
    %c0_19 = arith.constant 0 : index
    %c0_20 = arith.constant 0 : index
    %34 = vector.load %arg3[%c0_18, %c16, %c0_19, %c0_20] : memref<2x24x32x8xbf16, #tpu.memory_space<vmem>>, vector<1x8x32x8xbf16>
    %35 = vector.shape_cast %34 : vector<1x8x32x8xbf16> to vector<8x32x8xbf16>
    %c0_21 = arith.constant 0 : index
    %c0_22 = arith.constant 0 : index
    %c0_23 = arith.constant 0 : index
    %c0_24 = arith.constant 0 : index
    %36 = vector.load %arg4[%c0_21, %c0_22, %c0_23, %c0_24] : memref<2x24x1x8xf32, #tpu.memory_space<vmem>>, vector<1x8x1x8xf32>
    %37 = vector.shape_cast %36 : vector<1x8x1x8xf32> to vector<8x1x8xf32>
    %c0_25 = arith.constant 0 : index
    %c8_26 = arith.constant 8 : index
    %c0_27 = arith.constant 0 : index
    %c0_28 = arith.constant 0 : index
    %38 = vector.load %arg4[%c0_25, %c8_26, %c0_27, %c0_28] : memref<2x24x1x8xf32, #tpu.memory_space<vmem>>, vector<1x8x1x8xf32>
    %39 = vector.shape_cast %38 : vector<1x8x1x8xf32> to vector<8x1x8xf32>
    %c0_29 = arith.constant 0 : index
    %c16_30 = arith.constant 16 : index
    %c0_31 = arith.constant 0 : index
    %c0_32 = arith.constant 0 : index
    %40 = vector.load %arg4[%c0_29, %c16_30, %c0_31, %c0_32] : memref<2x24x1x8xf32, #tpu.memory_space<vmem>>, vector<1x8x1x8xf32>
    %41 = vector.shape_cast %40 : vector<1x8x1x8xf32> to vector<8x1x8xf32>
    "tpu.trace_start"() <{level = 10 : i32, message = "nsh,nhd->nsd"}> : () -> ()
    %cst_33 = arith.constant dense<0.000000e+00> : vector<8x8x8xf32>
    %42 = tpu.matmul %29, %31, %cst_33 {dimension_numbers = #tpu.dot_dimension_numbers<[2], [1], [1], [2], [0, 0, 0, 1, 1, 2], [0], [0]>} : vector<8x8x32xbf16>, vector<8x32x8xbf16>, vector<8x8x8xf32> -> vector<8x8x8xf32>
    "tpu.trace_stop"() : () -> ()
    %43 = vector.broadcast %37 : vector<8x1x8xf32> to vector<8x8x8xf32>
    %44 = arith.addf %42, %43 : vector<8x8x8xf32>
    "tpu.trace_start"() <{level = 10 : i32, message = "nsh,nhd->nsd"}> : () -> ()
    %cst_34 = arith.constant dense<0.000000e+00> : vector<8x8x8xf32>
    %45 = tpu.matmul %29, %33, %cst_34 {dimension_numbers = #tpu.dot_dimension_numbers<[2], [1], [1], [2], [0, 0, 0, 1, 1, 2], [0], [0]>} : vector<8x8x32xbf16>, vector<8x32x8xbf16>, vector<8x8x8xf32> -> vector<8x8x8xf32>
    "tpu.trace_stop"() : () -> ()
    %46 = vector.broadcast %39 : vector<8x1x8xf32> to vector<8x8x8xf32>
    %47 = arith.addf %45, %46 : vector<8x8x8xf32>
    "tpu.trace_start"() <{level = 10 : i32, message = "nsh,nhd->nsd"}> : () -> ()
    %cst_35 = arith.constant dense<0.000000e+00> : vector<8x8x8xf32>
    %48 = tpu.matmul %29, %35, %cst_35 {dimension_numbers = #tpu.dot_dimension_numbers<[2], [1], [1], [2], [0, 0, 0, 1, 1, 2], [0], [0]>} : vector<8x8x32xbf16>, vector<8x32x8xbf16>, vector<8x8x8xf32> -> vector<8x8x8xf32>
    "tpu.trace_stop"() : () -> ()
    %49 = vector.broadcast %41 : vector<8x1x8xf32> to vector<8x8x8xf32>
    %50 = arith.addf %48, %49 : vector<8x8x8xf32>
    %51 = arith.truncf %44 : vector<8x8x8xf32> to vector<8x8x8xbf16>
    %52 = arith.truncf %47 : vector<8x8x8xf32> to vector<8x8x8xbf16>
    "tpu.trace_start"() <{level = 10 : i32, message = "nqd,nkd->nqk"}> : () -> ()
    %cst_36 = arith.constant dense<0.000000e+00> : vector<8x8x8xf32>
    %53 = tpu.matmul %51, %52, %cst_36 {dimension_numbers = #tpu.dot_dimension_numbers<[2], [2], [1], [1], [0, 0, 0, 1, 1, 1], [0], [0]>} : vector<8x8x8xbf16>, vector<8x8x8xbf16>, vector<8x8x8xf32> -> vector<8x8x8xf32>
    "tpu.trace_stop"() : () -> ()
    %54 = vector.broadcast %0 : vector<8x1x8xf32> to vector<8x8x8xf32>
    %55 = arith.addf %53, %54 : vector<8x8x8xf32>
    %cst_37 = arith.constant dense<0xFF800000> : vector<8x8xf32>
    %56 = vector.multi_reduction <maximumf>, %55, %cst_37 [2] : vector<8x8x8xf32> to vector<8x8xf32>
    %57 = vector.shape_cast %56 : vector<8x8xf32> to vector<8x8x1xf32>
    %58 = vector.broadcast %57 : vector<8x8x1xf32> to vector<8x8x8xf32>
    %59 = arith.subf %55, %58 : vector<8x8x8xf32>
    %60 = math.exp %59 : vector<8x8x8xf32>
    %cst_38 = arith.constant dense<0.000000e+00> : vector<8x8xf32>
    %61 = vector.multi_reduction <add>, %60, %cst_38 [2] : vector<8x8x8xf32> to vector<8x8xf32>
    %62 = vector.shape_cast %61 : vector<8x8xf32> to vector<8x8x1xf32>
    %63 = tpu.reciprocal %62 {approx = true} : vector<8x8x1xf32> -> vector<8x8x1xf32>
    %64 = vector.broadcast %63 : vector<8x8x1xf32> to vector<8x8x8xf32>
    %65 = arith.mulf %60, %64 : vector<8x8x8xf32>
    %66 = arith.truncf %65 : vector<8x8x8xf32> to vector<8x8x8xbf16>
    %67 = arith.truncf %50 : vector<8x8x8xf32> to vector<8x8x8xbf16>
    "tpu.trace_start"() <{level = 10 : i32, message = "nqk,nkd->nqd"}> : () -> ()
    %cst_39 = arith.constant dense<0.000000e+00> : vector<8x8x8xf32>
    %68 = tpu.matmul %66, %67, %cst_39 {dimension_numbers = #tpu.dot_dimension_numbers<[2], [1], [1], [2], [0, 0, 0, 1, 1, 2], [0], [0]>} : vector<8x8x8xbf16>, vector<8x8x8xbf16>, vector<8x8x8xf32> -> vector<8x8x8xf32>
    "tpu.trace_stop"() : () -> ()
    %69 = arith.truncf %68 : vector<8x8x8xf32> to vector<8x8x8xbf16>
    %c0_40 = arith.constant 0 : index
    %c0_41 = arith.constant 0 : index
    %c0_42 = arith.constant 0 : index
    %c0_43 = arith.constant 0 : index
    %70 = vector.load %arg5[%c0_40, %c0_41, %c0_42, %c0_43] : memref<2x8x8x32xbf16, #tpu.memory_space<vmem>>, vector<1x8x8x32xbf16>
    %71 = vector.shape_cast %70 : vector<1x8x8x32xbf16> to vector<8x8x32xbf16>
    "tpu.trace_start"() <{level = 10 : i32, message = "nsd,nde->nse"}> : () -> ()
    %cst_44 = arith.constant dense<0.000000e+00> : vector<8x8x32xf32>
    %72 = tpu.matmul %69, %71, %cst_44 {dimension_numbers = #tpu.dot_dimension_numbers<[2], [1], [1], [2], [0, 0, 0, 1, 1, 2], [0], [0]>} : vector<8x8x8xbf16>, vector<8x8x32xbf16>, vector<8x8x32xf32> -> vector<8x8x32xf32>
    "tpu.trace_stop"() : () -> ()
    %73 = vector.shape_cast %72 : vector<8x8x32xf32> to vector<2x4x8x32xf32>
    %74 = vector.extract_strided_slice %73 {offsets = [0, 0, 0, 0], sizes = [2, 1, 8, 32], strides = [1, 1, 1, 1]} : vector<2x4x8x32xf32> to vector<2x1x8x32xf32>
    %75 = vector.shape_cast %74 : vector<2x1x8x32xf32> to vector<2x8x32xf32>
    %76 = vector.extract_strided_slice %73 {offsets = [0, 1, 0, 0], sizes = [2, 1, 8, 32], strides = [1, 1, 1, 1]} : vector<2x4x8x32xf32> to vector<2x1x8x32xf32>
    %77 = vector.shape_cast %76 : vector<2x1x8x32xf32> to vector<2x8x32xf32>
    %78 = arith.addf %75, %77 : vector<2x8x32xf32>
    %79 = vector.extract_strided_slice %73 {offsets = [0, 2, 0, 0], sizes = [2, 1, 8, 32], strides = [1, 1, 1, 1]} : vector<2x4x8x32xf32> to vector<2x1x8x32xf32>
    %80 = vector.shape_cast %79 : vector<2x1x8x32xf32> to vector<2x8x32xf32>
    %81 = arith.addf %78, %80 : vector<2x8x32xf32>
    %82 = vector.extract_strided_slice %73 {offsets = [0, 3, 0, 0], sizes = [2, 1, 8, 32], strides = [1, 1, 1, 1]} : vector<2x4x8x32xf32> to vector<2x1x8x32xf32>
    %83 = vector.shape_cast %82 : vector<2x1x8x32xf32> to vector<2x8x32xf32>
    %84 = arith.addf %81, %83 : vector<2x8x32xf32>
    %85 = vector.shape_cast %84 : vector<2x8x32xf32> to vector<16x32xf32>
    %c0_45 = arith.constant 0 : index
    %c0_46 = arith.constant 0 : index
    %c0_47 = arith.constant 0 : index
    %86 = vector.load %arg6[%c0_45, %c0_46, %c0_47] : memref<2x6x32xf32, #tpu.memory_space<vmem>>, vector<1x1x32xf32>
    %87 = vector.shape_cast %86 : vector<1x1x32xf32> to vector<1x32xf32>
    %88 = vector.broadcast %87 : vector<1x32xf32> to vector<16x32xf32>
    %89 = arith.addf %85, %88 : vector<16x32xf32>
    %90 = arith.addf %89, %23 : vector<16x32xf32>
    %c0_48 = arith.constant 0 : index
    %c2 = arith.constant 2 : index
    %c0_49 = arith.constant 0 : index
    %91 = vector.load %arg6[%c0_48, %c2, %c0_49] : memref<2x6x32xf32, #tpu.memory_space<vmem>>, vector<1x1x32xf32>
    %92 = vector.shape_cast %91 : vector<1x1x32xf32> to vector<1x32xf32>
    %c0_50 = arith.constant 0 : index
    %c3 = arith.constant 3 : index
    %c0_51 = arith.constant 0 : index
    %93 = vector.load %arg6[%c0_50, %c3, %c0_51] : memref<2x6x32xf32, #tpu.memory_space<vmem>>, vector<1x1x32xf32>
    %94 = vector.shape_cast %93 : vector<1x1x32xf32> to vector<1x32xf32>
    %cst_52 = arith.constant dense<0.000000e+00> : vector<16xf32>
    %95 = vector.multi_reduction <add>, %90, %cst_52 [1] : vector<16x32xf32> to vector<16xf32>
    %96 = vector.shape_cast %95 : vector<16xf32> to vector<16x1xf32>
    %cst_53 = arith.constant 3.200000e+01 : f32
    %97 = vector.broadcast %cst_53 : f32 to vector<16x1xf32>
    %98 = arith.divf %96, %97 : vector<16x1xf32>
    %99 = vector.broadcast %98 : vector<16x1xf32> to vector<16x32xf32>
    %100 = arith.subf %90, %99 : vector<16x32xf32>
    %101 = arith.mulf %100, %100 : vector<16x32xf32>
    %cst_54 = arith.constant dense<0.000000e+00> : vector<16xf32>
    %102 = vector.multi_reduction <add>, %101, %cst_54 [1] : vector<16x32xf32> to vector<16xf32>
    %103 = vector.shape_cast %102 : vector<16xf32> to vector<16x1xf32>
    %cst_55 = arith.constant 3.200000e+01 : f32
    %104 = vector.broadcast %cst_55 : f32 to vector<16x1xf32>
    %105 = arith.divf %103, %104 : vector<16x1xf32>
    %cst_56 = arith.constant 9.99999996E-13 : f32
    %106 = vector.broadcast %cst_56 : f32 to vector<16x1xf32>
    %107 = arith.addf %105, %106 : vector<16x1xf32>
    %108 = math.rsqrt %107 : vector<16x1xf32>
    %109 = vector.broadcast %108 : vector<16x1xf32> to vector<16x32xf32>
    %110 = arith.mulf %100, %109 : vector<16x32xf32>
    %111 = vector.broadcast %92 : vector<1x32xf32> to vector<16x32xf32>
    %112 = arith.mulf %110, %111 : vector<16x32xf32>
    %113 = vector.broadcast %94 : vector<1x32xf32> to vector<16x32xf32>
    %114 = arith.addf %112, %113 : vector<16x32xf32>
    %115 = arith.truncf %114 : vector<16x32xf32> to vector<16x32xbf16>
    %c0_57 = arith.constant 0 : index
    %c0_58 = arith.constant 0 : index
    %c0_59 = arith.constant 0 : index
    %116 = vector.load %arg7[%c0_57, %c0_58, %c0_59] : memref<2x32x64xbf16, #tpu.memory_space<vmem>>, vector<1x32x64xbf16>
    %117 = vector.shape_cast %116 : vector<1x32x64xbf16> to vector<32x64xbf16>
    %cst_60 = arith.constant dense<0.000000e+00> : vector<16x64xf32>
    %118 = tpu.matmul %115, %117, %cst_60 {dimension_numbers = #tpu.dot_dimension_numbers<[1], [0], [0], [1], [0, 0, 1, 1], [], []>} : vector<16x32xbf16>, vector<32x64xbf16>, vector<16x64xf32> -> vector<16x64xf32>
    %c0_61 = arith.constant 0 : index
    %c0_62 = arith.constant 0 : index
    %c0_63 = arith.constant 0 : index
    %119 = vector.load %arg8[%c0_61, %c0_62, %c0_63] : memref<2x1x64xf32, #tpu.memory_space<vmem>>, vector<1x1x64xf32>
    %120 = vector.shape_cast %119 : vector<1x1x64xf32> to vector<1x64xf32>
    %121 = vector.broadcast %120 : vector<1x64xf32> to vector<16x64xf32>
    %122 = arith.addf %118, %121 : vector<16x64xf32>
    %cst_64 = arith.constant 5.000000e-01 : f32
    %123 = vector.broadcast %cst_64 : f32 to vector<16x64xf32>
    %124 = arith.mulf %123, %122 : vector<16x64xf32>
    %cst_65 = arith.constant 4.471500e-02 : f32
    %125 = vector.broadcast %cst_65 : f32 to vector<16x64xf32>
    %126 = arith.mulf %125, %122 : vector<16x64xf32>
    %127 = arith.mulf %126, %122 : vector<16x64xf32>
    %128 = arith.mulf %127, %122 : vector<16x64xf32>
    %129 = arith.addf %122, %128 : vector<16x64xf32>
    %cst_66 = arith.constant 0.797884583 : f32
    %130 = vector.broadcast %cst_66 : f32 to vector<16x64xf32>
    %131 = arith.mulf %130, %129 : vector<16x64xf32>
    %132 = math.tanh %131 : vector<16x64xf32>
    %cst_67 = arith.constant 1.000000e+00 : f32
    %133 = vector.broadcast %cst_67 : f32 to vector<16x64xf32>
    %134 = arith.addf %133, %132 : vector<16x64xf32>
    %135 = arith.mulf %124, %134 : vector<16x64xf32>
    %136 = arith.truncf %135 : vector<16x64xf32> to vector<16x64xbf16>
    %c0_68 = arith.constant 0 : index
    %c0_69 = arith.constant 0 : index
    %c0_70 = arith.constant 0 : index
    %137 = vector.load %arg9[%c0_68, %c0_69, %c0_70] : memref<2x64x32xbf16, #tpu.memory_space<vmem>>, vector<1x64x32xbf16>
    %138 = vector.shape_cast %137 : vector<1x64x32xbf16> to vector<64x32xbf16>
    %cst_71 = arith.constant dense<0.000000e+00> : vector<16x32xf32>
    %139 = tpu.matmul %136, %138, %cst_71 {dimension_numbers = #tpu.dot_dimension_numbers<[1], [0], [0], [1], [0, 0, 1, 1], [], []>} : vector<16x64xbf16>, vector<64x32xbf16>, vector<16x32xf32> -> vector<16x32xf32>
    %c0_72 = arith.constant 0 : index
    %c1_73 = arith.constant 1 : index
    %c0_74 = arith.constant 0 : index
    %140 = vector.load %arg6[%c0_72, %c1_73, %c0_74] : memref<2x6x32xf32, #tpu.memory_space<vmem>>, vector<1x1x32xf32>
    %141 = vector.shape_cast %140 : vector<1x1x32xf32> to vector<1x32xf32>
    %142 = vector.broadcast %141 : vector<1x32xf32> to vector<16x32xf32>
    %143 = arith.addf %139, %142 : vector<16x32xf32>
    %144 = arith.addf %143, %114 : vector<16x32xf32>
    %c0_75 = arith.constant 0 : index
    %c4 = arith.constant 4 : index
    %c0_76 = arith.constant 0 : index
    %145 = vector.load %arg6[%c0_75, %c4, %c0_76] : memref<2x6x32xf32, #tpu.memory_space<vmem>>, vector<1x1x32xf32>
    %146 = vector.shape_cast %145 : vector<1x1x32xf32> to vector<1x32xf32>
    %c0_77 = arith.constant 0 : index
    %c5 = arith.constant 5 : index
    %c0_78 = arith.constant 0 : index
    %147 = vector.load %arg6[%c0_77, %c5, %c0_78] : memref<2x6x32xf32, #tpu.memory_space<vmem>>, vector<1x1x32xf32>
    %148 = vector.shape_cast %147 : vector<1x1x32xf32> to vector<1x32xf32>
    %cst_79 = arith.constant dense<0.000000e+00> : vector<16xf32>
    %149 = vector.multi_reduction <add>, %144, %cst_79 [1] : vector<16x32xf32> to vector<16xf32>
    %150 = vector.shape_cast %149 : vector<16xf32> to vector<16x1xf32>
    %cst_80 = arith.constant 3.200000e+01 : f32
    %151 = vector.broadcast %cst_80 : f32 to vector<16x1xf32>
    %152 = arith.divf %150, %151 : vector<16x1xf32>
    %153 = vector.broadcast %152 : vector<16x1xf32> to vector<16x32xf32>
    %154 = arith.subf %144, %153 : vector<16x32xf32>
    %155 = arith.mulf %154, %154 : vector<16x32xf32>
    %cst_81 = arith.constant dense<0.000000e+00> : vector<16xf32>
    %156 = vector.multi_reduction <add>, %155, %cst_81 [1] : vector<16x32xf32> to vector<16xf32>
    %157 = vector.shape_cast %156 : vector<16xf32> to vector<16x1xf32>
    %cst_82 = arith.constant 3.200000e+01 : f32
    %158 = vector.broadcast %cst_82 : f32 to vector<16x1xf32>
    %159 = arith.divf %157, %158 : vector<16x1xf32>
    %cst_83 = arith.constant 9.99999996E-13 : f32
    %160 = vector.broadcast %cst_83 : f32 to vector<16x1xf32>
    %161 = arith.addf %159, %160 : vector<16x1xf32>
    %162 = math.rsqrt %161 : vector<16x1xf32>
    %163 = vector.broadcast %162 : vector<16x1xf32> to vector<16x32xf32>
    %164 = arith.mulf %154, %163 : vector<16x32xf32>
    %165 = vector.broadcast %146 : vector<1x32xf32> to vector<16x32xf32>
    %166 = arith.mulf %164, %165 : vector<16x32xf32>
    %167 = vector.broadcast %148 : vector<1x32xf32> to vector<16x32xf32>
    %168 = arith.addf %166, %167 : vector<16x32xf32>
    %169 = vector.shape_cast %168 : vector<16x32xf32> to vector<2x8x32xf32>
    %170 = vector.shape_cast %169 : vector<2x8x32xf32> to vector<2x1x8x32xf32>
    %171 = vector.shape_cast %170 : vector<2x1x8x32xf32> to vector<2x1x8x32xf32>
    %172 = vector.broadcast %171 : vector<2x1x8x32xf32> to vector<2x4x8x32xf32>
    %173 = vector.shape_cast %172 : vector<2x4x8x32xf32> to vector<8x8x32xf32>
    %174 = arith.truncf %173 : vector<8x8x32xf32> to vector<8x8x32xbf16>
    %c1_84 = arith.constant 1 : index
    %c0_85 = arith.constant 0 : index
    %c0_86 = arith.constant 0 : index
    %c0_87 = arith.constant 0 : index
    %175 = vector.load %arg3[%c1_84, %c0_85, %c0_86, %c0_87] : memref<2x24x32x8xbf16, #tpu.memory_space<vmem>>, vector<1x8x32x8xbf16>
    %176 = vector.shape_cast %175 : vector<1x8x32x8xbf16> to vector<8x32x8xbf16>
    %c1_88 = arith.constant 1 : index
    %c8_89 = arith.constant 8 : index
    %c0_90 = arith.constant 0 : index
    %c0_91 = arith.constant 0 : index
    %177 = vector.load %arg3[%c1_88, %c8_89, %c0_90, %c0_91] : memref<2x24x32x8xbf16, #tpu.memory_space<vmem>>, vector<1x8x32x8xbf16>
    %178 = vector.shape_cast %177 : vector<1x8x32x8xbf16> to vector<8x32x8xbf16>
    %c1_92 = arith.constant 1 : index
    %c16_93 = arith.constant 16 : index
    %c0_94 = arith.constant 0 : index
    %c0_95 = arith.constant 0 : index
    %179 = vector.load %arg3[%c1_92, %c16_93, %c0_94, %c0_95] : memref<2x24x32x8xbf16, #tpu.memory_space<vmem>>, vector<1x8x32x8xbf16>
    %180 = vector.shape_cast %179 : vector<1x8x32x8xbf16> to vector<8x32x8xbf16>
    %c1_96 = arith.constant 1 : index
    %c0_97 = arith.constant 0 : index
    %c0_98 = arith.constant 0 : index
    %c0_99 = arith.constant 0 : index
    %181 = vector.load %arg4[%c1_96, %c0_97, %c0_98, %c0_99] : memref<2x24x1x8xf32, #tpu.memory_space<vmem>>, vector<1x8x1x8xf32>
    %182 = vector.shape_cast %181 : vector<1x8x1x8xf32> to vector<8x1x8xf32>
    %c1_100 = arith.constant 1 : index
    %c8_101 = arith.constant 8 : index
    %c0_102 = arith.constant 0 : index
    %c0_103 = arith.constant 0 : index
    %183 = vector.load %arg4[%c1_100, %c8_101, %c0_102, %c0_103] : memref<2x24x1x8xf32, #tpu.memory_space<vmem>>, vector<1x8x1x8xf32>
    %184 = vector.shape_cast %183 : vector<1x8x1x8xf32> to vector<8x1x8xf32>
    %c1_104 = arith.constant 1 : index
    %c16_105 = arith.constant 16 : index
    %c0_106 = arith.constant 0 : index
    %c0_107 = arith.constant 0 : index
    %185 = vector.load %arg4[%c1_104, %c16_105, %c0_106, %c0_107] : memref<2x24x1x8xf32, #tpu.memory_space<vmem>>, vector<1x8x1x8xf32>
    %186 = vector.shape_cast %185 : vector<1x8x1x8xf32> to vector<8x1x8xf32>
    "tpu.trace_start"() <{level = 10 : i32, message = "nsh,nhd->nsd"}> : () -> ()
    %cst_108 = arith.constant dense<0.000000e+00> : vector<8x8x8xf32>
    %187 = tpu.matmul %174, %176, %cst_108 {dimension_numbers = #tpu.dot_dimension_numbers<[2], [1], [1], [2], [0, 0, 0, 1, 1, 2], [0], [0]>} : vector<8x8x32xbf16>, vector<8x32x8xbf16>, vector<8x8x8xf32> -> vector<8x8x8xf32>
    "tpu.trace_stop"() : () -> ()
    %188 = vector.broadcast %182 : vector<8x1x8xf32> to vector<8x8x8xf32>
    %189 = arith.addf %187, %188 : vector<8x8x8xf32>
    "tpu.trace_start"() <{level = 10 : i32, message = "nsh,nhd->nsd"}> : () -> ()
    %cst_109 = arith.constant dense<0.000000e+00> : vector<8x8x8xf32>
    %190 = tpu.matmul %174, %178, %cst_109 {dimension_numbers = #tpu.dot_dimension_numbers<[2], [1], [1], [2], [0, 0, 0, 1, 1, 2], [0], [0]>} : vector<8x8x32xbf16>, vector<8x32x8xbf16>, vector<8x8x8xf32> -> vector<8x8x8xf32>
    "tpu.trace_stop"() : () -> ()
    %191 = vector.broadcast %184 : vector<8x1x8xf32> to vector<8x8x8xf32>
    %192 = arith.addf %190, %191 : vector<8x8x8xf32>
    "tpu.trace_start"() <{level = 10 : i32, message = "nsh,nhd->nsd"}> : () -> ()
    %cst_110 = arith.constant dense<0.000000e+00> : vector<8x8x8xf32>
    %193 = tpu.matmul %174, %180, %cst_110 {dimension_numbers = #tpu.dot_dimension_numbers<[2], [1], [1], [2], [0, 0, 0, 1, 1, 2], [0], [0]>} : vector<8x8x32xbf16>, vector<8x32x8xbf16>, vector<8x8x8xf32> -> vector<8x8x8xf32>
    "tpu.trace_stop"() : () -> ()
    %194 = vector.broadcast %186 : vector<8x1x8xf32> to vector<8x8x8xf32>
    %195 = arith.addf %193, %194 : vector<8x8x8xf32>
    %196 = arith.truncf %189 : vector<8x8x8xf32> to vector<8x8x8xbf16>
    %197 = arith.truncf %192 : vector<8x8x8xf32> to vector<8x8x8xbf16>
    "tpu.trace_start"() <{level = 10 : i32, message = "nqd,nkd->nqk"}> : () -> ()
    %cst_111 = arith.constant dense<0.000000e+00> : vector<8x8x8xf32>
    %198 = tpu.matmul %196, %197, %cst_111 {dimension_numbers = #tpu.dot_dimension_numbers<[2], [2], [1], [1], [0, 0, 0, 1, 1, 1], [0], [0]>} : vector<8x8x8xbf16>, vector<8x8x8xbf16>, vector<8x8x8xf32> -> vector<8x8x8xf32>
    "tpu.trace_stop"() : () -> ()
    %199 = vector.broadcast %0 : vector<8x1x8xf32> to vector<8x8x8xf32>
    %200 = arith.addf %198, %199 : vector<8x8x8xf32>
    %cst_112 = arith.constant dense<0xFF800000> : vector<8x8xf32>
    %201 = vector.multi_reduction <maximumf>, %200, %cst_112 [2] : vector<8x8x8xf32> to vector<8x8xf32>
    %202 = vector.shape_cast %201 : vector<8x8xf32> to vector<8x8x1xf32>
    %203 = vector.broadcast %202 : vector<8x8x1xf32> to vector<8x8x8xf32>
    %204 = arith.subf %200, %203 : vector<8x8x8xf32>
    %205 = math.exp %204 : vector<8x8x8xf32>
    %cst_113 = arith.constant dense<0.000000e+00> : vector<8x8xf32>
    %206 = vector.multi_reduction <add>, %205, %cst_113 [2] : vector<8x8x8xf32> to vector<8x8xf32>
    %207 = vector.shape_cast %206 : vector<8x8xf32> to vector<8x8x1xf32>
    %208 = tpu.reciprocal %207 {approx = true} : vector<8x8x1xf32> -> vector<8x8x1xf32>
    %209 = vector.broadcast %208 : vector<8x8x1xf32> to vector<8x8x8xf32>
    %210 = arith.mulf %205, %209 : vector<8x8x8xf32>
    %211 = arith.truncf %210 : vector<8x8x8xf32> to vector<8x8x8xbf16>
    %212 = arith.truncf %195 : vector<8x8x8xf32> to vector<8x8x8xbf16>
    "tpu.trace_start"() <{level = 10 : i32, message = "nqk,nkd->nqd"}> : () -> ()
    %cst_114 = arith.constant dense<0.000000e+00> : vector<8x8x8xf32>
    %213 = tpu.matmul %211, %212, %cst_114 {dimension_numbers = #tpu.dot_dimension_numbers<[2], [1], [1], [2], [0, 0, 0, 1, 1, 2], [0], [0]>} : vector<8x8x8xbf16>, vector<8x8x8xbf16>, vector<8x8x8xf32> -> vector<8x8x8xf32>
    "tpu.trace_stop"() : () -> ()
    %214 = arith.truncf %213 : vector<8x8x8xf32> to vector<8x8x8xbf16>
    %c1_115 = arith.constant 1 : index
    %c0_116 = arith.constant 0 : index
    %c0_117 = arith.constant 0 : index
    %c0_118 = arith.constant 0 : index
    %215 = vector.load %arg5[%c1_115, %c0_116, %c0_117, %c0_118] : memref<2x8x8x32xbf16, #tpu.memory_space<vmem>>, vector<1x8x8x32xbf16>
    %216 = vector.shape_cast %215 : vector<1x8x8x32xbf16> to vector<8x8x32xbf16>
    "tpu.trace_start"() <{level = 10 : i32, message = "nsd,nde->nse"}> : () -> ()
    %cst_119 = arith.constant dense<0.000000e+00> : vector<8x8x32xf32>
    %217 = tpu.matmul %214, %216, %cst_119 {dimension_numbers = #tpu.dot_dimension_numbers<[2], [1], [1], [2], [0, 0, 0, 1, 1, 2], [0], [0]>} : vector<8x8x8xbf16>, vector<8x8x32xbf16>, vector<8x8x32xf32> -> vector<8x8x32xf32>
    "tpu.trace_stop"() : () -> ()
    %218 = vector.shape_cast %217 : vector<8x8x32xf32> to vector<2x4x8x32xf32>
    %219 = vector.extract_strided_slice %218 {offsets = [0, 0, 0, 0], sizes = [2, 1, 8, 32], strides = [1, 1, 1, 1]} : vector<2x4x8x32xf32> to vector<2x1x8x32xf32>
    %220 = vector.shape_cast %219 : vector<2x1x8x32xf32> to vector<2x8x32xf32>
    %221 = vector.extract_strided_slice %218 {offsets = [0, 1, 0, 0], sizes = [2, 1, 8, 32], strides = [1, 1, 1, 1]} : vector<2x4x8x32xf32> to vector<2x1x8x32xf32>
    %222 = vector.shape_cast %221 : vector<2x1x8x32xf32> to vector<2x8x32xf32>
    %223 = arith.addf %220, %222 : vector<2x8x32xf32>
    %224 = vector.extract_strided_slice %218 {offsets = [0, 2, 0, 0], sizes = [2, 1, 8, 32], strides = [1, 1, 1, 1]} : vector<2x4x8x32xf32> to vector<2x1x8x32xf32>
    %225 = vector.shape_cast %224 : vector<2x1x8x32xf32> to vector<2x8x32xf32>
    %226 = arith.addf %223, %225 : vector<2x8x32xf32>
    %227 = vector.extract_strided_slice %218 {offsets = [0, 3, 0, 0], sizes = [2, 1, 8, 32], strides = [1, 1, 1, 1]} : vector<2x4x8x32xf32> to vector<2x1x8x32xf32>
    %228 = vector.shape_cast %227 : vector<2x1x8x32xf32> to vector<2x8x32xf32>
    %229 = arith.addf %226, %228 : vector<2x8x32xf32>
    %230 = vector.shape_cast %229 : vector<2x8x32xf32> to vector<16x32xf32>
    %c1_120 = arith.constant 1 : index
    %c0_121 = arith.constant 0 : index
    %c0_122 = arith.constant 0 : index
    %231 = vector.load %arg6[%c1_120, %c0_121, %c0_122] : memref<2x6x32xf32, #tpu.memory_space<vmem>>, vector<1x1x32xf32>
    %232 = vector.shape_cast %231 : vector<1x1x32xf32> to vector<1x32xf32>
    %233 = vector.broadcast %232 : vector<1x32xf32> to vector<16x32xf32>
    %234 = arith.addf %230, %233 : vector<16x32xf32>
    %235 = arith.addf %234, %168 : vector<16x32xf32>
    %c1_123 = arith.constant 1 : index
    %c2_124 = arith.constant 2 : index
    %c0_125 = arith.constant 0 : index
    %236 = vector.load %arg6[%c1_123, %c2_124, %c0_125] : memref<2x6x32xf32, #tpu.memory_space<vmem>>, vector<1x1x32xf32>
    %237 = vector.shape_cast %236 : vector<1x1x32xf32> to vector<1x32xf32>
    %c1_126 = arith.constant 1 : index
    %c3_127 = arith.constant 3 : index
    %c0_128 = arith.constant 0 : index
    %238 = vector.load %arg6[%c1_126, %c3_127, %c0_128] : memref<2x6x32xf32, #tpu.memory_space<vmem>>, vector<1x1x32xf32>
    %239 = vector.shape_cast %238 : vector<1x1x32xf32> to vector<1x32xf32>
    %cst_129 = arith.constant dense<0.000000e+00> : vector<16xf32>
    %240 = vector.multi_reduction <add>, %235, %cst_129 [1] : vector<16x32xf32> to vector<16xf32>
    %241 = vector.shape_cast %240 : vector<16xf32> to vector<16x1xf32>
    %cst_130 = arith.constant 3.200000e+01 : f32
    %242 = vector.broadcast %cst_130 : f32 to vector<16x1xf32>
    %243 = arith.divf %241, %242 : vector<16x1xf32>
    %244 = vector.broadcast %243 : vector<16x1xf32> to vector<16x32xf32>
    %245 = arith.subf %235, %244 : vector<16x32xf32>
    %246 = arith.mulf %245, %245 : vector<16x32xf32>
    %cst_131 = arith.constant dense<0.000000e+00> : vector<16xf32>
    %247 = vector.multi_reduction <add>, %246, %cst_131 [1] : vector<16x32xf32> to vector<16xf32>
    %248 = vector.shape_cast %247 : vector<16xf32> to vector<16x1xf32>
    %cst_132 = arith.constant 3.200000e+01 : f32
    %249 = vector.broadcast %cst_132 : f32 to vector<16x1xf32>
    %250 = arith.divf %248, %249 : vector<16x1xf32>
    %cst_133 = arith.constant 9.99999996E-13 : f32
    %251 = vector.broadcast %cst_133 : f32 to vector<16x1xf32>
    %252 = arith.addf %250, %251 : vector<16x1xf32>
    %253 = math.rsqrt %252 : vector<16x1xf32>
    %254 = vector.broadcast %253 : vector<16x1xf32> to vector<16x32xf32>
    %255 = arith.mulf %245, %254 : vector<16x32xf32>
    %256 = vector.broadcast %237 : vector<1x32xf32> to vector<16x32xf32>
    %257 = arith.mulf %255, %256 : vector<16x32xf32>
    %258 = vector.broadcast %239 : vector<1x32xf32> to vector<16x32xf32>
    %259 = arith.addf %257, %258 : vector<16x32xf32>
    %260 = arith.truncf %259 : vector<16x32xf32> to vector<16x32xbf16>
    %c1_134 = arith.constant 1 : index
    %c0_135 = arith.constant 0 : index
    %c0_136 = arith.constant 0 : index
    %261 = vector.load %arg7[%c1_134, %c0_135, %c0_136] : memref<2x32x64xbf16, #tpu.memory_space<vmem>>, vector<1x32x64xbf16>
    %262 = vector.shape_cast %261 : vector<1x32x64xbf16> to vector<32x64xbf16>
    %cst_137 = arith.constant dense<0.000000e+00> : vector<16x64xf32>
    %263 = tpu.matmul %260, %262, %cst_137 {dimension_numbers = #tpu.dot_dimension_numbers<[1], [0], [0], [1], [0, 0, 1, 1], [], []>} : vector<16x32xbf16>, vector<32x64xbf16>, vector<16x64xf32> -> vector<16x64xf32>
    %c1_138 = arith.constant 1 : index
    %c0_139 = arith.constant 0 : index
    %c0_140 = arith.constant 0 : index
    %264 = vector.load %arg8[%c1_138, %c0_139, %c0_140] : memref<2x1x64xf32, #tpu.memory_space<vmem>>, vector<1x1x64xf32>
    %265 = vector.shape_cast %264 : vector<1x1x64xf32> to vector<1x64xf32>
    %266 = vector.broadcast %265 : vector<1x64xf32> to vector<16x64xf32>
    %267 = arith.addf %263, %266 : vector<16x64xf32>
    %cst_141 = arith.constant 5.000000e-01 : f32
    %268 = vector.broadcast %cst_141 : f32 to vector<16x64xf32>
    %269 = arith.mulf %268, %267 : vector<16x64xf32>
    %cst_142 = arith.constant 4.471500e-02 : f32
    %270 = vector.broadcast %cst_142 : f32 to vector<16x64xf32>
    %271 = arith.mulf %270, %267 : vector<16x64xf32>
    %272 = arith.mulf %271, %267 : vector<16x64xf32>
    %273 = arith.mulf %272, %267 : vector<16x64xf32>
    %274 = arith.addf %267, %273 : vector<16x64xf32>
    %cst_143 = arith.constant 0.797884583 : f32
    %275 = vector.broadcast %cst_143 : f32 to vector<16x64xf32>
    %276 = arith.mulf %275, %274 : vector<16x64xf32>
    %277 = math.tanh %276 : vector<16x64xf32>
    %cst_144 = arith.constant 1.000000e+00 : f32
    %278 = vector.broadcast %cst_144 : f32 to vector<16x64xf32>
    %279 = arith.addf %278, %277 : vector<16x64xf32>
    %280 = arith.mulf %269, %279 : vector<16x64xf32>
    %281 = arith.truncf %280 : vector<16x64xf32> to vector<16x64xbf16>
    %c1_145 = arith.constant 1 : index
    %c0_146 = arith.constant 0 : index
    %c0_147 = arith.constant 0 : index
    %282 = vector.load %arg9[%c1_145, %c0_146, %c0_147] : memref<2x64x32xbf16, #tpu.memory_space<vmem>>, vector<1x64x32xbf16>
    %283 = vector.shape_cast %282 : vector<1x64x32xbf16> to vector<64x32xbf16>
    %cst_148 = arith.constant dense<0.000000e+00> : vector<16x32xf32>
    %284 = tpu.matmul %281, %283, %cst_148 {dimension_numbers = #tpu.dot_dimension_numbers<[1], [0], [0], [1], [0, 0, 1, 1], [], []>} : vector<16x64xbf16>, vector<64x32xbf16>, vector<16x32xf32> -> vector<16x32xf32>
    %c1_149 = arith.constant 1 : index
    %c1_150 = arith.constant 1 : index
    %c0_151 = arith.constant 0 : index
    %285 = vector.load %arg6[%c1_149, %c1_150, %c0_151] : memref<2x6x32xf32, #tpu.memory_space<vmem>>, vector<1x1x32xf32>
    %286 = vector.shape_cast %285 : vector<1x1x32xf32> to vector<1x32xf32>
    %287 = vector.broadcast %286 : vector<1x32xf32> to vector<16x32xf32>
    %288 = arith.addf %284, %287 : vector<16x32xf32>
    %289 = arith.addf %288, %259 : vector<16x32xf32>
    %c1_152 = arith.constant 1 : index
    %c4_153 = arith.constant 4 : index
    %c0_154 = arith.constant 0 : index
    %290 = vector.load %arg6[%c1_152, %c4_153, %c0_154] : memref<2x6x32xf32, #tpu.memory_space<vmem>>, vector<1x1x32xf32>
    %291 = vector.shape_cast %290 : vector<1x1x32xf32> to vector<1x32xf32>
    %c1_155 = arith.constant 1 : index
    %c5_156 = arith.constant 5 : index
    %c0_157 = arith.constant 0 : index
    %292 = vector.load %arg6[%c1_155, %c5_156, %c0_157] : memref<2x6x32xf32, #tpu.memory_space<vmem>>, vector<1x1x32xf32>
    %293 = vector.shape_cast %292 : vector<1x1x32xf32> to vector<1x32xf32>
    %cst_158 = arith.constant dense<0.000000e+00> : vector<16xf32>
    %294 = vector.multi_reduction <add>, %289, %cst_158 [1] : vector<16x32xf32> to vector<16xf32>
    %295 = vector.shape_cast %294 : vector<16xf32> to vector<16x1xf32>
    %cst_159 = arith.constant 3.200000e+01 : f32
    %296 = vector.broadcast %cst_159 : f32 to vector<16x1xf32>
    %297 = arith.divf %295, %296 : vector<16x1xf32>
    %298 = vector.broadcast %297 : vector<16x1xf32> to vector<16x32xf32>
    %299 = arith.subf %289, %298 : vector<16x32xf32>
    %300 = arith.mulf %299, %299 : vector<16x32xf32>
    %cst_160 = arith.constant dense<0.000000e+00> : vector<16xf32>
    %301 = vector.multi_reduction <add>, %300, %cst_160 [1] : vector<16x32xf32> to vector<16xf32>
    %302 = vector.shape_cast %301 : vector<16xf32> to vector<16x1xf32>
    %cst_161 = arith.constant 3.200000e+01 : f32
    %303 = vector.broadcast %cst_161 : f32 to vector<16x1xf32>
    %304 = arith.divf %302, %303 : vector<16x1xf32>
    %cst_162 = arith.constant 9.99999996E-13 : f32
    %305 = vector.broadcast %cst_162 : f32 to vector<16x1xf32>
    %306 = arith.addf %304, %305 : vector<16x1xf32>
    %307 = math.rsqrt %306 : vector<16x1xf32>
    %308 = vector.broadcast %307 : vector<16x1xf32> to vector<16x32xf32>
    %309 = arith.mulf %299, %308 : vector<16x32xf32>
    %310 = vector.broadcast %291 : vector<1x32xf32> to vector<16x32xf32>
    %311 = arith.mulf %309, %310 : vector<16x32xf32>
    %312 = vector.broadcast %293 : vector<1x32xf32> to vector<16x32xf32>
    %313 = arith.addf %311, %312 : vector<16x32xf32>
    %314 = vector.shape_cast %313 : vector<16x32xf32> to vector<2x8x32xf32>
    %315 = vector.extract_strided_slice %314 {offsets = [0, 0, 0], sizes = [2, 1, 32], strides = [1, 1, 1]} : vector<2x8x32xf32> to vector<2x1x32xf32>
    %316 = vector.shape_cast %315 : vector<2x1x32xf32> to vector<2x32xf32>
    %317 = arith.truncf %316 : vector<2x32xf32> to vector<2x32xbf16>
    %c0_163 = arith.constant 0 : index
    %c0_164 = arith.constant 0 : index
    %318 = vector.load %arg10[%c0_163, %c0_164] : memref<32x32xbf16, #tpu.memory_space<vmem>>, vector<32x32xbf16>
    %cst_165 = arith.constant dense<0.000000e+00> : vector<2x32xf32>
    %319 = tpu.matmul %317, %318, %cst_165 {dimension_numbers = #tpu.dot_dimension_numbers<[1], [0], [0], [1], [0, 0, 1, 1], [], []>} : vector<2x32xbf16>, vector<32x32xbf16>, vector<2x32xf32> -> vector<2x32xf32>
    %c0_166 = arith.constant 0 : index
    %c0_167 = arith.constant 0 : index
    %320 = vector.load %arg11[%c0_166, %c0_167] : memref<1x32xf32, #tpu.memory_space<vmem>>, vector<1x32xf32>
    %321 = vector.broadcast %320 : vector<1x32xf32> to vector<2x32xf32>
    %322 = arith.addf %319, %321 : vector<2x32xf32>
    %323 = math.tanh %322 : vector<2x32xf32>
    %324 = arith.truncf %323 : vector<2x32xf32> to vector<2x32xbf16>
    %c0_168 = arith.constant 0 : index
    %c0_169 = arith.constant 0 : index
    %325 = vector.load %arg12[%c0_168, %c0_169] : memref<32x96xbf16, #tpu.memory_space<vmem>>, vector<32x96xbf16>
    %cst_170 = arith.constant dense<0.000000e+00> : vector<2x96xf32>
    %326 = tpu.matmul %324, %325, %cst_170 {dimension_numbers = #tpu.dot_dimension_numbers<[1], [0], [0], [1], [0, 0, 1, 1], [], []>} : vector<2x32xbf16>, vector<32x96xbf16>, vector<2x96xf32> -> vector<2x96xf32>
    %c0_171 = arith.constant 0 : index
    %c0_172 = arith.constant 0 : index
    %327 = vector.load %arg13[%c0_171, %c0_172] : memref<1x96xf32, #tpu.memory_space<vmem>>, vector<1x96xf32>
    %328 = vector.broadcast %327 : vector<1x96xf32> to vector<2x96xf32>
    %329 = arith.addf %326, %328 : vector<2x96xf32>
    %330 = tpu.concatenate %323, %329 in 1 : vector<2x32xf32>, vector<2x96xf32> -> vector<2x128xf32>
    %c0_173 = arith.constant 0 : index
    %c0_174 = arith.constant 0 : index
    %331 = vector.load %arg14[%c0_173, %c0_174] : memref<2x128xf32, #tpu.memory_space<vmem>>, vector<2x128xf32>
    tpu.vector_store %arg14[%c0_173, %c0_174], %330 {strides = array<i32>} : memref<2x128xf32, #tpu.memory_space<vmem>>, vector<2x128xf32>,
    return
  }
}

</mosaic_0001>

<llo_original>
// kernel: bert_class_forward.1
$region0: #{bert_class_forward.1}
  #allocation0 [shape = 'u32[]', space=smem, size = 0x4, offset = 0x4, fixed_abs, tag = 'smem constant byte address 0x4 - core index']
  #allocation1 [shape = 'u32[144,128]{1,0:T(1,128)}', space=vmem, size = 0x12000, scoped, tag = 'internal scratch']
  %s0 = inlined_call_operand.vmem [shape: f32[16,32], index: 0, kind: input, shape index: {}]
  %s1 = inlined_call_operand.vmem [shape: f32[8,1,8], index: 1, kind: input, shape index: {}]
  %s2 = inlined_call_operand.vmem [shape: f32[2,32], index: 2, kind: input, shape index: {}]
  %s3 = inlined_call_operand.vmem [shape: bf16[2,24,32,8], index: 3, kind: input, shape index: {}]
  %s4 = inlined_call_operand.vmem [shape: f32[2,24,1,8], index: 4, kind: input, shape index: {}]
  %s5 = inlined_call_operand.vmem [shape: bf16[2,8,8,32], index: 5, kind: input, shape index: {}]
  %s6 = inlined_call_operand.vmem [shape: f32[2,6,32], index: 6, kind: input, shape index: {}]
  %s7 = inlined_call_operand.vmem [shape: bf16[2,32,64], index: 7, kind: input, shape index: {}]
  %s8 = inlined_call_operand.vmem [shape: f32[2,1,64], index: 8, kind: input, shape index: {}]
  %s9 = inlined_call_operand.vmem [shape: bf16[2,64,32], index: 9, kind: input, shape index: {}]
  %s10 = inlined_call_operand.vmem [shape: bf16[32,32], index: 10, kind: input, shape index: {}]
  %s11 = inlined_call_operand.vmem [shape: f32[1,32], index: 11, kind: input, shape index: {}]
  %s12 = inlined_call_operand.vmem [shape: bf16[32,96], index: 12, kind: input, shape index: {}]
  %s13 = inlined_call_operand.vmem [shape: f32[1,96], index: 13, kind: input, shape index: {}]
  %s14 = inlined_call_operand.vmem [shape: f32[2,128], index: 14, kind: output, shape index: {}]
  %s15 = sld [smem:[#allocation0]]
  $region66: #{bert_class_forward.1} parent=0
    _
  %s17 = ssub.s32 1, %s15
  %s18 = scalar_select 0, %s17, %s15
  // Predicated region
  $region2: #{bert_class_forward.1} parent=0 // pred_check
    _
  $region3: #{bert_class_forward.1} parent=0 // pred_check_branch
    %20 = sbr.rel (0) target = $region5
  $region4: #{bert_class_forward.1} parent=0 // pred_region
    _
  $region5: #{bert_class_forward.1} parent=0 // pred_fallthru
    _
  // Predicated region
  $region6: #{bert_class_forward.1} parent=0 // pred_check
    _
  $region7: #{bert_class_forward.1} parent=0 // pred_check_branch
    %22 = sbr.rel (0) target = $region9
  $region8: #{bert_class_forward.1} parent=0 // pred_region
    _
  $region9: #{bert_class_forward.1} parent=0 // pred_fallthru
    _
  // Predicated region
  $region10: #{bert_class_forward.1} parent=0 // pred_check
    _
  $region11: #{bert_class_forward.1} parent=0 // pred_check_branch
    %24 = sbr.rel (0) target = $region13
  $region12: #{bert_class_forward.1} parent=0 // pred_region
    _
  $region13: #{bert_class_forward.1} parent=0 // pred_fallthru
    _
  // Predicated region
  $region14: #{bert_class_forward.1} parent=0 // pred_check
    _
  $region15: #{bert_class_forward.1} parent=0 // pred_check_branch
    %26 = sbr.rel (0) target = $region17
  $region16: #{bert_class_forward.1} parent=0 // pred_region
    _
  $region17: #{bert_class_forward.1} parent=0 // pred_fallthru
    _
  // Predicated region
  $region18: #{bert_class_forward.1} parent=0 // pred_check
    _
  $region19: #{bert_class_forward.1} parent=0 // pred_check_branch
    %28 = sbr.rel (0) target = $region21
  $region20: #{bert_class_forward.1} parent=0 // pred_region
    _
  $region21: #{bert_class_forward.1} parent=0 // pred_fallthru
    _
  // Predicated region
  $region22: #{bert_class_forward.1} parent=0 // pred_check
    _
  $region23: #{bert_class_forward.1} parent=0 // pred_check_branch
    %30 = sbr.rel (0) target = $region25
  $region24: #{bert_class_forward.1} parent=0 // pred_region
    _
  $region25: #{bert_class_forward.1} parent=0 // pred_fallthru
    _
  // Predicated region
  $region26: #{bert_class_forward.1} parent=0 // pred_check
    _
  $region27: #{bert_class_forward.1} parent=0 // pred_check_branch
    %32 = sbr.rel (0) target = $region29
  $region28: #{bert_class_forward.1} parent=0 // pred_region
    _
  $region29: #{bert_class_forward.1} parent=0 // pred_fallthru
    _
  // Predicated region
  $region30: #{bert_class_forward.1} parent=0 // pred_check
    _
  $region31: #{bert_class_forward.1} parent=0 // pred_check_branch
    %34 = sbr.rel (0) target = $region33
  $region32: #{bert_class_forward.1} parent=0 // pred_region
    _
  $region33: #{bert_class_forward.1} parent=0 // pred_fallthru
    _
  // Predicated region
  $region34: #{bert_class_forward.1} parent=0 // pred_check
    _
  $region35: #{bert_class_forward.1} parent=0 // pred_check_branch
    %36 = sbr.rel (0) target = $region37
  $region36: #{bert_class_forward.1} parent=0 // pred_region
    _
  $region37: #{bert_class_forward.1} parent=0 // pred_fallthru
    _
  // Predicated region
  $region38: #{bert_class_forward.1} parent=0 // pred_check
    _
  $region39: #{bert_class_forward.1} parent=0 // pred_check_branch
    %38 = sbr.rel (0) target = $region41
  $region40: #{bert_class_forward.1} parent=0 // pred_region
    _
  $region41: #{bert_class_forward.1} parent=0 // pred_fallthru
    _
  // Predicated region
  $region42: #{bert_class_forward.1} parent=0 // pred_check
    _
  $region43: #{bert_class_forward.1} parent=0 // pred_check_branch
    %40 = sbr.rel (0) target = $region45
  $region44: #{bert_class_forward.1} parent=0 // pred_region
    _
  $region45: #{bert_class_forward.1} parent=0 // pred_fallthru
    _
  // Predicated region
  $region46: #{bert_class_forward.1} parent=0 // pred_check
    _
  $region47: #{bert_class_forward.1} parent=0 // pred_check_branch
    %42 = sbr.rel (0) target = $region49
  $region48: #{bert_class_forward.1} parent=0 // pred_region
    _
  $region49: #{bert_class_forward.1} parent=0 // pred_fallthru
    _
  // Predicated region
  $region50: #{bert_class_forward.1} parent=0 // pred_check
    _
  $region51: #{bert_class_forward.1} parent=0 // pred_check_branch
    %44 = sbr.rel (0) target = $region53
  $region52: #{bert_class_forward.1} parent=0 // pred_region
    _
  $region53: #{bert_class_forward.1} parent=0 // pred_fallthru
    _
  // Predicated region
  $region54: #{bert_class_forward.1} parent=0 // pred_check
    _
  $region55: #{bert_class_forward.1} parent=0 // pred_check_branch
    %46 = sbr.rel (0) target = $region57
  $region56: #{bert_class_forward.1} parent=0 // pred_region
    _
  $region57: #{bert_class_forward.1} parent=0 // pred_fallthru
    _
  %v48 = vld [vmem:[%s1] sm:$0x1]
  %v49 = vld [vmem:[%s1 + $0x1] sm:$0x1]
  %v50 = vld [vmem:[%s1 + $0x2] sm:$0x1]
  %v51 = vld [vmem:[%s1 + $0x3] sm:$0x1]
  %v52 = vld [vmem:[%s1 + $0x4] sm:$0x1]
  %v53 = vld [vmem:[%s1 + $0x5] sm:$0x1]
  %v54 = vld [vmem:[%s1 + $0x6] sm:$0x1]
  %v55 = vld [vmem:[%s1 + $0x7] sm:$0x1]
  %v56 = vld [vmem:[%s0] sm:$0xff]
  %v57 = vld [vmem:[%s0 + $0x8] sm:$0xff]
  %v58 = vld [vmem:[%s2] sm:$0x1]
  %v59 = vld [vmem:[%s2 + $0x1] sm:$0x1]
  %vm60 = vcmask 261120
  %v61 = vsel %vm60, %v56, 0.0
  %62 = vadd.xlane.f32.xlu0 %v61
  %v63 = vpop.xlane.xlu0 %62
  %v64 = vsel %vm60, %v57, 0.0
  %65 = vadd.xlane.f32.xlu0 %v64
  %v66 = vpop.xlane.xlu0 %65
  %v67 = vrcp.pop 32.0
  %v68 = vmul.f32 %v63, %v67
  %v69 = vmul.f32 %v66, %v67
  %v70 = vsub.f32 %v56, %v68
  %v71 = vsub.f32 %v57, %v69
  %v72 = vmul.f32 %v70, %v70
  %v73 = vmul.f32 %v71, %v71
  %v74 = vsel %vm60, %v72, 0.0
  %75 = vadd.xlane.f32.xlu0 %v74
  %v76 = vpop.xlane.xlu0 %75
  %v77 = vsel %vm60, %v73, 0.0
  %78 = vadd.xlane.f32.xlu0 %v77
  %v79 = vpop.xlane.xlu0 %78
  %v80 = vmul.f32 %v76, %v67
  %v81 = vmul.f32 %v79, %v67
  %v82 = vadd.f32 %v80, 1e-12
  %v83 = vadd.f32 %v81, 1e-12
  %v84 = vrsqrt.pop %v82
  %v85 = vrsqrt.pop %v83
  %v86 = vmul.f32 %v70, %v84
  %v87 = vmul.f32 %v71, %v85
  %v88 = vlaneseq
  %v89 = vshrl.u32 %v88, 7
  %v90 = vsub.s32 0, %v89
  %v91 = vrot.slane %v58, %v90
  %v92 = vmul.f32 %v86, %v91
  %v93 = vmul.f32 %v87, %v91
  %v94 = vlaneseq
  %v95 = vshrl.u32 %v94, 7
  %v96 = vsub.s32 0, %v95
  %v97 = vrot.slane %v59, %v96
  %v98 = vadd.f32 %v92, %v97
  %v99 = vadd.f32 %v93, %v97
  %v100 = vpack.c.bf16 %v98, %v98
  %v101 = vpack.c.bf16 %v99, %v99
  %v102 = vld [vmem:[%s3] sm:$0xf]
  %v103 = vld [vmem:[%s3 + $0x4] sm:$0xf]
  %v104 = vld [vmem:[%s3 + $0x8] sm:$0xf]
  %v105 = vld [vmem:[%s3 + $0xc] sm:$0xf]
  %v106 = vld [vmem:[%s3 + $0x10] sm:$0xf]
  %v107 = vld [vmem:[%s3 + $0x14] sm:$0xf]
  %v108 = vld [vmem:[%s3 + $0x18] sm:$0xf]
  %v109 = vld [vmem:[%s3 + $0x1c] sm:$0xf]
  %v110 = vld [vmem:[%s3 + $0x20] sm:$0xf]
  %v111 = vld [vmem:[%s3 + $0x24] sm:$0xf]
  %v112 = vld [vmem:[%s3 + $0x28] sm:$0xf]
  %v113 = vld [vmem:[%s3 + $0x2c] sm:$0xf]
  %v114 = vld [vmem:[%s3 + $0x30] sm:$0xf]
  %v115 = vld [vmem:[%s3 + $0x34] sm:$0xf]
  %v116 = vld [vmem:[%s3 + $0x38] sm:$0xf]
  %v117 = vld [vmem:[%s3 + $0x3c] sm:$0xf]
  %v118 = vld [vmem:[%s3 + $0x40] sm:$0xf]
  %v119 = vld [vmem:[%s3 + $0x44] sm:$0xf]
  %v120 = vld [vmem:[%s3 + $0x48] sm:$0xf]
  %v121 = vld [vmem:[%s3 + $0x4c] sm:$0xf]
  %v122 = vld [vmem:[%s3 + $0x50] sm:$0xf]
  %v123 = vld [vmem:[%s3 + $0x54] sm:$0xf]
  %v124 = vld [vmem:[%s3 + $0x58] sm:$0xf]
  %v125 = vld [vmem:[%s3 + $0x5c] sm:$0xf]
  %v126 = vld [vmem:[%s3 + $0x60] sm:$0xf]
  %v127 = vld [vmem:[%s3 + $0x64] sm:$0xf]
  %v128 = vld [vmem:[%s3 + $0x68] sm:$0xf]
  %v129 = vld [vmem:[%s3 + $0x6c] sm:$0xf]
  %v130 = vld [vmem:[%s3 + $0x70] sm:$0xf]
  %v131 = vld [vmem:[%s3 + $0x74] sm:$0xf]
  %v132 = vld [vmem:[%s3 + $0x78] sm:$0xf]
  %v133 = vld [vmem:[%s3 + $0x7c] sm:$0xf]
  %s134 = scalar_lea.vmem %s3, 128
  %v135 = vld [vmem:[%s134] sm:$0xf]
  %v136 = vld [vmem:[%s134 + $0x4] sm:$0xf]
  %v137 = vld [vmem:[%s134 + $0x8] sm:$0xf]
  %v138 = vld [vmem:[%s134 + $0xc] sm:$0xf]
  %v139 = vld [vmem:[%s134 + $0x10] sm:$0xf]
  %v140 = vld [vmem:[%s134 + $0x14] sm:$0xf]
  %v141 = vld [vmem:[%s134 + $0x18] sm:$0xf]
  %v142 = vld [vmem:[%s134 + $0x1c] sm:$0xf]
  %v143 = vld [vmem:[%s134 + $0x20] sm:$0xf]
  %v144 = vld [vmem:[%s134 + $0x24] sm:$0xf]
  %v145 = vld [vmem:[%s134 + $0x28] sm:$0xf]
  %v146 = vld [vmem:[%s134 + $0x2c] sm:$0xf]
  %v147 = vld [vmem:[%s134 + $0x30] sm:$0xf]
  %v148 = vld [vmem:[%s134 + $0x34] sm:$0xf]
  %v149 = vld [vmem:[%s134 + $0x38] sm:$0xf]
  %v150 = vld [vmem:[%s134 + $0x3c] sm:$0xf]
  %v151 = vld [vmem:[%s134 + $0x40] sm:$0xf]
  %v152 = vld [vmem:[%s134 + $0x44] sm:$0xf]
  %v153 = vld [vmem:[%s134 + $0x48] sm:$0xf]
  %v154 = vld [vmem:[%s134 + $0x4c] sm:$0xf]
  %v155 = vld [vmem:[%s134 + $0x50] sm:$0xf]
  %v156 = vld [vmem:[%s134 + $0x54] sm:$0xf]
  %v157 = vld [vmem:[%s134 + $0x58] sm:$0xf]
  %v158 = vld [vmem:[%s134 + $0x5c] sm:$0xf]
  %v159 = vld [vmem:[%s134 + $0x60] sm:$0xf]
  %v160 = vld [vmem:[%s134 + $0x64] sm:$0xf]
  %v161 = vld [vmem:[%s134 + $0x68] sm:$0xf]
  %v162 = vld [vmem:[%s134 + $0x6c] sm:$0xf]
  %v163 = vld [vmem:[%s134 + $0x70] sm:$0xf]
  %v164 = vld [vmem:[%s134 + $0x74] sm:$0xf]
  %v165 = vld [vmem:[%s134 + $0x78] sm:$0xf]
  %v166 = vld [vmem:[%s134 + $0x7c] sm:$0xf]
  %s167 = scalar_lea.vmem %s3, 256
  %v168 = vld [vmem:[%s167] sm:$0xf]
  %v169 = vld [vmem:[%s167 + $0x4] sm:$0xf]
  %v170 = vld [vmem:[%s167 + $0x8] sm:$0xf]
  %v171 = vld [vmem:[%s167 + $0xc] sm:$0xf]
  %v172 = vld [vmem:[%s167 + $0x10] sm:$0xf]
  %v173 = vld [vmem:[%s167 + $0x14] sm:$0xf]
  %v174 = vld [vmem:[%s167 + $0x18] sm:$0xf]
  %v175 = vld [vmem:[%s167 + $0x1c] sm:$0xf]
  %v176 = vld [vmem:[%s167 + $0x20] sm:$0xf]
  %v177 = vld [vmem:[%s167 + $0x24] sm:$0xf]
  %v178 = vld [vmem:[%s167 + $0x28] sm:$0xf]
  %v179 = vld [vmem:[%s167 + $0x2c] sm:$0xf]
  %v180 = vld [vmem:[%s167 + $0x30] sm:$0xf]
  %v181 = vld [vmem:[%s167 + $0x34] sm:$0xf]
  %v182 = vld [vmem:[%s167 + $0x38] sm:$0xf]
  %v183 = vld [vmem:[%s167 + $0x3c] sm:$0xf]
  %v184 = vld [vmem:[%s167 + $0x40] sm:$0xf]
  %v185 = vld [vmem:[%s167 + $0x44] sm:$0xf]
  %v186 = vld [vmem:[%s167 + $0x48] sm:$0xf]
  %v187 = vld [vmem:[%s167 + $0x4c] sm:$0xf]
  %v188 = vld [vmem:[%s167 + $0x50] sm:$0xf]
  %v189 = vld [vmem:[%s167 + $0x54] sm:$0xf]
  %v190 = vld [vmem:[%s167 + $0x58] sm:$0xf]
  %v191 = vld [vmem:[%s167 + $0x5c] sm:$0xf]
  %v192 = vld [vmem:[%s167 + $0x60] sm:$0xf]
  %v193 = vld [vmem:[%s167 + $0x64] sm:$0xf]
  %v194 = vld [vmem:[%s167 + $0x68] sm:$0xf]
  %v195 = vld [vmem:[%s167 + $0x6c] sm:$0xf]
  %v196 = vld [vmem:[%s167 + $0x70] sm:$0xf]
  %v197 = vld [vmem:[%s167 + $0x74] sm:$0xf]
  %v198 = vld [vmem:[%s167 + $0x78] sm:$0xf]
  %v199 = vld [vmem:[%s167 + $0x7c] sm:$0xf]
  %v200 = vld [vmem:[%s4] sm:$0x1]
  %v201 = vld [vmem:[%s4 + $0x1] sm:$0x1]
  %v202 = vld [vmem:[%s4 + $0x2] sm:$0x1]
  %v203 = vld [vmem:[%s4 + $0x3] sm:$0x1]
  %v204 = vld [vmem:[%s4 + $0x4] sm:$0x1]
  %v205 = vld [vmem:[%s4 + $0x5] sm:$0x1]
  %v206 = vld [vmem:[%s4 + $0x6] sm:$0x1]
  %v207 = vld [vmem:[%s4 + $0x7] sm:$0x1]
  %s208 = scalar_lea.vmem %s4, 8
  %v209 = vld [vmem:[%s208] sm:$0x1]
  %v210 = vld [vmem:[%s208 + $0x1] sm:$0x1]
  %v211 = vld [vmem:[%s208 + $0x2] sm:$0x1]
  %v212 = vld [vmem:[%s208 + $0x3] sm:$0x1]
  %v213 = vld [vmem:[%s208 + $0x4] sm:$0x1]
  %v214 = vld [vmem:[%s208 + $0x5] sm:$0x1]
  %v215 = vld [vmem:[%s208 + $0x6] sm:$0x1]
  %v216 = vld [vmem:[%s208 + $0x7] sm:$0x1]
  %s217 = scalar_lea.vmem %s4, 16
  %v218 = vld [vmem:[%s217] sm:$0x1]
  %v219 = vld [vmem:[%s217 + $0x1] sm:$0x1]
  %v220 = vld [vmem:[%s217 + $0x2] sm:$0x1]
  %v221 = vld [vmem:[%s217 + $0x3] sm:$0x1]
  %v222 = vld [vmem:[%s217 + $0x4] sm:$0x1]
  %v223 = vld [vmem:[%s217 + $0x5] sm:$0x1]
  %v224 = vld [vmem:[%s217 + $0x6] sm:$0x1]
  %v225 = vld [vmem:[%s217 + $0x7] sm:$0x1]
  %v234 = vlaneseq
  %v235 = vshrl.u32 %v234, 7
  %v236 = vsub.s32 0, %v235
  %v237 = vrot.slane %v200, %v236
  %v238 = vlaneseq
  %v239 = vshrl.u32 %v238, 7
  %v240 = vsub.s32 0, %v239
  %v241 = vrot.slane %v201, %v240
  %v242 = vlaneseq
  %v243 = vshrl.u32 %v242, 7
  %v244 = vsub.s32 0, %v243
  %v245 = vrot.slane %v202, %v244
  %v246 = vlaneseq
  %v247 = vshrl.u32 %v246, 7
  %v248 = vsub.s32 0, %v247
  %v249 = vrot.slane %v203, %v248
  %v250 = vlaneseq
  %v251 = vshrl.u32 %v250, 7
  %v252 = vsub.s32 0, %v251
  %v253 = vrot.slane %v204, %v252
  %v254 = vlaneseq
  %v255 = vshrl.u32 %v254, 7
  %v256 = vsub.s32 0, %v255
  %v257 = vrot.slane %v205, %v256
  %v258 = vlaneseq
  %v259 = vshrl.u32 %v258, 7
  %v260 = vsub.s32 0, %v259
  %v261 = vrot.slane %v206, %v260
  %v262 = vlaneseq
  %v263 = vshrl.u32 %v262, 7
  %v264 = vsub.s32 0, %v263
  %v265 = vrot.slane %v207, %v264
  %v278 = vunpack.c.l.b16 %v102
  %v279 = vunpack.c.l.b16 %v103
  %v280 = vunpack.c.l.b16 %v104
  %v281 = vunpack.c.l.b16 %v105
  %v282 = vpack.c.b16 %v279, %v278
  %v283 = vpack.c.b16 %v281, %v280
  %v287 = vsel %vm60, %v100, 0
  %289 = vmatprep.subr.bf16.mxu0 0
  %290 = vmatpush1.bf16.msra.mxu0 0
  %291 = vmatprep.subr.bf16.mxu0 0
  %292 = vmatpush1.bf16.msra.mxu0 0
  %293 = vmatprep.subr.bf16.mxu0 0
  %294 = vmatpush1.bf16.msra.mxu0 0
  %295 = vmatprep.subr.bf16.mxu0 0
  %296 = vmatpush1.bf16.msra.mxu0 0
  %297 = vmatprep.subr.bf16.mxu0 0
  %298 = vmatpush1.bf16.msra.mxu0 0
  %299 = vmatprep.subr.bf16.mxu0 0
  %300 = vmatpush1.bf16.msra.mxu0 0
  %301 = vmatprep.subr.bf16.mxu0 0
  %302 = vmatpush1.bf16.msra.mxu0 %v283
  %303 = vmatprep.subr.bf16.mxu0 0
  %304 = vmatpush1.bf16.msra.mxu0 %v282
  %305 = vmatprep.subr.bf16.mxu0 0
  %306 = vmatpush2.bf16.msra.mxu0 0
  %307 = vmatprep.subr.bf16.mxu0 0
  %308 = vmatpush2.bf16.msra.mxu0 0
  %309 = vmatprep.subr.bf16.mxu0 0
  %310 = vmatpush2.bf16.msra.mxu0 0
  %311 = vmatprep.subr.bf16.mxu0 0
  %312 = vmatpush2.bf16.msra.mxu0 0
  %313 = vmatprep.subr.bf16.mxu0 0
  %314 = vmatpush2.bf16.msra.mxu0 0
  %315 = vmatprep.subr.bf16.mxu0 0
  %316 = vmatpush2.bf16.msra.mxu0 0
  %317 = vmatprep.subr.bf16.mxu0 0
  %318 = vmatpush2.bf16.msra.mxu0 0
  %319 = vmatprep.subr.bf16.mxu0 0
  %320 = vmatpush2.bf16.msra.mxu0 0
  %321 = vmatprep.mubr.bf16.mxu0 0
  %322 = vmatmul.mubr.bf16.gmra.mxu0 %v287
  %v323 = vpop.f32.mrf.mxu0
  %v324 = vadd.f32 %v237, %v323
  %v325 = vpop.f32.mrf.mxu0
  %v326 = vpop.f32.mrf.mxu0
  %v327 = vpop.f32.mrf.mxu0
  %328 = vdwg.mxu0
  %v333 = vunpack.c.l.b16 %v106
  %v334 = vunpack.c.l.b16 %v107
  %v335 = vunpack.c.l.b16 %v108
  %v336 = vunpack.c.l.b16 %v109
  %v337 = vpack.c.b16 %v334, %v333
  %v338 = vpack.c.b16 %v336, %v335
  %341 = vmatprep.subr.bf16.mxu0 0
  %342 = vmatpush1.bf16.msra.mxu0 0
  %343 = vmatprep.subr.bf16.mxu0 0
  %344 = vmatpush1.bf16.msra.mxu0 0
  %345 = vmatprep.subr.bf16.mxu0 0
  %346 = vmatpush1.bf16.msra.mxu0 0
  %347 = vmatprep.subr.bf16.mxu0 0
  %348 = vmatpush1.bf16.msra.mxu0 0
  %349 = vmatprep.subr.bf16.mxu0 0
  %350 = vmatpush1.bf16.msra.mxu0 0
  %351 = vmatprep.subr.bf16.mxu0 0
  %352 = vmatpush1.bf16.msra.mxu0 0
  %353 = vmatprep.subr.bf16.mxu0 0
  %354 = vmatpush1.bf16.msra.mxu0 %v338
  %355 = vmatprep.subr.bf16.mxu0 0
  %356 = vmatpush1.bf16.msra.mxu0 %v337
  %357 = vmatprep.subr.bf16.mxu0 0
  %358 = vmatpush2.bf16.msra.mxu0 0
  %359 = vmatprep.subr.bf16.mxu0 0
  %360 = vmatpush2.bf16.msra.mxu0 0
  %361 = vmatprep.subr.bf16.mxu0 0
  %362 = vmatpush2.bf16.msra.mxu0 0
  %363 = vmatprep.subr.bf16.mxu0 0
  %364 = vmatpush2.bf16.msra.mxu0 0
  %365 = vmatprep.subr.bf16.mxu0 0
  %366 = vmatpush2.bf16.msra.mxu0 0
  %367 = vmatprep.subr.bf16.mxu0 0
  %368 = vmatpush2.bf16.msra.mxu0 0
  %369 = vmatprep.subr.bf16.mxu0 0
  %370 = vmatpush2.bf16.msra.mxu0 0
  %371 = vmatprep.subr.bf16.mxu0 0
  %372 = vmatpush2.bf16.msra.mxu0 0
  %373 = vmatprep.mubr.bf16.mxu0 0
  %374 = vmatmul.mubr.bf16.gmra.mxu0 %v287
  %v375 = vpop.f32.mrf.mxu0
  %v376 = vadd.f32 %v241, %v375
  %v377 = vpop.f32.mrf.mxu0
  %v378 = vpop.f32.mrf.mxu0
  %v379 = vpop.f32.mrf.mxu0
  %380 = vdwg.mxu0
  %v385 = vunpack.c.l.b16 %v110
  %v386 = vunpack.c.l.b16 %v111
  %v387 = vunpack.c.l.b16 %v112
  %v388 = vunpack.c.l.b16 %v113
  %v389 = vpack.c.b16 %v386, %v385
  %v390 = vpack.c.b16 %v388, %v387
  %393 = vmatprep.subr.bf16.mxu0 0
  %394 = vmatpush1.bf16.msra.mxu0 0
  %395 = vmatprep.subr.bf16.mxu0 0
  %396 = vmatpush1.bf16.msra.mxu0 0
  %397 = vmatprep.subr.bf16.mxu0 0
  %398 = vmatpush1.bf16.msra.mxu0 0
  %399 = vmatprep.subr.bf16.mxu0 0
  %400 = vmatpush1.bf16.msra.mxu0 0
  %401 = vmatprep.subr.bf16.mxu0 0
  %402 = vmatpush1.bf16.msra.mxu0 0
  %403 = vmatprep.subr.bf16.mxu0 0
  %404 = vmatpush1.bf16.msra.mxu0 0
  %405 = vmatprep.subr.bf16.mxu0 0
  %406 = vmatpush1.bf16.msra.mxu0 %v390
  %407 = vmatprep.subr.bf16.mxu0 0
  %408 = vmatpush1.bf16.msra.mxu0 %v389
  %409 = vmatprep.subr.bf16.mxu0 0
  %410 = vmatpush2.bf16.msra.mxu0 0
  %411 = vmatprep.subr.bf16.mxu0 0
  %412 = vmatpush2.bf16.msra.mxu0 0
  %413 = vmatprep.subr.bf16.mxu0 0
  %414 = vmatpush2.bf16.msra.mxu0 0
  %415 = vmatprep.subr.bf16.mxu0 0
  %416 = vmatpush2.bf16.msra.mxu0 0
  %417 = vmatprep.subr.bf16.mxu0 0
  %418 = vmatpush2.bf16.msra.mxu0 0
  %419 = vmatprep.subr.bf16.mxu0 0
  %420 = vmatpush2.bf16.msra.mxu0 0
  %421 = vmatprep.subr.bf16.mxu0 0
  %422 = vmatpush2.bf16.msra.mxu0 0
  %423 = vmatprep.subr.bf16.mxu0 0
  %424 = vmatpush2.bf16.msra.mxu0 0
  %425 = vmatprep.mubr.bf16.mxu0 0
  %426 = vmatmul.mubr.bf16.gmra.mxu0 %v287
  %v427 = vpop.f32.mrf.mxu0
  %v428 = vadd.f32 %v245, %v427
  %v429 = vpop.f32.mrf.mxu0
  %v430 = vpop.f32.mrf.mxu0
  %v431 = vpop.f32.mrf.mxu0
  %432 = vdwg.mxu0
  %v437 = vunpack.c.l.b16 %v114
  %v438 = vunpack.c.l.b16 %v115
  %v439 = vunpack.c.l.b16 %v116
  %v440 = vunpack.c.l.b16 %v117
  %v441 = vpack.c.b16 %v438, %v437
  %v442 = vpack.c.b16 %v440, %v439
  %445 = vmatprep.subr.bf16.mxu0 0
  %446 = vmatpush1.bf16.msra.mxu0 0
  %447 = vmatprep.subr.bf16.mxu0 0
  %448 = vmatpush1.bf16.msra.mxu0 0
  %449 = vmatprep.subr.bf16.mxu0 0
  %450 = vmatpush1.bf16.msra.mxu0 0
  %451 = vmatprep.subr.bf16.mxu0 0
  %452 = vmatpush1.bf16.msra.mxu0 0
  %453 = vmatprep.subr.bf16.mxu0 0
  %454 = vmatpush1.bf16.msra.mxu0 0
  %455 = vmatprep.subr.bf16.mxu0 0
  %456 = vmatpush1.bf16.msra.mxu0 0
  %457 = vmatprep.subr.bf16.mxu0 0
  %458 = vmatpush1.bf16.msra.mxu0 %v442
  %459 = vmatprep.subr.bf16.mxu0 0
  %460 = vmatpush1.bf16.msra.mxu0 %v441
  %461 = vmatprep.subr.bf16.mxu0 0
  %462 = vmatpush2.bf16.msra.mxu0 0
  %463 = vmatprep.subr.bf16.mxu0 0
  %464 = vmatpush2.bf16.msra.mxu0 0
  %465 = vmatprep.subr.bf16.mxu0 0
  %466 = vmatpush2.bf16.msra.mxu0 0
  %467 = vmatprep.subr.bf16.mxu0 0
  %468 = vmatpush2.bf16.msra.mxu0 0
  %469 = vmatprep.subr.bf16.mxu0 0
  %470 = vmatpush2.bf16.msra.mxu0 0
  %471 = vmatprep.subr.bf16.mxu0 0
  %472 = vmatpush2.bf16.msra.mxu0 0
  %473 = vmatprep.subr.bf16.mxu0 0
  %474 = vmatpush2.bf16.msra.mxu0 0
  %475 = vmatprep.subr.bf16.mxu0 0
  %476 = vmatpush2.bf16.msra.mxu0 0
  %477 = vmatprep.mubr.bf16.mxu0 0
  %478 = vmatmul.mubr.bf16.gmra.mxu0 %v287
  %v479 = vpop.f32.mrf.mxu0
  %v480 = vadd.f32 %v249, %v479
  %v481 = vpop.f32.mrf.mxu0
  %v482 = vpop.f32.mrf.mxu0
  %v483 = vpop.f32.mrf.mxu0
  %484 = vdwg.mxu0
  %v489 = vunpack.c.l.b16 %v118
  %v490 = vunpack.c.l.b16 %v119
  %v491 = vunpack.c.l.b16 %v120
  %v492 = vunpack.c.l.b16 %v121
  %v493 = vpack.c.b16 %v490, %v489
  %v494 = vpack.c.b16 %v492, %v491
  %v498 = vsel %vm60, %v101, 0
  %500 = vmatprep.subr.bf16.mxu0 0
  %501 = vmatpush1.bf16.msra.mxu0 0
  %502 = vmatprep.subr.bf16.mxu0 0
  %503 = vmatpush1.bf16.msra.mxu0 0
  %504 = vmatprep.subr.bf16.mxu0 0
  %505 = vmatpush1.bf16.msra.mxu0 0
  %506 = vmatprep.subr.bf16.mxu0 0
  %507 = vmatpush1.bf16.msra.mxu0 0
  %508 = vmatprep.subr.bf16.mxu0 0
  %509 = vmatpush1.bf16.msra.mxu0 0
  %510 = vmatprep.subr.bf16.mxu0 0
  %511 = vmatpush1.bf16.msra.mxu0 0
  %512 = vmatprep.subr.bf16.mxu0 0
  %513 = vmatpush1.bf16.msra.mxu0 %v494
  %514 = vmatprep.subr.bf16.mxu0 0
  %515 = vmatpush1.bf16.msra.mxu0 %v493
  %516 = vmatprep.subr.bf16.mxu0 0
  %517 = vmatpush2.bf16.msra.mxu0 0
  %518 = vmatprep.subr.bf16.mxu0 0
  %519 = vmatpush2.bf16.msra.mxu0 0
  %520 = vmatprep.subr.bf16.mxu0 0
  %521 = vmatpush2.bf16.msra.mxu0 0
  %522 = vmatprep.subr.bf16.mxu0 0
  %523 = vmatpush2.bf16.msra.mxu0 0
  %524 = vmatprep.subr.bf16.mxu0 0
  %525 = vmatpush2.bf16.msra.mxu0 0
  %526 = vmatprep.subr.bf16.mxu0 0
  %527 = vmatpush2.bf16.msra.mxu0 0
  %528 = vmatprep.subr.bf16.mxu0 0
  %529 = vmatpush2.bf16.msra.mxu0 0
  %530 = vmatprep.subr.bf16.mxu0 0
  %531 = vmatpush2.bf16.msra.mxu0 0
  %532 = vmatprep.mubr.bf16.mxu0 0
  %533 = vmatmul.mubr.bf16.gmra.mxu0 %v498
  %v534 = vpop.f32.mrf.mxu0
  %v535 = vadd.f32 %v253, %v534
  %v536 = vpop.f32.mrf.mxu0
  %v537 = vpop.f32.mrf.mxu0
  %v538 = vpop.f32.mrf.mxu0
  %539 = vdwg.mxu0
  %v544 = vunpack.c.l.b16 %v122
  %v545 = vunpack.c.l.b16 %v123
  %v546 = vunpack.c.l.b16 %v124
  %v547 = vunpack.c.l.b16 %v125
  %v548 = vpack.c.b16 %v545, %v544
  %v549 = vpack.c.b16 %v547, %v546
  %552 = vmatprep.subr.bf16.mxu0 0
  %553 = vmatpush1.bf16.msra.mxu0 0
  %554 = vmatprep.subr.bf16.mxu0 0
  %555 = vmatpush1.bf16.msra.mxu0 0
  %556 = vmatprep.subr.bf16.mxu0 0
  %557 = vmatpush1.bf16.msra.mxu0 0
  %558 = vmatprep.subr.bf16.mxu0 0
  %559 = vmatpush1.bf16.msra.mxu0 0
  %560 = vmatprep.subr.bf16.mxu0 0
  %561 = vmatpush1.bf16.msra.mxu0 0
  %562 = vmatprep.subr.bf16.mxu0 0
  %563 = vmatpush1.bf16.msra.mxu0 0
  %564 = vmatprep.subr.bf16.mxu0 0
  %565 = vmatpush1.bf16.msra.mxu0 %v549
  %566 = vmatprep.subr.bf16.mxu0 0
  %567 = vmatpush1.bf16.msra.mxu0 %v548
  %568 = vmatprep.subr.bf16.mxu0 0
  %569 = vmatpush2.bf16.msra.mxu0 0
  %570 = vmatprep.subr.bf16.mxu0 0
  %571 = vmatpush2.bf16.msra.mxu0 0
  %572 = vmatprep.subr.bf16.mxu0 0
  %573 = vmatpush2.bf16.msra.mxu0 0
  %574 = vmatprep.subr.bf16.mxu0 0
  %575 = vmatpush2.bf16.msra.mxu0 0
  %576 = vmatprep.subr.bf16.mxu0 0
  %577 = vmatpush2.bf16.msra.mxu0 0
  %578 = vmatprep.subr.bf16.mxu0 0
  %579 = vmatpush2.bf16.msra.mxu0 0
  %580 = vmatprep.subr.bf16.mxu0 0
  %581 = vmatpush2.bf16.msra.mxu0 0
  %582 = vmatprep.subr.bf16.mxu0 0
  %583 = vmatpush2.bf16.msra.mxu0 0
  %584 = vmatprep.mubr.bf16.mxu0 0
  %585 = vmatmul.mubr.bf16.gmra.mxu0 %v498
  %v586 = vpop.f32.mrf.mxu0
  %v587 = vadd.f32 %v257, %v586
  %v588 = vpop.f32.mrf.mxu0
  %v589 = vpop.f32.mrf.mxu0
  %v590 = vpop.f32.mrf.mxu0
  %591 = vdwg.mxu0
  %v596 = vunpack.c.l.b16 %v126
  %v597 = vunpack.c.l.b16 %v127
  %v598 = vunpack.c.l.b16 %v128
  %v599 = vunpack.c.l.b16 %v129
  %v600 = vpack.c.b16 %v597, %v596
  %v601 = vpack.c.b16 %v599, %v598
  %604 = vmatprep.subr.bf16.mxu0 0
  %605 = vmatpush1.bf16.msra.mxu0 0
  %606 = vmatprep.subr.bf16.mxu0 0
  %607 = vmatpush1.bf16.msra.mxu0 0
  %608 = vmatprep.subr.bf16.mxu0 0
  %609 = vmatpush1.bf16.msra.mxu0 0
  %610 = vmatprep.subr.bf16.mxu0 0
  %611 = vmatpush1.bf16.msra.mxu0 0
  %612 = vmatprep.subr.bf16.mxu0 0
  %613 = vmatpush1.bf16.msra.mxu0 0
  %614 = vmatprep.subr.bf16.mxu0 0
  %615 = vmatpush1.bf16.msra.mxu0 0
  %616 = vmatprep.subr.bf16.mxu0 0
  %617 = vmatpush1.bf16.msra.mxu0 %v601
  %618 = vmatprep.subr.bf16.mxu0 0
  %619 = vmatpush1.bf16.msra.mxu0 %v600
  %620 = vmatprep.subr.bf16.mxu0 0
  %621 = vmatpush2.bf16.msra.mxu0 0
  %622 = vmatprep.subr.bf16.mxu0 0
  %623 = vmatpush2.bf16.msra.mxu0 0
  %624 = vmatprep.subr.bf16.mxu0 0
  %625 = vmatpush2.bf16.msra.mxu0 0
  %626 = vmatprep.subr.bf16.mxu0 0
  %627 = vmatpush2.bf16.msra.mxu0 0
  %628 = vmatprep.subr.bf16.mxu0 0
  %629 = vmatpush2.bf16.msra.mxu0 0
  %630 = vmatprep.subr.bf16.mxu0 0
  %631 = vmatpush2.bf16.msra.mxu0 0
  %632 = vmatprep.subr.bf16.mxu0 0
  %633 = vmatpush2.bf16.msra.mxu0 0
  %634 = vmatprep.subr.bf16.mxu0 0
  %635 = vmatpush2.bf16.msra.mxu0 0
  %636 = vmatprep.mubr.bf16.mxu0 0
  %637 = vmatmul.mubr.bf16.gmra.mxu0 %v498
  %v638 = vpop.f32.mrf.mxu0
  %v639 = vadd.f32 %v261, %v638
  %v640 = vpop.f32.mrf.mxu0
  %v641 = vpop.f32.mrf.mxu0
  %v642 = vpop.f32.mrf.mxu0
  %643 = vdwg.mxu0
  %v648 = vunpack.c.l.b16 %v130
  %v649 = vunpack.c.l.b16 %v131
  %v650 = vunpack.c.l.b16 %v132
  %v651 = vunpack.c.l.b16 %v133
  %v652 = vpack.c.b16 %v649, %v648
  %v653 = vpack.c.b16 %v651, %v650
  %656 = vmatprep.subr.bf16.mxu0 0
  %657 = vmatpush1.bf16.msra.mxu0 0
  %658 = vmatprep.subr.bf16.mxu0 0
  %659 = vmatpush1.bf16.msra.mxu0 0
  %660 = vmatprep.subr.bf16.mxu0 0
  %661 = vmatpush1.bf16.msra.mxu0 0
  %662 = vmatprep.subr.bf16.mxu0 0
  %663 = vmatpush1.bf16.msra.mxu0 0
  %664 = vmatprep.subr.bf16.mxu0 0
  %665 = vmatpush1.bf16.msra.mxu0 0
  %666 = vmatprep.subr.bf16.mxu0 0
  %667 = vmatpush1.bf16.msra.mxu0 0
  %668 = vmatprep.subr.bf16.mxu0 0
  %669 = vmatpush1.bf16.msra.mxu0 %v653
  %670 = vmatprep.subr.bf16.mxu0 0
  %671 = vmatpush1.bf16.msra.mxu0 %v652
  %672 = vmatprep.subr.bf16.mxu0 0
  %673 = vmatpush2.bf16.msra.mxu0 0
  %674 = vmatprep.subr.bf16.mxu0 0
  %675 = vmatpush2.bf16.msra.mxu0 0
  %676 = vmatprep.subr.bf16.mxu0 0
  %677 = vmatpush2.bf16.msra.mxu0 0
  %678 = vmatprep.subr.bf16.mxu0 0
  %679 = vmatpush2.bf16.msra.mxu0 0
  %680 = vmatprep.subr.bf16.mxu0 0
  %681 = vmatpush2.bf16.msra.mxu0 0
  %682 = vmatprep.subr.bf16.mxu0 0
  %683 = vmatpush2.bf16.msra.mxu0 0
  %684 = vmatprep.subr.bf16.mxu0 0
  %685 = vmatpush2.bf16.msra.mxu0 0
  %686 = vmatprep.subr.bf16.mxu0 0
  %687 = vmatpush2.bf16.msra.mxu0 0
  %688 = vmatprep.mubr.bf16.mxu0 0
  %689 = vmatmul.mubr.bf16.gmra.mxu0 %v498
  %v690 = vpop.f32.mrf.mxu0
  %v691 = vadd.f32 %v265, %v690
  %v692 = vpop.f32.mrf.mxu0
  %v693 = vpop.f32.mrf.mxu0
  %v694 = vpop.f32.mrf.mxu0
  %695 = vdwg.mxu0
  %v704 = vlaneseq
  %v705 = vshrl.u32 %v704, 7
  %v706 = vsub.s32 0, %v705
  %v707 = vrot.slane %v209, %v706
  %v708 = vlaneseq
  %v709 = vshrl.u32 %v708, 7
  %v710 = vsub.s32 0, %v709
  %v711 = vrot.slane %v210, %v710
  %v712 = vlaneseq
  %v713 = vshrl.u32 %v712, 7
  %v714 = vsub.s32 0, %v713
  %v715 = vrot.slane %v211, %v714
  %v716 = vlaneseq
  %v717 = vshrl.u32 %v716, 7
  %v718 = vsub.s32 0, %v717
  %v719 = vrot.slane %v212, %v718
  %v720 = vlaneseq
  %v721 = vshrl.u32 %v720, 7
  %v722 = vsub.s32 0, %v721
  %v723 = vrot.slane %v213, %v722
  %v724 = vlaneseq
  %v725 = vshrl.u32 %v724, 7
  %v726 = vsub.s32 0, %v725
  %v727 = vrot.slane %v214, %v726
  %v728 = vlaneseq
  %v729 = vshrl.u32 %v728, 7
  %v730 = vsub.s32 0, %v729
  %v731 = vrot.slane %v215, %v730
  %v732 = vlaneseq
  %v733 = vshrl.u32 %v732, 7
  %v734 = vsub.s32 0, %v733
  %v735 = vrot.slane %v216, %v734
  %v748 = vunpack.c.l.b16 %v135
  %v749 = vunpack.c.l.b16 %v136
  %v750 = vunpack.c.l.b16 %v137
  %v751 = vunpack.c.l.b16 %v138
  %v752 = vpack.c.b16 %v749, %v748
  %v753 = vpack.c.b16 %v751, %v750
  %756 = vmatprep.subr.bf16.mxu0 0
  %757 = vmatpush1.bf16.msra.mxu0 0
  %758 = vmatprep.subr.bf16.mxu0 0
  %759 = vmatpush1.bf16.msra.mxu0 0
  %760 = vmatprep.subr.bf16.mxu0 0
  %761 = vmatpush1.bf16.msra.mxu0 0
  %762 = vmatprep.subr.bf16.mxu0 0
  %763 = vmatpush1.bf16.msra.mxu0 0
  %764 = vmatprep.subr.bf16.mxu0 0
  %765 = vmatpush1.bf16.msra.mxu0 0
  %766 = vmatprep.subr.bf16.mxu0 0
  %767 = vmatpush1.bf16.msra.mxu0 0
  %768 = vmatprep.subr.bf16.mxu0 0
  %769 = vmatpush1.bf16.msra.mxu0 %v753
  %770 = vmatprep.subr.bf16.mxu0 0
  %771 = vmatpush1.bf16.msra.mxu0 %v752
  %772 = vmatprep.subr.bf16.mxu0 0
  %773 = vmatpush2.bf16.msra.mxu0 0
  %774 = vmatprep.subr.bf16.mxu0 0
  %775 = vmatpush2.bf16.msra.mxu0 0
  %776 = vmatprep.subr.bf16.mxu0 0
  %777 = vmatpush2.bf16.msra.mxu0 0
  %778 = vmatprep.subr.bf16.mxu0 0
  %779 = vmatpush2.bf16.msra.mxu0 0
  %780 = vmatprep.subr.bf16.mxu0 0
  %781 = vmatpush2.bf16.msra.mxu0 0
  %782 = vmatprep.subr.bf16.mxu0 0
  %783 = vmatpush2.bf16.msra.mxu0 0
  %784 = vmatprep.subr.bf16.mxu0 0
  %785 = vmatpush2.bf16.msra.mxu0 0
  %786 = vmatprep.subr.bf16.mxu0 0
  %787 = vmatpush2.bf16.msra.mxu0 0
  %788 = vmatprep.mubr.bf16.mxu0 0
  %789 = vmatmul.mubr.bf16.gmra.mxu0 %v287
  %v790 = vpop.f32.mrf.mxu0
  %v791 = vadd.f32 %v707, %v790
  %v792 = vpop.f32.mrf.mxu0
  %v793 = vpop.f32.mrf.mxu0
  %v794 = vpop.f32.mrf.mxu0
  %795 = vdwg.mxu0
  %v800 = vunpack.c.l.b16 %v139
  %v801 = vunpack.c.l.b16 %v140
  %v802 = vunpack.c.l.b16 %v141
  %v803 = vunpack.c.l.b16 %v142
  %v804 = vpack.c.b16 %v801, %v800
  %v805 = vpack.c.b16 %v803, %v802
  %808 = vmatprep.subr.bf16.mxu0 0
  %809 = vmatpush1.bf16.msra.mxu0 0
  %810 = vmatprep.subr.bf16.mxu0 0
  %811 = vmatpush1.bf16.msra.mxu0 0
  %812 = vmatprep.subr.bf16.mxu0 0
  %813 = vmatpush1.bf16.msra.mxu0 0
  %814 = vmatprep.subr.bf16.mxu0 0
  %815 = vmatpush1.bf16.msra.mxu0 0
  %816 = vmatprep.subr.bf16.mxu0 0
  %817 = vmatpush1.bf16.msra.mxu0 0
  %818 = vmatprep.subr.bf16.mxu0 0
  %819 = vmatpush1.bf16.msra.mxu0 0
  %820 = vmatprep.subr.bf16.mxu0 0
  %821 = vmatpush1.bf16.msra.mxu0 %v805
  %822 = vmatprep.subr.bf16.mxu0 0
  %823 = vmatpush1.bf16.msra.mxu0 %v804
  %824 = vmatprep.subr.bf16.mxu0 0
  %825 = vmatpush2.bf16.msra.mxu0 0
  %826 = vmatprep.subr.bf16.mxu0 0
  %827 = vmatpush2.bf16.msra.mxu0 0
  %828 = vmatprep.subr.bf16.mxu0 0
  %829 = vmatpush2.bf16.msra.mxu0 0
  %830 = vmatprep.subr.bf16.mxu0 0
  %831 = vmatpush2.bf16.msra.mxu0 0
  %832 = vmatprep.subr.bf16.mxu0 0
  %833 = vmatpush2.bf16.msra.mxu0 0
  %834 = vmatprep.subr.bf16.mxu0 0
  %835 = vmatpush2.bf16.msra.mxu0 0
  %836 = vmatprep.subr.bf16.mxu0 0
  %837 = vmatpush2.bf16.msra.mxu0 0
  %838 = vmatprep.subr.bf16.mxu0 0
  %839 = vmatpush2.bf16.msra.mxu0 0
  %840 = vmatprep.mubr.bf16.mxu0 0
  %841 = vmatmul.mubr.bf16.gmra.mxu0 %v287
  %v842 = vpop.f32.mrf.mxu0
  %v843 = vadd.f32 %v711, %v842
  %v844 = vpop.f32.mrf.mxu0
  %v845 = vpop.f32.mrf.mxu0
  %v846 = vpop.f32.mrf.mxu0
  %847 = vdwg.mxu0
  %v852 = vunpack.c.l.b16 %v143
  %v853 = vunpack.c.l.b16 %v144
  %v854 = vunpack.c.l.b16 %v145
  %v855 = vunpack.c.l.b16 %v146
  %v856 = vpack.c.b16 %v853, %v852
  %v857 = vpack.c.b16 %v855, %v854
  %860 = vmatprep.subr.bf16.mxu0 0
  %861 = vmatpush1.bf16.msra.mxu0 0
  %862 = vmatprep.subr.bf16.mxu0 0
  %863 = vmatpush1.bf16.msra.mxu0 0
  %864 = vmatprep.subr.bf16.mxu0 0
  %865 = vmatpush1.bf16.msra.mxu0 0
  %866 = vmatprep.subr.bf16.mxu0 0
  %867 = vmatpush1.bf16.msra.mxu0 0
  %868 = vmatprep.subr.bf16.mxu0 0
  %869 = vmatpush1.bf16.msra.mxu0 0
  %870 = vmatprep.subr.bf16.mxu0 0
  %871 = vmatpush1.bf16.msra.mxu0 0
  %872 = vmatprep.subr.bf16.mxu0 0
  %873 = vmatpush1.bf16.msra.mxu0 %v857
  %874 = vmatprep.subr.bf16.mxu0 0
  %875 = vmatpush1.bf16.msra.mxu0 %v856
  %876 = vmatprep.subr.bf16.mxu0 0
  %877 = vmatpush2.bf16.msra.mxu0 0
  %878 = vmatprep.subr.bf16.mxu0 0
  %879 = vmatpush2.bf16.msra.mxu0 0
  %880 = vmatprep.subr.bf16.mxu0 0
  %881 = vmatpush2.bf16.msra.mxu0 0
  %882 = vmatprep.subr.bf16.mxu0 0
  %883 = vmatpush2.bf16.msra.mxu0 0
  %884 = vmatprep.subr.bf16.mxu0 0
  %885 = vmatpush2.bf16.msra.mxu0 0
  %886 = vmatprep.subr.bf16.mxu0 0
  %887 = vmatpush2.bf16.msra.mxu0 0
  %888 = vmatprep.subr.bf16.mxu0 0
  %889 = vmatpush2.bf16.msra.mxu0 0
  %890 = vmatprep.subr.bf16.mxu0 0
  %891 = vmatpush2.bf16.msra.mxu0 0
  %892 = vmatprep.mubr.bf16.mxu0 0
  %893 = vmatmul.mubr.bf16.gmra.mxu0 %v287
  %v894 = vpop.f32.mrf.mxu0
  %v895 = vadd.f32 %v715, %v894
  %v896 = vpop.f32.mrf.mxu0
  %v897 = vpop.f32.mrf.mxu0
  %v898 = vpop.f32.mrf.mxu0
  %899 = vdwg.mxu0
  %v904 = vunpack.c.l.b16 %v147
  %v905 = vunpack.c.l.b16 %v148
  %v906 = vunpack.c.l.b16 %v149
  %v907 = vunpack.c.l.b16 %v150
  %v908 = vpack.c.b16 %v905, %v904
  %v909 = vpack.c.b16 %v907, %v906
  %912 = vmatprep.subr.bf16.mxu0 0
  %913 = vmatpush1.bf16.msra.mxu0 0
  %914 = vmatprep.subr.bf16.mxu0 0
  %915 = vmatpush1.bf16.msra.mxu0 0
  %916 = vmatprep.subr.bf16.mxu0 0
  %917 = vmatpush1.bf16.msra.mxu0 0
  %918 = vmatprep.subr.bf16.mxu0 0
  %919 = vmatpush1.bf16.msra.mxu0 0
  %920 = vmatprep.subr.bf16.mxu0 0
  %921 = vmatpush1.bf16.msra.mxu0 0
  %922 = vmatprep.subr.bf16.mxu0 0
  %923 = vmatpush1.bf16.msra.mxu0 0
  %924 = vmatprep.subr.bf16.mxu0 0
  %925 = vmatpush1.bf16.msra.mxu0 %v909
  %926 = vmatprep.subr.bf16.mxu0 0
  %927 = vmatpush1.bf16.msra.mxu0 %v908
  %928 = vmatprep.subr.bf16.mxu0 0
  %929 = vmatpush2.bf16.msra.mxu0 0
  %930 = vmatprep.subr.bf16.mxu0 0
  %931 = vmatpush2.bf16.msra.mxu0 0
  %932 = vmatprep.subr.bf16.mxu0 0
  %933 = vmatpush2.bf16.msra.mxu0 0
  %934 = vmatprep.subr.bf16.mxu0 0
  %935 = vmatpush2.bf16.msra.mxu0 0
  %936 = vmatprep.subr.bf16.mxu0 0
  %937 = vmatpush2.bf16.msra.mxu0 0
  %938 = vmatprep.subr.bf16.mxu0 0
  %939 = vmatpush2.bf16.msra.mxu0 0
  %940 = vmatprep.subr.bf16.mxu0 0
  %941 = vmatpush2.bf16.msra.mxu0 0
  %942 = vmatprep.subr.bf16.mxu0 0
  %943 = vmatpush2.bf16.msra.mxu0 0
  %944 = vmatprep.mubr.bf16.mxu0 0
  %945 = vmatmul.mubr.bf16.gmra.mxu0 %v287
  %v946 = vpop.f32.mrf.mxu0
  %v947 = vadd.f32 %v719, %v946
  %v948 = vpop.f32.mrf.mxu0
  %v949 = vpop.f32.mrf.mxu0
  %v950 = vpop.f32.mrf.mxu0
  %951 = vdwg.mxu0
  %v956 = vunpack.c.l.b16 %v151
  %v957 = vunpack.c.l.b16 %v152
  %v958 = vunpack.c.l.b16 %v153
  %v959 = vunpack.c.l.b16 %v154
  %v960 = vpack.c.b16 %v957, %v956
  %v961 = vpack.c.b16 %v959, %v958
  %964 = vmatprep.subr.bf16.mxu0 0
  %965 = vmatpush1.bf16.msra.mxu0 0
  %966 = vmatprep.subr.bf16.mxu0 0
  %967 = vmatpush1.bf16.msra.mxu0 0
  %968 = vmatprep.subr.bf16.mxu0 0
  %969 = vmatpush1.bf16.msra.mxu0 0
  %970 = vmatprep.subr.bf16.mxu0 0
  %971 = vmatpush1.bf16.msra.mxu0 0
  %972 = vmatprep.subr.bf16.mxu0 0
  %973 = vmatpush1.bf16.msra.mxu0 0
  %974 = vmatprep.subr.bf16.mxu0 0
  %975 = vmatpush1.bf16.msra.mxu0 0
  %976 = vmatprep.subr.bf16.mxu0 0
  %977 = vmatpush1.bf16.msra.mxu0 %v961
  %978 = vmatprep.subr.bf16.mxu0 0
  %979 = vmatpush1.bf16.msra.mxu0 %v960
  %980 = vmatprep.subr.bf16.mxu0 0
  %981 = vmatpush2.bf16.msra.mxu0 0
  %982 = vmatprep.subr.bf16.mxu0 0
  %983 = vmatpush2.bf16.msra.mxu0 0
  %984 = vmatprep.subr.bf16.mxu0 0
  %985 = vmatpush2.bf16.msra.mxu0 0
  %986 = vmatprep.subr.bf16.mxu0 0
  %987 = vmatpush2.bf16.msra.mxu0 0
  %988 = vmatprep.subr.bf16.mxu0 0
  %989 = vmatpush2.bf16.msra.mxu0 0
  %990 = vmatprep.subr.bf16.mxu0 0
  %991 = vmatpush2.bf16.msra.mxu0 0
  %992 = vmatprep.subr.bf16.mxu0 0
  %993 = vmatpush2.bf16.msra.mxu0 0
  %994 = vmatprep.subr.bf16.mxu0 0
  %995 = vmatpush2.bf16.msra.mxu0 0
  %996 = vmatprep.mubr.bf16.mxu0 0
  %997 = vmatmul.mubr.bf16.gmra.mxu0 %v498
  %v998 = vpop.f32.mrf.mxu0
  %v999 = vadd.f32 %v723, %v998
  %v1000 = vpop.f32.mrf.mxu0
  %v1001 = vpop.f32.mrf.mxu0
  %v1002 = vpop.f32.mrf.mxu0
  %1003 = vdwg.mxu0
  %v1008 = vunpack.c.l.b16 %v155
  %v1009 = vunpack.c.l.b16 %v156
  %v1010 = vunpack.c.l.b16 %v157
  %v1011 = vunpack.c.l.b16 %v158
  %v1012 = vpack.c.b16 %v1009, %v1008
  %v1013 = vpack.c.b16 %v1011, %v1010
  %1016 = vmatprep.subr.bf16.mxu0 0
  %1017 = vmatpush1.bf16.msra.mxu0 0
  %1018 = vmatprep.subr.bf16.mxu0 0
  %1019 = vmatpush1.bf16.msra.mxu0 0
  %1020 = vmatprep.subr.bf16.mxu0 0
  %1021 = vmatpush1.bf16.msra.mxu0 0
  %1022 = vmatprep.subr.bf16.mxu0 0
  %1023 = vmatpush1.bf16.msra.mxu0 0
  %1024 = vmatprep.subr.bf16.mxu0 0
  %1025 = vmatpush1.bf16.msra.mxu0 0
  %1026 = vmatprep.subr.bf16.mxu0 0
  %1027 = vmatpush1.bf16.msra.mxu0 0
  %1028 = vmatprep.subr.bf16.mxu0 0
  %1029 = vmatpush1.bf16.msra.mxu0 %v1013
  %1030 = vmatprep.subr.bf16.mxu0 0
  %1031 = vmatpush1.bf16.msra.mxu0 %v1012
  %1032 = vmatprep.subr.bf16.mxu0 0
  %1033 = vmatpush2.bf16.msra.mxu0 0
  %1034 = vmatprep.subr.bf16.mxu0 0
  %1035 = vmatpush2.bf16.msra.mxu0 0
  %1036 = vmatprep.subr.bf16.mxu0 0
  %1037 = vmatpush2.bf16.msra.mxu0 0
  %1038 = vmatprep.subr.bf16.mxu0 0
  %1039 = vmatpush2.bf16.msra.mxu0 0
  %1040 = vmatprep.subr.bf16.mxu0 0
  %1041 = vmatpush2.bf16.msra.mxu0 0
  %1042 = vmatprep.subr.bf16.mxu0 0
  %1043 = vmatpush2.bf16.msra.mxu0 0
  %1044 = vmatprep.subr.bf16.mxu0 0
  %1045 = vmatpush2.bf16.msra.mxu0 0
  %1046 = vmatprep.subr.bf16.mxu0 0
  %1047 = vmatpush2.bf16.msra.mxu0 0
  %1048 = vmatprep.mubr.bf16.mxu0 0
  %1049 = vmatmul.mubr.bf16.gmra.mxu0 %v498
  %v1050 = vpop.f32.mrf.mxu0
  %v1051 = vadd.f32 %v727, %v1050
  %v1052 = vpop.f32.mrf.mxu0
  %v1053 = vpop.f32.mrf.mxu0
  %v1054 = vpop.f32.mrf.mxu0
  %1055 = vdwg.mxu0
  %v1060 = vunpack.c.l.b16 %v159
  %v1061 = vunpack.c.l.b16 %v160
  %v1062 = vunpack.c.l.b16 %v161
  %v1063 = vunpack.c.l.b16 %v162
  %v1064 = vpack.c.b16 %v1061, %v1060
  %v1065 = vpack.c.b16 %v1063, %v1062
  %1068 = vmatprep.subr.bf16.mxu0 0
  %1069 = vmatpush1.bf16.msra.mxu0 0
  %1070 = vmatprep.subr.bf16.mxu0 0
  %1071 = vmatpush1.bf16.msra.mxu0 0
  %1072 = vmatprep.subr.bf16.mxu0 0
  %1073 = vmatpush1.bf16.msra.mxu0 0
  %1074 = vmatprep.subr.bf16.mxu0 0
  %1075 = vmatpush1.bf16.msra.mxu0 0
  %1076 = vmatprep.subr.bf16.mxu0 0
  %1077 = vmatpush1.bf16.msra.mxu0 0
  %1078 = vmatprep.subr.bf16.mxu0 0
  %1079 = vmatpush1.bf16.msra.mxu0 0
  %1080 = vmatprep.subr.bf16.mxu0 0
  %1081 = vmatpush1.bf16.msra.mxu0 %v1065
  %1082 = vmatprep.subr.bf16.mxu0 0
  %1083 = vmatpush1.bf16.msra.mxu0 %v1064
  %1084 = vmatprep.subr.bf16.mxu0 0
  %1085 = vmatpush2.bf16.msra.mxu0 0
  %1086 = vmatprep.subr.bf16.mxu0 0
  %1087 = vmatpush2.bf16.msra.mxu0 0
  %1088 = vmatprep.subr.bf16.mxu0 0
  %1089 = vmatpush2.bf16.msra.mxu0 0
  %1090 = vmatprep.subr.bf16.mxu0 0
  %1091 = vmatpush2.bf16.msra.mxu0 0
  %1092 = vmatprep.subr.bf16.mxu0 0
  %1093 = vmatpush2.bf16.msra.mxu0 0
  %1094 = vmatprep.subr.bf16.mxu0 0
  %1095 = vmatpush2.bf16.msra.mxu0 0
  %1096 = vmatprep.subr.bf16.mxu0 0
  %1097 = vmatpush2.bf16.msra.mxu0 0
  %1098 = vmatprep.subr.bf16.mxu0 0
  %1099 = vmatpush2.bf16.msra.mxu0 0
  %1100 = vmatprep.mubr.bf16.mxu0 0
  %1101 = vmatmul.mubr.bf16.gmra.mxu0 %v498
  %v1102 = vpop.f32.mrf.mxu0
  %v1103 = vadd.f32 %v731, %v1102
  %v1104 = vpop.f32.mrf.mxu0
  %v1105 = vpop.f32.mrf.mxu0
  %v1106 = vpop.f32.mrf.mxu0
  %1107 = vdwg.mxu0
  %v1112 = vunpack.c.l.b16 %v163
  %v1113 = vunpack.c.l.b16 %v164
  %v1114 = vunpack.c.l.b16 %v165
  %v1115 = vunpack.c.l.b16 %v166
  %v1116 = vpack.c.b16 %v1113, %v1112
  %v1117 = vpack.c.b16 %v1115, %v1114
  %1120 = vmatprep.subr.bf16.mxu0 0
  %1121 = vmatpush1.bf16.msra.mxu0 0
  %1122 = vmatprep.subr.bf16.mxu0 0
  %1123 = vmatpush1.bf16.msra.mxu0 0
  %1124 = vmatprep.subr.bf16.mxu0 0
  %1125 = vmatpush1.bf16.msra.mxu0 0
  %1126 = vmatprep.subr.bf16.mxu0 0
  %1127 = vmatpush1.bf16.msra.mxu0 0
  %1128 = vmatprep.subr.bf16.mxu0 0
  %1129 = vmatpush1.bf16.msra.mxu0 0
  %1130 = vmatprep.subr.bf16.mxu0 0
  %1131 = vmatpush1.bf16.msra.mxu0 0
  %1132 = vmatprep.subr.bf16.mxu0 0
  %1133 = vmatpush1.bf16.msra.mxu0 %v1117
  %1134 = vmatprep.subr.bf16.mxu0 0
  %1135 = vmatpush1.bf16.msra.mxu0 %v1116
  %1136 = vmatprep.subr.bf16.mxu0 0
  %1137 = vmatpush2.bf16.msra.mxu0 0
  %1138 = vmatprep.subr.bf16.mxu0 0
  %1139 = vmatpush2.bf16.msra.mxu0 0
  %1140 = vmatprep.subr.bf16.mxu0 0
  %1141 = vmatpush2.bf16.msra.mxu0 0
  %1142 = vmatprep.subr.bf16.mxu0 0
  %1143 = vmatpush2.bf16.msra.mxu0 0
  %1144 = vmatprep.subr.bf16.mxu0 0
  %1145 = vmatpush2.bf16.msra.mxu0 0
  %1146 = vmatprep.subr.bf16.mxu0 0
  %1147 = vmatpush2.bf16.msra.mxu0 0
  %1148 = vmatprep.subr.bf16.mxu0 0
  %1149 = vmatpush2.bf16.msra.mxu0 0
  %1150 = vmatprep.subr.bf16.mxu0 0
  %1151 = vmatpush2.bf16.msra.mxu0 0
  %1152 = vmatprep.mubr.bf16.mxu0 0
  %1153 = vmatmul.mubr.bf16.gmra.mxu0 %v498
  %v1154 = vpop.f32.mrf.mxu0
  %v1155 = vadd.f32 %v735, %v1154
  %v1156 = vpop.f32.mrf.mxu0
  %v1157 = vpop.f32.mrf.mxu0
  %v1158 = vpop.f32.mrf.mxu0
  %1159 = vdwg.mxu0
  %v1168 = vlaneseq
  %v1169 = vshrl.u32 %v1168, 7
  %v1170 = vsub.s32 0, %v1169
  %v1171 = vrot.slane %v218, %v1170
  %v1172 = vlaneseq
  %v1173 = vshrl.u32 %v1172, 7
  %v1174 = vsub.s32 0, %v1173
  %v1175 = vrot.slane %v219, %v1174
  %v1176 = vlaneseq
  %v1177 = vshrl.u32 %v1176, 7
  %v1178 = vsub.s32 0, %v1177
  %v1179 = vrot.slane %v220, %v1178
  %v1180 = vlaneseq
  %v1181 = vshrl.u32 %v1180, 7
  %v1182 = vsub.s32 0, %v1181
  %v1183 = vrot.slane %v221, %v1182
  %v1184 = vlaneseq
  %v1185 = vshrl.u32 %v1184, 7
  %v1186 = vsub.s32 0, %v1185
  %v1187 = vrot.slane %v222, %v1186
  %v1188 = vlaneseq
  %v1189 = vshrl.u32 %v1188, 7
  %v1190 = vsub.s32 0, %v1189
  %v1191 = vrot.slane %v223, %v1190
  %v1192 = vlaneseq
  %v1193 = vshrl.u32 %v1192, 7
  %v1194 = vsub.s32 0, %v1193
  %v1195 = vrot.slane %v224, %v1194
  %v1196 = vlaneseq
  %v1197 = vshrl.u32 %v1196, 7
  %v1198 = vsub.s32 0, %v1197
  %v1199 = vrot.slane %v225, %v1198
  %v1212 = vunpack.c.l.b16 %v168
  %v1213 = vunpack.c.l.b16 %v169
  %v1214 = vunpack.c.l.b16 %v170
  %v1215 = vunpack.c.l.b16 %v171
  %v1216 = vpack.c.b16 %v1213, %v1212
  %v1217 = vpack.c.b16 %v1215, %v1214
  %1220 = vmatprep.subr.bf16.mxu0 0
  %1221 = vmatpush1.bf16.msra.mxu0 0
  %1222 = vmatprep.subr.bf16.mxu0 0
  %1223 = vmatpush1.bf16.msra.mxu0 0
  %1224 = vmatprep.subr.bf16.mxu0 0
  %1225 = vmatpush1.bf16.msra.mxu0 0
  %1226 = vmatprep.subr.bf16.mxu0 0
  %1227 = vmatpush1.bf16.msra.mxu0 0
  %1228 = vmatprep.subr.bf16.mxu0 0
  %1229 = vmatpush1.bf16.msra.mxu0 0
  %1230 = vmatprep.subr.bf16.mxu0 0
  %1231 = vmatpush1.bf16.msra.mxu0 0
  %1232 = vmatprep.subr.bf16.mxu0 0
  %1233 = vmatpush1.bf16.msra.mxu0 %v1217
  %1234 = vmatprep.subr.bf16.mxu0 0
  %1235 = vmatpush1.bf16.msra.mxu0 %v1216
  %1236 = vmatprep.subr.bf16.mxu0 0
  %1237 = vmatpush2.bf16.msra.mxu0 0
  %1238 = vmatprep.subr.bf16.mxu0 0
  %1239 = vmatpush2.bf16.msra.mxu0 0
  %1240 = vmatprep.subr.bf16.mxu0 0
  %1241 = vmatpush2.bf16.msra.mxu0 0
  %1242 = vmatprep.subr.bf16.mxu0 0
  %1243 = vmatpush2.bf16.msra.mxu0 0
  %1244 = vmatprep.subr.bf16.mxu0 0
  %1245 = vmatpush2.bf16.msra.mxu0 0
  %1246 = vmatprep.subr.bf16.mxu0 0
  %1247 = vmatpush2.bf16.msra.mxu0 0
  %1248 = vmatprep.subr.bf16.mxu0 0
  %1249 = vmatpush2.bf16.msra.mxu0 0
  %1250 = vmatprep.subr.bf16.mxu0 0
  %1251 = vmatpush2.bf16.msra.mxu0 0
  %1252 = vmatprep.mubr.bf16.mxu0 0
  %1253 = vmatmul.mubr.bf16.gmra.mxu0 %v287
  %v1254 = vpop.f32.mrf.mxu0
  %v1255 = vadd.f32 %v1171, %v1254
  %v1256 = vpop.f32.mrf.mxu0
  %v1257 = vpop.f32.mrf.mxu0
  %v1258 = vpop.f32.mrf.mxu0
  %1259 = vdwg.mxu0
  %v1264 = vunpack.c.l.b16 %v172
  %v1265 = vunpack.c.l.b16 %v173
  %v1266 = vunpack.c.l.b16 %v174
  %v1267 = vunpack.c.l.b16 %v175
  %v1268 = vpack.c.b16 %v1265, %v1264
  %v1269 = vpack.c.b16 %v1267, %v1266
  %1272 = vmatprep.subr.bf16.mxu0 0
  %1273 = vmatpush1.bf16.msra.mxu0 0
  %1274 = vmatprep.subr.bf16.mxu0 0
  %1275 = vmatpush1.bf16.msra.mxu0 0
  %1276 = vmatprep.subr.bf16.mxu0 0
  %1277 = vmatpush1.bf16.msra.mxu0 0
  %1278 = vmatprep.subr.bf16.mxu0 0
  %1279 = vmatpush1.bf16.msra.mxu0 0
  %1280 = vmatprep.subr.bf16.mxu0 0
  %1281 = vmatpush1.bf16.msra.mxu0 0
  %1282 = vmatprep.subr.bf16.mxu0 0
  %1283 = vmatpush1.bf16.msra.mxu0 0
  %1284 = vmatprep.subr.bf16.mxu0 0
  %1285 = vmatpush1.bf16.msra.mxu0 %v1269
  %1286 = vmatprep.subr.bf16.mxu0 0
  %1287 = vmatpush1.bf16.msra.mxu0 %v1268
  %1288 = vmatprep.subr.bf16.mxu0 0
  %1289 = vmatpush2.bf16.msra.mxu0 0
  %1290 = vmatprep.subr.bf16.mxu0 0
  %1291 = vmatpush2.bf16.msra.mxu0 0
  %1292 = vmatprep.subr.bf16.mxu0 0
  %1293 = vmatpush2.bf16.msra.mxu0 0
  %1294 = vmatprep.subr.bf16.mxu0 0
  %1295 = vmatpush2.bf16.msra.mxu0 0
  %1296 = vmatprep.subr.bf16.mxu0 0
  %1297 = vmatpush2.bf16.msra.mxu0 0
  %1298 = vmatprep.subr.bf16.mxu0 0
  %1299 = vmatpush2.bf16.msra.mxu0 0
  %1300 = vmatprep.subr.bf16.mxu0 0
  %1301 = vmatpush2.bf16.msra.mxu0 0
  %1302 = vmatprep.subr.bf16.mxu0 0
  %1303 = vmatpush2.bf16.msra.mxu0 0
  %1304 = vmatprep.mubr.bf16.mxu0 0
  %1305 = vmatmul.mubr.bf16.gmra.mxu0 %v287
  %v1306 = vpop.f32.mrf.mxu0
  %v1307 = vadd.f32 %v1175, %v1306
  %v1308 = vpop.f32.mrf.mxu0
  %v1309 = vpop.f32.mrf.mxu0
  %v1310 = vpop.f32.mrf.mxu0
  %1311 = vdwg.mxu0
  %v1316 = vunpack.c.l.b16 %v176
  %v1317 = vunpack.c.l.b16 %v177
  %v1318 = vunpack.c.l.b16 %v178
  %v1319 = vunpack.c.l.b16 %v179
  %v1320 = vpack.c.b16 %v1317, %v1316
  %v1321 = vpack.c.b16 %v1319, %v1318
  %1324 = vmatprep.subr.bf16.mxu0 0
  %1325 = vmatpush1.bf16.msra.mxu0 0
  %1326 = vmatprep.subr.bf16.mxu0 0
  %1327 = vmatpush1.bf16.msra.mxu0 0
  %1328 = vmatprep.subr.bf16.mxu0 0
  %1329 = vmatpush1.bf16.msra.mxu0 0
  %1330 = vmatprep.subr.bf16.mxu0 0
  %1331 = vmatpush1.bf16.msra.mxu0 0
  %1332 = vmatprep.subr.bf16.mxu0 0
  %1333 = vmatpush1.bf16.msra.mxu0 0
  %1334 = vmatprep.subr.bf16.mxu0 0
  %1335 = vmatpush1.bf16.msra.mxu0 0
  %1336 = vmatprep.subr.bf16.mxu0 0
  %1337 = vmatpush1.bf16.msra.mxu0 %v1321
  %1338 = vmatprep.subr.bf16.mxu0 0
  %1339 = vmatpush1.bf16.msra.mxu0 %v1320
  %1340 = vmatprep.subr.bf16.mxu0 0
  %1341 = vmatpush2.bf16.msra.mxu0 0
  %1342 = vmatprep.subr.bf16.mxu0 0
  %1343 = vmatpush2.bf16.msra.mxu0 0
  %1344 = vmatprep.subr.bf16.mxu0 0
  %1345 = vmatpush2.bf16.msra.mxu0 0
  %1346 = vmatprep.subr.bf16.mxu0 0
  %1347 = vmatpush2.bf16.msra.mxu0 0
  %1348 = vmatprep.subr.bf16.mxu0 0
  %1349 = vmatpush2.bf16.msra.mxu0 0
  %1350 = vmatprep.subr.bf16.mxu0 0
  %1351 = vmatpush2.bf16.msra.mxu0 0
  %1352 = vmatprep.subr.bf16.mxu0 0
  %1353 = vmatpush2.bf16.msra.mxu0 0
  %1354 = vmatprep.subr.bf16.mxu0 0
  %1355 = vmatpush2.bf16.msra.mxu0 0
  %1356 = vmatprep.mubr.bf16.mxu0 0
  %1357 = vmatmul.mubr.bf16.gmra.mxu0 %v287
  %v1358 = vpop.f32.mrf.mxu0
  %v1359 = vadd.f32 %v1179, %v1358
  %v1360 = vpop.f32.mrf.mxu0
  %v1361 = vpop.f32.mrf.mxu0
  %v1362 = vpop.f32.mrf.mxu0
  %1363 = vdwg.mxu0
  %v1368 = vunpack.c.l.b16 %v180
  %v1369 = vunpack.c.l.b16 %v181
  %v1370 = vunpack.c.l.b16 %v182
  %v1371 = vunpack.c.l.b16 %v183
  %v1372 = vpack.c.b16 %v1369, %v1368
  %v1373 = vpack.c.b16 %v1371, %v1370
  %1376 = vmatprep.subr.bf16.mxu0 0
  %1377 = vmatpush1.bf16.msra.mxu0 0
  %1378 = vmatprep.subr.bf16.mxu0 0
  %1379 = vmatpush1.bf16.msra.mxu0 0
  %1380 = vmatprep.subr.bf16.mxu0 0
  %1381 = vmatpush1.bf16.msra.mxu0 0
  %1382 = vmatprep.subr.bf16.mxu0 0
  %1383 = vmatpush1.bf16.msra.mxu0 0
  %1384 = vmatprep.subr.bf16.mxu0 0
  %1385 = vmatpush1.bf16.msra.mxu0 0
  %1386 = vmatprep.subr.bf16.mxu0 0
  %1387 = vmatpush1.bf16.msra.mxu0 0
  %1388 = vmatprep.subr.bf16.mxu0 0
  %1389 = vmatpush1.bf16.msra.mxu0 %v1373
  %1390 = vmatprep.subr.bf16.mxu0 0
  %1391 = vmatpush1.bf16.msra.mxu0 %v1372
  %1392 = vmatprep.subr.bf16.mxu0 0
  %1393 = vmatpush2.bf16.msra.mxu0 0
  %1394 = vmatprep.subr.bf16.mxu0 0
  %1395 = vmatpush2.bf16.msra.mxu0 0
  %1396 = vmatprep.subr.bf16.mxu0 0
  %1397 = vmatpush2.bf16.msra.mxu0 0
  %1398 = vmatprep.subr.bf16.mxu0 0
  %1399 = vmatpush2.bf16.msra.mxu0 0
  %1400 = vmatprep.subr.bf16.mxu0 0
  %1401 = vmatpush2.bf16.msra.mxu0 0
  %1402 = vmatprep.subr.bf16.mxu0 0
  %1403 = vmatpush2.bf16.msra.mxu0 0
  %1404 = vmatprep.subr.bf16.mxu0 0
  %1405 = vmatpush2.bf16.msra.mxu0 0
  %1406 = vmatprep.subr.bf16.mxu0 0
  %1407 = vmatpush2.bf16.msra.mxu0 0
  %1408 = vmatprep.mubr.bf16.mxu0 0
  %1409 = vmatmul.mubr.bf16.gmra.mxu0 %v287
  %v1410 = vpop.f32.mrf.mxu0
  %v1411 = vadd.f32 %v1183, %v1410
  %v1412 = vpop.f32.mrf.mxu0
  %v1413 = vpop.f32.mrf.mxu0
  %v1414 = vpop.f32.mrf.mxu0
  %1415 = vdwg.mxu0
  %v1420 = vunpack.c.l.b16 %v184
  %v1421 = vunpack.c.l.b16 %v185
  %v1422 = vunpack.c.l.b16 %v186
  %v1423 = vunpack.c.l.b16 %v187
  %v1424 = vpack.c.b16 %v1421, %v1420
  %v1425 = vpack.c.b16 %v1423, %v1422
  %1428 = vmatprep.subr.bf16.mxu0 0
  %1429 = vmatpush1.bf16.msra.mxu0 0
  %1430 = vmatprep.subr.bf16.mxu0 0
  %1431 = vmatpush1.bf16.msra.mxu0 0
  %1432 = vmatprep.subr.bf16.mxu0 0
  %1433 = vmatpush1.bf16.msra.mxu0 0
  %1434 = vmatprep.subr.bf16.mxu0 0
  %1435 = vmatpush1.bf16.msra.mxu0 0
  %1436 = vmatprep.subr.bf16.mxu0 0
  %1437 = vmatpush1.bf16.msra.mxu0 0
  %1438 = vmatprep.subr.bf16.mxu0 0
  %1439 = vmatpush1.bf16.msra.mxu0 0
  %1440 = vmatprep.subr.bf16.mxu0 0
  %1441 = vmatpush1.bf16.msra.mxu0 %v1425
  %1442 = vmatprep.subr.bf16.mxu0 0
  %1443 = vmatpush1.bf16.msra.mxu0 %v1424
  %1444 = vmatprep.subr.bf16.mxu0 0
  %1445 = vmatpush2.bf16.msra.mxu0 0
  %1446 = vmatprep.subr.bf16.mxu0 0
  %1447 = vmatpush2.bf16.msra.mxu0 0
  %1448 = vmatprep.subr.bf16.mxu0 0
  %1449 = vmatpush2.bf16.msra.mxu0 0
  %1450 = vmatprep.subr.bf16.mxu0 0
  %1451 = vmatpush2.bf16.msra.mxu0 0
  %1452 = vmatprep.subr.bf16.mxu0 0
  %1453 = vmatpush2.bf16.msra.mxu0 0
  %1454 = vmatprep.subr.bf16.mxu0 0
  %1455 = vmatpush2.bf16.msra.mxu0 0
  %1456 = vmatprep.subr.bf16.mxu0 0
  %1457 = vmatpush2.bf16.msra.mxu0 0
  %1458 = vmatprep.subr.bf16.mxu0 0
  %1459 = vmatpush2.bf16.msra.mxu0 0
  %1460 = vmatprep.mubr.bf16.mxu0 0
  %1461 = vmatmul.mubr.bf16.gmra.mxu0 %v498
  %v1462 = vpop.f32.mrf.mxu0
  %v1463 = vadd.f32 %v1187, %v1462
  %v1464 = vpop.f32.mrf.mxu0
  %v1465 = vpop.f32.mrf.mxu0
  %v1466 = vpop.f32.mrf.mxu0
  %1467 = vdwg.mxu0
  %v1472 = vunpack.c.l.b16 %v188
  %v1473 = vunpack.c.l.b16 %v189
  %v1474 = vunpack.c.l.b16 %v190
  %v1475 = vunpack.c.l.b16 %v191
  %v1476 = vpack.c.b16 %v1473, %v1472
  %v1477 = vpack.c.b16 %v1475, %v1474
  %1480 = vmatprep.subr.bf16.mxu0 0
  %1481 = vmatpush1.bf16.msra.mxu0 0
  %1482 = vmatprep.subr.bf16.mxu0 0
  %1483 = vmatpush1.bf16.msra.mxu0 0
  %1484 = vmatprep.subr.bf16.mxu0 0
  %1485 = vmatpush1.bf16.msra.mxu0 0
  %1486 = vmatprep.subr.bf16.mxu0 0
  %1487 = vmatpush1.bf16.msra.mxu0 0
  %1488 = vmatprep.subr.bf16.mxu0 0
  %1489 = vmatpush1.bf16.msra.mxu0 0
  %1490 = vmatprep.subr.bf16.mxu0 0
  %1491 = vmatpush1.bf16.msra.mxu0 0
  %1492 = vmatprep.subr.bf16.mxu0 0
  %1493 = vmatpush1.bf16.msra.mxu0 %v1477
  %1494 = vmatprep.subr.bf16.mxu0 0
  %1495 = vmatpush1.bf16.msra.mxu0 %v1476
  %1496 = vmatprep.subr.bf16.mxu0 0
  %1497 = vmatpush2.bf16.msra.mxu0 0
  %1498 = vmatprep.subr.bf16.mxu0 0
  %1499 = vmatpush2.bf16.msra.mxu0 0
  %1500 = vmatprep.subr.bf16.mxu0 0
  %1501 = vmatpush2.bf16.msra.mxu0 0
  %1502 = vmatprep.subr.bf16.mxu0 0
  %1503 = vmatpush2.bf16.msra.mxu0 0
  %1504 = vmatprep.subr.bf16.mxu0 0
  %1505 = vmatpush2.bf16.msra.mxu0 0
  %1506 = vmatprep.subr.bf16.mxu0 0
  %1507 = vmatpush2.bf16.msra.mxu0 0
  %1508 = vmatprep.subr.bf16.mxu0 0
  %1509 = vmatpush2.bf16.msra.mxu0 0
  %1510 = vmatprep.subr.bf16.mxu0 0
  %1511 = vmatpush2.bf16.msra.mxu0 0
  %1512 = vmatprep.mubr.bf16.mxu0 0
  %1513 = vmatmul.mubr.bf16.gmra.mxu0 %v498
  %v1514 = vpop.f32.mrf.mxu0
  %v1515 = vadd.f32 %v1191, %v1514
  %v1516 = vpop.f32.mrf.mxu0
  %v1517 = vpop.f32.mrf.mxu0
  %v1518 = vpop.f32.mrf.mxu0
  %1519 = vdwg.mxu0
  %v1524 = vunpack.c.l.b16 %v192
  %v1525 = vunpack.c.l.b16 %v193
  %v1526 = vunpack.c.l.b16 %v194
  %v1527 = vunpack.c.l.b16 %v195
  %v1528 = vpack.c.b16 %v1525, %v1524
  %v1529 = vpack.c.b16 %v1527, %v1526
  %1532 = vmatprep.subr.bf16.mxu0 0
  %1533 = vmatpush1.bf16.msra.mxu0 0
  %1534 = vmatprep.subr.bf16.mxu0 0
  %1535 = vmatpush1.bf16.msra.mxu0 0
  %1536 = vmatprep.subr.bf16.mxu0 0
  %1537 = vmatpush1.bf16.msra.mxu0 0
  %1538 = vmatprep.subr.bf16.mxu0 0
  %1539 = vmatpush1.bf16.msra.mxu0 0
  %1540 = vmatprep.subr.bf16.mxu0 0
  %1541 = vmatpush1.bf16.msra.mxu0 0
  %1542 = vmatprep.subr.bf16.mxu0 0
  %1543 = vmatpush1.bf16.msra.mxu0 0
  %1544 = vmatprep.subr.bf16.mxu0 0
  %1545 = vmatpush1.bf16.msra.mxu0 %v1529
  %1546 = vmatprep.subr.bf16.mxu0 0
  %1547 = vmatpush1.bf16.msra.mxu0 %v1528
  %1548 = vmatprep.subr.bf16.mxu0 0
  %1549 = vmatpush2.bf16.msra.mxu0 0
  %1550 = vmatprep.subr.bf16.mxu0 0
  %1551 = vmatpush2.bf16.msra.mxu0 0
  %1552 = vmatprep.subr.bf16.mxu0 0
  %1553 = vmatpush2.bf16.msra.mxu0 0
  %1554 = vmatprep.subr.bf16.mxu0 0
  %1555 = vmatpush2.bf16.msra.mxu0 0
  %1556 = vmatprep.subr.bf16.mxu0 0
  %1557 = vmatpush2.bf16.msra.mxu0 0
  %1558 = vmatprep.subr.bf16.mxu0 0
  %1559 = vmatpush2.bf16.msra.mxu0 0
  %1560 = vmatprep.subr.bf16.mxu0 0
  %1561 = vmatpush2.bf16.msra.mxu0 0
  %1562 = vmatprep.subr.bf16.mxu0 0
  %1563 = vmatpush2.bf16.msra.mxu0 0
  %1564 = vmatprep.mubr.bf16.mxu0 0
  %1565 = vmatmul.mubr.bf16.gmra.mxu0 %v498
  %v1566 = vpop.f32.mrf.mxu0
  %v1567 = vadd.f32 %v1195, %v1566
  %v1568 = vpop.f32.mrf.mxu0
  %v1569 = vpop.f32.mrf.mxu0
  %v1570 = vpop.f32.mrf.mxu0
  %1571 = vdwg.mxu0
  %v1576 = vunpack.c.l.b16 %v196
  %v1577 = vunpack.c.l.b16 %v197
  %v1578 = vunpack.c.l.b16 %v198
  %v1579 = vunpack.c.l.b16 %v199
  %v1580 = vpack.c.b16 %v1577, %v1576
  %v1581 = vpack.c.b16 %v1579, %v1578
  %1584 = vmatprep.subr.bf16.mxu0 0
  %1585 = vmatpush1.bf16.msra.mxu0 0
  %1586 = vmatprep.subr.bf16.mxu0 0
  %1587 = vmatpush1.bf16.msra.mxu0 0
  %1588 = vmatprep.subr.bf16.mxu0 0
  %1589 = vmatpush1.bf16.msra.mxu0 0
  %1590 = vmatprep.subr.bf16.mxu0 0
  %1591 = vmatpush1.bf16.msra.mxu0 0
  %1592 = vmatprep.subr.bf16.mxu0 0
  %1593 = vmatpush1.bf16.msra.mxu0 0
  %1594 = vmatprep.subr.bf16.mxu0 0
  %1595 = vmatpush1.bf16.msra.mxu0 0
  %1596 = vmatprep.subr.bf16.mxu0 0
  %1597 = vmatpush1.bf16.msra.mxu0 %v1581
  %1598 = vmatprep.subr.bf16.mxu0 0
  %1599 = vmatpush1.bf16.msra.mxu0 %v1580
  %1600 = vmatprep.subr.bf16.mxu0 0
  %1601 = vmatpush2.bf16.msra.mxu0 0
  %1602 = vmatprep.subr.bf16.mxu0 0
  %1603 = vmatpush2.bf16.msra.mxu0 0
  %1604 = vmatprep.subr.bf16.mxu0 0
  %1605 = vmatpush2.bf16.msra.mxu0 0
  %1606 = vmatprep.subr.bf16.mxu0 0
  %1607 = vmatpush2.bf16.msra.mxu0 0
  %1608 = vmatprep.subr.bf16.mxu0 0
  %1609 = vmatpush2.bf16.msra.mxu0 0
  %1610 = vmatprep.subr.bf16.mxu0 0
  %1611 = vmatpush2.bf16.msra.mxu0 0
  %1612 = vmatprep.subr.bf16.mxu0 0
  %1613 = vmatpush2.bf16.msra.mxu0 0
  %1614 = vmatprep.subr.bf16.mxu0 0
  %1615 = vmatpush2.bf16.msra.mxu0 0
  %1616 = vmatprep.mubr.bf16.mxu0 0
  %1617 = vmatmul.mubr.bf16.gmra.mxu0 %v498
  %v1618 = vpop.f32.mrf.mxu0
  %v1619 = vadd.f32 %v1199, %v1618
  %v1620 = vpop.f32.mrf.mxu0
  %v1621 = vpop.f32.mrf.mxu0
  %v1622 = vpop.f32.mrf.mxu0
  %1623 = vdwg.mxu0
  %v1624 = vpack.c.bf16 %v324, %v324
  %v1625 = vpack.c.bf16 %v376, %v376
  %v1626 = vpack.c.bf16 %v428, %v428
  %v1627 = vpack.c.bf16 %v480, %v480
  %v1628 = vpack.c.bf16 %v535, %v535
  %v1629 = vpack.c.bf16 %v587, %v587
  %v1630 = vpack.c.bf16 %v639, %v639
  %v1631 = vpack.c.bf16 %v691, %v691
  %v1632 = vpack.c.bf16 %v791, %v791
  %v1633 = vpack.c.bf16 %v843, %v843
  %v1634 = vpack.c.bf16 %v895, %v895
  %v1635 = vpack.c.bf16 %v947, %v947
  %v1636 = vpack.c.bf16 %v999, %v999
  %v1637 = vpack.c.bf16 %v1051, %v1051
  %v1638 = vpack.c.bf16 %v1103, %v1103
  %v1639 = vpack.c.bf16 %v1155, %v1155
  %v1648 = vlaneseq
  %v1649 = vshrl.u32 %v1648, 7
  %v1650 = vsub.s32 0, %v1649
  %v1651 = vrot.slane %v48, %v1650
  %v1652 = vlaneseq
  %v1653 = vshrl.u32 %v1652, 7
  %v1654 = vsub.s32 0, %v1653
  %v1655 = vrot.slane %v49, %v1654
  %v1656 = vlaneseq
  %v1657 = vshrl.u32 %v1656, 7
  %v1658 = vsub.s32 0, %v1657
  %v1659 = vrot.slane %v50, %v1658
  %v1660 = vlaneseq
  %v1661 = vshrl.u32 %v1660, 7
  %v1662 = vsub.s32 0, %v1661
  %v1663 = vrot.slane %v51, %v1662
  %v1664 = vlaneseq
  %v1665 = vshrl.u32 %v1664, 7
  %v1666 = vsub.s32 0, %v1665
  %v1667 = vrot.slane %v52, %v1666
  %v1668 = vlaneseq
  %v1669 = vshrl.u32 %v1668, 7
  %v1670 = vsub.s32 0, %v1669
  %v1671 = vrot.slane %v53, %v1670
  %v1672 = vlaneseq
  %v1673 = vshrl.u32 %v1672, 7
  %v1674 = vsub.s32 0, %v1673
  %v1675 = vrot.slane %v54, %v1674
  %v1676 = vlaneseq
  %v1677 = vshrl.u32 %v1676, 7
  %v1678 = vsub.s32 0, %v1677
  %v1679 = vrot.slane %v55, %v1678
  %vm1688 = vcmask 64512
  %v1690 = vsel %vm1688, %v1624, 0
  %v1693 = vsel %vm1688, %v1632, 0
  %1695 = vmatprep.subr.bf16.mxu0 0
  %1696 = vmatpush1.bf16.xpose.msra.mxu0 0
  %1697 = vmatprep.subr.bf16.mxu0 0
  %1698 = vmatpush1.bf16.xpose.msra.mxu0 0
  %1699 = vmatprep.subr.bf16.mxu0 0
  %1700 = vmatpush1.bf16.xpose.msra.mxu0 0
  %1701 = vmatprep.subr.bf16.mxu0 0
  %1702 = vmatpush1.bf16.xpose.msra.mxu0 0
  %1703 = vmatprep.subr.bf16.mxu0 0
  %1704 = vmatpush1.bf16.xpose.msra.mxu0 0
  %1705 = vmatprep.subr.bf16.mxu0 0
  %1706 = vmatpush1.bf16.xpose.msra.mxu0 0
  %1707 = vmatprep.subr.bf16.mxu0 0
  %1708 = vmatpush1.bf16.xpose.msra.mxu0 0
  %1709 = vmatprep.subr.bf16.mxu0 0
  %1710 = vmatpush1.bf16.xpose.msra.mxu0 %v1693
  %1711 = vmatprep.subr.bf16.mxu0 0
  %1712 = vmatpush2.bf16.xpose.msra.mxu0 0
  %1713 = vmatprep.subr.bf16.mxu0 0
  %1714 = vmatpush2.bf16.xpose.msra.mxu0 0
  %1715 = vmatprep.subr.bf16.mxu0 0
  %1716 = vmatpush2.bf16.xpose.msra.mxu0 0
  %1717 = vmatprep.subr.bf16.mxu0 0
  %1718 = vmatpush2.bf16.xpose.msra.mxu0 0
  %1719 = vmatprep.subr.bf16.mxu0 0
  %1720 = vmatpush2.bf16.xpose.msra.mxu0 0
  %1721 = vmatprep.subr.bf16.mxu0 0
  %1722 = vmatpush2.bf16.xpose.msra.mxu0 0
  %1723 = vmatprep.subr.bf16.mxu0 0
  %1724 = vmatpush2.bf16.xpose.msra.mxu0 0
  %1725 = vmatprep.subr.bf16.mxu0 0
  %1726 = vmatpush2.bf16.xpose.msra.mxu0 0
  %1727 = vmatprep.mubr.bf16.mxu0 0
  %1728 = vmatmul.mubr.bf16.gmra.mxu0 %v1690
  %v1729 = vpop.f32.mrf.mxu0
  %v1730 = vadd.f32 %v1651, %v1729
  %v1731 = vpop.f32.mrf.mxu0
  %v1732 = vpop.f32.mrf.mxu0
  %v1733 = vpop.f32.mrf.mxu0
  %1734 = vdwg.mxu0
  %v1736 = vsel %vm1688, %v1625, 0
  %v1739 = vsel %vm1688, %v1633, 0
  %1741 = vmatprep.subr.bf16.mxu0 0
  %1742 = vmatpush1.bf16.xpose.msra.mxu0 0
  %1743 = vmatprep.subr.bf16.mxu0 0
  %1744 = vmatpush1.bf16.xpose.msra.mxu0 0
  %1745 = vmatprep.subr.bf16.mxu0 0
  %1746 = vmatpush1.bf16.xpose.msra.mxu0 0
  %1747 = vmatprep.subr.bf16.mxu0 0
  %1748 = vmatpush1.bf16.xpose.msra.mxu0 0
  %1749 = vmatprep.subr.bf16.mxu0 0
  %1750 = vmatpush1.bf16.xpose.msra.mxu0 0
  %1751 = vmatprep.subr.bf16.mxu0 0
  %1752 = vmatpush1.bf16.xpose.msra.mxu0 0
  %1753 = vmatprep.subr.bf16.mxu0 0
  %1754 = vmatpush1.bf16.xpose.msra.mxu0 0
  %1755 = vmatprep.subr.bf16.mxu0 0
  %1756 = vmatpush1.bf16.xpose.msra.mxu0 %v1739
  %1757 = vmatprep.subr.bf16.mxu0 0
  %1758 = vmatpush2.bf16.xpose.msra.mxu0 0
  %1759 = vmatprep.subr.bf16.mxu0 0
  %1760 = vmatpush2.bf16.xpose.msra.mxu0 0
  %1761 = vmatprep.subr.bf16.mxu0 0
  %1762 = vmatpush2.bf16.xpose.msra.mxu0 0
  %1763 = vmatprep.subr.bf16.mxu0 0
  %1764 = vmatpush2.bf16.xpose.msra.mxu0 0
  %1765 = vmatprep.subr.bf16.mxu0 0
  %1766 = vmatpush2.bf16.xpose.msra.mxu0 0
  %1767 = vmatprep.subr.bf16.mxu0 0
  %1768 = vmatpush2.bf16.xpose.msra.mxu0 0
  %1769 = vmatprep.subr.bf16.mxu0 0
  %1770 = vmatpush2.bf16.xpose.msra.mxu0 0
  %1771 = vmatprep.subr.bf16.mxu0 0
  %1772 = vmatpush2.bf16.xpose.msra.mxu0 0
  %1773 = vmatprep.mubr.bf16.mxu0 0
  %1774 = vmatmul.mubr.bf16.gmra.mxu0 %v1736
  %v1775 = vpop.f32.mrf.mxu0
  %v1776 = vadd.f32 %v1655, %v1775
  %v1777 = vpop.f32.mrf.mxu0
  %v1778 = vpop.f32.mrf.mxu0
  %v1779 = vpop.f32.mrf.mxu0
  %1780 = vdwg.mxu0
  %v1782 = vsel %vm1688, %v1626, 0
  %v1785 = vsel %vm1688, %v1634, 0
  %1787 = vmatprep.subr.bf16.mxu0 0
  %1788 = vmatpush1.bf16.xpose.msra.mxu0 0
  %1789 = vmatprep.subr.bf16.mxu0 0
  %1790 = vmatpush1.bf16.xpose.msra.mxu0 0
  %1791 = vmatprep.subr.bf16.mxu0 0
  %1792 = vmatpush1.bf16.xpose.msra.mxu0 0
  %1793 = vmatprep.subr.bf16.mxu0 0
  %1794 = vmatpush1.bf16.xpose.msra.mxu0 0
  %1795 = vmatprep.subr.bf16.mxu0 0
  %1796 = vmatpush1.bf16.xpose.msra.mxu0 0
  %1797 = vmatprep.subr.bf16.mxu0 0
  %1798 = vmatpush1.bf16.xpose.msra.mxu0 0
  %1799 = vmatprep.subr.bf16.mxu0 0
  %1800 = vmatpush1.bf16.xpose.msra.mxu0 0
  %1801 = vmatprep.subr.bf16.mxu0 0
  %1802 = vmatpush1.bf16.xpose.msra.mxu0 %v1785
  %1803 = vmatprep.subr.bf16.mxu0 0
  %1804 = vmatpush2.bf16.xpose.msra.mxu0 0
  %1805 = vmatprep.subr.bf16.mxu0 0
  %1806 = vmatpush2.bf16.xpose.msra.mxu0 0
  %1807 = vmatprep.subr.bf16.mxu0 0
  %1808 = vmatpush2.bf16.xpose.msra.mxu0 0
  %1809 = vmatprep.subr.bf16.mxu0 0
  %1810 = vmatpush2.bf16.xpose.msra.mxu0 0
  %1811 = vmatprep.subr.bf16.mxu0 0
  %1812 = vmatpush2.bf16.xpose.msra.mxu0 0
  %1813 = vmatprep.subr.bf16.mxu0 0
  %1814 = vmatpush2.bf16.xpose.msra.mxu0 0
  %1815 = vmatprep.subr.bf16.mxu0 0
  %1816 = vmatpush2.bf16.xpose.msra.mxu0 0
  %1817 = vmatprep.subr.bf16.mxu0 0
  %1818 = vmatpush2.bf16.xpose.msra.mxu0 0
  %1819 = vmatprep.mubr.bf16.mxu0 0
  %1820 = vmatmul.mubr.bf16.gmra.mxu0 %v1782
  %v1821 = vpop.f32.mrf.mxu0
  %v1822 = vadd.f32 %v1659, %v1821
  %v1823 = vpop.f32.mrf.mxu0
  %v1824 = vpop.f32.mrf.mxu0
  %v1825 = vpop.f32.mrf.mxu0
  %1826 = vdwg.mxu0
  %v1828 = vsel %vm1688, %v1627, 0
  %v1831 = vsel %vm1688, %v1635, 0
  %1833 = vmatprep.subr.bf16.mxu0 0
  %1834 = vmatpush1.bf16.xpose.msra.mxu0 0
  %1835 = vmatprep.subr.bf16.mxu0 0
  %1836 = vmatpush1.bf16.xpose.msra.mxu0 0
  %1837 = vmatprep.subr.bf16.mxu0 0
  %1838 = vmatpush1.bf16.xpose.msra.mxu0 0
  %1839 = vmatprep.subr.bf16.mxu0 0
  %1840 = vmatpush1.bf16.xpose.msra.mxu0 0
  %1841 = vmatprep.subr.bf16.mxu0 0
  %1842 = vmatpush1.bf16.xpose.msra.mxu0 0
  %1843 = vmatprep.subr.bf16.mxu0 0
  %1844 = vmatpush1.bf16.xpose.msra.mxu0 0
  %1845 = vmatprep.subr.bf16.mxu0 0
  %1846 = vmatpush1.bf16.xpose.msra.mxu0 0
  %1847 = vmatprep.subr.bf16.mxu0 0
  %1848 = vmatpush1.bf16.xpose.msra.mxu0 %v1831
  %1849 = vmatprep.subr.bf16.mxu0 0
  %1850 = vmatpush2.bf16.xpose.msra.mxu0 0
  %1851 = vmatprep.subr.bf16.mxu0 0
  %1852 = vmatpush2.bf16.xpose.msra.mxu0 0
  %1853 = vmatprep.subr.bf16.mxu0 0
  %1854 = vmatpush2.bf16.xpose.msra.mxu0 0
  %1855 = vmatprep.subr.bf16.mxu0 0
  %1856 = vmatpush2.bf16.xpose.msra.mxu0 0
  %1857 = vmatprep.subr.bf16.mxu0 0
  %1858 = vmatpush2.bf16.xpose.msra.mxu0 0
  %1859 = vmatprep.subr.bf16.mxu0 0
  %1860 = vmatpush2.bf16.xpose.msra.mxu0 0
  %1861 = vmatprep.subr.bf16.mxu0 0
  %1862 = vmatpush2.bf16.xpose.msra.mxu0 0
  %1863 = vmatprep.subr.bf16.mxu0 0
  %1864 = vmatpush2.bf16.xpose.msra.mxu0 0
  %1865 = vmatprep.mubr.bf16.mxu0 0
  %1866 = vmatmul.mubr.bf16.gmra.mxu0 %v1828
  %v1867 = vpop.f32.mrf.mxu0
  %v1868 = vadd.f32 %v1663, %v1867
  %v1869 = vpop.f32.mrf.mxu0
  %v1870 = vpop.f32.mrf.mxu0
  %v1871 = vpop.f32.mrf.mxu0
  %1872 = vdwg.mxu0
  %v1874 = vsel %vm1688, %v1628, 0
  %v1877 = vsel %vm1688, %v1636, 0
  %1879 = vmatprep.subr.bf16.mxu0 0
  %1880 = vmatpush1.bf16.xpose.msra.mxu0 0
  %1881 = vmatprep.subr.bf16.mxu0 0
  %1882 = vmatpush1.bf16.xpose.msra.mxu0 0
  %1883 = vmatprep.subr.bf16.mxu0 0
  %1884 = vmatpush1.bf16.xpose.msra.mxu0 0
  %1885 = vmatprep.subr.bf16.mxu0 0
  %1886 = vmatpush1.bf16.xpose.msra.mxu0 0
  %1887 = vmatprep.subr.bf16.mxu0 0
  %1888 = vmatpush1.bf16.xpose.msra.mxu0 0
  %1889 = vmatprep.subr.bf16.mxu0 0
  %1890 = vmatpush1.bf16.xpose.msra.mxu0 0
  %1891 = vmatprep.subr.bf16.mxu0 0
  %1892 = vmatpush1.bf16.xpose.msra.mxu0 0
  %1893 = vmatprep.subr.bf16.mxu0 0
  %1894 = vmatpush1.bf16.xpose.msra.mxu0 %v1877
  %1895 = vmatprep.subr.bf16.mxu0 0
  %1896 = vmatpush2.bf16.xpose.msra.mxu0 0
  %1897 = vmatprep.subr.bf16.mxu0 0
  %1898 = vmatpush2.bf16.xpose.msra.mxu0 0
  %1899 = vmatprep.subr.bf16.mxu0 0
  %1900 = vmatpush2.bf16.xpose.msra.mxu0 0
  %1901 = vmatprep.subr.bf16.mxu0 0
  %1902 = vmatpush2.bf16.xpose.msra.mxu0 0
  %1903 = vmatprep.subr.bf16.mxu0 0
  %1904 = vmatpush2.bf16.xpose.msra.mxu0 0
  %1905 = vmatprep.subr.bf16.mxu0 0
  %1906 = vmatpush2.bf16.xpose.msra.mxu0 0
  %1907 = vmatprep.subr.bf16.mxu0 0
  %1908 = vmatpush2.bf16.xpose.msra.mxu0 0
  %1909 = vmatprep.subr.bf16.mxu0 0
  %1910 = vmatpush2.bf16.xpose.msra.mxu0 0
  %1911 = vmatprep.mubr.bf16.mxu0 0
  %1912 = vmatmul.mubr.bf16.gmra.mxu0 %v1874
  %v1913 = vpop.f32.mrf.mxu0
  %v1914 = vadd.f32 %v1667, %v1913
  %v1915 = vpop.f32.mrf.mxu0
  %v1916 = vpop.f32.mrf.mxu0
  %v1917 = vpop.f32.mrf.mxu0
  %1918 = vdwg.mxu0
  %v1920 = vsel %vm1688, %v1629, 0
  %v1923 = vsel %vm1688, %v1637, 0
  %1925 = vmatprep.subr.bf16.mxu0 0
  %1926 = vmatpush1.bf16.xpose.msra.mxu0 0
  %1927 = vmatprep.subr.bf16.mxu0 0
  %1928 = vmatpush1.bf16.xpose.msra.mxu0 0
  %1929 = vmatprep.subr.bf16.mxu0 0
  %1930 = vmatpush1.bf16.xpose.msra.mxu0 0
  %1931 = vmatprep.subr.bf16.mxu0 0
  %1932 = vmatpush1.bf16.xpose.msra.mxu0 0
  %1933 = vmatprep.subr.bf16.mxu0 0
  %1934 = vmatpush1.bf16.xpose.msra.mxu0 0
  %1935 = vmatprep.subr.bf16.mxu0 0
  %1936 = vmatpush1.bf16.xpose.msra.mxu0 0
  %1937 = vmatprep.subr.bf16.mxu0 0
  %1938 = vmatpush1.bf16.xpose.msra.mxu0 0
  %1939 = vmatprep.subr.bf16.mxu0 0
  %1940 = vmatpush1.bf16.xpose.msra.mxu0 %v1923
  %1941 = vmatprep.subr.bf16.mxu0 0
  %1942 = vmatpush2.bf16.xpose.msra.mxu0 0
  %1943 = vmatprep.subr.bf16.mxu0 0
  %1944 = vmatpush2.bf16.xpose.msra.mxu0 0
  %1945 = vmatprep.subr.bf16.mxu0 0
  %1946 = vmatpush2.bf16.xpose.msra.mxu0 0
  %1947 = vmatprep.subr.bf16.mxu0 0
  %1948 = vmatpush2.bf16.xpose.msra.mxu0 0
  %1949 = vmatprep.subr.bf16.mxu0 0
  %1950 = vmatpush2.bf16.xpose.msra.mxu0 0
  %1951 = vmatprep.subr.bf16.mxu0 0
  %1952 = vmatpush2.bf16.xpose.msra.mxu0 0
  %1953 = vmatprep.subr.bf16.mxu0 0
  %1954 = vmatpush2.bf16.xpose.msra.mxu0 0
  %1955 = vmatprep.subr.bf16.mxu0 0
  %1956 = vmatpush2.bf16.xpose.msra.mxu0 0
  %1957 = vmatprep.mubr.bf16.mxu0 0
  %1958 = vmatmul.mubr.bf16.gmra.mxu0 %v1920
  %v1959 = vpop.f32.mrf.mxu0
  %v1960 = vadd.f32 %v1671, %v1959
  %v1961 = vpop.f32.mrf.mxu0
  %v1962 = vpop.f32.mrf.mxu0
  %v1963 = vpop.f32.mrf.mxu0
  %1964 = vdwg.mxu0
  %v1966 = vsel %vm1688, %v1630, 0
  %v1969 = vsel %vm1688, %v1638, 0
  %1971 = vmatprep.subr.bf16.mxu0 0
  %1972 = vmatpush1.bf16.xpose.msra.mxu0 0
  %1973 = vmatprep.subr.bf16.mxu0 0
  %1974 = vmatpush1.bf16.xpose.msra.mxu0 0
  %1975 = vmatprep.subr.bf16.mxu0 0
  %1976 = vmatpush1.bf16.xpose.msra.mxu0 0
  %1977 = vmatprep.subr.bf16.mxu0 0
  %1978 = vmatpush1.bf16.xpose.msra.mxu0 0
  %1979 = vmatprep.subr.bf16.mxu0 0
  %1980 = vmatpush1.bf16.xpose.msra.mxu0 0
  %1981 = vmatprep.subr.bf16.mxu0 0
  %1982 = vmatpush1.bf16.xpose.msra.mxu0 0
  %1983 = vmatprep.subr.bf16.mxu0 0
  %1984 = vmatpush1.bf16.xpose.msra.mxu0 0
  %1985 = vmatprep.subr.bf16.mxu0 0
  %1986 = vmatpush1.bf16.xpose.msra.mxu0 %v1969
  %1987 = vmatprep.subr.bf16.mxu0 0
  %1988 = vmatpush2.bf16.xpose.msra.mxu0 0
  %1989 = vmatprep.subr.bf16.mxu0 0
  %1990 = vmatpush2.bf16.xpose.msra.mxu0 0
  %1991 = vmatprep.subr.bf16.mxu0 0
  %1992 = vmatpush2.bf16.xpose.msra.mxu0 0
  %1993 = vmatprep.subr.bf16.mxu0 0
  %1994 = vmatpush2.bf16.xpose.msra.mxu0 0
  %1995 = vmatprep.subr.bf16.mxu0 0
  %1996 = vmatpush2.bf16.xpose.msra.mxu0 0
  %1997 = vmatprep.subr.bf16.mxu0 0
  %1998 = vmatpush2.bf16.xpose.msra.mxu0 0
  %1999 = vmatprep.subr.bf16.mxu0 0
  %2000 = vmatpush2.bf16.xpose.msra.mxu0 0
  %2001 = vmatprep.subr.bf16.mxu0 0
  %2002 = vmatpush2.bf16.xpose.msra.mxu0 0
  %2003 = vmatprep.mubr.bf16.mxu0 0
  %2004 = vmatmul.mubr.bf16.gmra.mxu0 %v1966
  %v2005 = vpop.f32.mrf.mxu0
  %v2006 = vadd.f32 %v1675, %v2005
  %v2007 = vpop.f32.mrf.mxu0
  %v2008 = vpop.f32.mrf.mxu0
  %v2009 = vpop.f32.mrf.mxu0
  %2010 = vdwg.mxu0
  %v2012 = vsel %vm1688, %v1631, 0
  %v2015 = vsel %vm1688, %v1639, 0
  %2017 = vmatprep.subr.bf16.mxu0 0
  %2018 = vmatpush1.bf16.xpose.msra.mxu0 0
  %2019 = vmatprep.subr.bf16.mxu0 0
  %2020 = vmatpush1.bf16.xpose.msra.mxu0 0
  %2021 = vmatprep.subr.bf16.mxu0 0
  %2022 = vmatpush1.bf16.xpose.msra.mxu0 0
  %2023 = vmatprep.subr.bf16.mxu0 0
  %2024 = vmatpush1.bf16.xpose.msra.mxu0 0
  %2025 = vmatprep.subr.bf16.mxu0 0
  %2026 = vmatpush1.bf16.xpose.msra.mxu0 0
  %2027 = vmatprep.subr.bf16.mxu0 0
  %2028 = vmatpush1.bf16.xpose.msra.mxu0 0
  %2029 = vmatprep.subr.bf16.mxu0 0
  %2030 = vmatpush1.bf16.xpose.msra.mxu0 0
  %2031 = vmatprep.subr.bf16.mxu0 0
  %2032 = vmatpush1.bf16.xpose.msra.mxu0 %v2015
  %2033 = vmatprep.subr.bf16.mxu0 0
  %2034 = vmatpush2.bf16.xpose.msra.mxu0 0
  %2035 = vmatprep.subr.bf16.mxu0 0
  %2036 = vmatpush2.bf16.xpose.msra.mxu0 0
  %2037 = vmatprep.subr.bf16.mxu0 0
  %2038 = vmatpush2.bf16.xpose.msra.mxu0 0
  %2039 = vmatprep.subr.bf16.mxu0 0
  %2040 = vmatpush2.bf16.xpose.msra.mxu0 0
  %2041 = vmatprep.subr.bf16.mxu0 0
  %2042 = vmatpush2.bf16.xpose.msra.mxu0 0
  %2043 = vmatprep.subr.bf16.mxu0 0
  %2044 = vmatpush2.bf16.xpose.msra.mxu0 0
  %2045 = vmatprep.subr.bf16.mxu0 0
  %2046 = vmatpush2.bf16.xpose.msra.mxu0 0
  %2047 = vmatprep.subr.bf16.mxu0 0
  %2048 = vmatpush2.bf16.xpose.msra.mxu0 0
  %2049 = vmatprep.mubr.bf16.mxu0 0
  %2050 = vmatmul.mubr.bf16.gmra.mxu0 %v2012
  %v2051 = vpop.f32.mrf.mxu0
  %v2052 = vadd.f32 %v1679, %v2051
  %v2053 = vpop.f32.mrf.mxu0
  %v2054 = vpop.f32.mrf.mxu0
  %v2055 = vpop.f32.mrf.mxu0
  %2056 = vdwg.mxu0
  %v2057 = vsel %vm1688, %v1730, -inf
  %2058 = vmax.xlane.f32.xlu0 %v2057
  %v2059 = vpop.xlane.xlu0 %2058
  %v2060 = vsel %vm1688, %v1776, -inf
  %2061 = vmax.xlane.f32.xlu0 %v2060
  %v2062 = vpop.xlane.xlu0 %2061
  %v2063 = vsel %vm1688, %v1822, -inf
  %2064 = vmax.xlane.f32.xlu0 %v2063
  %v2065 = vpop.xlane.xlu0 %2064
  %v2066 = vsel %vm1688, %v1868, -inf
  %2067 = vmax.xlane.f32.xlu0 %v2066
  %v2068 = vpop.xlane.xlu0 %2067
  %v2069 = vsel %vm1688, %v1914, -inf
  %2070 = vmax.xlane.f32.xlu0 %v2069
  %v2071 = vpop.xlane.xlu0 %2070
  %v2072 = vsel %vm1688, %v1960, -inf
  %2073 = vmax.xlane.f32.xlu0 %v2072
  %v2074 = vpop.xlane.xlu0 %2073
  %v2075 = vsel %vm1688, %v2006, -inf
  %2076 = vmax.xlane.f32.xlu0 %v2075
  %v2077 = vpop.xlane.xlu0 %2076
  %v2078 = vsel %vm1688, %v2052, -inf
  %2079 = vmax.xlane.f32.xlu0 %v2078
  %v2080 = vpop.xlane.xlu0 %2079
  %v2081 = vsub.f32 %v1730, %v2059
  %v2082 = vsub.f32 %v1776, %v2062
  %v2083 = vsub.f32 %v1822, %v2065
  %v2084 = vsub.f32 %v1868, %v2068
  %v2085 = vsub.f32 %v1914, %v2071
  %v2086 = vsub.f32 %v1960, %v2074
  %v2087 = vsub.f32 %v2006, %v2077
  %v2088 = vsub.f32 %v2052, %v2080
  %v2089 = vmul.f32 %v2081, 1.442695
  %v2090 = vpow.pop %v2089
  %v2091 = vmul.f32 %v2082, 1.442695
  %v2092 = vpow.pop %v2091
  %v2093 = vmul.f32 %v2083, 1.442695
  %v2094 = vpow.pop %v2093
  %v2095 = vmul.f32 %v2084, 1.442695
  %v2096 = vpow.pop %v2095
  %v2097 = vmul.f32 %v2085, 1.442695
  %v2098 = vpow.pop %v2097
  %v2099 = vmul.f32 %v2086, 1.442695
  %v2100 = vpow.pop %v2099
  %v2101 = vmul.f32 %v2087, 1.442695
  %v2102 = vpow.pop %v2101
  %v2103 = vmul.f32 %v2088, 1.442695
  %v2104 = vpow.pop %v2103
  %v2105 = vsel %vm1688, %v2090, 0.0
  %2106 = vadd.xlane.f32.xlu0 %v2105
  %v2107 = vpop.xlane.xlu0 %2106
  %v2108 = vsel %vm1688, %v2092, 0.0
  %2109 = vadd.xlane.f32.xlu0 %v2108
  %v2110 = vpop.xlane.xlu0 %2109
  %v2111 = vsel %vm1688, %v2094, 0.0
  %2112 = vadd.xlane.f32.xlu0 %v2111
  %v2113 = vpop.xlane.xlu0 %2112
  %v2114 = vsel %vm1688, %v2096, 0.0
  %2115 = vadd.xlane.f32.xlu0 %v2114
  %v2116 = vpop.xlane.xlu0 %2115
  %v2117 = vsel %vm1688, %v2098, 0.0
  %2118 = vadd.xlane.f32.xlu0 %v2117
  %v2119 = vpop.xlane.xlu0 %2118
  %v2120 = vsel %vm1688, %v2100, 0.0
  %2121 = vadd.xlane.f32.xlu0 %v2120
  %v2122 = vpop.xlane.xlu0 %2121
  %v2123 = vsel %vm1688, %v2102, 0.0
  %2124 = vadd.xlane.f32.xlu0 %v2123
  %v2125 = vpop.xlane.xlu0 %2124
  %v2126 = vsel %vm1688, %v2104, 0.0
  %2127 = vadd.xlane.f32.xlu0 %v2126
  %v2128 = vpop.xlane.xlu0 %2127
  %v2129 = vrcp.pop %v2107
  %v2130 = vrcp.pop %v2110
  %v2131 = vrcp.pop %v2113
  %v2132 = vrcp.pop %v2116
  %v2133 = vrcp.pop %v2119
  %v2134 = vrcp.pop %v2122
  %v2135 = vrcp.pop %v2125
  %v2136 = vrcp.pop %v2128
  %v2137 = vmul.f32 %v2090, %v2129
  %v2138 = vmul.f32 %v2092, %v2130
  %v2139 = vmul.f32 %v2094, %v2131
  %v2140 = vmul.f32 %v2096, %v2132
  %v2141 = vmul.f32 %v2098, %v2133
  %v2142 = vmul.f32 %v2100, %v2134
  %v2143 = vmul.f32 %v2102, %v2135
  %v2144 = vmul.f32 %v2104, %v2136
  %v2145 = vpack.c.bf16 %v2137, %v2137
  %v2146 = vpack.c.bf16 %v2138, %v2138
  %v2147 = vpack.c.bf16 %v2139, %v2139
  %v2148 = vpack.c.bf16 %v2140, %v2140
  %v2149 = vpack.c.bf16 %v2141, %v2141
  %v2150 = vpack.c.bf16 %v2142, %v2142
  %v2151 = vpack.c.bf16 %v2143, %v2143
  %v2152 = vpack.c.bf16 %v2144, %v2144
  %v2153 = vpack.c.bf16 %v1255, %v1255
  %v2154 = vpack.c.bf16 %v1307, %v1307
  %v2155 = vpack.c.bf16 %v1359, %v1359
  %v2156 = vpack.c.bf16 %v1411, %v1411
  %v2157 = vpack.c.bf16 %v1463, %v1463
  %v2158 = vpack.c.bf16 %v1515, %v1515
  %v2159 = vpack.c.bf16 %v1567, %v1567
  %v2160 = vpack.c.bf16 %v1619, %v1619
  %v2162 = vsel %vm1688, %v2145, 0
  %vm2164 = vcmask 1043456
  %v2166 = vsel %vm2164, %v2153, 0
  %2168 = vmatprep.subr.bf16.mxu0 0
  %2169 = vmatpush1.bf16.msra.mxu0 0
  %2170 = vmatprep.subr.bf16.mxu0 0
  %2171 = vmatpush1.bf16.msra.mxu0 0
  %2172 = vmatprep.subr.bf16.mxu0 0
  %2173 = vmatpush1.bf16.msra.mxu0 0
  %2174 = vmatprep.subr.bf16.mxu0 0
  %2175 = vmatpush1.bf16.msra.mxu0 0
  %2176 = vmatprep.subr.bf16.mxu0 0
  %2177 = vmatpush1.bf16.msra.mxu0 0
  %2178 = vmatprep.subr.bf16.mxu0 0
  %2179 = vmatpush1.bf16.msra.mxu0 0
  %2180 = vmatprep.subr.bf16.mxu0 0
  %2181 = vmatpush1.bf16.msra.mxu0 0
  %2182 = vmatprep.subr.bf16.mxu0 0
  %2183 = vmatpush1.bf16.msra.mxu0 %v2166
  %2184 = vmatprep.subr.bf16.mxu0 0
  %2185 = vmatpush2.bf16.msra.mxu0 0
  %2186 = vmatprep.subr.bf16.mxu0 0
  %2187 = vmatpush2.bf16.msra.mxu0 0
  %2188 = vmatprep.subr.bf16.mxu0 0
  %2189 = vmatpush2.bf16.msra.mxu0 0
  %2190 = vmatprep.subr.bf16.mxu0 0
  %2191 = vmatpush2.bf16.msra.mxu0 0
  %2192 = vmatprep.subr.bf16.mxu0 0
  %2193 = vmatpush2.bf16.msra.mxu0 0
  %2194 = vmatprep.subr.bf16.mxu0 0
  %2195 = vmatpush2.bf16.msra.mxu0 0
  %2196 = vmatprep.subr.bf16.mxu0 0
  %2197 = vmatpush2.bf16.msra.mxu0 0
  %2198 = vmatprep.subr.bf16.mxu0 0
  %2199 = vmatpush2.bf16.msra.mxu0 0
  %2200 = vmatprep.mubr.bf16.mxu0 0
  %2201 = vmatmul.mubr.bf16.gmra.mxu0 %v2162
  %v2202 = vpop.f32.mrf.mxu0
  %v2203 = vadd.f32 0.0, %v2202
  %v2204 = vpop.f32.mrf.mxu0
  %v2205 = vpop.f32.mrf.mxu0
  %v2206 = vpop.f32.mrf.mxu0
  %2207 = vdwg.mxu0
  %v2209 = vsel %vm1688, %v2146, 0
  %v2212 = vsel %vm2164, %v2154, 0
  %2214 = vmatprep.subr.bf16.mxu0 0
  %2215 = vmatpush1.bf16.msra.mxu0 0
  %2216 = vmatprep.subr.bf16.mxu0 0
  %2217 = vmatpush1.bf16.msra.mxu0 0
  %2218 = vmatprep.subr.bf16.mxu0 0
  %2219 = vmatpush1.bf16.msra.mxu0 0
  %2220 = vmatprep.subr.bf16.mxu0 0
  %2221 = vmatpush1.bf16.msra.mxu0 0
  %2222 = vmatprep.subr.bf16.mxu0 0
  %2223 = vmatpush1.bf16.msra.mxu0 0
  %2224 = vmatprep.subr.bf16.mxu0 0
  %2225 = vmatpush1.bf16.msra.mxu0 0
  %2226 = vmatprep.subr.bf16.mxu0 0
  %2227 = vmatpush1.bf16.msra.mxu0 0
  %2228 = vmatprep.subr.bf16.mxu0 0
  %2229 = vmatpush1.bf16.msra.mxu0 %v2212
  %2230 = vmatprep.subr.bf16.mxu0 0
  %2231 = vmatpush2.bf16.msra.mxu0 0
  %2232 = vmatprep.subr.bf16.mxu0 0
  %2233 = vmatpush2.bf16.msra.mxu0 0
  %2234 = vmatprep.subr.bf16.mxu0 0
  %2235 = vmatpush2.bf16.msra.mxu0 0
  %2236 = vmatprep.subr.bf16.mxu0 0
  %2237 = vmatpush2.bf16.msra.mxu0 0
  %2238 = vmatprep.subr.bf16.mxu0 0
  %2239 = vmatpush2.bf16.msra.mxu0 0
  %2240 = vmatprep.subr.bf16.mxu0 0
  %2241 = vmatpush2.bf16.msra.mxu0 0
  %2242 = vmatprep.subr.bf16.mxu0 0
  %2243 = vmatpush2.bf16.msra.mxu0 0
  %2244 = vmatprep.subr.bf16.mxu0 0
  %2245 = vmatpush2.bf16.msra.mxu0 0
  %2246 = vmatprep.mubr.bf16.mxu0 0
  %2247 = vmatmul.mubr.bf16.gmra.mxu0 %v2209
  %v2248 = vpop.f32.mrf.mxu0
  %v2249 = vadd.f32 0.0, %v2248
  %v2250 = vpop.f32.mrf.mxu0
  %v2251 = vpop.f32.mrf.mxu0
  %v2252 = vpop.f32.mrf.mxu0
  %2253 = vdwg.mxu0
  %v2255 = vsel %vm1688, %v2147, 0
  %v2258 = vsel %vm2164, %v2155, 0
  %2260 = vmatprep.subr.bf16.mxu0 0
  %2261 = vmatpush1.bf16.msra.mxu0 0
  %2262 = vmatprep.subr.bf16.mxu0 0
  %2263 = vmatpush1.bf16.msra.mxu0 0
  %2264 = vmatprep.subr.bf16.mxu0 0
  %2265 = vmatpush1.bf16.msra.mxu0 0
  %2266 = vmatprep.subr.bf16.mxu0 0
  %2267 = vmatpush1.bf16.msra.mxu0 0
  %2268 = vmatprep.subr.bf16.mxu0 0
  %2269 = vmatpush1.bf16.msra.mxu0 0
  %2270 = vmatprep.subr.bf16.mxu0 0
  %2271 = vmatpush1.bf16.msra.mxu0 0
  %2272 = vmatprep.subr.bf16.mxu0 0
  %2273 = vmatpush1.bf16.msra.mxu0 0
  %2274 = vmatprep.subr.bf16.mxu0 0
  %2275 = vmatpush1.bf16.msra.mxu0 %v2258
  %2276 = vmatprep.subr.bf16.mxu0 0
  %2277 = vmatpush2.bf16.msra.mxu0 0
  %2278 = vmatprep.subr.bf16.mxu0 0
  %2279 = vmatpush2.bf16.msra.mxu0 0
  %2280 = vmatprep.subr.bf16.mxu0 0
  %2281 = vmatpush2.bf16.msra.mxu0 0
  %2282 = vmatprep.subr.bf16.mxu0 0
  %2283 = vmatpush2.bf16.msra.mxu0 0
  %2284 = vmatprep.subr.bf16.mxu0 0
  %2285 = vmatpush2.bf16.msra.mxu0 0
  %2286 = vmatprep.subr.bf16.mxu0 0
  %2287 = vmatpush2.bf16.msra.mxu0 0
  %2288 = vmatprep.subr.bf16.mxu0 0
  %2289 = vmatpush2.bf16.msra.mxu0 0
  %2290 = vmatprep.subr.bf16.mxu0 0
  %2291 = vmatpush2.bf16.msra.mxu0 0
  %2292 = vmatprep.mubr.bf16.mxu0 0
  %2293 = vmatmul.mubr.bf16.gmra.mxu0 %v2255
  %v2294 = vpop.f32.mrf.mxu0
  %v2295 = vadd.f32 0.0, %v2294
  %v2296 = vpop.f32.mrf.mxu0
  %v2297 = vpop.f32.mrf.mxu0
  %v2298 = vpop.f32.mrf.mxu0
  %2299 = vdwg.mxu0
  %v2301 = vsel %vm1688, %v2148, 0
  %v2304 = vsel %vm2164, %v2156, 0
  %2306 = vmatprep.subr.bf16.mxu0 0
  %2307 = vmatpush1.bf16.msra.mxu0 0
  %2308 = vmatprep.subr.bf16.mxu0 0
  %2309 = vmatpush1.bf16.msra.mxu0 0
  %2310 = vmatprep.subr.bf16.mxu0 0
  %2311 = vmatpush1.bf16.msra.mxu0 0
  %2312 = vmatprep.subr.bf16.mxu0 0
  %2313 = vmatpush1.bf16.msra.mxu0 0
  %2314 = vmatprep.subr.bf16.mxu0 0
  %2315 = vmatpush1.bf16.msra.mxu0 0
  %2316 = vmatprep.subr.bf16.mxu0 0
  %2317 = vmatpush1.bf16.msra.mxu0 0
  %2318 = vmatprep.subr.bf16.mxu0 0
  %2319 = vmatpush1.bf16.msra.mxu0 0
  %2320 = vmatprep.subr.bf16.mxu0 0
  %2321 = vmatpush1.bf16.msra.mxu0 %v2304
  %2322 = vmatprep.subr.bf16.mxu0 0
  %2323 = vmatpush2.bf16.msra.mxu0 0
  %2324 = vmatprep.subr.bf16.mxu0 0
  %2325 = vmatpush2.bf16.msra.mxu0 0
  %2326 = vmatprep.subr.bf16.mxu0 0
  %2327 = vmatpush2.bf16.msra.mxu0 0
  %2328 = vmatprep.subr.bf16.mxu0 0
  %2329 = vmatpush2.bf16.msra.mxu0 0
  %2330 = vmatprep.subr.bf16.mxu0 0
  %2331 = vmatpush2.bf16.msra.mxu0 0
  %2332 = vmatprep.subr.bf16.mxu0 0
  %2333 = vmatpush2.bf16.msra.mxu0 0
  %2334 = vmatprep.subr.bf16.mxu0 0
  %2335 = vmatpush2.bf16.msra.mxu0 0
  %2336 = vmatprep.subr.bf16.mxu0 0
  %2337 = vmatpush2.bf16.msra.mxu0 0
  %2338 = vmatprep.mubr.bf16.mxu0 0
  %2339 = vmatmul.mubr.bf16.gmra.mxu0 %v2301
  %v2340 = vpop.f32.mrf.mxu0
  %v2341 = vadd.f32 0.0, %v2340
  %v2342 = vpop.f32.mrf.mxu0
  %v2343 = vpop.f32.mrf.mxu0
  %v2344 = vpop.f32.mrf.mxu0
  %2345 = vdwg.mxu0
  %v2347 = vsel %vm1688, %v2149, 0
  %v2350 = vsel %vm2164, %v2157, 0
  %2352 = vmatprep.subr.bf16.mxu0 0
  %2353 = vmatpush1.bf16.msra.mxu0 0
  %2354 = vmatprep.subr.bf16.mxu0 0
  %2355 = vmatpush1.bf16.msra.mxu0 0
  %2356 = vmatprep.subr.bf16.mxu0 0
  %2357 = vmatpush1.bf16.msra.mxu0 0
  %2358 = vmatprep.subr.bf16.mxu0 0
  %2359 = vmatpush1.bf16.msra.mxu0 0
  %2360 = vmatprep.subr.bf16.mxu0 0
  %2361 = vmatpush1.bf16.msra.mxu0 0
  %2362 = vmatprep.subr.bf16.mxu0 0
  %2363 = vmatpush1.bf16.msra.mxu0 0
  %2364 = vmatprep.subr.bf16.mxu0 0
  %2365 = vmatpush1.bf16.msra.mxu0 0
  %2366 = vmatprep.subr.bf16.mxu0 0
  %2367 = vmatpush1.bf16.msra.mxu0 %v2350
  %2368 = vmatprep.subr.bf16.mxu0 0
  %2369 = vmatpush2.bf16.msra.mxu0 0
  %2370 = vmatprep.subr.bf16.mxu0 0
  %2371 = vmatpush2.bf16.msra.mxu0 0
  %2372 = vmatprep.subr.bf16.mxu0 0
  %2373 = vmatpush2.bf16.msra.mxu0 0
  %2374 = vmatprep.subr.bf16.mxu0 0
  %2375 = vmatpush2.bf16.msra.mxu0 0
  %2376 = vmatprep.subr.bf16.mxu0 0
  %2377 = vmatpush2.bf16.msra.mxu0 0
  %2378 = vmatprep.subr.bf16.mxu0 0
  %2379 = vmatpush2.bf16.msra.mxu0 0
  %2380 = vmatprep.subr.bf16.mxu0 0
  %2381 = vmatpush2.bf16.msra.mxu0 0
  %2382 = vmatprep.subr.bf16.mxu0 0
  %2383 = vmatpush2.bf16.msra.mxu0 0
  %2384 = vmatprep.mubr.bf16.mxu0 0
  %2385 = vmatmul.mubr.bf16.gmra.mxu0 %v2347
  %v2386 = vpop.f32.mrf.mxu0
  %v2387 = vadd.f32 0.0, %v2386
  %v2388 = vpop.f32.mrf.mxu0
  %v2389 = vpop.f32.mrf.mxu0
  %v2390 = vpop.f32.mrf.mxu0
  %2391 = vdwg.mxu0
  %v2393 = vsel %vm1688, %v2150, 0
  %v2396 = vsel %vm2164, %v2158, 0
  %2398 = vmatprep.subr.bf16.mxu0 0
  %2399 = vmatpush1.bf16.msra.mxu0 0
  %2400 = vmatprep.subr.bf16.mxu0 0
  %2401 = vmatpush1.bf16.msra.mxu0 0
  %2402 = vmatprep.subr.bf16.mxu0 0
  %2403 = vmatpush1.bf16.msra.mxu0 0
  %2404 = vmatprep.subr.bf16.mxu0 0
  %2405 = vmatpush1.bf16.msra.mxu0 0
  %2406 = vmatprep.subr.bf16.mxu0 0
  %2407 = vmatpush1.bf16.msra.mxu0 0
  %2408 = vmatprep.subr.bf16.mxu0 0
  %2409 = vmatpush1.bf16.msra.mxu0 0
  %2410 = vmatprep.subr.bf16.mxu0 0
  %2411 = vmatpush1.bf16.msra.mxu0 0
  %2412 = vmatprep.subr.bf16.mxu0 0
  %2413 = vmatpush1.bf16.msra.mxu0 %v2396
  %2414 = vmatprep.subr.bf16.mxu0 0
  %2415 = vmatpush2.bf16.msra.mxu0 0
  %2416 = vmatprep.subr.bf16.mxu0 0
  %2417 = vmatpush2.bf16.msra.mxu0 0
  %2418 = vmatprep.subr.bf16.mxu0 0
  %2419 = vmatpush2.bf16.msra.mxu0 0
  %2420 = vmatprep.subr.bf16.mxu0 0
  %2421 = vmatpush2.bf16.msra.mxu0 0
  %2422 = vmatprep.subr.bf16.mxu0 0
  %2423 = vmatpush2.bf16.msra.mxu0 0
  %2424 = vmatprep.subr.bf16.mxu0 0
  %2425 = vmatpush2.bf16.msra.mxu0 0
  %2426 = vmatprep.subr.bf16.mxu0 0
  %2427 = vmatpush2.bf16.msra.mxu0 0
  %2428 = vmatprep.subr.bf16.mxu0 0
  %2429 = vmatpush2.bf16.msra.mxu0 0
  %2430 = vmatprep.mubr.bf16.mxu0 0
  %2431 = vmatmul.mubr.bf16.gmra.mxu0 %v2393
  %v2432 = vpop.f32.mrf.mxu0
  %v2433 = vadd.f32 0.0, %v2432
  %v2434 = vpop.f32.mrf.mxu0
  %v2435 = vpop.f32.mrf.mxu0
  %v2436 = vpop.f32.mrf.mxu0
  %2437 = vdwg.mxu0
  %v2439 = vsel %vm1688, %v2151, 0
  %v2442 = vsel %vm2164, %v2159, 0
  %2444 = vmatprep.subr.bf16.mxu0 0
  %2445 = vmatpush1.bf16.msra.mxu0 0
  %2446 = vmatprep.subr.bf16.mxu0 0
  %2447 = vmatpush1.bf16.msra.mxu0 0
  %2448 = vmatprep.subr.bf16.mxu0 0
  %2449 = vmatpush1.bf16.msra.mxu0 0
  %2450 = vmatprep.subr.bf16.mxu0 0
  %2451 = vmatpush1.bf16.msra.mxu0 0
  %2452 = vmatprep.subr.bf16.mxu0 0
  %2453 = vmatpush1.bf16.msra.mxu0 0
  %2454 = vmatprep.subr.bf16.mxu0 0
  %2455 = vmatpush1.bf16.msra.mxu0 0
  %2456 = vmatprep.subr.bf16.mxu0 0
  %2457 = vmatpush1.bf16.msra.mxu0 0
  %2458 = vmatprep.subr.bf16.mxu0 0
  %2459 = vmatpush1.bf16.msra.mxu0 %v2442
  %2460 = vmatprep.subr.bf16.mxu0 0
  %2461 = vmatpush2.bf16.msra.mxu0 0
  %2462 = vmatprep.subr.bf16.mxu0 0
  %2463 = vmatpush2.bf16.msra.mxu0 0
  %2464 = vmatprep.subr.bf16.mxu0 0
  %2465 = vmatpush2.bf16.msra.mxu0 0
  %2466 = vmatprep.subr.bf16.mxu0 0
  %2467 = vmatpush2.bf16.msra.mxu0 0
  %2468 = vmatprep.subr.bf16.mxu0 0
  %2469 = vmatpush2.bf16.msra.mxu0 0
  %2470 = vmatprep.subr.bf16.mxu0 0
  %2471 = vmatpush2.bf16.msra.mxu0 0
  %2472 = vmatprep.subr.bf16.mxu0 0
  %2473 = vmatpush2.bf16.msra.mxu0 0
  %2474 = vmatprep.subr.bf16.mxu0 0
  %2475 = vmatpush2.bf16.msra.mxu0 0
  %2476 = vmatprep.mubr.bf16.mxu0 0
  %2477 = vmatmul.mubr.bf16.gmra.mxu0 %v2439
  %v2478 = vpop.f32.mrf.mxu0
  %v2479 = vadd.f32 0.0, %v2478
  %v2480 = vpop.f32.mrf.mxu0
  %v2481 = vpop.f32.mrf.mxu0
  %v2482 = vpop.f32.mrf.mxu0
  %2483 = vdwg.mxu0
  %v2485 = vsel %vm1688, %v2152, 0
  %v2488 = vsel %vm2164, %v2160, 0
  %2490 = vmatprep.subr.bf16.mxu0 0
  %2491 = vmatpush1.bf16.msra.mxu0 0
  %2492 = vmatprep.subr.bf16.mxu0 0
  %2493 = vmatpush1.bf16.msra.mxu0 0
  %2494 = vmatprep.subr.bf16.mxu0 0
  %2495 = vmatpush1.bf16.msra.mxu0 0
  %2496 = vmatprep.subr.bf16.mxu0 0
  %2497 = vmatpush1.bf16.msra.mxu0 0
  %2498 = vmatprep.subr.bf16.mxu0 0
  %2499 = vmatpush1.bf16.msra.mxu0 0
  %2500 = vmatprep.subr.bf16.mxu0 0
  %2501 = vmatpush1.bf16.msra.mxu0 0
  %2502 = vmatprep.subr.bf16.mxu0 0
  %2503 = vmatpush1.bf16.msra.mxu0 0
  %2504 = vmatprep.subr.bf16.mxu0 0
  %2505 = vmatpush1.bf16.msra.mxu0 %v2488
  %2506 = vmatprep.subr.bf16.mxu0 0
  %2507 = vmatpush2.bf16.msra.mxu0 0
  %2508 = vmatprep.subr.bf16.mxu0 0
  %2509 = vmatpush2.bf16.msra.mxu0 0
  %2510 = vmatprep.subr.bf16.mxu0 0
  %2511 = vmatpush2.bf16.msra.mxu0 0
  %2512 = vmatprep.subr.bf16.mxu0 0
  %2513 = vmatpush2.bf16.msra.mxu0 0
  %2514 = vmatprep.subr.bf16.mxu0 0
  %2515 = vmatpush2.bf16.msra.mxu0 0
  %2516 = vmatprep.subr.bf16.mxu0 0
  %2517 = vmatpush2.bf16.msra.mxu0 0
  %2518 = vmatprep.subr.bf16.mxu0 0
  %2519 = vmatpush2.bf16.msra.mxu0 0
  %2520 = vmatprep.subr.bf16.mxu0 0
  %2521 = vmatpush2.bf16.msra.mxu0 0
  %2522 = vmatprep.mubr.bf16.mxu0 0
  %2523 = vmatmul.mubr.bf16.gmra.mxu0 %v2485
  %v2524 = vpop.f32.mrf.mxu0
  %v2525 = vadd.f32 0.0, %v2524
  %v2526 = vpop.f32.mrf.mxu0
  %v2527 = vpop.f32.mrf.mxu0
  %v2528 = vpop.f32.mrf.mxu0
  %2529 = vdwg.mxu0
  %v2530 = vpack.c.bf16 %v2203, %v2203
  %v2531 = vpack.c.bf16 %v2249, %v2249
  %v2532 = vpack.c.bf16 %v2295, %v2295
  %v2533 = vpack.c.bf16 %v2341, %v2341
  %v2534 = vpack.c.bf16 %v2387, %v2387
  %v2535 = vpack.c.bf16 %v2433, %v2433
  %v2536 = vpack.c.bf16 %v2479, %v2479
  %v2537 = vpack.c.bf16 %v2525, %v2525
  %v2538 = vld [vmem:[%s5] sm:$0xf]
  %v2539 = vld [vmem:[%s5 + $0x4] sm:$0xf]
  %v2540 = vld [vmem:[%s5 + $0x8] sm:$0xf]
  %v2541 = vld [vmem:[%s5 + $0xc] sm:$0xf]
  %v2542 = vld [vmem:[%s5 + $0x10] sm:$0xf]
  %v2543 = vld [vmem:[%s5 + $0x14] sm:$0xf]
  %v2544 = vld [vmem:[%s5 + $0x18] sm:$0xf]
  %v2545 = vld [vmem:[%s5 + $0x1c] sm:$0xf]
  %v2547 = vsel %vm1688, %v2530, 0
  %v2550 = vsel %vm2164, %v2538, 0
  %2552 = vmatprep.subr.bf16.mxu0 0
  %2553 = vmatpush1.bf16.msra.mxu0 0
  %2554 = vmatprep.subr.bf16.mxu0 0
  %2555 = vmatpush1.bf16.msra.mxu0 0
  %2556 = vmatprep.subr.bf16.mxu0 0
  %2557 = vmatpush1.bf16.msra.mxu0 0
  %2558 = vmatprep.subr.bf16.mxu0 0
  %2559 = vmatpush1.bf16.msra.mxu0 0
  %2560 = vmatprep.subr.bf16.mxu0 0
  %2561 = vmatpush1.bf16.msra.mxu0 0
  %2562 = vmatprep.subr.bf16.mxu0 0
  %2563 = vmatpush1.bf16.msra.mxu0 0
  %2564 = vmatprep.subr.bf16.mxu0 0
  %2565 = vmatpush1.bf16.msra.mxu0 0
  %2566 = vmatprep.subr.bf16.mxu0 0
  %2567 = vmatpush1.bf16.msra.mxu0 %v2550
  %2568 = vmatprep.subr.bf16.mxu0 0
  %2569 = vmatpush2.bf16.msra.mxu0 0
  %2570 = vmatprep.subr.bf16.mxu0 0
  %2571 = vmatpush2.bf16.msra.mxu0 0
  %2572 = vmatprep.subr.bf16.mxu0 0
  %2573 = vmatpush2.bf16.msra.mxu0 0
  %2574 = vmatprep.subr.bf16.mxu0 0
  %2575 = vmatpush2.bf16.msra.mxu0 0
  %2576 = vmatprep.subr.bf16.mxu0 0
  %2577 = vmatpush2.bf16.msra.mxu0 0
  %2578 = vmatprep.subr.bf16.mxu0 0
  %2579 = vmatpush2.bf16.msra.mxu0 0
  %2580 = vmatprep.subr.bf16.mxu0 0
  %2581 = vmatpush2.bf16.msra.mxu0 0
  %2582 = vmatprep.subr.bf16.mxu0 0
  %2583 = vmatpush2.bf16.msra.mxu0 0
  %2584 = vmatprep.mubr.bf16.mxu0 0
  %2585 = vmatmul.mubr.bf16.gmra.mxu0 %v2547
  %v2586 = vpop.f32.mrf.mxu0
  %v2587 = vadd.f32 0.0, %v2586
  %v2588 = vpop.f32.mrf.mxu0
  %v2589 = vpop.f32.mrf.mxu0
  %v2590 = vpop.f32.mrf.mxu0
  %2591 = vdwg.mxu0
  %v2593 = vsel %vm1688, %v2531, 0
  %v2596 = vsel %vm2164, %v2539, 0
  %2598 = vmatprep.subr.bf16.mxu0 0
  %2599 = vmatpush1.bf16.msra.mxu0 0
  %2600 = vmatprep.subr.bf16.mxu0 0
  %2601 = vmatpush1.bf16.msra.mxu0 0
  %2602 = vmatprep.subr.bf16.mxu0 0
  %2603 = vmatpush1.bf16.msra.mxu0 0
  %2604 = vmatprep.subr.bf16.mxu0 0
  %2605 = vmatpush1.bf16.msra.mxu0 0
  %2606 = vmatprep.subr.bf16.mxu0 0
  %2607 = vmatpush1.bf16.msra.mxu0 0
  %2608 = vmatprep.subr.bf16.mxu0 0
  %2609 = vmatpush1.bf16.msra.mxu0 0
  %2610 = vmatprep.subr.bf16.mxu0 0
  %2611 = vmatpush1.bf16.msra.mxu0 0
  %2612 = vmatprep.subr.bf16.mxu0 0
  %2613 = vmatpush1.bf16.msra.mxu0 %v2596
  %2614 = vmatprep.subr.bf16.mxu0 0
  %2615 = vmatpush2.bf16.msra.mxu0 0
  %2616 = vmatprep.subr.bf16.mxu0 0
  %2617 = vmatpush2.bf16.msra.mxu0 0
  %2618 = vmatprep.subr.bf16.mxu0 0
  %2619 = vmatpush2.bf16.msra.mxu0 0
  %2620 = vmatprep.subr.bf16.mxu0 0
  %2621 = vmatpush2.bf16.msra.mxu0 0
  %2622 = vmatprep.subr.bf16.mxu0 0
  %2623 = vmatpush2.bf16.msra.mxu0 0
  %2624 = vmatprep.subr.bf16.mxu0 0
  %2625 = vmatpush2.bf16.msra.mxu0 0
  %2626 = vmatprep.subr.bf16.mxu0 0
  %2627 = vmatpush2.bf16.msra.mxu0 0
  %2628 = vmatprep.subr.bf16.mxu0 0
  %2629 = vmatpush2.bf16.msra.mxu0 0
  %2630 = vmatprep.mubr.bf16.mxu0 0
  %2631 = vmatmul.mubr.bf16.gmra.mxu0 %v2593
  %v2632 = vpop.f32.mrf.mxu0
  %v2633 = vadd.f32 0.0, %v2632
  %v2634 = vpop.f32.mrf.mxu0
  %v2635 = vpop.f32.mrf.mxu0
  %v2636 = vpop.f32.mrf.mxu0
  %2637 = vdwg.mxu0
  %v2639 = vsel %vm1688, %v2532, 0
  %v2642 = vsel %vm2164, %v2540, 0
  %2644 = vmatprep.subr.bf16.mxu0 0
  %2645 = vmatpush1.bf16.msra.mxu0 0
  %2646 = vmatprep.subr.bf16.mxu0 0
  %2647 = vmatpush1.bf16.msra.mxu0 0
  %2648 = vmatprep.subr.bf16.mxu0 0
  %2649 = vmatpush1.bf16.msra.mxu0 0
  %2650 = vmatprep.subr.bf16.mxu0 0
  %2651 = vmatpush1.bf16.msra.mxu0 0
  %2652 = vmatprep.subr.bf16.mxu0 0
  %2653 = vmatpush1.bf16.msra.mxu0 0
  %2654 = vmatprep.subr.bf16.mxu0 0
  %2655 = vmatpush1.bf16.msra.mxu0 0
  %2656 = vmatprep.subr.bf16.mxu0 0
  %2657 = vmatpush1.bf16.msra.mxu0 0
  %2658 = vmatprep.subr.bf16.mxu0 0
  %2659 = vmatpush1.bf16.msra.mxu0 %v2642
  %2660 = vmatprep.subr.bf16.mxu0 0
  %2661 = vmatpush2.bf16.msra.mxu0 0
  %2662 = vmatprep.subr.bf16.mxu0 0
  %2663 = vmatpush2.bf16.msra.mxu0 0
  %2664 = vmatprep.subr.bf16.mxu0 0
  %2665 = vmatpush2.bf16.msra.mxu0 0
  %2666 = vmatprep.subr.bf16.mxu0 0
  %2667 = vmatpush2.bf16.msra.mxu0 0
  %2668 = vmatprep.subr.bf16.mxu0 0
  %2669 = vmatpush2.bf16.msra.mxu0 0
  %2670 = vmatprep.subr.bf16.mxu0 0
  %2671 = vmatpush2.bf16.msra.mxu0 0
  %2672 = vmatprep.subr.bf16.mxu0 0
  %2673 = vmatpush2.bf16.msra.mxu0 0
  %2674 = vmatprep.subr.bf16.mxu0 0
  %2675 = vmatpush2.bf16.msra.mxu0 0
  %2676 = vmatprep.mubr.bf16.mxu0 0
  %2677 = vmatmul.mubr.bf16.gmra.mxu0 %v2639
  %v2678 = vpop.f32.mrf.mxu0
  %v2679 = vadd.f32 0.0, %v2678
  %v2680 = vpop.f32.mrf.mxu0
  %v2681 = vpop.f32.mrf.mxu0
  %v2682 = vpop.f32.mrf.mxu0
  %2683 = vdwg.mxu0
  %v2685 = vsel %vm1688, %v2533, 0
  %v2688 = vsel %vm2164, %v2541, 0
  %2690 = vmatprep.subr.bf16.mxu0 0
  %2691 = vmatpush1.bf16.msra.mxu0 0
  %2692 = vmatprep.subr.bf16.mxu0 0
  %2693 = vmatpush1.bf16.msra.mxu0 0
  %2694 = vmatprep.subr.bf16.mxu0 0
  %2695 = vmatpush1.bf16.msra.mxu0 0
  %2696 = vmatprep.subr.bf16.mxu0 0
  %2697 = vmatpush1.bf16.msra.mxu0 0
  %2698 = vmatprep.subr.bf16.mxu0 0
  %2699 = vmatpush1.bf16.msra.mxu0 0
  %2700 = vmatprep.subr.bf16.mxu0 0
  %2701 = vmatpush1.bf16.msra.mxu0 0
  %2702 = vmatprep.subr.bf16.mxu0 0
  %2703 = vmatpush1.bf16.msra.mxu0 0
  %2704 = vmatprep.subr.bf16.mxu0 0
  %2705 = vmatpush1.bf16.msra.mxu0 %v2688
  %2706 = vmatprep.subr.bf16.mxu0 0
  %2707 = vmatpush2.bf16.msra.mxu0 0
  %2708 = vmatprep.subr.bf16.mxu0 0
  %2709 = vmatpush2.bf16.msra.mxu0 0
  %2710 = vmatprep.subr.bf16.mxu0 0
  %2711 = vmatpush2.bf16.msra.mxu0 0
  %2712 = vmatprep.subr.bf16.mxu0 0
  %2713 = vmatpush2.bf16.msra.mxu0 0
  %2714 = vmatprep.subr.bf16.mxu0 0
  %2715 = vmatpush2.bf16.msra.mxu0 0
  %2716 = vmatprep.subr.bf16.mxu0 0
  %2717 = vmatpush2.bf16.msra.mxu0 0
  %2718 = vmatprep.subr.bf16.mxu0 0
  %2719 = vmatpush2.bf16.msra.mxu0 0
  %2720 = vmatprep.subr.bf16.mxu0 0
  %2721 = vmatpush2.bf16.msra.mxu0 0
  %2722 = vmatprep.mubr.bf16.mxu0 0
  %2723 = vmatmul.mubr.bf16.gmra.mxu0 %v2685
  %v2724 = vpop.f32.mrf.mxu0
  %v2725 = vadd.f32 0.0, %v2724
  %v2726 = vpop.f32.mrf.mxu0
  %v2727 = vpop.f32.mrf.mxu0
  %v2728 = vpop.f32.mrf.mxu0
  %2729 = vdwg.mxu0
  %v2731 = vsel %vm1688, %v2534, 0
  %v2734 = vsel %vm2164, %v2542, 0
  %2736 = vmatprep.subr.bf16.mxu0 0
  %2737 = vmatpush1.bf16.msra.mxu0 0
  %2738 = vmatprep.subr.bf16.mxu0 0
  %2739 = vmatpush1.bf16.msra.mxu0 0
  %2740 = vmatprep.subr.bf16.mxu0 0
  %2741 = vmatpush1.bf16.msra.mxu0 0
  %2742 = vmatprep.subr.bf16.mxu0 0
  %2743 = vmatpush1.bf16.msra.mxu0 0
  %2744 = vmatprep.subr.bf16.mxu0 0
  %2745 = vmatpush1.bf16.msra.mxu0 0
  %2746 = vmatprep.subr.bf16.mxu0 0
  %2747 = vmatpush1.bf16.msra.mxu0 0
  %2748 = vmatprep.subr.bf16.mxu0 0
  %2749 = vmatpush1.bf16.msra.mxu0 0
  %2750 = vmatprep.subr.bf16.mxu0 0
  %2751 = vmatpush1.bf16.msra.mxu0 %v2734
  %2752 = vmatprep.subr.bf16.mxu0 0
  %2753 = vmatpush2.bf16.msra.mxu0 0
  %2754 = vmatprep.subr.bf16.mxu0 0
  %2755 = vmatpush2.bf16.msra.mxu0 0
  %2756 = vmatprep.subr.bf16.mxu0 0
  %2757 = vmatpush2.bf16.msra.mxu0 0
  %2758 = vmatprep.subr.bf16.mxu0 0
  %2759 = vmatpush2.bf16.msra.mxu0 0
  %2760 = vmatprep.subr.bf16.mxu0 0
  %2761 = vmatpush2.bf16.msra.mxu0 0
  %2762 = vmatprep.subr.bf16.mxu0 0
  %2763 = vmatpush2.bf16.msra.mxu0 0
  %2764 = vmatprep.subr.bf16.mxu0 0
  %2765 = vmatpush2.bf16.msra.mxu0 0
  %2766 = vmatprep.subr.bf16.mxu0 0
  %2767 = vmatpush2.bf16.msra.mxu0 0
  %2768 = vmatprep.mubr.bf16.mxu0 0
  %2769 = vmatmul.mubr.bf16.gmra.mxu0 %v2731
  %v2770 = vpop.f32.mrf.mxu0
  %v2771 = vadd.f32 0.0, %v2770
  %v2772 = vpop.f32.mrf.mxu0
  %v2773 = vpop.f32.mrf.mxu0
  %v2774 = vpop.f32.mrf.mxu0
  %2775 = vdwg.mxu0
  %v2777 = vsel %vm1688, %v2535, 0
  %v2780 = vsel %vm2164, %v2543, 0
  %2782 = vmatprep.subr.bf16.mxu0 0
  %2783 = vmatpush1.bf16.msra.mxu0 0
  %2784 = vmatprep.subr.bf16.mxu0 0
  %2785 = vmatpush1.bf16.msra.mxu0 0
  %2786 = vmatprep.subr.bf16.mxu0 0
  %2787 = vmatpush1.bf16.msra.mxu0 0
  %2788 = vmatprep.subr.bf16.mxu0 0
  %2789 = vmatpush1.bf16.msra.mxu0 0
  %2790 = vmatprep.subr.bf16.mxu0 0
  %2791 = vmatpush1.bf16.msra.mxu0 0
  %2792 = vmatprep.subr.bf16.mxu0 0
  %2793 = vmatpush1.bf16.msra.mxu0 0
  %2794 = vmatprep.subr.bf16.mxu0 0
  %2795 = vmatpush1.bf16.msra.mxu0 0
  %2796 = vmatprep.subr.bf16.mxu0 0
  %2797 = vmatpush1.bf16.msra.mxu0 %v2780
  %2798 = vmatprep.subr.bf16.mxu0 0
  %2799 = vmatpush2.bf16.msra.mxu0 0
  %2800 = vmatprep.subr.bf16.mxu0 0
  %2801 = vmatpush2.bf16.msra.mxu0 0
  %2802 = vmatprep.subr.bf16.mxu0 0
  %2803 = vmatpush2.bf16.msra.mxu0 0
  %2804 = vmatprep.subr.bf16.mxu0 0
  %2805 = vmatpush2.bf16.msra.mxu0 0
  %2806 = vmatprep.subr.bf16.mxu0 0
  %2807 = vmatpush2.bf16.msra.mxu0 0
  %2808 = vmatprep.subr.bf16.mxu0 0
  %2809 = vmatpush2.bf16.msra.mxu0 0
  %2810 = vmatprep.subr.bf16.mxu0 0
  %2811 = vmatpush2.bf16.msra.mxu0 0
  %2812 = vmatprep.subr.bf16.mxu0 0
  %2813 = vmatpush2.bf16.msra.mxu0 0
  %2814 = vmatprep.mubr.bf16.mxu0 0
  %2815 = vmatmul.mubr.bf16.gmra.mxu0 %v2777
  %v2816 = vpop.f32.mrf.mxu0
  %v2817 = vadd.f32 0.0, %v2816
  %v2818 = vpop.f32.mrf.mxu0
  %v2819 = vpop.f32.mrf.mxu0
  %v2820 = vpop.f32.mrf.mxu0
  %2821 = vdwg.mxu0
  %v2823 = vsel %vm1688, %v2536, 0
  %v2826 = vsel %vm2164, %v2544, 0
  %2828 = vmatprep.subr.bf16.mxu0 0
  %2829 = vmatpush1.bf16.msra.mxu0 0
  %2830 = vmatprep.subr.bf16.mxu0 0
  %2831 = vmatpush1.bf16.msra.mxu0 0
  %2832 = vmatprep.subr.bf16.mxu0 0
  %2833 = vmatpush1.bf16.msra.mxu0 0
  %2834 = vmatprep.subr.bf16.mxu0 0
  %2835 = vmatpush1.bf16.msra.mxu0 0
  %2836 = vmatprep.subr.bf16.mxu0 0
  %2837 = vmatpush1.bf16.msra.mxu0 0
  %2838 = vmatprep.subr.bf16.mxu0 0
  %2839 = vmatpush1.bf16.msra.mxu0 0
  %2840 = vmatprep.subr.bf16.mxu0 0
  %2841 = vmatpush1.bf16.msra.mxu0 0
  %2842 = vmatprep.subr.bf16.mxu0 0
  %2843 = vmatpush1.bf16.msra.mxu0 %v2826
  %2844 = vmatprep.subr.bf16.mxu0 0
  %2845 = vmatpush2.bf16.msra.mxu0 0
  %2846 = vmatprep.subr.bf16.mxu0 0
  %2847 = vmatpush2.bf16.msra.mxu0 0
  %2848 = vmatprep.subr.bf16.mxu0 0
  %2849 = vmatpush2.bf16.msra.mxu0 0
  %2850 = vmatprep.subr.bf16.mxu0 0
  %2851 = vmatpush2.bf16.msra.mxu0 0
  %2852 = vmatprep.subr.bf16.mxu0 0
  %2853 = vmatpush2.bf16.msra.mxu0 0
  %2854 = vmatprep.subr.bf16.mxu0 0
  %2855 = vmatpush2.bf16.msra.mxu0 0
  %2856 = vmatprep.subr.bf16.mxu0 0
  %2857 = vmatpush2.bf16.msra.mxu0 0
  %2858 = vmatprep.subr.bf16.mxu0 0
  %2859 = vmatpush2.bf16.msra.mxu0 0
  %2860 = vmatprep.mubr.bf16.mxu0 0
  %2861 = vmatmul.mubr.bf16.gmra.mxu0 %v2823
  %v2862 = vpop.f32.mrf.mxu0
  %v2863 = vadd.f32 0.0, %v2862
  %v2864 = vpop.f32.mrf.mxu0
  %v2865 = vpop.f32.mrf.mxu0
  %v2866 = vpop.f32.mrf.mxu0
  %2867 = vdwg.mxu0
  %v2869 = vsel %vm1688, %v2537, 0
  %v2872 = vsel %vm2164, %v2545, 0
  %2874 = vmatprep.subr.bf16.mxu0 0
  %2875 = vmatpush1.bf16.msra.mxu0 0
  %2876 = vmatprep.subr.bf16.mxu0 0
  %2877 = vmatpush1.bf16.msra.mxu0 0
  %2878 = vmatprep.subr.bf16.mxu0 0
  %2879 = vmatpush1.bf16.msra.mxu0 0
  %2880 = vmatprep.subr.bf16.mxu0 0
  %2881 = vmatpush1.bf16.msra.mxu0 0
  %2882 = vmatprep.subr.bf16.mxu0 0
  %2883 = vmatpush1.bf16.msra.mxu0 0
  %2884 = vmatprep.subr.bf16.mxu0 0
  %2885 = vmatpush1.bf16.msra.mxu0 0
  %2886 = vmatprep.subr.bf16.mxu0 0
  %2887 = vmatpush1.bf16.msra.mxu0 0
  %2888 = vmatprep.subr.bf16.mxu0 0
  %2889 = vmatpush1.bf16.msra.mxu0 %v2872
  %2890 = vmatprep.subr.bf16.mxu0 0
  %2891 = vmatpush2.bf16.msra.mxu0 0
  %2892 = vmatprep.subr.bf16.mxu0 0
  %2893 = vmatpush2.bf16.msra.mxu0 0
  %2894 = vmatprep.subr.bf16.mxu0 0
  %2895 = vmatpush2.bf16.msra.mxu0 0
  %2896 = vmatprep.subr.bf16.mxu0 0
  %2897 = vmatpush2.bf16.msra.mxu0 0
  %2898 = vmatprep.subr.bf16.mxu0 0
  %2899 = vmatpush2.bf16.msra.mxu0 0
  %2900 = vmatprep.subr.bf16.mxu0 0
  %2901 = vmatpush2.bf16.msra.mxu0 0
  %2902 = vmatprep.subr.bf16.mxu0 0
  %2903 = vmatpush2.bf16.msra.mxu0 0
  %2904 = vmatprep.subr.bf16.mxu0 0
  %2905 = vmatpush2.bf16.msra.mxu0 0
  %2906 = vmatprep.mubr.bf16.mxu0 0
  %2907 = vmatmul.mubr.bf16.gmra.mxu0 %v2869
  %v2908 = vpop.f32.mrf.mxu0
  %v2909 = vadd.f32 0.0, %v2908
  %v2910 = vpop.f32.mrf.mxu0
  %v2911 = vpop.f32.mrf.mxu0
  %v2912 = vpop.f32.mrf.mxu0
  %2913 = vdwg.mxu0
  %v2914 = vadd.f32 %v2587, %v2633
  %v2915 = vadd.f32 %v2771, %v2817
  %v2916 = vadd.f32 %v2914, %v2679
  %v2917 = vadd.f32 %v2915, %v2863
  %v2918 = vadd.f32 %v2916, %v2725
  %v2919 = vadd.f32 %v2917, %v2909
  %v2920 = vld [vmem:[%s6] sm:$0x1]
  %v2921 = vlaneseq
  %v2922 = vshrl.u32 %v2921, 7
  %v2923 = vsub.s32 0, %v2922
  %v2924 = vrot.slane %v2920, %v2923
  %v2925 = vadd.f32 %v2918, %v2924
  %v2926 = vadd.f32 %v2919, %v2924
  %v2927 = vadd.f32 %v2925, %v98
  %v2928 = vadd.f32 %v2926, %v99
  %v2929 = vld [vmem:[%s6 + $0x2] sm:$0x1]
  %v2930 = vld [vmem:[%s6 + $0x3] sm:$0x1]
  %v2931 = vsel %vm60, %v2927, 0.0
  %2932 = vadd.xlane.f32.xlu0 %v2931
  %v2933 = vpop.xlane.xlu0 %2932
  %v2934 = vsel %vm60, %v2928, 0.0
  %2935 = vadd.xlane.f32.xlu0 %v2934
  %v2936 = vpop.xlane.xlu0 %2935
  %v2937 = vmul.f32 %v2933, %v67
  %v2938 = vmul.f32 %v2936, %v67
  %v2939 = vsub.f32 %v2927, %v2937
  %v2940 = vsub.f32 %v2928, %v2938
  %v2941 = vmul.f32 %v2939, %v2939
  %v2942 = vmul.f32 %v2940, %v2940
  %v2943 = vsel %vm60, %v2941, 0.0
  %2944 = vadd.xlane.f32.xlu0 %v2943
  %v2945 = vpop.xlane.xlu0 %2944
  %v2946 = vsel %vm60, %v2942, 0.0
  %2947 = vadd.xlane.f32.xlu0 %v2946
  %v2948 = vpop.xlane.xlu0 %2947
  %v2949 = vmul.f32 %v2945, %v67
  %v2950 = vmul.f32 %v2948, %v67
  %v2951 = vadd.f32 %v2949, 1e-12
  %v2952 = vadd.f32 %v2950, 1e-12
  %v2953 = vrsqrt.pop %v2951
  %v2954 = vrsqrt.pop %v2952
  %v2955 = vmul.f32 %v2939, %v2953
  %v2956 = vmul.f32 %v2940, %v2954
  %v2957 = vlaneseq
  %v2958 = vshrl.u32 %v2957, 7
  %v2959 = vsub.s32 0, %v2958
  %v2960 = vrot.slane %v2929, %v2959
  %v2961 = vmul.f32 %v2955, %v2960
  %v2962 = vmul.f32 %v2956, %v2960
  %v2963 = vlaneseq
  %v2964 = vshrl.u32 %v2963, 7
  %v2965 = vsub.s32 0, %v2964
  %v2966 = vrot.slane %v2930, %v2965
  %v2967 = vadd.f32 %v2961, %v2966
  %v2968 = vadd.f32 %v2962, %v2966
  %v2969 = vpack.c.bf16 %v2968, %v2967
  %v2970 = vld [vmem:[%s7] sm:$0xf]
  %v2971 = vld [vmem:[%s7 + $0x4] sm:$0xf]
  %v2972 = vld [vmem:[%s7 + $0x8] sm:$0xf]
  %v2973 = vld [vmem:[%s7 + $0xc] sm:$0xf]
  %v2974 = vld [vmem:[%s8] sm:$0x1]
  %v2976 = vlaneseq
  %v2977 = vshrl.u32 %v2976, 7
  %v2978 = vsub.s32 0, %v2977
  %v2979 = vrot.slane %v2974, %v2978
  %v2985 = vunpack.c.l.b16 %v2970
  %v2986 = vunpack.c.l.b16 %v2971
  %v2987 = vunpack.c.l.b16 %v2972
  %v2988 = vunpack.c.l.b16 %v2973
  %v2989 = vpack.c.b16 %v2986, %v2985
  %v2990 = vpack.c.b16 %v2988, %v2987
  %v2994 = vsel %vm60, %v2969, 0
  %2996 = vmatprep.subr.bf16.mxu0 0
  %2997 = vmatpush1.bf16.msra.mxu0 0
  %2998 = vmatprep.subr.bf16.mxu0 0
  %2999 = vmatpush1.bf16.msra.mxu0 0
  %3000 = vmatprep.subr.bf16.mxu0 0
  %3001 = vmatpush1.bf16.msra.mxu0 0
  %3002 = vmatprep.subr.bf16.mxu0 0
  %3003 = vmatpush1.bf16.msra.mxu0 0
  %3004 = vmatprep.subr.bf16.mxu0 0
  %3005 = vmatpush1.bf16.msra.mxu0 0
  %3006 = vmatprep.subr.bf16.mxu0 0
  %3007 = vmatpush1.bf16.msra.mxu0 0
  %3008 = vmatprep.subr.bf16.mxu0 0
  %3009 = vmatpush1.bf16.msra.mxu0 %v2990
  %3010 = vmatprep.subr.bf16.mxu0 0
  %3011 = vmatpush1.bf16.msra.mxu0 %v2989
  %3012 = vmatprep.subr.bf16.mxu0 0
  %3013 = vmatpush2.bf16.msra.mxu0 0
  %3014 = vmatprep.subr.bf16.mxu0 0
  %3015 = vmatpush2.bf16.msra.mxu0 0
  %3016 = vmatprep.subr.bf16.mxu0 0
  %3017 = vmatpush2.bf16.msra.mxu0 0
  %3018 = vmatprep.subr.bf16.mxu0 0
  %3019 = vmatpush2.bf16.msra.mxu0 0
  %3020 = vmatprep.subr.bf16.mxu0 0
  %3021 = vmatpush2.bf16.msra.mxu0 0
  %3022 = vmatprep.subr.bf16.mxu0 0
  %3023 = vmatpush2.bf16.msra.mxu0 0
  %3024 = vmatprep.subr.bf16.mxu0 0
  %3025 = vmatpush2.bf16.msra.mxu0 0
  %3026 = vmatprep.subr.bf16.mxu0 0
  %3027 = vmatpush2.bf16.msra.mxu0 0
  %3028 = vmatprep.mubr.bf16.mxu0 0
  %3029 = vmatmul.mubr.bf16.gmra.mxu0 %v2994
  %v3030 = vpop.f32.mrf.mxu0
  %v3031 = vadd.f32 %v2979, %v3030
  %v3032 = vpop.f32.mrf.mxu0
  %v3033 = vpop.f32.mrf.mxu0
  %v3034 = vadd.f32 %v2979, %v3033
  %v3035 = vpop.f32.mrf.mxu0
  %3036 = vdwg.mxu0
  %v3037 = vmul.f32 %v3031, 0.5
  %v3038 = vmul.f32 %v3034, 0.5
  %v3039 = vmul.f32 %v3031, 0.044715
  %v3040 = vmul.f32 %v3034, 0.044715
  %v3041 = vmul.f32 %v3039, %v3031
  %v3042 = vmul.f32 %v3040, %v3034
  %v3043 = vmul.f32 %v3041, %v3031
  %v3044 = vmul.f32 %v3042, %v3034
  %v3045 = vadd.f32 %v3031, %v3043
  %v3046 = vadd.f32 %v3034, %v3044
  %v3047 = vmul.f32 %v3045, 0.7978846
  %v3048 = vmul.f32 %v3046, 0.7978846
  %v3049 = vtanh.pop %v3047
  %v3050 = vtanh.pop %v3048
  %v3051 = vadd.f32 %v3049, 1.0
  %v3052 = vadd.f32 %v3050, 1.0
  %v3053 = vmul.f32 %v3037, %v3051
  %v3054 = vmul.f32 %v3038, %v3052
  %v3055 = vpack.c.bf16 %v3054, %v3053
  %v3056 = vld [vmem:[%s9] sm:$0xf]
  %v3057 = vld [vmem:[%s9 + $0x4] sm:$0xf]
  %v3058 = vld [vmem:[%s9 + $0x8] sm:$0xf]
  %v3059 = vld [vmem:[%s9 + $0xc] sm:$0xf]
  %v3060 = vld [vmem:[%s9 + $0x10] sm:$0xf]
  %v3061 = vld [vmem:[%s9 + $0x14] sm:$0xf]
  %v3062 = vld [vmem:[%s9 + $0x18] sm:$0xf]
  %v3063 = vld [vmem:[%s9 + $0x1c] sm:$0xf]
  %v3064 = vld [vmem:[%s6 + $0x1] sm:$0x1]
  %v3065 = vlaneseq
  %v3066 = vshrl.u32 %v3065, 7
  %v3067 = vsub.s32 0, %v3066
  %v3068 = vrot.slane %v3064, %v3067
  %v3077 = vunpack.c.l.b16 %v3056
  %v3078 = vunpack.c.l.b16 %v3057
  %v3079 = vunpack.c.l.b16 %v3058
  %v3080 = vunpack.c.l.b16 %v3059
  %v3081 = vunpack.c.l.b16 %v3060
  %v3082 = vunpack.c.l.b16 %v3061
  %v3083 = vunpack.c.l.b16 %v3062
  %v3084 = vunpack.c.l.b16 %v3063
  %v3085 = vpack.c.b16 %v3078, %v3077
  %v3086 = vpack.c.b16 %v3080, %v3079
  %v3087 = vpack.c.b16 %v3082, %v3081
  %v3088 = vpack.c.b16 %v3084, %v3083
  %vm3093 = vcmask 523264
  %v3095 = vsel %vm3093, %v3055, 0
  %3097 = vmatprep.subr.bf16.mxu0 0
  %3098 = vmatpush1.bf16.msra.mxu0 0
  %3099 = vmatprep.subr.bf16.mxu0 0
  %3100 = vmatpush1.bf16.msra.mxu0 0
  %3101 = vmatprep.subr.bf16.mxu0 0
  %3102 = vmatpush1.bf16.msra.mxu0 0
  %3103 = vmatprep.subr.bf16.mxu0 0
  %3104 = vmatpush1.bf16.msra.mxu0 0
  %3105 = vmatprep.subr.bf16.mxu0 0
  %3106 = vmatpush1.bf16.msra.mxu0 %v3088
  %3107 = vmatprep.subr.bf16.mxu0 0
  %3108 = vmatpush1.bf16.msra.mxu0 %v3087
  %3109 = vmatprep.subr.bf16.mxu0 0
  %3110 = vmatpush1.bf16.msra.mxu0 %v3086
  %3111 = vmatprep.subr.bf16.mxu0 0
  %3112 = vmatpush1.bf16.msra.mxu0 %v3085
  %3113 = vmatprep.subr.bf16.mxu0 0
  %3114 = vmatpush2.bf16.msra.mxu0 0
  %3115 = vmatprep.subr.bf16.mxu0 0
  %3116 = vmatpush2.bf16.msra.mxu0 0
  %3117 = vmatprep.subr.bf16.mxu0 0
  %3118 = vmatpush2.bf16.msra.mxu0 0
  %3119 = vmatprep.subr.bf16.mxu0 0
  %3120 = vmatpush2.bf16.msra.mxu0 0
  %3121 = vmatprep.subr.bf16.mxu0 0
  %3122 = vmatpush2.bf16.msra.mxu0 0
  %3123 = vmatprep.subr.bf16.mxu0 0
  %3124 = vmatpush2.bf16.msra.mxu0 0
  %3125 = vmatprep.subr.bf16.mxu0 0
  %3126 = vmatpush2.bf16.msra.mxu0 0
  %3127 = vmatprep.subr.bf16.mxu0 0
  %3128 = vmatpush2.bf16.msra.mxu0 0
  %3129 = vmatprep.mubr.bf16.mxu0 0
  %3130 = vmatmul.mubr.bf16.gmra.mxu0 %v3095
  %v3131 = vpop.f32.mrf.mxu0
  %v3132 = vadd.f32 %v3068, %v3131
  %v3133 = vpop.f32.mrf.mxu0
  %v3134 = vpop.f32.mrf.mxu0
  %v3135 = vadd.f32 %v3068, %v3134
  %v3136 = vpop.f32.mrf.mxu0
  %3137 = vdwg.mxu0
  %v3138 = vadd.f32 %v3132, %v2967
  %v3139 = vadd.f32 %v3135, %v2968
  %v3140 = vld [vmem:[%s6 + $0x4] sm:$0x1]
  %v3141 = vld [vmem:[%s6 + $0x5] sm:$0x1]
  %v3142 = vsel %vm60, %v3138, 0.0
  %3143 = vadd.xlane.f32.xlu0 %v3142
  %v3144 = vpop.xlane.xlu0 %3143
  %v3145 = vsel %vm60, %v3139, 0.0
  %3146 = vadd.xlane.f32.xlu0 %v3145
  %v3147 = vpop.xlane.xlu0 %3146
  %v3148 = vmul.f32 %v3144, %v67
  %v3149 = vmul.f32 %v3147, %v67
  %v3150 = vsub.f32 %v3138, %v3148
  %v3151 = vsub.f32 %v3139, %v3149
  %v3152 = vmul.f32 %v3150, %v3150
  %v3153 = vmul.f32 %v3151, %v3151
  %v3154 = vsel %vm60, %v3152, 0.0
  %3155 = vadd.xlane.f32.xlu0 %v3154
  %v3156 = vpop.xlane.xlu0 %3155
  %v3157 = vsel %vm60, %v3153, 0.0
  %3158 = vadd.xlane.f32.xlu0 %v3157
  %v3159 = vpop.xlane.xlu0 %3158
  %v3160 = vmul.f32 %v3156, %v67
  %v3161 = vmul.f32 %v3159, %v67
  %v3162 = vadd.f32 %v3160, 1e-12
  %v3163 = vadd.f32 %v3161, 1e-12
  %v3164 = vrsqrt.pop %v3162
  %v3165 = vrsqrt.pop %v3163
  %v3166 = vmul.f32 %v3150, %v3164
  %v3167 = vmul.f32 %v3151, %v3165
  %v3168 = vlaneseq
  %v3169 = vshrl.u32 %v3168, 7
  %v3170 = vsub.s32 0, %v3169
  %v3171 = vrot.slane %v3140, %v3170
  %v3172 = vmul.f32 %v3166, %v3171
  %v3173 = vmul.f32 %v3167, %v3171
  %v3174 = vlaneseq
  %v3175 = vshrl.u32 %v3174, 7
  %v3176 = vsub.s32 0, %v3175
  %v3177 = vrot.slane %v3141, %v3176
  %v3178 = vadd.f32 %v3172, %v3177
  %v3179 = vadd.f32 %v3173, %v3177
  %v3180 = vpack.c.bf16 %v3178, %v3178
  %v3181 = vpack.c.bf16 %v3179, %v3179
  %s3182 = scalar_lea.vmem %s3, 384
  %v3183 = vld [vmem:[%s3182] sm:$0xf]
  %v3184 = vld [vmem:[%s3182 + $0x4] sm:$0xf]
  %v3185 = vld [vmem:[%s3182 + $0x8] sm:$0xf]
  %v3186 = vld [vmem:[%s3182 + $0xc] sm:$0xf]
  %v3187 = vld [vmem:[%s3182 + $0x10] sm:$0xf]
  %v3188 = vld [vmem:[%s3182 + $0x14] sm:$0xf]
  %v3189 = vld [vmem:[%s3182 + $0x18] sm:$0xf]
  %v3190 = vld [vmem:[%s3182 + $0x1c] sm:$0xf]
  %v3191 = vld [vmem:[%s3182 + $0x20] sm:$0xf]
  %v3192 = vld [vmem:[%s3182 + $0x24] sm:$0xf]
  %v3193 = vld [vmem:[%s3182 + $0x28] sm:$0xf]
  %v3194 = vld [vmem:[%s3182 + $0x2c] sm:$0xf]
  %v3195 = vld [vmem:[%s3182 + $0x30] sm:$0xf]
  %v3196 = vld [vmem:[%s3182 + $0x34] sm:$0xf]
  %v3197 = vld [vmem:[%s3182 + $0x38] sm:$0xf]
  %v3198 = vld [vmem:[%s3182 + $0x3c] sm:$0xf]
  %v3199 = vld [vmem:[%s3182 + $0x40] sm:$0xf]
  %v3200 = vld [vmem:[%s3182 + $0x44] sm:$0xf]
  %v3201 = vld [vmem:[%s3182 + $0x48] sm:$0xf]
  %v3202 = vld [vmem:[%s3182 + $0x4c] sm:$0xf]
  %v3203 = vld [vmem:[%s3182 + $0x50] sm:$0xf]
  %v3204 = vld [vmem:[%s3182 + $0x54] sm:$0xf]
  %v3205 = vld [vmem:[%s3182 + $0x58] sm:$0xf]
  %v3206 = vld [vmem:[%s3182 + $0x5c] sm:$0xf]
  %v3207 = vld [vmem:[%s3182 + $0x60] sm:$0xf]
  %v3208 = vld [vmem:[%s3182 + $0x64] sm:$0xf]
  %v3209 = vld [vmem:[%s3182 + $0x68] sm:$0xf]
  %v3210 = vld [vmem:[%s3182 + $0x6c] sm:$0xf]
  %v3211 = vld [vmem:[%s3182 + $0x70] sm:$0xf]
  %v3212 = vld [vmem:[%s3182 + $0x74] sm:$0xf]
  %v3213 = vld [vmem:[%s3182 + $0x78] sm:$0xf]
  %v3214 = vld [vmem:[%s3182 + $0x7c] sm:$0xf]
  %s3215 = scalar_lea.vmem %s3, 512
  %v3216 = vld [vmem:[%s3215] sm:$0xf]
  %v3217 = vld [vmem:[%s3215 + $0x4] sm:$0xf]
  %v3218 = vld [vmem:[%s3215 + $0x8] sm:$0xf]
  %v3219 = vld [vmem:[%s3215 + $0xc] sm:$0xf]
  %v3220 = vld [vmem:[%s3215 + $0x10] sm:$0xf]
  %v3221 = vld [vmem:[%s3215 + $0x14] sm:$0xf]
  %v3222 = vld [vmem:[%s3215 + $0x18] sm:$0xf]
  %v3223 = vld [vmem:[%s3215 + $0x1c] sm:$0xf]
  %v3224 = vld [vmem:[%s3215 + $0x20] sm:$0xf]
  %v3225 = vld [vmem:[%s3215 + $0x24] sm:$0xf]
  %v3226 = vld [vmem:[%s3215 + $0x28] sm:$0xf]
  %v3227 = vld [vmem:[%s3215 + $0x2c] sm:$0xf]
  %v3228 = vld [vmem:[%s3215 + $0x30] sm:$0xf]
  %v3229 = vld [vmem:[%s3215 + $0x34] sm:$0xf]
  %v3230 = vld [vmem:[%s3215 + $0x38] sm:$0xf]
  %v3231 = vld [vmem:[%s3215 + $0x3c] sm:$0xf]
  %v3232 = vld [vmem:[%s3215 + $0x40] sm:$0xf]
  %v3233 = vld [vmem:[%s3215 + $0x44] sm:$0xf]
  %v3234 = vld [vmem:[%s3215 + $0x48] sm:$0xf]
  %v3235 = vld [vmem:[%s3215 + $0x4c] sm:$0xf]
  %v3236 = vld [vmem:[%s3215 + $0x50] sm:$0xf]
  %v3237 = vld [vmem:[%s3215 + $0x54] sm:$0xf]
  %v3238 = vld [vmem:[%s3215 + $0x58] sm:$0xf]
  %v3239 = vld [vmem:[%s3215 + $0x5c] sm:$0xf]
  %v3240 = vld [vmem:[%s3215 + $0x60] sm:$0xf]
  %v3241 = vld [vmem:[%s3215 + $0x64] sm:$0xf]
  %v3242 = vld [vmem:[%s3215 + $0x68] sm:$0xf]
  %v3243 = vld [vmem:[%s3215 + $0x6c] sm:$0xf]
  %v3244 = vld [vmem:[%s3215 + $0x70] sm:$0xf]
  %v3245 = vld [vmem:[%s3215 + $0x74] sm:$0xf]
  %v3246 = vld [vmem:[%s3215 + $0x78] sm:$0xf]
  %v3247 = vld [vmem:[%s3215 + $0x7c] sm:$0xf]
  %s3248 = scalar_lea.vmem %s3, 640
  %v3249 = vld [vmem:[%s3248] sm:$0xf]
  %v3250 = vld [vmem:[%s3248 + $0x4] sm:$0xf]
  %v3251 = vld [vmem:[%s3248 + $0x8] sm:$0xf]
  %v3252 = vld [vmem:[%s3248 + $0xc] sm:$0xf]
  %v3253 = vld [vmem:[%s3248 + $0x10] sm:$0xf]
  %v3254 = vld [vmem:[%s3248 + $0x14] sm:$0xf]
  %v3255 = vld [vmem:[%s3248 + $0x18] sm:$0xf]
  %v3256 = vld [vmem:[%s3248 + $0x1c] sm:$0xf]
  %v3257 = vld [vmem:[%s3248 + $0x20] sm:$0xf]
  %v3258 = vld [vmem:[%s3248 + $0x24] sm:$0xf]
  %v3259 = vld [vmem:[%s3248 + $0x28] sm:$0xf]
  %v3260 = vld [vmem:[%s3248 + $0x2c] sm:$0xf]
  %v3261 = vld [vmem:[%s3248 + $0x30] sm:$0xf]
  %v3262 = vld [vmem:[%s3248 + $0x34] sm:$0xf]
  %v3263 = vld [vmem:[%s3248 + $0x38] sm:$0xf]
  %v3264 = vld [vmem:[%s3248 + $0x3c] sm:$0xf]
  %v3265 = vld [vmem:[%s3248 + $0x40] sm:$0xf]
  %v3266 = vld [vmem:[%s3248 + $0x44] sm:$0xf]
  %v3267 = vld [vmem:[%s3248 + $0x48] sm:$0xf]
  %v3268 = vld [vmem:[%s3248 + $0x4c] sm:$0xf]
  %v3269 = vld [vmem:[%s3248 + $0x50] sm:$0xf]
  %v3270 = vld [vmem:[%s3248 + $0x54] sm:$0xf]
  %v3271 = vld [vmem:[%s3248 + $0x58] sm:$0xf]
  %v3272 = vld [vmem:[%s3248 + $0x5c] sm:$0xf]
  %v3273 = vld [vmem:[%s3248 + $0x60] sm:$0xf]
  %v3274 = vld [vmem:[%s3248 + $0x64] sm:$0xf]
  %v3275 = vld [vmem:[%s3248 + $0x68] sm:$0xf]
  %v3276 = vld [vmem:[%s3248 + $0x6c] sm:$0xf]
  %v3277 = vld [vmem:[%s3248 + $0x70] sm:$0xf]
  %v3278 = vld [vmem:[%s3248 + $0x74] sm:$0xf]
  %v3279 = vld [vmem:[%s3248 + $0x78] sm:$0xf]
  %v3280 = vld [vmem:[%s3248 + $0x7c] sm:$0xf]
  %s3281 = scalar_lea.vmem %s4, 24
  %v3282 = vld [vmem:[%s3281] sm:$0x1]
  %v3283 = vld [vmem:[%s3281 + $0x1] sm:$0x1]
  %v3284 = vld [vmem:[%s3281 + $0x2] sm:$0x1]
  %v3285 = vld [vmem:[%s3281 + $0x3] sm:$0x1]
  %v3286 = vld [vmem:[%s3281 + $0x4] sm:$0x1]
  %v3287 = vld [vmem:[%s3281 + $0x5] sm:$0x1]
  %v3288 = vld [vmem:[%s3281 + $0x6] sm:$0x1]
  %v3289 = vld [vmem:[%s3281 + $0x7] sm:$0x1]
  %s3290 = scalar_lea.vmem %s4, 32
  %v3291 = vld [vmem:[%s3290] sm:$0x1]
  %v3292 = vld [vmem:[%s3290 + $0x1] sm:$0x1]
  %v3293 = vld [vmem:[%s3290 + $0x2] sm:$0x1]
  %v3294 = vld [vmem:[%s3290 + $0x3] sm:$0x1]
  %v3295 = vld [vmem:[%s3290 + $0x4] sm:$0x1]
  %v3296 = vld [vmem:[%s3290 + $0x5] sm:$0x1]
  %v3297 = vld [vmem:[%s3290 + $0x6] sm:$0x1]
  %v3298 = vld [vmem:[%s3290 + $0x7] sm:$0x1]
  %s3299 = scalar_lea.vmem %s4, 40
  %v3300 = vld [vmem:[%s3299] sm:$0x1]
  %v3301 = vld [vmem:[%s3299 + $0x1] sm:$0x1]
  %v3302 = vld [vmem:[%s3299 + $0x2] sm:$0x1]
  %v3303 = vld [vmem:[%s3299 + $0x3] sm:$0x1]
  %v3304 = vld [vmem:[%s3299 + $0x4] sm:$0x1]
  %v3305 = vld [vmem:[%s3299 + $0x5] sm:$0x1]
  %v3306 = vld [vmem:[%s3299 + $0x6] sm:$0x1]
  %v3307 = vld [vmem:[%s3299 + $0x7] sm:$0x1]
  %v3316 = vlaneseq
  %v3317 = vshrl.u32 %v3316, 7
  %v3318 = vsub.s32 0, %v3317
  %v3319 = vrot.slane %v3282, %v3318
  %v3320 = vlaneseq
  %v3321 = vshrl.u32 %v3320, 7
  %v3322 = vsub.s32 0, %v3321
  %v3323 = vrot.slane %v3283, %v3322
  %v3324 = vlaneseq
  %v3325 = vshrl.u32 %v3324, 7
  %v3326 = vsub.s32 0, %v3325
  %v3327 = vrot.slane %v3284, %v3326
  %v3328 = vlaneseq
  %v3329 = vshrl.u32 %v3328, 7
  %v3330 = vsub.s32 0, %v3329
  %v3331 = vrot.slane %v3285, %v3330
  %v3332 = vlaneseq
  %v3333 = vshrl.u32 %v3332, 7
  %v3334 = vsub.s32 0, %v3333
  %v3335 = vrot.slane %v3286, %v3334
  %v3336 = vlaneseq
  %v3337 = vshrl.u32 %v3336, 7
  %v3338 = vsub.s32 0, %v3337
  %v3339 = vrot.slane %v3287, %v3338
  %v3340 = vlaneseq
  %v3341 = vshrl.u32 %v3340, 7
  %v3342 = vsub.s32 0, %v3341
  %v3343 = vrot.slane %v3288, %v3342
  %v3344 = vlaneseq
  %v3345 = vshrl.u32 %v3344, 7
  %v3346 = vsub.s32 0, %v3345
  %v3347 = vrot.slane %v3289, %v3346
  %v3360 = vunpack.c.l.b16 %v3183
  %v3361 = vunpack.c.l.b16 %v3184
  %v3362 = vunpack.c.l.b16 %v3185
  %v3363 = vunpack.c.l.b16 %v3186
  %v3364 = vpack.c.b16 %v3361, %v3360
  %v3365 = vpack.c.b16 %v3363, %v3362
  %v3369 = vsel %vm60, %v3180, 0
  %3371 = vmatprep.subr.bf16.mxu0 0
  %3372 = vmatpush1.bf16.msra.mxu0 0
  %3373 = vmatprep.subr.bf16.mxu0 0
  %3374 = vmatpush1.bf16.msra.mxu0 0
  %3375 = vmatprep.subr.bf16.mxu0 0
  %3376 = vmatpush1.bf16.msra.mxu0 0
  %3377 = vmatprep.subr.bf16.mxu0 0
  %3378 = vmatpush1.bf16.msra.mxu0 0
  %3379 = vmatprep.subr.bf16.mxu0 0
  %3380 = vmatpush1.bf16.msra.mxu0 0
  %3381 = vmatprep.subr.bf16.mxu0 0
  %3382 = vmatpush1.bf16.msra.mxu0 0
  %3383 = vmatprep.subr.bf16.mxu0 0
  %3384 = vmatpush1.bf16.msra.mxu0 %v3365
  %3385 = vmatprep.subr.bf16.mxu0 0
  %3386 = vmatpush1.bf16.msra.mxu0 %v3364
  %3387 = vmatprep.subr.bf16.mxu0 0
  %3388 = vmatpush2.bf16.msra.mxu0 0
  %3389 = vmatprep.subr.bf16.mxu0 0
  %3390 = vmatpush2.bf16.msra.mxu0 0
  %3391 = vmatprep.subr.bf16.mxu0 0
  %3392 = vmatpush2.bf16.msra.mxu0 0
  %3393 = vmatprep.subr.bf16.mxu0 0
  %3394 = vmatpush2.bf16.msra.mxu0 0
  %3395 = vmatprep.subr.bf16.mxu0 0
  %3396 = vmatpush2.bf16.msra.mxu0 0
  %3397 = vmatprep.subr.bf16.mxu0 0
  %3398 = vmatpush2.bf16.msra.mxu0 0
  %3399 = vmatprep.subr.bf16.mxu0 0
  %3400 = vmatpush2.bf16.msra.mxu0 0
  %3401 = vmatprep.subr.bf16.mxu0 0
  %3402 = vmatpush2.bf16.msra.mxu0 0
  %3403 = vmatprep.mubr.bf16.mxu0 0
  %3404 = vmatmul.mubr.bf16.gmra.mxu0 %v3369
  %v3405 = vpop.f32.mrf.mxu0
  %v3406 = vadd.f32 %v3319, %v3405
  %v3407 = vpop.f32.mrf.mxu0
  %v3408 = vpop.f32.mrf.mxu0
  %v3409 = vpop.f32.mrf.mxu0
  %3410 = vdwg.mxu0
  %v3415 = vunpack.c.l.b16 %v3187
  %v3416 = vunpack.c.l.b16 %v3188
  %v3417 = vunpack.c.l.b16 %v3189
  %v3418 = vunpack.c.l.b16 %v3190
  %v3419 = vpack.c.b16 %v3416, %v3415
  %v3420 = vpack.c.b16 %v3418, %v3417
  %3423 = vmatprep.subr.bf16.mxu0 0
  %3424 = vmatpush1.bf16.msra.mxu0 0
  %3425 = vmatprep.subr.bf16.mxu0 0
  %3426 = vmatpush1.bf16.msra.mxu0 0
  %3427 = vmatprep.subr.bf16.mxu0 0
  %3428 = vmatpush1.bf16.msra.mxu0 0
  %3429 = vmatprep.subr.bf16.mxu0 0
  %3430 = vmatpush1.bf16.msra.mxu0 0
  %3431 = vmatprep.subr.bf16.mxu0 0
  %3432 = vmatpush1.bf16.msra.mxu0 0
  %3433 = vmatprep.subr.bf16.mxu0 0
  %3434 = vmatpush1.bf16.msra.mxu0 0
  %3435 = vmatprep.subr.bf16.mxu0 0
  %3436 = vmatpush1.bf16.msra.mxu0 %v3420
  %3437 = vmatprep.subr.bf16.mxu0 0
  %3438 = vmatpush1.bf16.msra.mxu0 %v3419
  %3439 = vmatprep.subr.bf16.mxu0 0
  %3440 = vmatpush2.bf16.msra.mxu0 0
  %3441 = vmatprep.subr.bf16.mxu0 0
  %3442 = vmatpush2.bf16.msra.mxu0 0
  %3443 = vmatprep.subr.bf16.mxu0 0
  %3444 = vmatpush2.bf16.msra.mxu0 0
  %3445 = vmatprep.subr.bf16.mxu0 0
  %3446 = vmatpush2.bf16.msra.mxu0 0
  %3447 = vmatprep.subr.bf16.mxu0 0
  %3448 = vmatpush2.bf16.msra.mxu0 0
  %3449 = vmatprep.subr.bf16.mxu0 0
  %3450 = vmatpush2.bf16.msra.mxu0 0
  %3451 = vmatprep.subr.bf16.mxu0 0
  %3452 = vmatpush2.bf16.msra.mxu0 0
  %3453 = vmatprep.subr.bf16.mxu0 0
  %3454 = vmatpush2.bf16.msra.mxu0 0
  %3455 = vmatprep.mubr.bf16.mxu0 0
  %3456 = vmatmul.mubr.bf16.gmra.mxu0 %v3369
  %v3457 = vpop.f32.mrf.mxu0
  %v3458 = vadd.f32 %v3323, %v3457
  %v3459 = vpop.f32.mrf.mxu0
  %v3460 = vpop.f32.mrf.mxu0
  %v3461 = vpop.f32.mrf.mxu0
  %3462 = vdwg.mxu0
  %v3467 = vunpack.c.l.b16 %v3191
  %v3468 = vunpack.c.l.b16 %v3192
  %v3469 = vunpack.c.l.b16 %v3193
  %v3470 = vunpack.c.l.b16 %v3194
  %v3471 = vpack.c.b16 %v3468, %v3467
  %v3472 = vpack.c.b16 %v3470, %v3469
  %3475 = vmatprep.subr.bf16.mxu0 0
  %3476 = vmatpush1.bf16.msra.mxu0 0
  %3477 = vmatprep.subr.bf16.mxu0 0
  %3478 = vmatpush1.bf16.msra.mxu0 0
  %3479 = vmatprep.subr.bf16.mxu0 0
  %3480 = vmatpush1.bf16.msra.mxu0 0
  %3481 = vmatprep.subr.bf16.mxu0 0
  %3482 = vmatpush1.bf16.msra.mxu0 0
  %3483 = vmatprep.subr.bf16.mxu0 0
  %3484 = vmatpush1.bf16.msra.mxu0 0
  %3485 = vmatprep.subr.bf16.mxu0 0
  %3486 = vmatpush1.bf16.msra.mxu0 0
  %3487 = vmatprep.subr.bf16.mxu0 0
  %3488 = vmatpush1.bf16.msra.mxu0 %v3472
  %3489 = vmatprep.subr.bf16.mxu0 0
  %3490 = vmatpush1.bf16.msra.mxu0 %v3471
  %3491 = vmatprep.subr.bf16.mxu0 0
  %3492 = vmatpush2.bf16.msra.mxu0 0
  %3493 = vmatprep.subr.bf16.mxu0 0
  %3494 = vmatpush2.bf16.msra.mxu0 0
  %3495 = vmatprep.subr.bf16.mxu0 0
  %3496 = vmatpush2.bf16.msra.mxu0 0
  %3497 = vmatprep.subr.bf16.mxu0 0
  %3498 = vmatpush2.bf16.msra.mxu0 0
  %3499 = vmatprep.subr.bf16.mxu0 0
  %3500 = vmatpush2.bf16.msra.mxu0 0
  %3501 = vmatprep.subr.bf16.mxu0 0
  %3502 = vmatpush2.bf16.msra.mxu0 0
  %3503 = vmatprep.subr.bf16.mxu0 0
  %3504 = vmatpush2.bf16.msra.mxu0 0
  %3505 = vmatprep.subr.bf16.mxu0 0
  %3506 = vmatpush2.bf16.msra.mxu0 0
  %3507 = vmatprep.mubr.bf16.mxu0 0
  %3508 = vmatmul.mubr.bf16.gmra.mxu0 %v3369
  %v3509 = vpop.f32.mrf.mxu0
  %v3510 = vadd.f32 %v3327, %v3509
  %v3511 = vpop.f32.mrf.mxu0
  %v3512 = vpop.f32.mrf.mxu0
  %v3513 = vpop.f32.mrf.mxu0
  %3514 = vdwg.mxu0
  %v3519 = vunpack.c.l.b16 %v3195
  %v3520 = vunpack.c.l.b16 %v3196
  %v3521 = vunpack.c.l.b16 %v3197
  %v3522 = vunpack.c.l.b16 %v3198
  %v3523 = vpack.c.b16 %v3520, %v3519
  %v3524 = vpack.c.b16 %v3522, %v3521
  %3527 = vmatprep.subr.bf16.mxu0 0
  %3528 = vmatpush1.bf16.msra.mxu0 0
  %3529 = vmatprep.subr.bf16.mxu0 0
  %3530 = vmatpush1.bf16.msra.mxu0 0
  %3531 = vmatprep.subr.bf16.mxu0 0
  %3532 = vmatpush1.bf16.msra.mxu0 0
  %3533 = vmatprep.subr.bf16.mxu0 0
  %3534 = vmatpush1.bf16.msra.mxu0 0
  %3535 = vmatprep.subr.bf16.mxu0 0
  %3536 = vmatpush1.bf16.msra.mxu0 0
  %3537 = vmatprep.subr.bf16.mxu0 0
  %3538 = vmatpush1.bf16.msra.mxu0 0
  %3539 = vmatprep.subr.bf16.mxu0 0
  %3540 = vmatpush1.bf16.msra.mxu0 %v3524
  %3541 = vmatprep.subr.bf16.mxu0 0
  %3542 = vmatpush1.bf16.msra.mxu0 %v3523
  %3543 = vmatprep.subr.bf16.mxu0 0
  %3544 = vmatpush2.bf16.msra.mxu0 0
  %3545 = vmatprep.subr.bf16.mxu0 0
  %3546 = vmatpush2.bf16.msra.mxu0 0
  %3547 = vmatprep.subr.bf16.mxu0 0
  %3548 = vmatpush2.bf16.msra.mxu0 0
  %3549 = vmatprep.subr.bf16.mxu0 0
  %3550 = vmatpush2.bf16.msra.mxu0 0
  %3551 = vmatprep.subr.bf16.mxu0 0
  %3552 = vmatpush2.bf16.msra.mxu0 0
  %3553 = vmatprep.subr.bf16.mxu0 0
  %3554 = vmatpush2.bf16.msra.mxu0 0
  %3555 = vmatprep.subr.bf16.mxu0 0
  %3556 = vmatpush2.bf16.msra.mxu0 0
  %3557 = vmatprep.subr.bf16.mxu0 0
  %3558 = vmatpush2.bf16.msra.mxu0 0
  %3559 = vmatprep.mubr.bf16.mxu0 0
  %3560 = vmatmul.mubr.bf16.gmra.mxu0 %v3369
  %v3561 = vpop.f32.mrf.mxu0
  %v3562 = vadd.f32 %v3331, %v3561
  %v3563 = vpop.f32.mrf.mxu0
  %v3564 = vpop.f32.mrf.mxu0
  %v3565 = vpop.f32.mrf.mxu0
  %3566 = vdwg.mxu0
  %v3571 = vunpack.c.l.b16 %v3199
  %v3572 = vunpack.c.l.b16 %v3200
  %v3573 = vunpack.c.l.b16 %v3201
  %v3574 = vunpack.c.l.b16 %v3202
  %v3575 = vpack.c.b16 %v3572, %v3571
  %v3576 = vpack.c.b16 %v3574, %v3573
  %v3580 = vsel %vm60, %v3181, 0
  %3582 = vmatprep.subr.bf16.mxu0 0
  %3583 = vmatpush1.bf16.msra.mxu0 0
  %3584 = vmatprep.subr.bf16.mxu0 0
  %3585 = vmatpush1.bf16.msra.mxu0 0
  %3586 = vmatprep.subr.bf16.mxu0 0
  %3587 = vmatpush1.bf16.msra.mxu0 0
  %3588 = vmatprep.subr.bf16.mxu0 0
  %3589 = vmatpush1.bf16.msra.mxu0 0
  %3590 = vmatprep.subr.bf16.mxu0 0
  %3591 = vmatpush1.bf16.msra.mxu0 0
  %3592 = vmatprep.subr.bf16.mxu0 0
  %3593 = vmatpush1.bf16.msra.mxu0 0
  %3594 = vmatprep.subr.bf16.mxu0 0
  %3595 = vmatpush1.bf16.msra.mxu0 %v3576
  %3596 = vmatprep.subr.bf16.mxu0 0
  %3597 = vmatpush1.bf16.msra.mxu0 %v3575
  %3598 = vmatprep.subr.bf16.mxu0 0
  %3599 = vmatpush2.bf16.msra.mxu0 0
  %3600 = vmatprep.subr.bf16.mxu0 0
  %3601 = vmatpush2.bf16.msra.mxu0 0
  %3602 = vmatprep.subr.bf16.mxu0 0
  %3603 = vmatpush2.bf16.msra.mxu0 0
  %3604 = vmatprep.subr.bf16.mxu0 0
  %3605 = vmatpush2.bf16.msra.mxu0 0
  %3606 = vmatprep.subr.bf16.mxu0 0
  %3607 = vmatpush2.bf16.msra.mxu0 0
  %3608 = vmatprep.subr.bf16.mxu0 0
  %3609 = vmatpush2.bf16.msra.mxu0 0
  %3610 = vmatprep.subr.bf16.mxu0 0
  %3611 = vmatpush2.bf16.msra.mxu0 0
  %3612 = vmatprep.subr.bf16.mxu0 0
  %3613 = vmatpush2.bf16.msra.mxu0 0
  %3614 = vmatprep.mubr.bf16.mxu0 0
  %3615 = vmatmul.mubr.bf16.gmra.mxu0 %v3580
  %v3616 = vpop.f32.mrf.mxu0
  %v3617 = vadd.f32 %v3335, %v3616
  %v3618 = vpop.f32.mrf.mxu0
  %v3619 = vpop.f32.mrf.mxu0
  %v3620 = vpop.f32.mrf.mxu0
  %3621 = vdwg.mxu0
  %v3626 = vunpack.c.l.b16 %v3203
  %v3627 = vunpack.c.l.b16 %v3204
  %v3628 = vunpack.c.l.b16 %v3205
  %v3629 = vunpack.c.l.b16 %v3206
  %v3630 = vpack.c.b16 %v3627, %v3626
  %v3631 = vpack.c.b16 %v3629, %v3628
  %3634 = vmatprep.subr.bf16.mxu0 0
  %3635 = vmatpush1.bf16.msra.mxu0 0
  %3636 = vmatprep.subr.bf16.mxu0 0
  %3637 = vmatpush1.bf16.msra.mxu0 0
  %3638 = vmatprep.subr.bf16.mxu0 0
  %3639 = vmatpush1.bf16.msra.mxu0 0
  %3640 = vmatprep.subr.bf16.mxu0 0
  %3641 = vmatpush1.bf16.msra.mxu0 0
  %3642 = vmatprep.subr.bf16.mxu0 0
  %3643 = vmatpush1.bf16.msra.mxu0 0
  %3644 = vmatprep.subr.bf16.mxu0 0
  %3645 = vmatpush1.bf16.msra.mxu0 0
  %3646 = vmatprep.subr.bf16.mxu0 0
  %3647 = vmatpush1.bf16.msra.mxu0 %v3631
  %3648 = vmatprep.subr.bf16.mxu0 0
  %3649 = vmatpush1.bf16.msra.mxu0 %v3630
  %3650 = vmatprep.subr.bf16.mxu0 0
  %3651 = vmatpush2.bf16.msra.mxu0 0
  %3652 = vmatprep.subr.bf16.mxu0 0
  %3653 = vmatpush2.bf16.msra.mxu0 0
  %3654 = vmatprep.subr.bf16.mxu0 0
  %3655 = vmatpush2.bf16.msra.mxu0 0
  %3656 = vmatprep.subr.bf16.mxu0 0
  %3657 = vmatpush2.bf16.msra.mxu0 0
  %3658 = vmatprep.subr.bf16.mxu0 0
  %3659 = vmatpush2.bf16.msra.mxu0 0
  %3660 = vmatprep.subr.bf16.mxu0 0
  %3661 = vmatpush2.bf16.msra.mxu0 0
  %3662 = vmatprep.subr.bf16.mxu0 0
  %3663 = vmatpush2.bf16.msra.mxu0 0
  %3664 = vmatprep.subr.bf16.mxu0 0
  %3665 = vmatpush2.bf16.msra.mxu0 0
  %3666 = vmatprep.mubr.bf16.mxu0 0
  %3667 = vmatmul.mubr.bf16.gmra.mxu0 %v3580
  %v3668 = vpop.f32.mrf.mxu0
  %v3669 = vadd.f32 %v3339, %v3668
  %v3670 = vpop.f32.mrf.mxu0
  %v3671 = vpop.f32.mrf.mxu0
  %v3672 = vpop.f32.mrf.mxu0
  %3673 = vdwg.mxu0
  %v3678 = vunpack.c.l.b16 %v3207
  %v3679 = vunpack.c.l.b16 %v3208
  %v3680 = vunpack.c.l.b16 %v3209
  %v3681 = vunpack.c.l.b16 %v3210
  %v3682 = vpack.c.b16 %v3679, %v3678
  %v3683 = vpack.c.b16 %v3681, %v3680
  %3686 = vmatprep.subr.bf16.mxu0 0
  %3687 = vmatpush1.bf16.msra.mxu0 0
  %3688 = vmatprep.subr.bf16.mxu0 0
  %3689 = vmatpush1.bf16.msra.mxu0 0
  %3690 = vmatprep.subr.bf16.mxu0 0
  %3691 = vmatpush1.bf16.msra.mxu0 0
  %3692 = vmatprep.subr.bf16.mxu0 0
  %3693 = vmatpush1.bf16.msra.mxu0 0
  %3694 = vmatprep.subr.bf16.mxu0 0
  %3695 = vmatpush1.bf16.msra.mxu0 0
  %3696 = vmatprep.subr.bf16.mxu0 0
  %3697 = vmatpush1.bf16.msra.mxu0 0
  %3698 = vmatprep.subr.bf16.mxu0 0
  %3699 = vmatpush1.bf16.msra.mxu0 %v3683
  %3700 = vmatprep.subr.bf16.mxu0 0
  %3701 = vmatpush1.bf16.msra.mxu0 %v3682
  %3702 = vmatprep.subr.bf16.mxu0 0
  %3703 = vmatpush2.bf16.msra.mxu0 0
  %3704 = vmatprep.subr.bf16.mxu0 0
  %3705 = vmatpush2.bf16.msra.mxu0 0
  %3706 = vmatprep.subr.bf16.mxu0 0
  %3707 = vmatpush2.bf16.msra.mxu0 0
  %3708 = vmatprep.subr.bf16.mxu0 0
  %3709 = vmatpush2.bf16.msra.mxu0 0
  %3710 = vmatprep.subr.bf16.mxu0 0
  %3711 = vmatpush2.bf16.msra.mxu0 0
  %3712 = vmatprep.subr.bf16.mxu0 0
  %3713 = vmatpush2.bf16.msra.mxu0 0
  %3714 = vmatprep.subr.bf16.mxu0 0
  %3715 = vmatpush2.bf16.msra.mxu0 0
  %3716 = vmatprep.subr.bf16.mxu0 0
  %3717 = vmatpush2.bf16.msra.mxu0 0
  %3718 = vmatprep.mubr.bf16.mxu0 0
  %3719 = vmatmul.mubr.bf16.gmra.mxu0 %v3580
  %v3720 = vpop.f32.mrf.mxu0
  %v3721 = vadd.f32 %v3343, %v3720
  %v3722 = vpop.f32.mrf.mxu0
  %v3723 = vpop.f32.mrf.mxu0
  %v3724 = vpop.f32.mrf.mxu0
  %3725 = vdwg.mxu0
  %v3730 = vunpack.c.l.b16 %v3211
  %v3731 = vunpack.c.l.b16 %v3212
  %v3732 = vunpack.c.l.b16 %v3213
  %v3733 = vunpack.c.l.b16 %v3214
  %v3734 = vpack.c.b16 %v3731, %v3730
  %v3735 = vpack.c.b16 %v3733, %v3732
  %3738 = vmatprep.subr.bf16.mxu0 0
  %3739 = vmatpush1.bf16.msra.mxu0 0
  %3740 = vmatprep.subr.bf16.mxu0 0
  %3741 = vmatpush1.bf16.msra.mxu0 0
  %3742 = vmatprep.subr.bf16.mxu0 0
  %3743 = vmatpush1.bf16.msra.mxu0 0
  %3744 = vmatprep.subr.bf16.mxu0 0
  %3745 = vmatpush1.bf16.msra.mxu0 0
  %3746 = vmatprep.subr.bf16.mxu0 0
  %3747 = vmatpush1.bf16.msra.mxu0 0
  %3748 = vmatprep.subr.bf16.mxu0 0
  %3749 = vmatpush1.bf16.msra.mxu0 0
  %3750 = vmatprep.subr.bf16.mxu0 0
  %3751 = vmatpush1.bf16.msra.mxu0 %v3735
  %3752 = vmatprep.subr.bf16.mxu0 0
  %3753 = vmatpush1.bf16.msra.mxu0 %v3734
  %3754 = vmatprep.subr.bf16.mxu0 0
  %3755 = vmatpush2.bf16.msra.mxu0 0
  %3756 = vmatprep.subr.bf16.mxu0 0
  %3757 = vmatpush2.bf16.msra.mxu0 0
  %3758 = vmatprep.subr.bf16.mxu0 0
  %3759 = vmatpush2.bf16.msra.mxu0 0
  %3760 = vmatprep.subr.bf16.mxu0 0
  %3761 = vmatpush2.bf16.msra.mxu0 0
  %3762 = vmatprep.subr.bf16.mxu0 0
  %3763 = vmatpush2.bf16.msra.mxu0 0
  %3764 = vmatprep.subr.bf16.mxu0 0
  %3765 = vmatpush2.bf16.msra.mxu0 0
  %3766 = vmatprep.subr.bf16.mxu0 0
  %3767 = vmatpush2.bf16.msra.mxu0 0
  %3768 = vmatprep.subr.bf16.mxu0 0
  %3769 = vmatpush2.bf16.msra.mxu0 0
  %3770 = vmatprep.mubr.bf16.mxu0 0
  %3771 = vmatmul.mubr.bf16.gmra.mxu0 %v3580
  %v3772 = vpop.f32.mrf.mxu0
  %v3773 = vadd.f32 %v3347, %v3772
  %v3774 = vpop.f32.mrf.mxu0
  %v3775 = vpop.f32.mrf.mxu0
  %v3776 = vpop.f32.mrf.mxu0
  %3777 = vdwg.mxu0
  %v3786 = vlaneseq
  %v3787 = vshrl.u32 %v3786, 7
  %v3788 = vsub.s32 0, %v3787
  %v3789 = vrot.slane %v3291, %v3788
  %v3790 = vlaneseq
  %v3791 = vshrl.u32 %v3790, 7
  %v3792 = vsub.s32 0, %v3791
  %v3793 = vrot.slane %v3292, %v3792
  %v3794 = vlaneseq
  %v3795 = vshrl.u32 %v3794, 7
  %v3796 = vsub.s32 0, %v3795
  %v3797 = vrot.slane %v3293, %v3796
  %v3798 = vlaneseq
  %v3799 = vshrl.u32 %v3798, 7
  %v3800 = vsub.s32 0, %v3799
  %v3801 = vrot.slane %v3294, %v3800
  %v3802 = vlaneseq
  %v3803 = vshrl.u32 %v3802, 7
  %v3804 = vsub.s32 0, %v3803
  %v3805 = vrot.slane %v3295, %v3804
  %v3806 = vlaneseq
  %v3807 = vshrl.u32 %v3806, 7
  %v3808 = vsub.s32 0, %v3807
  %v3809 = vrot.slane %v3296, %v3808
  %v3810 = vlaneseq
  %v3811 = vshrl.u32 %v3810, 7
  %v3812 = vsub.s32 0, %v3811
  %v3813 = vrot.slane %v3297, %v3812
  %v3814 = vlaneseq
  %v3815 = vshrl.u32 %v3814, 7
  %v3816 = vsub.s32 0, %v3815
  %v3817 = vrot.slane %v3298, %v3816
  %v3830 = vunpack.c.l.b16 %v3216
  %v3831 = vunpack.c.l.b16 %v3217
  %v3832 = vunpack.c.l.b16 %v3218
  %v3833 = vunpack.c.l.b16 %v3219
  %v3834 = vpack.c.b16 %v3831, %v3830
  %v3835 = vpack.c.b16 %v3833, %v3832
  %3838 = vmatprep.subr.bf16.mxu0 0
  %3839 = vmatpush1.bf16.msra.mxu0 0
  %3840 = vmatprep.subr.bf16.mxu0 0
  %3841 = vmatpush1.bf16.msra.mxu0 0
  %3842 = vmatprep.subr.bf16.mxu0 0
  %3843 = vmatpush1.bf16.msra.mxu0 0
  %3844 = vmatprep.subr.bf16.mxu0 0
  %3845 = vmatpush1.bf16.msra.mxu0 0
  %3846 = vmatprep.subr.bf16.mxu0 0
  %3847 = vmatpush1.bf16.msra.mxu0 0
  %3848 = vmatprep.subr.bf16.mxu0 0
  %3849 = vmatpush1.bf16.msra.mxu0 0
  %3850 = vmatprep.subr.bf16.mxu0 0
  %3851 = vmatpush1.bf16.msra.mxu0 %v3835
  %3852 = vmatprep.subr.bf16.mxu0 0
  %3853 = vmatpush1.bf16.msra.mxu0 %v3834
  %3854 = vmatprep.subr.bf16.mxu0 0
  %3855 = vmatpush2.bf16.msra.mxu0 0
  %3856 = vmatprep.subr.bf16.mxu0 0
  %3857 = vmatpush2.bf16.msra.mxu0 0
  %3858 = vmatprep.subr.bf16.mxu0 0
  %3859 = vmatpush2.bf16.msra.mxu0 0
  %3860 = vmatprep.subr.bf16.mxu0 0
  %3861 = vmatpush2.bf16.msra.mxu0 0
  %3862 = vmatprep.subr.bf16.mxu0 0
  %3863 = vmatpush2.bf16.msra.mxu0 0
  %3864 = vmatprep.subr.bf16.mxu0 0
  %3865 = vmatpush2.bf16.msra.mxu0 0
  %3866 = vmatprep.subr.bf16.mxu0 0
  %3867 = vmatpush2.bf16.msra.mxu0 0
  %3868 = vmatprep.subr.bf16.mxu0 0
  %3869 = vmatpush2.bf16.msra.mxu0 0
  %3870 = vmatprep.mubr.bf16.mxu0 0
  %3871 = vmatmul.mubr.bf16.gmra.mxu0 %v3369
  %v3872 = vpop.f32.mrf.mxu0
  %v3873 = vadd.f32 %v3789, %v3872
  %v3874 = vpop.f32.mrf.mxu0
  %v3875 = vpop.f32.mrf.mxu0
  %v3876 = vpop.f32.mrf.mxu0
  %3877 = vdwg.mxu0
  %v3882 = vunpack.c.l.b16 %v3220
  %v3883 = vunpack.c.l.b16 %v3221
  %v3884 = vunpack.c.l.b16 %v3222
  %v3885 = vunpack.c.l.b16 %v3223
  %v3886 = vpack.c.b16 %v3883, %v3882
  %v3887 = vpack.c.b16 %v3885, %v3884
  %3890 = vmatprep.subr.bf16.mxu0 0
  %3891 = vmatpush1.bf16.msra.mxu0 0
  %3892 = vmatprep.subr.bf16.mxu0 0
  %3893 = vmatpush1.bf16.msra.mxu0 0
  %3894 = vmatprep.subr.bf16.mxu0 0
  %3895 = vmatpush1.bf16.msra.mxu0 0
  %3896 = vmatprep.subr.bf16.mxu0 0
  %3897 = vmatpush1.bf16.msra.mxu0 0
  %3898 = vmatprep.subr.bf16.mxu0 0
  %3899 = vmatpush1.bf16.msra.mxu0 0
  %3900 = vmatprep.subr.bf16.mxu0 0
  %3901 = vmatpush1.bf16.msra.mxu0 0
  %3902 = vmatprep.subr.bf16.mxu0 0
  %3903 = vmatpush1.bf16.msra.mxu0 %v3887
  %3904 = vmatprep.subr.bf16.mxu0 0
  %3905 = vmatpush1.bf16.msra.mxu0 %v3886
  %3906 = vmatprep.subr.bf16.mxu0 0
  %3907 = vmatpush2.bf16.msra.mxu0 0
  %3908 = vmatprep.subr.bf16.mxu0 0
  %3909 = vmatpush2.bf16.msra.mxu0 0
  %3910 = vmatprep.subr.bf16.mxu0 0
  %3911 = vmatpush2.bf16.msra.mxu0 0
  %3912 = vmatprep.subr.bf16.mxu0 0
  %3913 = vmatpush2.bf16.msra.mxu0 0
  %3914 = vmatprep.subr.bf16.mxu0 0
  %3915 = vmatpush2.bf16.msra.mxu0 0
  %3916 = vmatprep.subr.bf16.mxu0 0
  %3917 = vmatpush2.bf16.msra.mxu0 0
  %3918 = vmatprep.subr.bf16.mxu0 0
  %3919 = vmatpush2.bf16.msra.mxu0 0
  %3920 = vmatprep.subr.bf16.mxu0 0
  %3921 = vmatpush2.bf16.msra.mxu0 0
  %3922 = vmatprep.mubr.bf16.mxu0 0
  %3923 = vmatmul.mubr.bf16.gmra.mxu0 %v3369
  %v3924 = vpop.f32.mrf.mxu0
  %v3925 = vadd.f32 %v3793, %v3924
  %v3926 = vpop.f32.mrf.mxu0
  %v3927 = vpop.f32.mrf.mxu0
  %v3928 = vpop.f32.mrf.mxu0
  %3929 = vdwg.mxu0
  %v3934 = vunpack.c.l.b16 %v3224
  %v3935 = vunpack.c.l.b16 %v3225
  %v3936 = vunpack.c.l.b16 %v3226
  %v3937 = vunpack.c.l.b16 %v3227
  %v3938 = vpack.c.b16 %v3935, %v3934
  %v3939 = vpack.c.b16 %v3937, %v3936
  %3942 = vmatprep.subr.bf16.mxu0 0
  %3943 = vmatpush1.bf16.msra.mxu0 0
  %3944 = vmatprep.subr.bf16.mxu0 0
  %3945 = vmatpush1.bf16.msra.mxu0 0
  %3946 = vmatprep.subr.bf16.mxu0 0
  %3947 = vmatpush1.bf16.msra.mxu0 0
  %3948 = vmatprep.subr.bf16.mxu0 0
  %3949 = vmatpush1.bf16.msra.mxu0 0
  %3950 = vmatprep.subr.bf16.mxu0 0
  %3951 = vmatpush1.bf16.msra.mxu0 0
  %3952 = vmatprep.subr.bf16.mxu0 0
  %3953 = vmatpush1.bf16.msra.mxu0 0
  %3954 = vmatprep.subr.bf16.mxu0 0
  %3955 = vmatpush1.bf16.msra.mxu0 %v3939
  %3956 = vmatprep.subr.bf16.mxu0 0
  %3957 = vmatpush1.bf16.msra.mxu0 %v3938
  %3958 = vmatprep.subr.bf16.mxu0 0
  %3959 = vmatpush2.bf16.msra.mxu0 0
  %3960 = vmatprep.subr.bf16.mxu0 0
  %3961 = vmatpush2.bf16.msra.mxu0 0
  %3962 = vmatprep.subr.bf16.mxu0 0
  %3963 = vmatpush2.bf16.msra.mxu0 0
  %3964 = vmatprep.subr.bf16.mxu0 0
  %3965 = vmatpush2.bf16.msra.mxu0 0
  %3966 = vmatprep.subr.bf16.mxu0 0
  %3967 = vmatpush2.bf16.msra.mxu0 0
  %3968 = vmatprep.subr.bf16.mxu0 0
  %3969 = vmatpush2.bf16.msra.mxu0 0
  %3970 = vmatprep.subr.bf16.mxu0 0
  %3971 = vmatpush2.bf16.msra.mxu0 0
  %3972 = vmatprep.subr.bf16.mxu0 0
  %3973 = vmatpush2.bf16.msra.mxu0 0
  %3974 = vmatprep.mubr.bf16.mxu0 0
  %3975 = vmatmul.mubr.bf16.gmra.mxu0 %v3369
  %v3976 = vpop.f32.mrf.mxu0
  %v3977 = vadd.f32 %v3797, %v3976
  %v3978 = vpop.f32.mrf.mxu0
  %v3979 = vpop.f32.mrf.mxu0
  %v3980 = vpop.f32.mrf.mxu0
  %3981 = vdwg.mxu0
  %v3986 = vunpack.c.l.b16 %v3228
  %v3987 = vunpack.c.l.b16 %v3229
  %v3988 = vunpack.c.l.b16 %v3230
  %v3989 = vunpack.c.l.b16 %v3231
  %v3990 = vpack.c.b16 %v3987, %v3986
  %v3991 = vpack.c.b16 %v3989, %v3988
  %3994 = vmatprep.subr.bf16.mxu0 0
  %3995 = vmatpush1.bf16.msra.mxu0 0
  %3996 = vmatprep.subr.bf16.mxu0 0
  %3997 = vmatpush1.bf16.msra.mxu0 0
  %3998 = vmatprep.subr.bf16.mxu0 0
  %3999 = vmatpush1.bf16.msra.mxu0 0
  %4000 = vmatprep.subr.bf16.mxu0 0
  %4001 = vmatpush1.bf16.msra.mxu0 0
  %4002 = vmatprep.subr.bf16.mxu0 0
  %4003 = vmatpush1.bf16.msra.mxu0 0
  %4004 = vmatprep.subr.bf16.mxu0 0
  %4005 = vmatpush1.bf16.msra.mxu0 0
  %4006 = vmatprep.subr.bf16.mxu0 0
  %4007 = vmatpush1.bf16.msra.mxu0 %v3991
  %4008 = vmatprep.subr.bf16.mxu0 0
  %4009 = vmatpush1.bf16.msra.mxu0 %v3990
  %4010 = vmatprep.subr.bf16.mxu0 0
  %4011 = vmatpush2.bf16.msra.mxu0 0
  %4012 = vmatprep.subr.bf16.mxu0 0
  %4013 = vmatpush2.bf16.msra.mxu0 0
  %4014 = vmatprep.subr.bf16.mxu0 0
  %4015 = vmatpush2.bf16.msra.mxu0 0
  %4016 = vmatprep.subr.bf16.mxu0 0
  %4017 = vmatpush2.bf16.msra.mxu0 0
  %4018 = vmatprep.subr.bf16.mxu0 0
  %4019 = vmatpush2.bf16.msra.mxu0 0
  %4020 = vmatprep.subr.bf16.mxu0 0
  %4021 = vmatpush2.bf16.msra.mxu0 0
  %4022 = vmatprep.subr.bf16.mxu0 0
  %4023 = vmatpush2.bf16.msra.mxu0 0
  %4024 = vmatprep.subr.bf16.mxu0 0
  %4025 = vmatpush2.bf16.msra.mxu0 0
  %4026 = vmatprep.mubr.bf16.mxu0 0
  %4027 = vmatmul.mubr.bf16.gmra.mxu0 %v3369
  %v4028 = vpop.f32.mrf.mxu0
  %v4029 = vadd.f32 %v3801, %v4028
  %v4030 = vpop.f32.mrf.mxu0
  %v4031 = vpop.f32.mrf.mxu0
  %v4032 = vpop.f32.mrf.mxu0
  %4033 = vdwg.mxu0
  %v4038 = vunpack.c.l.b16 %v3232
  %v4039 = vunpack.c.l.b16 %v3233
  %v4040 = vunpack.c.l.b16 %v3234
  %v4041 = vunpack.c.l.b16 %v3235
  %v4042 = vpack.c.b16 %v4039, %v4038
  %v4043 = vpack.c.b16 %v4041, %v4040
  %4046 = vmatprep.subr.bf16.mxu0 0
  %4047 = vmatpush1.bf16.msra.mxu0 0
  %4048 = vmatprep.subr.bf16.mxu0 0
  %4049 = vmatpush1.bf16.msra.mxu0 0
  %4050 = vmatprep.subr.bf16.mxu0 0
  %4051 = vmatpush1.bf16.msra.mxu0 0
  %4052 = vmatprep.subr.bf16.mxu0 0
  %4053 = vmatpush1.bf16.msra.mxu0 0
  %4054 = vmatprep.subr.bf16.mxu0 0
  %4055 = vmatpush1.bf16.msra.mxu0 0
  %4056 = vmatprep.subr.bf16.mxu0 0
  %4057 = vmatpush1.bf16.msra.mxu0 0
  %4058 = vmatprep.subr.bf16.mxu0 0
  %4059 = vmatpush1.bf16.msra.mxu0 %v4043
  %4060 = vmatprep.subr.bf16.mxu0 0
  %4061 = vmatpush1.bf16.msra.mxu0 %v4042
  %4062 = vmatprep.subr.bf16.mxu0 0
  %4063 = vmatpush2.bf16.msra.mxu0 0
  %4064 = vmatprep.subr.bf16.mxu0 0
  %4065 = vmatpush2.bf16.msra.mxu0 0
  %4066 = vmatprep.subr.bf16.mxu0 0
  %4067 = vmatpush2.bf16.msra.mxu0 0
  %4068 = vmatprep.subr.bf16.mxu0 0
  %4069 = vmatpush2.bf16.msra.mxu0 0
  %4070 = vmatprep.subr.bf16.mxu0 0
  %4071 = vmatpush2.bf16.msra.mxu0 0
  %4072 = vmatprep.subr.bf16.mxu0 0
  %4073 = vmatpush2.bf16.msra.mxu0 0
  %4074 = vmatprep.subr.bf16.mxu0 0
  %4075 = vmatpush2.bf16.msra.mxu0 0
  %4076 = vmatprep.subr.bf16.mxu0 0
  %4077 = vmatpush2.bf16.msra.mxu0 0
  %4078 = vmatprep.mubr.bf16.mxu0 0
  %4079 = vmatmul.mubr.bf16.gmra.mxu0 %v3580
  %v4080 = vpop.f32.mrf.mxu0
  %v4081 = vadd.f32 %v3805, %v4080
  %v4082 = vpop.f32.mrf.mxu0
  %v4083 = vpop.f32.mrf.mxu0
  %v4084 = vpop.f32.mrf.mxu0
  %4085 = vdwg.mxu0
  %v4090 = vunpack.c.l.b16 %v3236
  %v4091 = vunpack.c.l.b16 %v3237
  %v4092 = vunpack.c.l.b16 %v3238
  %v4093 = vunpack.c.l.b16 %v3239
  %v4094 = vpack.c.b16 %v4091, %v4090
  %v4095 = vpack.c.b16 %v4093, %v4092
  %4098 = vmatprep.subr.bf16.mxu0 0
  %4099 = vmatpush1.bf16.msra.mxu0 0
  %4100 = vmatprep.subr.bf16.mxu0 0
  %4101 = vmatpush1.bf16.msra.mxu0 0
  %4102 = vmatprep.subr.bf16.mxu0 0
  %4103 = vmatpush1.bf16.msra.mxu0 0
  %4104 = vmatprep.subr.bf16.mxu0 0
  %4105 = vmatpush1.bf16.msra.mxu0 0
  %4106 = vmatprep.subr.bf16.mxu0 0
  %4107 = vmatpush1.bf16.msra.mxu0 0
  %4108 = vmatprep.subr.bf16.mxu0 0
  %4109 = vmatpush1.bf16.msra.mxu0 0
  %4110 = vmatprep.subr.bf16.mxu0 0
  %4111 = vmatpush1.bf16.msra.mxu0 %v4095
  %4112 = vmatprep.subr.bf16.mxu0 0
  %4113 = vmatpush1.bf16.msra.mxu0 %v4094
  %4114 = vmatprep.subr.bf16.mxu0 0
  %4115 = vmatpush2.bf16.msra.mxu0 0
  %4116 = vmatprep.subr.bf16.mxu0 0
  %4117 = vmatpush2.bf16.msra.mxu0 0
  %4118 = vmatprep.subr.bf16.mxu0 0
  %4119 = vmatpush2.bf16.msra.mxu0 0
  %4120 = vmatprep.subr.bf16.mxu0 0
  %4121 = vmatpush2.bf16.msra.mxu0 0
  %4122 = vmatprep.subr.bf16.mxu0 0
  %4123 = vmatpush2.bf16.msra.mxu0 0
  %4124 = vmatprep.subr.bf16.mxu0 0
  %4125 = vmatpush2.bf16.msra.mxu0 0
  %4126 = vmatprep.subr.bf16.mxu0 0
  %4127 = vmatpush2.bf16.msra.mxu0 0
  %4128 = vmatprep.subr.bf16.mxu0 0
  %4129 = vmatpush2.bf16.msra.mxu0 0
  %4130 = vmatprep.mubr.bf16.mxu0 0
  %4131 = vmatmul.mubr.bf16.gmra.mxu0 %v3580
  %v4132 = vpop.f32.mrf.mxu0
  %v4133 = vadd.f32 %v3809, %v4132
  %v4134 = vpop.f32.mrf.mxu0
  %v4135 = vpop.f32.mrf.mxu0
  %v4136 = vpop.f32.mrf.mxu0
  %4137 = vdwg.mxu0
  %v4142 = vunpack.c.l.b16 %v3240
  %v4143 = vunpack.c.l.b16 %v3241
  %v4144 = vunpack.c.l.b16 %v3242
  %v4145 = vunpack.c.l.b16 %v3243
  %v4146 = vpack.c.b16 %v4143, %v4142
  %v4147 = vpack.c.b16 %v4145, %v4144
  %4150 = vmatprep.subr.bf16.mxu0 0
  %4151 = vmatpush1.bf16.msra.mxu0 0
  %4152 = vmatprep.subr.bf16.mxu0 0
  %4153 = vmatpush1.bf16.msra.mxu0 0
  %4154 = vmatprep.subr.bf16.mxu0 0
  %4155 = vmatpush1.bf16.msra.mxu0 0
  %4156 = vmatprep.subr.bf16.mxu0 0
  %4157 = vmatpush1.bf16.msra.mxu0 0
  %4158 = vmatprep.subr.bf16.mxu0 0
  %4159 = vmatpush1.bf16.msra.mxu0 0
  %4160 = vmatprep.subr.bf16.mxu0 0
  %4161 = vmatpush1.bf16.msra.mxu0 0
  %4162 = vmatprep.subr.bf16.mxu0 0
  %4163 = vmatpush1.bf16.msra.mxu0 %v4147
  %4164 = vmatprep.subr.bf16.mxu0 0
  %4165 = vmatpush1.bf16.msra.mxu0 %v4146
  %4166 = vmatprep.subr.bf16.mxu0 0
  %4167 = vmatpush2.bf16.msra.mxu0 0
  %4168 = vmatprep.subr.bf16.mxu0 0
  %4169 = vmatpush2.bf16.msra.mxu0 0
  %4170 = vmatprep.subr.bf16.mxu0 0
  %4171 = vmatpush2.bf16.msra.mxu0 0
  %4172 = vmatprep.subr.bf16.mxu0 0
  %4173 = vmatpush2.bf16.msra.mxu0 0
  %4174 = vmatprep.subr.bf16.mxu0 0
  %4175 = vmatpush2.bf16.msra.mxu0 0
  %4176 = vmatprep.subr.bf16.mxu0 0
  %4177 = vmatpush2.bf16.msra.mxu0 0
  %4178 = vmatprep.subr.bf16.mxu0 0
  %4179 = vmatpush2.bf16.msra.mxu0 0
  %4180 = vmatprep.subr.bf16.mxu0 0
  %4181 = vmatpush2.bf16.msra.mxu0 0
  %4182 = vmatprep.mubr.bf16.mxu0 0
  %4183 = vmatmul.mubr.bf16.gmra.mxu0 %v3580
  %v4184 = vpop.f32.mrf.mxu0
  %v4185 = vadd.f32 %v3813, %v4184
  %v4186 = vpop.f32.mrf.mxu0
  %v4187 = vpop.f32.mrf.mxu0
  %v4188 = vpop.f32.mrf.mxu0
  %4189 = vdwg.mxu0
  %v4194 = vunpack.c.l.b16 %v3244
  %v4195 = vunpack.c.l.b16 %v3245
  %v4196 = vunpack.c.l.b16 %v3246
  %v4197 = vunpack.c.l.b16 %v3247
  %v4198 = vpack.c.b16 %v4195, %v4194
  %v4199 = vpack.c.b16 %v4197, %v4196
  %4202 = vmatprep.subr.bf16.mxu0 0
  %4203 = vmatpush1.bf16.msra.mxu0 0
  %4204 = vmatprep.subr.bf16.mxu0 0
  %4205 = vmatpush1.bf16.msra.mxu0 0
  %4206 = vmatprep.subr.bf16.mxu0 0
  %4207 = vmatpush1.bf16.msra.mxu0 0
  %4208 = vmatprep.subr.bf16.mxu0 0
  %4209 = vmatpush1.bf16.msra.mxu0 0
  %4210 = vmatprep.subr.bf16.mxu0 0
  %4211 = vmatpush1.bf16.msra.mxu0 0
  %4212 = vmatprep.subr.bf16.mxu0 0
  %4213 = vmatpush1.bf16.msra.mxu0 0
  %4214 = vmatprep.subr.bf16.mxu0 0
  %4215 = vmatpush1.bf16.msra.mxu0 %v4199
  %4216 = vmatprep.subr.bf16.mxu0 0
  %4217 = vmatpush1.bf16.msra.mxu0 %v4198
  %4218 = vmatprep.subr.bf16.mxu0 0
  %4219 = vmatpush2.bf16.msra.mxu0 0
  %4220 = vmatprep.subr.bf16.mxu0 0
  %4221 = vmatpush2.bf16.msra.mxu0 0
  %4222 = vmatprep.subr.bf16.mxu0 0
  %4223 = vmatpush2.bf16.msra.mxu0 0
  %4224 = vmatprep.subr.bf16.mxu0 0
  %4225 = vmatpush2.bf16.msra.mxu0 0
  %4226 = vmatprep.subr.bf16.mxu0 0
  %4227 = vmatpush2.bf16.msra.mxu0 0
  %4228 = vmatprep.subr.bf16.mxu0 0
  %4229 = vmatpush2.bf16.msra.mxu0 0
  %4230 = vmatprep.subr.bf16.mxu0 0
  %4231 = vmatpush2.bf16.msra.mxu0 0
  %4232 = vmatprep.subr.bf16.mxu0 0
  %4233 = vmatpush2.bf16.msra.mxu0 0
  %4234 = vmatprep.mubr.bf16.mxu0 0
  %4235 = vmatmul.mubr.bf16.gmra.mxu0 %v3580
  %v4236 = vpop.f32.mrf.mxu0
  %v4237 = vadd.f32 %v3817, %v4236
  %v4238 = vpop.f32.mrf.mxu0
  %v4239 = vpop.f32.mrf.mxu0
  %v4240 = vpop.f32.mrf.mxu0
  %4241 = vdwg.mxu0
  %v4250 = vlaneseq
  %v4251 = vshrl.u32 %v4250, 7
  %v4252 = vsub.s32 0, %v4251
  %v4253 = vrot.slane %v3300, %v4252
  %v4254 = vlaneseq
  %v4255 = vshrl.u32 %v4254, 7
  %v4256 = vsub.s32 0, %v4255
  %v4257 = vrot.slane %v3301, %v4256
  %v4258 = vlaneseq
  %v4259 = vshrl.u32 %v4258, 7
  %v4260 = vsub.s32 0, %v4259
  %v4261 = vrot.slane %v3302, %v4260
  %v4262 = vlaneseq
  %v4263 = vshrl.u32 %v4262, 7
  %v4264 = vsub.s32 0, %v4263
  %v4265 = vrot.slane %v3303, %v4264
  %v4266 = vlaneseq
  %v4267 = vshrl.u32 %v4266, 7
  %v4268 = vsub.s32 0, %v4267
  %v4269 = vrot.slane %v3304, %v4268
  %v4270 = vlaneseq
  %v4271 = vshrl.u32 %v4270, 7
  %v4272 = vsub.s32 0, %v4271
  %v4273 = vrot.slane %v3305, %v4272
  %v4274 = vlaneseq
  %v4275 = vshrl.u32 %v4274, 7
  %v4276 = vsub.s32 0, %v4275
  %v4277 = vrot.slane %v3306, %v4276
  %v4278 = vlaneseq
  %v4279 = vshrl.u32 %v4278, 7
  %v4280 = vsub.s32 0, %v4279
  %v4281 = vrot.slane %v3307, %v4280
  %v4294 = vunpack.c.l.b16 %v3249
  %v4295 = vunpack.c.l.b16 %v3250
  %v4296 = vunpack.c.l.b16 %v3251
  %v4297 = vunpack.c.l.b16 %v3252
  %v4298 = vpack.c.b16 %v4295, %v4294
  %v4299 = vpack.c.b16 %v4297, %v4296
  %4302 = vmatprep.subr.bf16.mxu0 0
  %4303 = vmatpush1.bf16.msra.mxu0 0
  %4304 = vmatprep.subr.bf16.mxu0 0
  %4305 = vmatpush1.bf16.msra.mxu0 0
  %4306 = vmatprep.subr.bf16.mxu0 0
  %4307 = vmatpush1.bf16.msra.mxu0 0
  %4308 = vmatprep.subr.bf16.mxu0 0
  %4309 = vmatpush1.bf16.msra.mxu0 0
  %4310 = vmatprep.subr.bf16.mxu0 0
  %4311 = vmatpush1.bf16.msra.mxu0 0
  %4312 = vmatprep.subr.bf16.mxu0 0
  %4313 = vmatpush1.bf16.msra.mxu0 0
  %4314 = vmatprep.subr.bf16.mxu0 0
  %4315 = vmatpush1.bf16.msra.mxu0 %v4299
  %4316 = vmatprep.subr.bf16.mxu0 0
  %4317 = vmatpush1.bf16.msra.mxu0 %v4298
  %4318 = vmatprep.subr.bf16.mxu0 0
  %4319 = vmatpush2.bf16.msra.mxu0 0
  %4320 = vmatprep.subr.bf16.mxu0 0
  %4321 = vmatpush2.bf16.msra.mxu0 0
  %4322 = vmatprep.subr.bf16.mxu0 0
  %4323 = vmatpush2.bf16.msra.mxu0 0
  %4324 = vmatprep.subr.bf16.mxu0 0
  %4325 = vmatpush2.bf16.msra.mxu0 0
  %4326 = vmatprep.subr.bf16.mxu0 0
  %4327 = vmatpush2.bf16.msra.mxu0 0
  %4328 = vmatprep.subr.bf16.mxu0 0
  %4329 = vmatpush2.bf16.msra.mxu0 0
  %4330 = vmatprep.subr.bf16.mxu0 0
  %4331 = vmatpush2.bf16.msra.mxu0 0
  %4332 = vmatprep.subr.bf16.mxu0 0
  %4333 = vmatpush2.bf16.msra.mxu0 0
  %4334 = vmatprep.mubr.bf16.mxu0 0
  %4335 = vmatmul.mubr.bf16.gmra.mxu0 %v3369
  %v4336 = vpop.f32.mrf.mxu0
  %v4337 = vadd.f32 %v4253, %v4336
  %v4338 = vpop.f32.mrf.mxu0
  %v4339 = vpop.f32.mrf.mxu0
  %v4340 = vpop.f32.mrf.mxu0
  %4341 = vdwg.mxu0
  %v4346 = vunpack.c.l.b16 %v3253
  %v4347 = vunpack.c.l.b16 %v3254
  %v4348 = vunpack.c.l.b16 %v3255
  %v4349 = vunpack.c.l.b16 %v3256
  %v4350 = vpack.c.b16 %v4347, %v4346
  %v4351 = vpack.c.b16 %v4349, %v4348
  %4354 = vmatprep.subr.bf16.mxu0 0
  %4355 = vmatpush1.bf16.msra.mxu0 0
  %4356 = vmatprep.subr.bf16.mxu0 0
  %4357 = vmatpush1.bf16.msra.mxu0 0
  %4358 = vmatprep.subr.bf16.mxu0 0
  %4359 = vmatpush1.bf16.msra.mxu0 0
  %4360 = vmatprep.subr.bf16.mxu0 0
  %4361 = vmatpush1.bf16.msra.mxu0 0
  %4362 = vmatprep.subr.bf16.mxu0 0
  %4363 = vmatpush1.bf16.msra.mxu0 0
  %4364 = vmatprep.subr.bf16.mxu0 0
  %4365 = vmatpush1.bf16.msra.mxu0 0
  %4366 = vmatprep.subr.bf16.mxu0 0
  %4367 = vmatpush1.bf16.msra.mxu0 %v4351
  %4368 = vmatprep.subr.bf16.mxu0 0
  %4369 = vmatpush1.bf16.msra.mxu0 %v4350
  %4370 = vmatprep.subr.bf16.mxu0 0
  %4371 = vmatpush2.bf16.msra.mxu0 0
  %4372 = vmatprep.subr.bf16.mxu0 0
  %4373 = vmatpush2.bf16.msra.mxu0 0
  %4374 = vmatprep.subr.bf16.mxu0 0
  %4375 = vmatpush2.bf16.msra.mxu0 0
  %4376 = vmatprep.subr.bf16.mxu0 0
  %4377 = vmatpush2.bf16.msra.mxu0 0
  %4378 = vmatprep.subr.bf16.mxu0 0
  %4379 = vmatpush2.bf16.msra.mxu0 0
  %4380 = vmatprep.subr.bf16.mxu0 0
  %4381 = vmatpush2.bf16.msra.mxu0 0
  %4382 = vmatprep.subr.bf16.mxu0 0
  %4383 = vmatpush2.bf16.msra.mxu0 0
  %4384 = vmatprep.subr.bf16.mxu0 0
  %4385 = vmatpush2.bf16.msra.mxu0 0
  %4386 = vmatprep.mubr.bf16.mxu0 0
  %4387 = vmatmul.mubr.bf16.gmra.mxu0 %v3369
  %v4388 = vpop.f32.mrf.mxu0
  %v4389 = vadd.f32 %v4257, %v4388
  %v4390 = vpop.f32.mrf.mxu0
  %v4391 = vpop.f32.mrf.mxu0
  %v4392 = vpop.f32.mrf.mxu0
  %4393 = vdwg.mxu0
  %v4398 = vunpack.c.l.b16 %v3257
  %v4399 = vunpack.c.l.b16 %v3258
  %v4400 = vunpack.c.l.b16 %v3259
  %v4401 = vunpack.c.l.b16 %v3260
  %v4402 = vpack.c.b16 %v4399, %v4398
  %v4403 = vpack.c.b16 %v4401, %v4400
  %4406 = vmatprep.subr.bf16.mxu0 0
  %4407 = vmatpush1.bf16.msra.mxu0 0
  %4408 = vmatprep.subr.bf16.mxu0 0
  %4409 = vmatpush1.bf16.msra.mxu0 0
  %4410 = vmatprep.subr.bf16.mxu0 0
  %4411 = vmatpush1.bf16.msra.mxu0 0
  %4412 = vmatprep.subr.bf16.mxu0 0
  %4413 = vmatpush1.bf16.msra.mxu0 0
  %4414 = vmatprep.subr.bf16.mxu0 0
  %4415 = vmatpush1.bf16.msra.mxu0 0
  %4416 = vmatprep.subr.bf16.mxu0 0
  %4417 = vmatpush1.bf16.msra.mxu0 0
  %4418 = vmatprep.subr.bf16.mxu0 0
  %4419 = vmatpush1.bf16.msra.mxu0 %v4403
  %4420 = vmatprep.subr.bf16.mxu0 0
  %4421 = vmatpush1.bf16.msra.mxu0 %v4402
  %4422 = vmatprep.subr.bf16.mxu0 0
  %4423 = vmatpush2.bf16.msra.mxu0 0
  %4424 = vmatprep.subr.bf16.mxu0 0
  %4425 = vmatpush2.bf16.msra.mxu0 0
  %4426 = vmatprep.subr.bf16.mxu0 0
  %4427 = vmatpush2.bf16.msra.mxu0 0
  %4428 = vmatprep.subr.bf16.mxu0 0
  %4429 = vmatpush2.bf16.msra.mxu0 0
  %4430 = vmatprep.subr.bf16.mxu0 0
  %4431 = vmatpush2.bf16.msra.mxu0 0
  %4432 = vmatprep.subr.bf16.mxu0 0
  %4433 = vmatpush2.bf16.msra.mxu0 0
  %4434 = vmatprep.subr.bf16.mxu0 0
  %4435 = vmatpush2.bf16.msra.mxu0 0
  %4436 = vmatprep.subr.bf16.mxu0 0
  %4437 = vmatpush2.bf16.msra.mxu0 0
  %4438 = vmatprep.mubr.bf16.mxu0 0
  %4439 = vmatmul.mubr.bf16.gmra.mxu0 %v3369
  %v4440 = vpop.f32.mrf.mxu0
  %v4441 = vadd.f32 %v4261, %v4440
  %v4442 = vpop.f32.mrf.mxu0
  %v4443 = vpop.f32.mrf.mxu0
  %v4444 = vpop.f32.mrf.mxu0
  %4445 = vdwg.mxu0
  %v4450 = vunpack.c.l.b16 %v3261
  %v4451 = vunpack.c.l.b16 %v3262
  %v4452 = vunpack.c.l.b16 %v3263
  %v4453 = vunpack.c.l.b16 %v3264
  %v4454 = vpack.c.b16 %v4451, %v4450
  %v4455 = vpack.c.b16 %v4453, %v4452
  %4458 = vmatprep.subr.bf16.mxu0 0
  %4459 = vmatpush1.bf16.msra.mxu0 0
  %4460 = vmatprep.subr.bf16.mxu0 0
  %4461 = vmatpush1.bf16.msra.mxu0 0
  %4462 = vmatprep.subr.bf16.mxu0 0
  %4463 = vmatpush1.bf16.msra.mxu0 0
  %4464 = vmatprep.subr.bf16.mxu0 0
  %4465 = vmatpush1.bf16.msra.mxu0 0
  %4466 = vmatprep.subr.bf16.mxu0 0
  %4467 = vmatpush1.bf16.msra.mxu0 0
  %4468 = vmatprep.subr.bf16.mxu0 0
  %4469 = vmatpush1.bf16.msra.mxu0 0
  %4470 = vmatprep.subr.bf16.mxu0 0
  %4471 = vmatpush1.bf16.msra.mxu0 %v4455
  %4472 = vmatprep.subr.bf16.mxu0 0
  %4473 = vmatpush1.bf16.msra.mxu0 %v4454
  %4474 = vmatprep.subr.bf16.mxu0 0
  %4475 = vmatpush2.bf16.msra.mxu0 0
  %4476 = vmatprep.subr.bf16.mxu0 0
  %4477 = vmatpush2.bf16.msra.mxu0 0
  %4478 = vmatprep.subr.bf16.mxu0 0
  %4479 = vmatpush2.bf16.msra.mxu0 0
  %4480 = vmatprep.subr.bf16.mxu0 0
  %4481 = vmatpush2.bf16.msra.mxu0 0
  %4482 = vmatprep.subr.bf16.mxu0 0
  %4483 = vmatpush2.bf16.msra.mxu0 0
  %4484 = vmatprep.subr.bf16.mxu0 0
  %4485 = vmatpush2.bf16.msra.mxu0 0
  %4486 = vmatprep.subr.bf16.mxu0 0
  %4487 = vmatpush2.bf16.msra.mxu0 0
  %4488 = vmatprep.subr.bf16.mxu0 0
  %4489 = vmatpush2.bf16.msra.mxu0 0
  %4490 = vmatprep.mubr.bf16.mxu0 0
  %4491 = vmatmul.mubr.bf16.gmra.mxu0 %v3369
  %v4492 = vpop.f32.mrf.mxu0
  %v4493 = vadd.f32 %v4265, %v4492
  %v4494 = vpop.f32.mrf.mxu0
  %v4495 = vpop.f32.mrf.mxu0
  %v4496 = vpop.f32.mrf.mxu0
  %4497 = vdwg.mxu0
  %v4502 = vunpack.c.l.b16 %v3265
  %v4503 = vunpack.c.l.b16 %v3266
  %v4504 = vunpack.c.l.b16 %v3267
  %v4505 = vunpack.c.l.b16 %v3268
  %v4506 = vpack.c.b16 %v4503, %v4502
  %v4507 = vpack.c.b16 %v4505, %v4504
  %4510 = vmatprep.subr.bf16.mxu0 0
  %4511 = vmatpush1.bf16.msra.mxu0 0
  %4512 = vmatprep.subr.bf16.mxu0 0
  %4513 = vmatpush1.bf16.msra.mxu0 0
  %4514 = vmatprep.subr.bf16.mxu0 0
  %4515 = vmatpush1.bf16.msra.mxu0 0
  %4516 = vmatprep.subr.bf16.mxu0 0
  %4517 = vmatpush1.bf16.msra.mxu0 0
  %4518 = vmatprep.subr.bf16.mxu0 0
  %4519 = vmatpush1.bf16.msra.mxu0 0
  %4520 = vmatprep.subr.bf16.mxu0 0
  %4521 = vmatpush1.bf16.msra.mxu0 0
  %4522 = vmatprep.subr.bf16.mxu0 0
  %4523 = vmatpush1.bf16.msra.mxu0 %v4507
  %4524 = vmatprep.subr.bf16.mxu0 0
  %4525 = vmatpush1.bf16.msra.mxu0 %v4506
  %4526 = vmatprep.subr.bf16.mxu0 0
  %4527 = vmatpush2.bf16.msra.mxu0 0
  %4528 = vmatprep.subr.bf16.mxu0 0
  %4529 = vmatpush2.bf16.msra.mxu0 0
  %4530 = vmatprep.subr.bf16.mxu0 0
  %4531 = vmatpush2.bf16.msra.mxu0 0
  %4532 = vmatprep.subr.bf16.mxu0 0
  %4533 = vmatpush2.bf16.msra.mxu0 0
  %4534 = vmatprep.subr.bf16.mxu0 0
  %4535 = vmatpush2.bf16.msra.mxu0 0
  %4536 = vmatprep.subr.bf16.mxu0 0
  %4537 = vmatpush2.bf16.msra.mxu0 0
  %4538 = vmatprep.subr.bf16.mxu0 0
  %4539 = vmatpush2.bf16.msra.mxu0 0
  %4540 = vmatprep.subr.bf16.mxu0 0
  %4541 = vmatpush2.bf16.msra.mxu0 0
  %4542 = vmatprep.mubr.bf16.mxu0 0
  %4543 = vmatmul.mubr.bf16.gmra.mxu0 %v3580
  %v4544 = vpop.f32.mrf.mxu0
  %v4545 = vadd.f32 %v4269, %v4544
  %v4546 = vpop.f32.mrf.mxu0
  %v4547 = vpop.f32.mrf.mxu0
  %v4548 = vpop.f32.mrf.mxu0
  %4549 = vdwg.mxu0
  %v4554 = vunpack.c.l.b16 %v3269
  %v4555 = vunpack.c.l.b16 %v3270
  %v4556 = vunpack.c.l.b16 %v3271
  %v4557 = vunpack.c.l.b16 %v3272
  %v4558 = vpack.c.b16 %v4555, %v4554
  %v4559 = vpack.c.b16 %v4557, %v4556
  %4562 = vmatprep.subr.bf16.mxu0 0
  %4563 = vmatpush1.bf16.msra.mxu0 0
  %4564 = vmatprep.subr.bf16.mxu0 0
  %4565 = vmatpush1.bf16.msra.mxu0 0
  %4566 = vmatprep.subr.bf16.mxu0 0
  %4567 = vmatpush1.bf16.msra.mxu0 0
  %4568 = vmatprep.subr.bf16.mxu0 0
  %4569 = vmatpush1.bf16.msra.mxu0 0
  %4570 = vmatprep.subr.bf16.mxu0 0
  %4571 = vmatpush1.bf16.msra.mxu0 0
  %4572 = vmatprep.subr.bf16.mxu0 0
  %4573 = vmatpush1.bf16.msra.mxu0 0
  %4574 = vmatprep.subr.bf16.mxu0 0
  %4575 = vmatpush1.bf16.msra.mxu0 %v4559
  %4576 = vmatprep.subr.bf16.mxu0 0
  %4577 = vmatpush1.bf16.msra.mxu0 %v4558
  %4578 = vmatprep.subr.bf16.mxu0 0
  %4579 = vmatpush2.bf16.msra.mxu0 0
  %4580 = vmatprep.subr.bf16.mxu0 0
  %4581 = vmatpush2.bf16.msra.mxu0 0
  %4582 = vmatprep.subr.bf16.mxu0 0
  %4583 = vmatpush2.bf16.msra.mxu0 0
  %4584 = vmatprep.subr.bf16.mxu0 0
  %4585 = vmatpush2.bf16.msra.mxu0 0
  %4586 = vmatprep.subr.bf16.mxu0 0
  %4587 = vmatpush2.bf16.msra.mxu0 0
  %4588 = vmatprep.subr.bf16.mxu0 0
  %4589 = vmatpush2.bf16.msra.mxu0 0
  %4590 = vmatprep.subr.bf16.mxu0 0
  %4591 = vmatpush2.bf16.msra.mxu0 0
  %4592 = vmatprep.subr.bf16.mxu0 0
  %4593 = vmatpush2.bf16.msra.mxu0 0
  %4594 = vmatprep.mubr.bf16.mxu0 0
  %4595 = vmatmul.mubr.bf16.gmra.mxu0 %v3580
  %v4596 = vpop.f32.mrf.mxu0
  %v4597 = vadd.f32 %v4273, %v4596
  %v4598 = vpop.f32.mrf.mxu0
  %v4599 = vpop.f32.mrf.mxu0
  %v4600 = vpop.f32.mrf.mxu0
  %4601 = vdwg.mxu0
  %v4606 = vunpack.c.l.b16 %v3273
  %v4607 = vunpack.c.l.b16 %v3274
  %v4608 = vunpack.c.l.b16 %v3275
  %v4609 = vunpack.c.l.b16 %v3276
  %v4610 = vpack.c.b16 %v4607, %v4606
  %v4611 = vpack.c.b16 %v4609, %v4608
  %4614 = vmatprep.subr.bf16.mxu0 0
  %4615 = vmatpush1.bf16.msra.mxu0 0
  %4616 = vmatprep.subr.bf16.mxu0 0
  %4617 = vmatpush1.bf16.msra.mxu0 0
  %4618 = vmatprep.subr.bf16.mxu0 0
  %4619 = vmatpush1.bf16.msra.mxu0 0
  %4620 = vmatprep.subr.bf16.mxu0 0
  %4621 = vmatpush1.bf16.msra.mxu0 0
  %4622 = vmatprep.subr.bf16.mxu0 0
  %4623 = vmatpush1.bf16.msra.mxu0 0
  %4624 = vmatprep.subr.bf16.mxu0 0
  %4625 = vmatpush1.bf16.msra.mxu0 0
  %4626 = vmatprep.subr.bf16.mxu0 0
  %4627 = vmatpush1.bf16.msra.mxu0 %v4611
  %4628 = vmatprep.subr.bf16.mxu0 0
  %4629 = vmatpush1.bf16.msra.mxu0 %v4610
  %4630 = vmatprep.subr.bf16.mxu0 0
  %4631 = vmatpush2.bf16.msra.mxu0 0
  %4632 = vmatprep.subr.bf16.mxu0 0
  %4633 = vmatpush2.bf16.msra.mxu0 0
  %4634 = vmatprep.subr.bf16.mxu0 0
  %4635 = vmatpush2.bf16.msra.mxu0 0
  %4636 = vmatprep.subr.bf16.mxu0 0
  %4637 = vmatpush2.bf16.msra.mxu0 0
  %4638 = vmatprep.subr.bf16.mxu0 0
  %4639 = vmatpush2.bf16.msra.mxu0 0
  %4640 = vmatprep.subr.bf16.mxu0 0
  %4641 = vmatpush2.bf16.msra.mxu0 0
  %4642 = vmatprep.subr.bf16.mxu0 0
  %4643 = vmatpush2.bf16.msra.mxu0 0
  %4644 = vmatprep.subr.bf16.mxu0 0
  %4645 = vmatpush2.bf16.msra.mxu0 0
  %4646 = vmatprep.mubr.bf16.mxu0 0
  %4647 = vmatmul.mubr.bf16.gmra.mxu0 %v3580
  %v4648 = vpop.f32.mrf.mxu0
  %v4649 = vadd.f32 %v4277, %v4648
  %v4650 = vpop.f32.mrf.mxu0
  %v4651 = vpop.f32.mrf.mxu0
  %v4652 = vpop.f32.mrf.mxu0
  %4653 = vdwg.mxu0
  %v4658 = vunpack.c.l.b16 %v3277
  %v4659 = vunpack.c.l.b16 %v3278
  %v4660 = vunpack.c.l.b16 %v3279
  %v4661 = vunpack.c.l.b16 %v3280
  %v4662 = vpack.c.b16 %v4659, %v4658
  %v4663 = vpack.c.b16 %v4661, %v4660
  %4666 = vmatprep.subr.bf16.mxu0 0
  %4667 = vmatpush1.bf16.msra.mxu0 0
  %4668 = vmatprep.subr.bf16.mxu0 0
  %4669 = vmatpush1.bf16.msra.mxu0 0
  %4670 = vmatprep.subr.bf16.mxu0 0
  %4671 = vmatpush1.bf16.msra.mxu0 0
  %4672 = vmatprep.subr.bf16.mxu0 0
  %4673 = vmatpush1.bf16.msra.mxu0 0
  %4674 = vmatprep.subr.bf16.mxu0 0
  %4675 = vmatpush1.bf16.msra.mxu0 0
  %4676 = vmatprep.subr.bf16.mxu0 0
  %4677 = vmatpush1.bf16.msra.mxu0 0
  %4678 = vmatprep.subr.bf16.mxu0 0
  %4679 = vmatpush1.bf16.msra.mxu0 %v4663
  %4680 = vmatprep.subr.bf16.mxu0 0
  %4681 = vmatpush1.bf16.msra.mxu0 %v4662
  %4682 = vmatprep.subr.bf16.mxu0 0
  %4683 = vmatpush2.bf16.msra.mxu0 0
  %4684 = vmatprep.subr.bf16.mxu0 0
  %4685 = vmatpush2.bf16.msra.mxu0 0
  %4686 = vmatprep.subr.bf16.mxu0 0
  %4687 = vmatpush2.bf16.msra.mxu0 0
  %4688 = vmatprep.subr.bf16.mxu0 0
  %4689 = vmatpush2.bf16.msra.mxu0 0
  %4690 = vmatprep.subr.bf16.mxu0 0
  %4691 = vmatpush2.bf16.msra.mxu0 0
  %4692 = vmatprep.subr.bf16.mxu0 0
  %4693 = vmatpush2.bf16.msra.mxu0 0
  %4694 = vmatprep.subr.bf16.mxu0 0
  %4695 = vmatpush2.bf16.msra.mxu0 0
  %4696 = vmatprep.subr.bf16.mxu0 0
  %4697 = vmatpush2.bf16.msra.mxu0 0
  %4698 = vmatprep.mubr.bf16.mxu0 0
  %4699 = vmatmul.mubr.bf16.gmra.mxu0 %v3580
  %v4700 = vpop.f32.mrf.mxu0
  %v4701 = vadd.f32 %v4281, %v4700
  %v4702 = vpop.f32.mrf.mxu0
  %v4703 = vpop.f32.mrf.mxu0
  %v4704 = vpop.f32.mrf.mxu0
  %4705 = vdwg.mxu0
  %v4706 = vpack.c.bf16 %v3406, %v3406
  %v4707 = vpack.c.bf16 %v3458, %v3458
  %v4708 = vpack.c.bf16 %v3510, %v3510
  %v4709 = vpack.c.bf16 %v3562, %v3562
  %v4710 = vpack.c.bf16 %v3617, %v3617
  %v4711 = vpack.c.bf16 %v3669, %v3669
  %v4712 = vpack.c.bf16 %v3721, %v3721
  %v4713 = vpack.c.bf16 %v3773, %v3773
  %v4714 = vpack.c.bf16 %v3873, %v3873
  %v4715 = vpack.c.bf16 %v3925, %v3925
  %v4716 = vpack.c.bf16 %v3977, %v3977
  %v4717 = vpack.c.bf16 %v4029, %v4029
  %v4718 = vpack.c.bf16 %v4081, %v4081
  %v4719 = vpack.c.bf16 %v4133, %v4133
  %v4720 = vpack.c.bf16 %v4185, %v4185
  %v4721 = vpack.c.bf16 %v4237, %v4237
  %v4723 = vsel %vm1688, %v4706, 0
  %v4726 = vsel %vm1688, %v4714, 0
  %4728 = vmatprep.subr.bf16.mxu0 0
  %4729 = vmatpush1.bf16.xpose.msra.mxu0 0
  %4730 = vmatprep.subr.bf16.mxu0 0
  %4731 = vmatpush1.bf16.xpose.msra.mxu0 0
  %4732 = vmatprep.subr.bf16.mxu0 0
  %4733 = vmatpush1.bf16.xpose.msra.mxu0 0
  %4734 = vmatprep.subr.bf16.mxu0 0
  %4735 = vmatpush1.bf16.xpose.msra.mxu0 0
  %4736 = vmatprep.subr.bf16.mxu0 0
  %4737 = vmatpush1.bf16.xpose.msra.mxu0 0
  %4738 = vmatprep.subr.bf16.mxu0 0
  %4739 = vmatpush1.bf16.xpose.msra.mxu0 0
  %4740 = vmatprep.subr.bf16.mxu0 0
  %4741 = vmatpush1.bf16.xpose.msra.mxu0 0
  %4742 = vmatprep.subr.bf16.mxu0 0
  %4743 = vmatpush1.bf16.xpose.msra.mxu0 %v4726
  %4744 = vmatprep.subr.bf16.mxu0 0
  %4745 = vmatpush2.bf16.xpose.msra.mxu0 0
  %4746 = vmatprep.subr.bf16.mxu0 0
  %4747 = vmatpush2.bf16.xpose.msra.mxu0 0
  %4748 = vmatprep.subr.bf16.mxu0 0
  %4749 = vmatpush2.bf16.xpose.msra.mxu0 0
  %4750 = vmatprep.subr.bf16.mxu0 0
  %4751 = vmatpush2.bf16.xpose.msra.mxu0 0
  %4752 = vmatprep.subr.bf16.mxu0 0
  %4753 = vmatpush2.bf16.xpose.msra.mxu0 0
  %4754 = vmatprep.subr.bf16.mxu0 0
  %4755 = vmatpush2.bf16.xpose.msra.mxu0 0
  %4756 = vmatprep.subr.bf16.mxu0 0
  %4757 = vmatpush2.bf16.xpose.msra.mxu0 0
  %4758 = vmatprep.subr.bf16.mxu0 0
  %4759 = vmatpush2.bf16.xpose.msra.mxu0 0
  %4760 = vmatprep.mubr.bf16.mxu0 0
  %4761 = vmatmul.mubr.bf16.gmra.mxu0 %v4723
  %v4762 = vpop.f32.mrf.mxu0
  %v4763 = vadd.f32 %v1651, %v4762
  %v4764 = vpop.f32.mrf.mxu0
  %v4765 = vpop.f32.mrf.mxu0
  %v4766 = vpop.f32.mrf.mxu0
  %4767 = vdwg.mxu0
  %v4769 = vsel %vm1688, %v4707, 0
  %v4772 = vsel %vm1688, %v4715, 0
  %4774 = vmatprep.subr.bf16.mxu0 0
  %4775 = vmatpush1.bf16.xpose.msra.mxu0 0
  %4776 = vmatprep.subr.bf16.mxu0 0
  %4777 = vmatpush1.bf16.xpose.msra.mxu0 0
  %4778 = vmatprep.subr.bf16.mxu0 0
  %4779 = vmatpush1.bf16.xpose.msra.mxu0 0
  %4780 = vmatprep.subr.bf16.mxu0 0
  %4781 = vmatpush1.bf16.xpose.msra.mxu0 0
  %4782 = vmatprep.subr.bf16.mxu0 0
  %4783 = vmatpush1.bf16.xpose.msra.mxu0 0
  %4784 = vmatprep.subr.bf16.mxu0 0
  %4785 = vmatpush1.bf16.xpose.msra.mxu0 0
  %4786 = vmatprep.subr.bf16.mxu0 0
  %4787 = vmatpush1.bf16.xpose.msra.mxu0 0
  %4788 = vmatprep.subr.bf16.mxu0 0
  %4789 = vmatpush1.bf16.xpose.msra.mxu0 %v4772
  %4790 = vmatprep.subr.bf16.mxu0 0
  %4791 = vmatpush2.bf16.xpose.msra.mxu0 0
  %4792 = vmatprep.subr.bf16.mxu0 0
  %4793 = vmatpush2.bf16.xpose.msra.mxu0 0
  %4794 = vmatprep.subr.bf16.mxu0 0
  %4795 = vmatpush2.bf16.xpose.msra.mxu0 0
  %4796 = vmatprep.subr.bf16.mxu0 0
  %4797 = vmatpush2.bf16.xpose.msra.mxu0 0
  %4798 = vmatprep.subr.bf16.mxu0 0
  %4799 = vmatpush2.bf16.xpose.msra.mxu0 0
  %4800 = vmatprep.subr.bf16.mxu0 0
  %4801 = vmatpush2.bf16.xpose.msra.mxu0 0
  %4802 = vmatprep.subr.bf16.mxu0 0
  %4803 = vmatpush2.bf16.xpose.msra.mxu0 0
  %4804 = vmatprep.subr.bf16.mxu0 0
  %4805 = vmatpush2.bf16.xpose.msra.mxu0 0
  %4806 = vmatprep.mubr.bf16.mxu0 0
  %4807 = vmatmul.mubr.bf16.gmra.mxu0 %v4769
  %v4808 = vpop.f32.mrf.mxu0
  %v4809 = vadd.f32 %v1655, %v4808
  %v4810 = vpop.f32.mrf.mxu0
  %v4811 = vpop.f32.mrf.mxu0
  %v4812 = vpop.f32.mrf.mxu0
  %4813 = vdwg.mxu0
  %v4815 = vsel %vm1688, %v4708, 0
  %v4818 = vsel %vm1688, %v4716, 0
  %4820 = vmatprep.subr.bf16.mxu0 0
  %4821 = vmatpush1.bf16.xpose.msra.mxu0 0
  %4822 = vmatprep.subr.bf16.mxu0 0
  %4823 = vmatpush1.bf16.xpose.msra.mxu0 0
  %4824 = vmatprep.subr.bf16.mxu0 0
  %4825 = vmatpush1.bf16.xpose.msra.mxu0 0
  %4826 = vmatprep.subr.bf16.mxu0 0
  %4827 = vmatpush1.bf16.xpose.msra.mxu0 0
  %4828 = vmatprep.subr.bf16.mxu0 0
  %4829 = vmatpush1.bf16.xpose.msra.mxu0 0
  %4830 = vmatprep.subr.bf16.mxu0 0
  %4831 = vmatpush1.bf16.xpose.msra.mxu0 0
  %4832 = vmatprep.subr.bf16.mxu0 0
  %4833 = vmatpush1.bf16.xpose.msra.mxu0 0
  %4834 = vmatprep.subr.bf16.mxu0 0
  %4835 = vmatpush1.bf16.xpose.msra.mxu0 %v4818
  %4836 = vmatprep.subr.bf16.mxu0 0
  %4837 = vmatpush2.bf16.xpose.msra.mxu0 0
  %4838 = vmatprep.subr.bf16.mxu0 0
  %4839 = vmatpush2.bf16.xpose.msra.mxu0 0
  %4840 = vmatprep.subr.bf16.mxu0 0
  %4841 = vmatpush2.bf16.xpose.msra.mxu0 0
  %4842 = vmatprep.subr.bf16.mxu0 0
  %4843 = vmatpush2.bf16.xpose.msra.mxu0 0
  %4844 = vmatprep.subr.bf16.mxu0 0
  %4845 = vmatpush2.bf16.xpose.msra.mxu0 0
  %4846 = vmatprep.subr.bf16.mxu0 0
  %4847 = vmatpush2.bf16.xpose.msra.mxu0 0
  %4848 = vmatprep.subr.bf16.mxu0 0
  %4849 = vmatpush2.bf16.xpose.msra.mxu0 0
  %4850 = vmatprep.subr.bf16.mxu0 0
  %4851 = vmatpush2.bf16.xpose.msra.mxu0 0
  %4852 = vmatprep.mubr.bf16.mxu0 0
  %4853 = vmatmul.mubr.bf16.gmra.mxu0 %v4815
  %v4854 = vpop.f32.mrf.mxu0
  %v4855 = vadd.f32 %v1659, %v4854
  %v4856 = vpop.f32.mrf.mxu0
  %v4857 = vpop.f32.mrf.mxu0
  %v4858 = vpop.f32.mrf.mxu0
  %4859 = vdwg.mxu0
  %v4861 = vsel %vm1688, %v4709, 0
  %v4864 = vsel %vm1688, %v4717, 0
  %4866 = vmatprep.subr.bf16.mxu0 0
  %4867 = vmatpush1.bf16.xpose.msra.mxu0 0
  %4868 = vmatprep.subr.bf16.mxu0 0
  %4869 = vmatpush1.bf16.xpose.msra.mxu0 0
  %4870 = vmatprep.subr.bf16.mxu0 0
  %4871 = vmatpush1.bf16.xpose.msra.mxu0 0
  %4872 = vmatprep.subr.bf16.mxu0 0
  %4873 = vmatpush1.bf16.xpose.msra.mxu0 0
  %4874 = vmatprep.subr.bf16.mxu0 0
  %4875 = vmatpush1.bf16.xpose.msra.mxu0 0
  %4876 = vmatprep.subr.bf16.mxu0 0
  %4877 = vmatpush1.bf16.xpose.msra.mxu0 0
  %4878 = vmatprep.subr.bf16.mxu0 0
  %4879 = vmatpush1.bf16.xpose.msra.mxu0 0
  %4880 = vmatprep.subr.bf16.mxu0 0
  %4881 = vmatpush1.bf16.xpose.msra.mxu0 %v4864
  %4882 = vmatprep.subr.bf16.mxu0 0
  %4883 = vmatpush2.bf16.xpose.msra.mxu0 0
  %4884 = vmatprep.subr.bf16.mxu0 0
  %4885 = vmatpush2.bf16.xpose.msra.mxu0 0
  %4886 = vmatprep.subr.bf16.mxu0 0
  %4887 = vmatpush2.bf16.xpose.msra.mxu0 0
  %4888 = vmatprep.subr.bf16.mxu0 0
  %4889 = vmatpush2.bf16.xpose.msra.mxu0 0
  %4890 = vmatprep.subr.bf16.mxu0 0
  %4891 = vmatpush2.bf16.xpose.msra.mxu0 0
  %4892 = vmatprep.subr.bf16.mxu0 0
  %4893 = vmatpush2.bf16.xpose.msra.mxu0 0
  %4894 = vmatprep.subr.bf16.mxu0 0
  %4895 = vmatpush2.bf16.xpose.msra.mxu0 0
  %4896 = vmatprep.subr.bf16.mxu0 0
  %4897 = vmatpush2.bf16.xpose.msra.mxu0 0
  %4898 = vmatprep.mubr.bf16.mxu0 0
  %4899 = vmatmul.mubr.bf16.gmra.mxu0 %v4861
  %v4900 = vpop.f32.mrf.mxu0
  %v4901 = vadd.f32 %v1663, %v4900
  %v4902 = vpop.f32.mrf.mxu0
  %v4903 = vpop.f32.mrf.mxu0
  %v4904 = vpop.f32.mrf.mxu0
  %4905 = vdwg.mxu0
  %v4907 = vsel %vm1688, %v4710, 0
  %v4910 = vsel %vm1688, %v4718, 0
  %4912 = vmatprep.subr.bf16.mxu0 0
  %4913 = vmatpush1.bf16.xpose.msra.mxu0 0
  %4914 = vmatprep.subr.bf16.mxu0 0
  %4915 = vmatpush1.bf16.xpose.msra.mxu0 0
  %4916 = vmatprep.subr.bf16.mxu0 0
  %4917 = vmatpush1.bf16.xpose.msra.mxu0 0
  %4918 = vmatprep.subr.bf16.mxu0 0
  %4919 = vmatpush1.bf16.xpose.msra.mxu0 0
  %4920 = vmatprep.subr.bf16.mxu0 0
  %4921 = vmatpush1.bf16.xpose.msra.mxu0 0
  %4922 = vmatprep.subr.bf16.mxu0 0
  %4923 = vmatpush1.bf16.xpose.msra.mxu0 0
  %4924 = vmatprep.subr.bf16.mxu0 0
  %4925 = vmatpush1.bf16.xpose.msra.mxu0 0
  %4926 = vmatprep.subr.bf16.mxu0 0
  %4927 = vmatpush1.bf16.xpose.msra.mxu0 %v4910
  %4928 = vmatprep.subr.bf16.mxu0 0
  %4929 = vmatpush2.bf16.xpose.msra.mxu0 0
  %4930 = vmatprep.subr.bf16.mxu0 0
  %4931 = vmatpush2.bf16.xpose.msra.mxu0 0
  %4932 = vmatprep.subr.bf16.mxu0 0
  %4933 = vmatpush2.bf16.xpose.msra.mxu0 0
  %4934 = vmatprep.subr.bf16.mxu0 0
  %4935 = vmatpush2.bf16.xpose.msra.mxu0 0
  %4936 = vmatprep.subr.bf16.mxu0 0
  %4937 = vmatpush2.bf16.xpose.msra.mxu0 0
  %4938 = vmatprep.subr.bf16.mxu0 0
  %4939 = vmatpush2.bf16.xpose.msra.mxu0 0
  %4940 = vmatprep.subr.bf16.mxu0 0
  %4941 = vmatpush2.bf16.xpose.msra.mxu0 0
  %4942 = vmatprep.subr.bf16.mxu0 0
  %4943 = vmatpush2.bf16.xpose.msra.mxu0 0
  %4944 = vmatprep.mubr.bf16.mxu0 0
  %4945 = vmatmul.mubr.bf16.gmra.mxu0 %v4907
  %v4946 = vpop.f32.mrf.mxu0
  %v4947 = vadd.f32 %v1667, %v4946
  %v4948 = vpop.f32.mrf.mxu0
  %v4949 = vpop.f32.mrf.mxu0
  %v4950 = vpop.f32.mrf.mxu0
  %4951 = vdwg.mxu0
  %v4953 = vsel %vm1688, %v4711, 0
  %v4956 = vsel %vm1688, %v4719, 0
  %4958 = vmatprep.subr.bf16.mxu0 0
  %4959 = vmatpush1.bf16.xpose.msra.mxu0 0
  %4960 = vmatprep.subr.bf16.mxu0 0
  %4961 = vmatpush1.bf16.xpose.msra.mxu0 0
  %4962 = vmatprep.subr.bf16.mxu0 0
  %4963 = vmatpush1.bf16.xpose.msra.mxu0 0
  %4964 = vmatprep.subr.bf16.mxu0 0
  %4965 = vmatpush1.bf16.xpose.msra.mxu0 0
  %4966 = vmatprep.subr.bf16.mxu0 0
  %4967 = vmatpush1.bf16.xpose.msra.mxu0 0
  %4968 = vmatprep.subr.bf16.mxu0 0
  %4969 = vmatpush1.bf16.xpose.msra.mxu0 0
  %4970 = vmatprep.subr.bf16.mxu0 0
  %4971 = vmatpush1.bf16.xpose.msra.mxu0 0
  %4972 = vmatprep.subr.bf16.mxu0 0
  %4973 = vmatpush1.bf16.xpose.msra.mxu0 %v4956
  %4974 = vmatprep.subr.bf16.mxu0 0
  %4975 = vmatpush2.bf16.xpose.msra.mxu0 0
  %4976 = vmatprep.subr.bf16.mxu0 0
  %4977 = vmatpush2.bf16.xpose.msra.mxu0 0
  %4978 = vmatprep.subr.bf16.mxu0 0
  %4979 = vmatpush2.bf16.xpose.msra.mxu0 0
  %4980 = vmatprep.subr.bf16.mxu0 0
  %4981 = vmatpush2.bf16.xpose.msra.mxu0 0
  %4982 = vmatprep.subr.bf16.mxu0 0
  %4983 = vmatpush2.bf16.xpose.msra.mxu0 0
  %4984 = vmatprep.subr.bf16.mxu0 0
  %4985 = vmatpush2.bf16.xpose.msra.mxu0 0
  %4986 = vmatprep.subr.bf16.mxu0 0
  %4987 = vmatpush2.bf16.xpose.msra.mxu0 0
  %4988 = vmatprep.subr.bf16.mxu0 0
  %4989 = vmatpush2.bf16.xpose.msra.mxu0 0
  %4990 = vmatprep.mubr.bf16.mxu0 0
  %4991 = vmatmul.mubr.bf16.gmra.mxu0 %v4953
  %v4992 = vpop.f32.mrf.mxu0
  %v4993 = vadd.f32 %v1671, %v4992
  %v4994 = vpop.f32.mrf.mxu0
  %v4995 = vpop.f32.mrf.mxu0
  %v4996 = vpop.f32.mrf.mxu0
  %4997 = vdwg.mxu0
  %v4999 = vsel %vm1688, %v4712, 0
  %v5002 = vsel %vm1688, %v4720, 0
  %5004 = vmatprep.subr.bf16.mxu0 0
  %5005 = vmatpush1.bf16.xpose.msra.mxu0 0
  %5006 = vmatprep.subr.bf16.mxu0 0
  %5007 = vmatpush1.bf16.xpose.msra.mxu0 0
  %5008 = vmatprep.subr.bf16.mxu0 0
  %5009 = vmatpush1.bf16.xpose.msra.mxu0 0
  %5010 = vmatprep.subr.bf16.mxu0 0
  %5011 = vmatpush1.bf16.xpose.msra.mxu0 0
  %5012 = vmatprep.subr.bf16.mxu0 0
  %5013 = vmatpush1.bf16.xpose.msra.mxu0 0
  %5014 = vmatprep.subr.bf16.mxu0 0
  %5015 = vmatpush1.bf16.xpose.msra.mxu0 0
  %5016 = vmatprep.subr.bf16.mxu0 0
  %5017 = vmatpush1.bf16.xpose.msra.mxu0 0
  %5018 = vmatprep.subr.bf16.mxu0 0
  %5019 = vmatpush1.bf16.xpose.msra.mxu0 %v5002
  %5020 = vmatprep.subr.bf16.mxu0 0
  %5021 = vmatpush2.bf16.xpose.msra.mxu0 0
  %5022 = vmatprep.subr.bf16.mxu0 0
  %5023 = vmatpush2.bf16.xpose.msra.mxu0 0
  %5024 = vmatprep.subr.bf16.mxu0 0
  %5025 = vmatpush2.bf16.xpose.msra.mxu0 0
  %5026 = vmatprep.subr.bf16.mxu0 0
  %5027 = vmatpush2.bf16.xpose.msra.mxu0 0
  %5028 = vmatprep.subr.bf16.mxu0 0
  %5029 = vmatpush2.bf16.xpose.msra.mxu0 0
  %5030 = vmatprep.subr.bf16.mxu0 0
  %5031 = vmatpush2.bf16.xpose.msra.mxu0 0
  %5032 = vmatprep.subr.bf16.mxu0 0
  %5033 = vmatpush2.bf16.xpose.msra.mxu0 0
  %5034 = vmatprep.subr.bf16.mxu0 0
  %5035 = vmatpush2.bf16.xpose.msra.mxu0 0
  %5036 = vmatprep.mubr.bf16.mxu0 0
  %5037 = vmatmul.mubr.bf16.gmra.mxu0 %v4999
  %v5038 = vpop.f32.mrf.mxu0
  %v5039 = vadd.f32 %v1675, %v5038
  %v5040 = vpop.f32.mrf.mxu0
  %v5041 = vpop.f32.mrf.mxu0
  %v5042 = vpop.f32.mrf.mxu0
  %5043 = vdwg.mxu0
  %v5045 = vsel %vm1688, %v4713, 0
  %v5048 = vsel %vm1688, %v4721, 0
  %5050 = vmatprep.subr.bf16.mxu0 0
  %5051 = vmatpush1.bf16.xpose.msra.mxu0 0
  %5052 = vmatprep.subr.bf16.mxu0 0
  %5053 = vmatpush1.bf16.xpose.msra.mxu0 0
  %5054 = vmatprep.subr.bf16.mxu0 0
  %5055 = vmatpush1.bf16.xpose.msra.mxu0 0
  %5056 = vmatprep.subr.bf16.mxu0 0
  %5057 = vmatpush1.bf16.xpose.msra.mxu0 0
  %5058 = vmatprep.subr.bf16.mxu0 0
  %5059 = vmatpush1.bf16.xpose.msra.mxu0 0
  %5060 = vmatprep.subr.bf16.mxu0 0
  %5061 = vmatpush1.bf16.xpose.msra.mxu0 0
  %5062 = vmatprep.subr.bf16.mxu0 0
  %5063 = vmatpush1.bf16.xpose.msra.mxu0 0
  %5064 = vmatprep.subr.bf16.mxu0 0
  %5065 = vmatpush1.bf16.xpose.msra.mxu0 %v5048
  %5066 = vmatprep.subr.bf16.mxu0 0
  %5067 = vmatpush2.bf16.xpose.msra.mxu0 0
  %5068 = vmatprep.subr.bf16.mxu0 0
  %5069 = vmatpush2.bf16.xpose.msra.mxu0 0
  %5070 = vmatprep.subr.bf16.mxu0 0
  %5071 = vmatpush2.bf16.xpose.msra.mxu0 0
  %5072 = vmatprep.subr.bf16.mxu0 0
  %5073 = vmatpush2.bf16.xpose.msra.mxu0 0
  %5074 = vmatprep.subr.bf16.mxu0 0
  %5075 = vmatpush2.bf16.xpose.msra.mxu0 0
  %5076 = vmatprep.subr.bf16.mxu0 0
  %5077 = vmatpush2.bf16.xpose.msra.mxu0 0
  %5078 = vmatprep.subr.bf16.mxu0 0
  %5079 = vmatpush2.bf16.xpose.msra.mxu0 0
  %5080 = vmatprep.subr.bf16.mxu0 0
  %5081 = vmatpush2.bf16.xpose.msra.mxu0 0
  %5082 = vmatprep.mubr.bf16.mxu0 0
  %5083 = vmatmul.mubr.bf16.gmra.mxu0 %v5045
  %v5084 = vpop.f32.mrf.mxu0
  %v5085 = vadd.f32 %v1679, %v5084
  %v5086 = vpop.f32.mrf.mxu0
  %v5087 = vpop.f32.mrf.mxu0
  %v5088 = vpop.f32.mrf.mxu0
  %5089 = vdwg.mxu0
  %v5090 = vsel %vm1688, %v4763, -inf
  %5091 = vmax.xlane.f32.xlu0 %v5090
  %v5092 = vpop.xlane.xlu0 %5091
  %v5093 = vsel %vm1688, %v4809, -inf
  %5094 = vmax.xlane.f32.xlu0 %v5093
  %v5095 = vpop.xlane.xlu0 %5094
  %v5096 = vsel %vm1688, %v4855, -inf
  %5097 = vmax.xlane.f32.xlu0 %v5096
  %v5098 = vpop.xlane.xlu0 %5097
  %v5099 = vsel %vm1688, %v4901, -inf
  %5100 = vmax.xlane.f32.xlu0 %v5099
  %v5101 = vpop.xlane.xlu0 %5100
  %v5102 = vsel %vm1688, %v4947, -inf
  %5103 = vmax.xlane.f32.xlu0 %v5102
  %v5104 = vpop.xlane.xlu0 %5103
  %v5105 = vsel %vm1688, %v4993, -inf
  %5106 = vmax.xlane.f32.xlu0 %v5105
  %v5107 = vpop.xlane.xlu0 %5106
  %v5108 = vsel %vm1688, %v5039, -inf
  %5109 = vmax.xlane.f32.xlu0 %v5108
  %v5110 = vpop.xlane.xlu0 %5109
  %v5111 = vsel %vm1688, %v5085, -inf
  %5112 = vmax.xlane.f32.xlu0 %v5111
  %v5113 = vpop.xlane.xlu0 %5112
  %v5114 = vsub.f32 %v4763, %v5092
  %v5115 = vsub.f32 %v4809, %v5095
  %v5116 = vsub.f32 %v4855, %v5098
  %v5117 = vsub.f32 %v4901, %v5101
  %v5118 = vsub.f32 %v4947, %v5104
  %v5119 = vsub.f32 %v4993, %v5107
  %v5120 = vsub.f32 %v5039, %v5110
  %v5121 = vsub.f32 %v5085, %v5113
  %v5122 = vmul.f32 %v5114, 1.442695
  %v5123 = vpow.pop %v5122
  %v5124 = vmul.f32 %v5115, 1.442695
  %v5125 = vpow.pop %v5124
  %v5126 = vmul.f32 %v5116, 1.442695
  %v5127 = vpow.pop %v5126
  %v5128 = vmul.f32 %v5117, 1.442695
  %v5129 = vpow.pop %v5128
  %v5130 = vmul.f32 %v5118, 1.442695
  %v5131 = vpow.pop %v5130
  %v5132 = vmul.f32 %v5119, 1.442695
  %v5133 = vpow.pop %v5132
  %v5134 = vmul.f32 %v5120, 1.442695
  %v5135 = vpow.pop %v5134
  %v5136 = vmul.f32 %v5121, 1.442695
  %v5137 = vpow.pop %v5136
  %v5138 = vsel %vm1688, %v5123, 0.0
  %5139 = vadd.xlane.f32.xlu0 %v5138
  %v5140 = vpop.xlane.xlu0 %5139
  %v5141 = vsel %vm1688, %v5125, 0.0
  %5142 = vadd.xlane.f32.xlu0 %v5141
  %v5143 = vpop.xlane.xlu0 %5142
  %v5144 = vsel %vm1688, %v5127, 0.0
  %5145 = vadd.xlane.f32.xlu0 %v5144
  %v5146 = vpop.xlane.xlu0 %5145
  %v5147 = vsel %vm1688, %v5129, 0.0
  %5148 = vadd.xlane.f32.xlu0 %v5147
  %v5149 = vpop.xlane.xlu0 %5148
  %v5150 = vsel %vm1688, %v5131, 0.0
  %5151 = vadd.xlane.f32.xlu0 %v5150
  %v5152 = vpop.xlane.xlu0 %5151
  %v5153 = vsel %vm1688, %v5133, 0.0
  %5154 = vadd.xlane.f32.xlu0 %v5153
  %v5155 = vpop.xlane.xlu0 %5154
  %v5156 = vsel %vm1688, %v5135, 0.0
  %5157 = vadd.xlane.f32.xlu0 %v5156
  %v5158 = vpop.xlane.xlu0 %5157
  %v5159 = vsel %vm1688, %v5137, 0.0
  %5160 = vadd.xlane.f32.xlu0 %v5159
  %v5161 = vpop.xlane.xlu0 %5160
  %v5162 = vrcp.pop %v5140
  %v5163 = vrcp.pop %v5143
  %v5164 = vrcp.pop %v5146
  %v5165 = vrcp.pop %v5149
  %v5166 = vrcp.pop %v5152
  %v5167 = vrcp.pop %v5155
  %v5168 = vrcp.pop %v5158
  %v5169 = vrcp.pop %v5161
  %v5170 = vmul.f32 %v5123, %v5162
  %v5171 = vmul.f32 %v5125, %v5163
  %v5172 = vmul.f32 %v5127, %v5164
  %v5173 = vmul.f32 %v5129, %v5165
  %v5174 = vmul.f32 %v5131, %v5166
  %v5175 = vmul.f32 %v5133, %v5167
  %v5176 = vmul.f32 %v5135, %v5168
  %v5177 = vmul.f32 %v5137, %v5169
  %v5178 = vpack.c.bf16 %v5170, %v5170
  %v5179 = vpack.c.bf16 %v5171, %v5171
  %v5180 = vpack.c.bf16 %v5172, %v5172
  %v5181 = vpack.c.bf16 %v5173, %v5173
  %v5182 = vpack.c.bf16 %v5174, %v5174
  %v5183 = vpack.c.bf16 %v5175, %v5175
  %v5184 = vpack.c.bf16 %v5176, %v5176
  %v5185 = vpack.c.bf16 %v5177, %v5177
  %v5186 = vpack.c.bf16 %v4337, %v4337
  %v5187 = vpack.c.bf16 %v4389, %v4389
  %v5188 = vpack.c.bf16 %v4441, %v4441
  %v5189 = vpack.c.bf16 %v4493, %v4493
  %v5190 = vpack.c.bf16 %v4545, %v4545
  %v5191 = vpack.c.bf16 %v4597, %v4597
  %v5192 = vpack.c.bf16 %v4649, %v4649
  %v5193 = vpack.c.bf16 %v4701, %v4701
  %v5195 = vsel %vm1688, %v5178, 0
  %v5198 = vsel %vm2164, %v5186, 0
  %5200 = vmatprep.subr.bf16.mxu0 0
  %5201 = vmatpush1.bf16.msra.mxu0 0
  %5202 = vmatprep.subr.bf16.mxu0 0
  %5203 = vmatpush1.bf16.msra.mxu0 0
  %5204 = vmatprep.subr.bf16.mxu0 0
  %5205 = vmatpush1.bf16.msra.mxu0 0
  %5206 = vmatprep.subr.bf16.mxu0 0
  %5207 = vmatpush1.bf16.msra.mxu0 0
  %5208 = vmatprep.subr.bf16.mxu0 0
  %5209 = vmatpush1.bf16.msra.mxu0 0
  %5210 = vmatprep.subr.bf16.mxu0 0
  %5211 = vmatpush1.bf16.msra.mxu0 0
  %5212 = vmatprep.subr.bf16.mxu0 0
  %5213 = vmatpush1.bf16.msra.mxu0 0
  %5214 = vmatprep.subr.bf16.mxu0 0
  %5215 = vmatpush1.bf16.msra.mxu0 %v5198
  %5216 = vmatprep.subr.bf16.mxu0 0
  %5217 = vmatpush2.bf16.msra.mxu0 0
  %5218 = vmatprep.subr.bf16.mxu0 0
  %5219 = vmatpush2.bf16.msra.mxu0 0
  %5220 = vmatprep.subr.bf16.mxu0 0
  %5221 = vmatpush2.bf16.msra.mxu0 0
  %5222 = vmatprep.subr.bf16.mxu0 0
  %5223 = vmatpush2.bf16.msra.mxu0 0
  %5224 = vmatprep.subr.bf16.mxu0 0
  %5225 = vmatpush2.bf16.msra.mxu0 0
  %5226 = vmatprep.subr.bf16.mxu0 0
  %5227 = vmatpush2.bf16.msra.mxu0 0
  %5228 = vmatprep.subr.bf16.mxu0 0
  %5229 = vmatpush2.bf16.msra.mxu0 0
  %5230 = vmatprep.subr.bf16.mxu0 0
  %5231 = vmatpush2.bf16.msra.mxu0 0
  %5232 = vmatprep.mubr.bf16.mxu0 0
  %5233 = vmatmul.mubr.bf16.gmra.mxu0 %v5195
  %v5234 = vpop.f32.mrf.mxu0
  %v5235 = vadd.f32 0.0, %v5234
  %v5236 = vpop.f32.mrf.mxu0
  %v5237 = vpop.f32.mrf.mxu0
  %v5238 = vpop.f32.mrf.mxu0
  %5239 = vdwg.mxu0
  %v5241 = vsel %vm1688, %v5179, 0
  %v5244 = vsel %vm2164, %v5187, 0
  %5246 = vmatprep.subr.bf16.mxu0 0
  %5247 = vmatpush1.bf16.msra.mxu0 0
  %5248 = vmatprep.subr.bf16.mxu0 0
  %5249 = vmatpush1.bf16.msra.mxu0 0
  %5250 = vmatprep.subr.bf16.mxu0 0
  %5251 = vmatpush1.bf16.msra.mxu0 0
  %5252 = vmatprep.subr.bf16.mxu0 0
  %5253 = vmatpush1.bf16.msra.mxu0 0
  %5254 = vmatprep.subr.bf16.mxu0 0
  %5255 = vmatpush1.bf16.msra.mxu0 0
  %5256 = vmatprep.subr.bf16.mxu0 0
  %5257 = vmatpush1.bf16.msra.mxu0 0
  %5258 = vmatprep.subr.bf16.mxu0 0
  %5259 = vmatpush1.bf16.msra.mxu0 0
  %5260 = vmatprep.subr.bf16.mxu0 0
  %5261 = vmatpush1.bf16.msra.mxu0 %v5244
  %5262 = vmatprep.subr.bf16.mxu0 0
  %5263 = vmatpush2.bf16.msra.mxu0 0
  %5264 = vmatprep.subr.bf16.mxu0 0
  %5265 = vmatpush2.bf16.msra.mxu0 0
  %5266 = vmatprep.subr.bf16.mxu0 0
  %5267 = vmatpush2.bf16.msra.mxu0 0
  %5268 = vmatprep.subr.bf16.mxu0 0
  %5269 = vmatpush2.bf16.msra.mxu0 0
  %5270 = vmatprep.subr.bf16.mxu0 0
  %5271 = vmatpush2.bf16.msra.mxu0 0
  %5272 = vmatprep.subr.bf16.mxu0 0
  %5273 = vmatpush2.bf16.msra.mxu0 0
  %5274 = vmatprep.subr.bf16.mxu0 0
  %5275 = vmatpush2.bf16.msra.mxu0 0
  %5276 = vmatprep.subr.bf16.mxu0 0
  %5277 = vmatpush2.bf16.msra.mxu0 0
  %5278 = vmatprep.mubr.bf16.mxu0 0
  %5279 = vmatmul.mubr.bf16.gmra.mxu0 %v5241
  %v5280 = vpop.f32.mrf.mxu0
  %v5281 = vadd.f32 0.0, %v5280
  %v5282 = vpop.f32.mrf.mxu0
  %v5283 = vpop.f32.mrf.mxu0
  %v5284 = vpop.f32.mrf.mxu0
  %5285 = vdwg.mxu0
  %v5287 = vsel %vm1688, %v5180, 0
  %v5290 = vsel %vm2164, %v5188, 0
  %5292 = vmatprep.subr.bf16.mxu0 0
  %5293 = vmatpush1.bf16.msra.mxu0 0
  %5294 = vmatprep.subr.bf16.mxu0 0
  %5295 = vmatpush1.bf16.msra.mxu0 0
  %5296 = vmatprep.subr.bf16.mxu0 0
  %5297 = vmatpush1.bf16.msra.mxu0 0
  %5298 = vmatprep.subr.bf16.mxu0 0
  %5299 = vmatpush1.bf16.msra.mxu0 0
  %5300 = vmatprep.subr.bf16.mxu0 0
  %5301 = vmatpush1.bf16.msra.mxu0 0
  %5302 = vmatprep.subr.bf16.mxu0 0
  %5303 = vmatpush1.bf16.msra.mxu0 0
  %5304 = vmatprep.subr.bf16.mxu0 0
  %5305 = vmatpush1.bf16.msra.mxu0 0
  %5306 = vmatprep.subr.bf16.mxu0 0
  %5307 = vmatpush1.bf16.msra.mxu0 %v5290
  %5308 = vmatprep.subr.bf16.mxu0 0
  %5309 = vmatpush2.bf16.msra.mxu0 0
  %5310 = vmatprep.subr.bf16.mxu0 0
  %5311 = vmatpush2.bf16.msra.mxu0 0
  %5312 = vmatprep.subr.bf16.mxu0 0
  %5313 = vmatpush2.bf16.msra.mxu0 0
  %5314 = vmatprep.subr.bf16.mxu0 0
  %5315 = vmatpush2.bf16.msra.mxu0 0
  %5316 = vmatprep.subr.bf16.mxu0 0
  %5317 = vmatpush2.bf16.msra.mxu0 0
  %5318 = vmatprep.subr.bf16.mxu0 0
  %5319 = vmatpush2.bf16.msra.mxu0 0
  %5320 = vmatprep.subr.bf16.mxu0 0
  %5321 = vmatpush2.bf16.msra.mxu0 0
  %5322 = vmatprep.subr.bf16.mxu0 0
  %5323 = vmatpush2.bf16.msra.mxu0 0
  %5324 = vmatprep.mubr.bf16.mxu0 0
  %5325 = vmatmul.mubr.bf16.gmra.mxu0 %v5287
  %v5326 = vpop.f32.mrf.mxu0
  %v5327 = vadd.f32 0.0, %v5326
  %v5328 = vpop.f32.mrf.mxu0
  %v5329 = vpop.f32.mrf.mxu0
  %v5330 = vpop.f32.mrf.mxu0
  %5331 = vdwg.mxu0
  %v5333 = vsel %vm1688, %v5181, 0
  %v5336 = vsel %vm2164, %v5189, 0
  %5338 = vmatprep.subr.bf16.mxu0 0
  %5339 = vmatpush1.bf16.msra.mxu0 0
  %5340 = vmatprep.subr.bf16.mxu0 0
  %5341 = vmatpush1.bf16.msra.mxu0 0
  %5342 = vmatprep.subr.bf16.mxu0 0
  %5343 = vmatpush1.bf16.msra.mxu0 0
  %5344 = vmatprep.subr.bf16.mxu0 0
  %5345 = vmatpush1.bf16.msra.mxu0 0
  %5346 = vmatprep.subr.bf16.mxu0 0
  %5347 = vmatpush1.bf16.msra.mxu0 0
  %5348 = vmatprep.subr.bf16.mxu0 0
  %5349 = vmatpush1.bf16.msra.mxu0 0
  %5350 = vmatprep.subr.bf16.mxu0 0
  %5351 = vmatpush1.bf16.msra.mxu0 0
  %5352 = vmatprep.subr.bf16.mxu0 0
  %5353 = vmatpush1.bf16.msra.mxu0 %v5336
  %5354 = vmatprep.subr.bf16.mxu0 0
  %5355 = vmatpush2.bf16.msra.mxu0 0
  %5356 = vmatprep.subr.bf16.mxu0 0
  %5357 = vmatpush2.bf16.msra.mxu0 0
  %5358 = vmatprep.subr.bf16.mxu0 0
  %5359 = vmatpush2.bf16.msra.mxu0 0
  %5360 = vmatprep.subr.bf16.mxu0 0
  %5361 = vmatpush2.bf16.msra.mxu0 0
  %5362 = vmatprep.subr.bf16.mxu0 0
  %5363 = vmatpush2.bf16.msra.mxu0 0
  %5364 = vmatprep.subr.bf16.mxu0 0
  %5365 = vmatpush2.bf16.msra.mxu0 0
  %5366 = vmatprep.subr.bf16.mxu0 0
  %5367 = vmatpush2.bf16.msra.mxu0 0
  %5368 = vmatprep.subr.bf16.mxu0 0
  %5369 = vmatpush2.bf16.msra.mxu0 0
  %5370 = vmatprep.mubr.bf16.mxu0 0
  %5371 = vmatmul.mubr.bf16.gmra.mxu0 %v5333
  %v5372 = vpop.f32.mrf.mxu0
  %v5373 = vadd.f32 0.0, %v5372
  %v5374 = vpop.f32.mrf.mxu0
  %v5375 = vpop.f32.mrf.mxu0
  %v5376 = vpop.f32.mrf.mxu0
  %5377 = vdwg.mxu0
  %v5379 = vsel %vm1688, %v5182, 0
  %v5382 = vsel %vm2164, %v5190, 0
  %5384 = vmatprep.subr.bf16.mxu0 0
  %5385 = vmatpush1.bf16.msra.mxu0 0
  %5386 = vmatprep.subr.bf16.mxu0 0
  %5387 = vmatpush1.bf16.msra.mxu0 0
  %5388 = vmatprep.subr.bf16.mxu0 0
  %5389 = vmatpush1.bf16.msra.mxu0 0
  %5390 = vmatprep.subr.bf16.mxu0 0
  %5391 = vmatpush1.bf16.msra.mxu0 0
  %5392 = vmatprep.subr.bf16.mxu0 0
  %5393 = vmatpush1.bf16.msra.mxu0 0
  %5394 = vmatprep.subr.bf16.mxu0 0
  %5395 = vmatpush1.bf16.msra.mxu0 0
  %5396 = vmatprep.subr.bf16.mxu0 0
  %5397 = vmatpush1.bf16.msra.mxu0 0
  %5398 = vmatprep.subr.bf16.mxu0 0
  %5399 = vmatpush1.bf16.msra.mxu0 %v5382
  %5400 = vmatprep.subr.bf16.mxu0 0
  %5401 = vmatpush2.bf16.msra.mxu0 0
  %5402 = vmatprep.subr.bf16.mxu0 0
  %5403 = vmatpush2.bf16.msra.mxu0 0
  %5404 = vmatprep.subr.bf16.mxu0 0
  %5405 = vmatpush2.bf16.msra.mxu0 0
  %5406 = vmatprep.subr.bf16.mxu0 0
  %5407 = vmatpush2.bf16.msra.mxu0 0
  %5408 = vmatprep.subr.bf16.mxu0 0
  %5409 = vmatpush2.bf16.msra.mxu0 0
  %5410 = vmatprep.subr.bf16.mxu0 0
  %5411 = vmatpush2.bf16.msra.mxu0 0
  %5412 = vmatprep.subr.bf16.mxu0 0
  %5413 = vmatpush2.bf16.msra.mxu0 0
  %5414 = vmatprep.subr.bf16.mxu0 0
  %5415 = vmatpush2.bf16.msra.mxu0 0
  %5416 = vmatprep.mubr.bf16.mxu0 0
  %5417 = vmatmul.mubr.bf16.gmra.mxu0 %v5379
  %v5418 = vpop.f32.mrf.mxu0
  %v5419 = vadd.f32 0.0, %v5418
  %v5420 = vpop.f32.mrf.mxu0
  %v5421 = vpop.f32.mrf.mxu0
  %v5422 = vpop.f32.mrf.mxu0
  %5423 = vdwg.mxu0
  %v5425 = vsel %vm1688, %v5183, 0
  %v5428 = vsel %vm2164, %v5191, 0
  %5430 = vmatprep.subr.bf16.mxu0 0
  %5431 = vmatpush1.bf16.msra.mxu0 0
  %5432 = vmatprep.subr.bf16.mxu0 0
  %5433 = vmatpush1.bf16.msra.mxu0 0
  %5434 = vmatprep.subr.bf16.mxu0 0
  %5435 = vmatpush1.bf16.msra.mxu0 0
  %5436 = vmatprep.subr.bf16.mxu0 0
  %5437 = vmatpush1.bf16.msra.mxu0 0
  %5438 = vmatprep.subr.bf16.mxu0 0
  %5439 = vmatpush1.bf16.msra.mxu0 0
  %5440 = vmatprep.subr.bf16.mxu0 0
  %5441 = vmatpush1.bf16.msra.mxu0 0
  %5442 = vmatprep.subr.bf16.mxu0 0
  %5443 = vmatpush1.bf16.msra.mxu0 0
  %5444 = vmatprep.subr.bf16.mxu0 0
  %5445 = vmatpush1.bf16.msra.mxu0 %v5428
  %5446 = vmatprep.subr.bf16.mxu0 0
  %5447 = vmatpush2.bf16.msra.mxu0 0
  %5448 = vmatprep.subr.bf16.mxu0 0
  %5449 = vmatpush2.bf16.msra.mxu0 0
  %5450 = vmatprep.subr.bf16.mxu0 0
  %5451 = vmatpush2.bf16.msra.mxu0 0
  %5452 = vmatprep.subr.bf16.mxu0 0
  %5453 = vmatpush2.bf16.msra.mxu0 0
  %5454 = vmatprep.subr.bf16.mxu0 0
  %5455 = vmatpush2.bf16.msra.mxu0 0
  %5456 = vmatprep.subr.bf16.mxu0 0
  %5457 = vmatpush2.bf16.msra.mxu0 0
  %5458 = vmatprep.subr.bf16.mxu0 0
  %5459 = vmatpush2.bf16.msra.mxu0 0
  %5460 = vmatprep.subr.bf16.mxu0 0
  %5461 = vmatpush2.bf16.msra.mxu0 0
  %5462 = vmatprep.mubr.bf16.mxu0 0
  %5463 = vmatmul.mubr.bf16.gmra.mxu0 %v5425
  %v5464 = vpop.f32.mrf.mxu0
  %v5465 = vadd.f32 0.0, %v5464
  %v5466 = vpop.f32.mrf.mxu0
  %v5467 = vpop.f32.mrf.mxu0
  %v5468 = vpop.f32.mrf.mxu0
  %5469 = vdwg.mxu0
  %v5471 = vsel %vm1688, %v5184, 0
  %v5474 = vsel %vm2164, %v5192, 0
  %5476 = vmatprep.subr.bf16.mxu0 0
  %5477 = vmatpush1.bf16.msra.mxu0 0
  %5478 = vmatprep.subr.bf16.mxu0 0
  %5479 = vmatpush1.bf16.msra.mxu0 0
  %5480 = vmatprep.subr.bf16.mxu0 0
  %5481 = vmatpush1.bf16.msra.mxu0 0
  %5482 = vmatprep.subr.bf16.mxu0 0
  %5483 = vmatpush1.bf16.msra.mxu0 0
  %5484 = vmatprep.subr.bf16.mxu0 0
  %5485 = vmatpush1.bf16.msra.mxu0 0
  %5486 = vmatprep.subr.bf16.mxu0 0
  %5487 = vmatpush1.bf16.msra.mxu0 0
  %5488 = vmatprep.subr.bf16.mxu0 0
  %5489 = vmatpush1.bf16.msra.mxu0 0
  %5490 = vmatprep.subr.bf16.mxu0 0
  %5491 = vmatpush1.bf16.msra.mxu0 %v5474
  %5492 = vmatprep.subr.bf16.mxu0 0
  %5493 = vmatpush2.bf16.msra.mxu0 0
  %5494 = vmatprep.subr.bf16.mxu0 0
  %5495 = vmatpush2.bf16.msra.mxu0 0
  %5496 = vmatprep.subr.bf16.mxu0 0
  %5497 = vmatpush2.bf16.msra.mxu0 0
  %5498 = vmatprep.subr.bf16.mxu0 0
  %5499 = vmatpush2.bf16.msra.mxu0 0
  %5500 = vmatprep.subr.bf16.mxu0 0
  %5501 = vmatpush2.bf16.msra.mxu0 0
  %5502 = vmatprep.subr.bf16.mxu0 0
  %5503 = vmatpush2.bf16.msra.mxu0 0
  %5504 = vmatprep.subr.bf16.mxu0 0
  %5505 = vmatpush2.bf16.msra.mxu0 0
  %5506 = vmatprep.subr.bf16.mxu0 0
  %5507 = vmatpush2.bf16.msra.mxu0 0
  %5508 = vmatprep.mubr.bf16.mxu0 0
  %5509 = vmatmul.mubr.bf16.gmra.mxu0 %v5471
  %v5510 = vpop.f32.mrf.mxu0
  %v5511 = vadd.f32 0.0, %v5510
  %v5512 = vpop.f32.mrf.mxu0
  %v5513 = vpop.f32.mrf.mxu0
  %v5514 = vpop.f32.mrf.mxu0
  %5515 = vdwg.mxu0
  %v5517 = vsel %vm1688, %v5185, 0
  %v5520 = vsel %vm2164, %v5193, 0
  %5522 = vmatprep.subr.bf16.mxu0 0
  %5523 = vmatpush1.bf16.msra.mxu0 0
  %5524 = vmatprep.subr.bf16.mxu0 0
  %5525 = vmatpush1.bf16.msra.mxu0 0
  %5526 = vmatprep.subr.bf16.mxu0 0
  %5527 = vmatpush1.bf16.msra.mxu0 0
  %5528 = vmatprep.subr.bf16.mxu0 0
  %5529 = vmatpush1.bf16.msra.mxu0 0
  %5530 = vmatprep.subr.bf16.mxu0 0
  %5531 = vmatpush1.bf16.msra.mxu0 0
  %5532 = vmatprep.subr.bf16.mxu0 0
  %5533 = vmatpush1.bf16.msra.mxu0 0
  %5534 = vmatprep.subr.bf16.mxu0 0
  %5535 = vmatpush1.bf16.msra.mxu0 0
  %5536 = vmatprep.subr.bf16.mxu0 0
  %5537 = vmatpush1.bf16.msra.mxu0 %v5520
  %5538 = vmatprep.subr.bf16.mxu0 0
  %5539 = vmatpush2.bf16.msra.mxu0 0
  %5540 = vmatprep.subr.bf16.mxu0 0
  %5541 = vmatpush2.bf16.msra.mxu0 0
  %5542 = vmatprep.subr.bf16.mxu0 0
  %5543 = vmatpush2.bf16.msra.mxu0 0
  %5544 = vmatprep.subr.bf16.mxu0 0
  %5545 = vmatpush2.bf16.msra.mxu0 0
  %5546 = vmatprep.subr.bf16.mxu0 0
  %5547 = vmatpush2.bf16.msra.mxu0 0
  %5548 = vmatprep.subr.bf16.mxu0 0
  %5549 = vmatpush2.bf16.msra.mxu0 0
  %5550 = vmatprep.subr.bf16.mxu0 0
  %5551 = vmatpush2.bf16.msra.mxu0 0
  %5552 = vmatprep.subr.bf16.mxu0 0
  %5553 = vmatpush2.bf16.msra.mxu0 0
  %5554 = vmatprep.mubr.bf16.mxu0 0
  %5555 = vmatmul.mubr.bf16.gmra.mxu0 %v5517
  %v5556 = vpop.f32.mrf.mxu0
  %v5557 = vadd.f32 0.0, %v5556
  %v5558 = vpop.f32.mrf.mxu0
  %v5559 = vpop.f32.mrf.mxu0
  %v5560 = vpop.f32.mrf.mxu0
  %5561 = vdwg.mxu0
  %v5562 = vpack.c.bf16 %v5235, %v5235
  %v5563 = vpack.c.bf16 %v5281, %v5281
  %v5564 = vpack.c.bf16 %v5327, %v5327
  %v5565 = vpack.c.bf16 %v5373, %v5373
  %v5566 = vpack.c.bf16 %v5419, %v5419
  %v5567 = vpack.c.bf16 %v5465, %v5465
  %v5568 = vpack.c.bf16 %v5511, %v5511
  %v5569 = vpack.c.bf16 %v5557, %v5557
  %s5570 = scalar_lea.vmem %s5, 32
  %v5571 = vld [vmem:[%s5570] sm:$0xf]
  %v5572 = vld [vmem:[%s5570 + $0x4] sm:$0xf]
  %v5573 = vld [vmem:[%s5570 + $0x8] sm:$0xf]
  %v5574 = vld [vmem:[%s5570 + $0xc] sm:$0xf]
  %v5575 = vld [vmem:[%s5570 + $0x10] sm:$0xf]
  %v5576 = vld [vmem:[%s5570 + $0x14] sm:$0xf]
  %v5577 = vld [vmem:[%s5570 + $0x18] sm:$0xf]
  %v5578 = vld [vmem:[%s5570 + $0x1c] sm:$0xf]
  %v5580 = vsel %vm1688, %v5562, 0
  %v5583 = vsel %vm2164, %v5571, 0
  %5585 = vmatprep.subr.bf16.mxu0 0
  %5586 = vmatpush1.bf16.msra.mxu0 0
  %5587 = vmatprep.subr.bf16.mxu0 0
  %5588 = vmatpush1.bf16.msra.mxu0 0
  %5589 = vmatprep.subr.bf16.mxu0 0
  %5590 = vmatpush1.bf16.msra.mxu0 0
  %5591 = vmatprep.subr.bf16.mxu0 0
  %5592 = vmatpush1.bf16.msra.mxu0 0
  %5593 = vmatprep.subr.bf16.mxu0 0
  %5594 = vmatpush1.bf16.msra.mxu0 0
  %5595 = vmatprep.subr.bf16.mxu0 0
  %5596 = vmatpush1.bf16.msra.mxu0 0
  %5597 = vmatprep.subr.bf16.mxu0 0
  %5598 = vmatpush1.bf16.msra.mxu0 0
  %5599 = vmatprep.subr.bf16.mxu0 0
  %5600 = vmatpush1.bf16.msra.mxu0 %v5583
  %5601 = vmatprep.subr.bf16.mxu0 0
  %5602 = vmatpush2.bf16.msra.mxu0 0
  %5603 = vmatprep.subr.bf16.mxu0 0
  %5604 = vmatpush2.bf16.msra.mxu0 0
  %5605 = vmatprep.subr.bf16.mxu0 0
  %5606 = vmatpush2.bf16.msra.mxu0 0
  %5607 = vmatprep.subr.bf16.mxu0 0
  %5608 = vmatpush2.bf16.msra.mxu0 0
  %5609 = vmatprep.subr.bf16.mxu0 0
  %5610 = vmatpush2.bf16.msra.mxu0 0
  %5611 = vmatprep.subr.bf16.mxu0 0
  %5612 = vmatpush2.bf16.msra.mxu0 0
  %5613 = vmatprep.subr.bf16.mxu0 0
  %5614 = vmatpush2.bf16.msra.mxu0 0
  %5615 = vmatprep.subr.bf16.mxu0 0
  %5616 = vmatpush2.bf16.msra.mxu0 0
  %5617 = vmatprep.mubr.bf16.mxu0 0
  %5618 = vmatmul.mubr.bf16.gmra.mxu0 %v5580
  %v5619 = vpop.f32.mrf.mxu0
  %v5620 = vadd.f32 0.0, %v5619
  %v5621 = vpop.f32.mrf.mxu0
  %v5622 = vpop.f32.mrf.mxu0
  %v5623 = vpop.f32.mrf.mxu0
  %5624 = vdwg.mxu0
  %v5626 = vsel %vm1688, %v5563, 0
  %v5629 = vsel %vm2164, %v5572, 0
  %5631 = vmatprep.subr.bf16.mxu0 0
  %5632 = vmatpush1.bf16.msra.mxu0 0
  %5633 = vmatprep.subr.bf16.mxu0 0
  %5634 = vmatpush1.bf16.msra.mxu0 0
  %5635 = vmatprep.subr.bf16.mxu0 0
  %5636 = vmatpush1.bf16.msra.mxu0 0
  %5637 = vmatprep.subr.bf16.mxu0 0
  %5638 = vmatpush1.bf16.msra.mxu0 0
  %5639 = vmatprep.subr.bf16.mxu0 0
  %5640 = vmatpush1.bf16.msra.mxu0 0
  %5641 = vmatprep.subr.bf16.mxu0 0
  %5642 = vmatpush1.bf16.msra.mxu0 0
  %5643 = vmatprep.subr.bf16.mxu0 0
  %5644 = vmatpush1.bf16.msra.mxu0 0
  %5645 = vmatprep.subr.bf16.mxu0 0
  %5646 = vmatpush1.bf16.msra.mxu0 %v5629
  %5647 = vmatprep.subr.bf16.mxu0 0
  %5648 = vmatpush2.bf16.msra.mxu0 0
  %5649 = vmatprep.subr.bf16.mxu0 0
  %5650 = vmatpush2.bf16.msra.mxu0 0
  %5651 = vmatprep.subr.bf16.mxu0 0
  %5652 = vmatpush2.bf16.msra.mxu0 0
  %5653 = vmatprep.subr.bf16.mxu0 0
  %5654 = vmatpush2.bf16.msra.mxu0 0
  %5655 = vmatprep.subr.bf16.mxu0 0
  %5656 = vmatpush2.bf16.msra.mxu0 0
  %5657 = vmatprep.subr.bf16.mxu0 0
  %5658 = vmatpush2.bf16.msra.mxu0 0
  %5659 = vmatprep.subr.bf16.mxu0 0
  %5660 = vmatpush2.bf16.msra.mxu0 0
  %5661 = vmatprep.subr.bf16.mxu0 0
  %5662 = vmatpush2.bf16.msra.mxu0 0
  %5663 = vmatprep.mubr.bf16.mxu0 0
  %5664 = vmatmul.mubr.bf16.gmra.mxu0 %v5626
  %v5665 = vpop.f32.mrf.mxu0
  %v5666 = vadd.f32 0.0, %v5665
  %v5667 = vpop.f32.mrf.mxu0
  %v5668 = vpop.f32.mrf.mxu0
  %v5669 = vpop.f32.mrf.mxu0
  %5670 = vdwg.mxu0
  %v5672 = vsel %vm1688, %v5564, 0
  %v5675 = vsel %vm2164, %v5573, 0
  %5677 = vmatprep.subr.bf16.mxu0 0
  %5678 = vmatpush1.bf16.msra.mxu0 0
  %5679 = vmatprep.subr.bf16.mxu0 0
  %5680 = vmatpush1.bf16.msra.mxu0 0
  %5681 = vmatprep.subr.bf16.mxu0 0
  %5682 = vmatpush1.bf16.msra.mxu0 0
  %5683 = vmatprep.subr.bf16.mxu0 0
  %5684 = vmatpush1.bf16.msra.mxu0 0
  %5685 = vmatprep.subr.bf16.mxu0 0
  %5686 = vmatpush1.bf16.msra.mxu0 0
  %5687 = vmatprep.subr.bf16.mxu0 0
  %5688 = vmatpush1.bf16.msra.mxu0 0
  %5689 = vmatprep.subr.bf16.mxu0 0
  %5690 = vmatpush1.bf16.msra.mxu0 0
  %5691 = vmatprep.subr.bf16.mxu0 0
  %5692 = vmatpush1.bf16.msra.mxu0 %v5675
  %5693 = vmatprep.subr.bf16.mxu0 0
  %5694 = vmatpush2.bf16.msra.mxu0 0
  %5695 = vmatprep.subr.bf16.mxu0 0
  %5696 = vmatpush2.bf16.msra.mxu0 0
  %5697 = vmatprep.subr.bf16.mxu0 0
  %5698 = vmatpush2.bf16.msra.mxu0 0
  %5699 = vmatprep.subr.bf16.mxu0 0
  %5700 = vmatpush2.bf16.msra.mxu0 0
  %5701 = vmatprep.subr.bf16.mxu0 0
  %5702 = vmatpush2.bf16.msra.mxu0 0
  %5703 = vmatprep.subr.bf16.mxu0 0
  %5704 = vmatpush2.bf16.msra.mxu0 0
  %5705 = vmatprep.subr.bf16.mxu0 0
  %5706 = vmatpush2.bf16.msra.mxu0 0
  %5707 = vmatprep.subr.bf16.mxu0 0
  %5708 = vmatpush2.bf16.msra.mxu0 0
  %5709 = vmatprep.mubr.bf16.mxu0 0
  %5710 = vmatmul.mubr.bf16.gmra.mxu0 %v5672
  %v5711 = vpop.f32.mrf.mxu0
  %v5712 = vadd.f32 0.0, %v5711
  %v5713 = vpop.f32.mrf.mxu0
  %v5714 = vpop.f32.mrf.mxu0
  %v5715 = vpop.f32.mrf.mxu0
  %5716 = vdwg.mxu0
  %v5718 = vsel %vm1688, %v5565, 0
  %v5721 = vsel %vm2164, %v5574, 0
  %5723 = vmatprep.subr.bf16.mxu0 0
  %5724 = vmatpush1.bf16.msra.mxu0 0
  %5725 = vmatprep.subr.bf16.mxu0 0
  %5726 = vmatpush1.bf16.msra.mxu0 0
  %5727 = vmatprep.subr.bf16.mxu0 0
  %5728 = vmatpush1.bf16.msra.mxu0 0
  %5729 = vmatprep.subr.bf16.mxu0 0
  %5730 = vmatpush1.bf16.msra.mxu0 0
  %5731 = vmatprep.subr.bf16.mxu0 0
  %5732 = vmatpush1.bf16.msra.mxu0 0
  %5733 = vmatprep.subr.bf16.mxu0 0
  %5734 = vmatpush1.bf16.msra.mxu0 0
  %5735 = vmatprep.subr.bf16.mxu0 0
  %5736 = vmatpush1.bf16.msra.mxu0 0
  %5737 = vmatprep.subr.bf16.mxu0 0
  %5738 = vmatpush1.bf16.msra.mxu0 %v5721
  %5739 = vmatprep.subr.bf16.mxu0 0
  %5740 = vmatpush2.bf16.msra.mxu0 0
  %5741 = vmatprep.subr.bf16.mxu0 0
  %5742 = vmatpush2.bf16.msra.mxu0 0
  %5743 = vmatprep.subr.bf16.mxu0 0
  %5744 = vmatpush2.bf16.msra.mxu0 0
  %5745 = vmatprep.subr.bf16.mxu0 0
  %5746 = vmatpush2.bf16.msra.mxu0 0
  %5747 = vmatprep.subr.bf16.mxu0 0
  %5748 = vmatpush2.bf16.msra.mxu0 0
  %5749 = vmatprep.subr.bf16.mxu0 0
  %5750 = vmatpush2.bf16.msra.mxu0 0
  %5751 = vmatprep.subr.bf16.mxu0 0
  %5752 = vmatpush2.bf16.msra.mxu0 0
  %5753 = vmatprep.subr.bf16.mxu0 0
  %5754 = vmatpush2.bf16.msra.mxu0 0
  %5755 = vmatprep.mubr.bf16.mxu0 0
  %5756 = vmatmul.mubr.bf16.gmra.mxu0 %v5718
  %v5757 = vpop.f32.mrf.mxu0
  %v5758 = vadd.f32 0.0, %v5757
  %v5759 = vpop.f32.mrf.mxu0
  %v5760 = vpop.f32.mrf.mxu0
  %v5761 = vpop.f32.mrf.mxu0
  %5762 = vdwg.mxu0
  %v5764 = vsel %vm1688, %v5566, 0
  %v5767 = vsel %vm2164, %v5575, 0
  %5769 = vmatprep.subr.bf16.mxu0 0
  %5770 = vmatpush1.bf16.msra.mxu0 0
  %5771 = vmatprep.subr.bf16.mxu0 0
  %5772 = vmatpush1.bf16.msra.mxu0 0
  %5773 = vmatprep.subr.bf16.mxu0 0
  %5774 = vmatpush1.bf16.msra.mxu0 0
  %5775 = vmatprep.subr.bf16.mxu0 0
  %5776 = vmatpush1.bf16.msra.mxu0 0
  %5777 = vmatprep.subr.bf16.mxu0 0
  %5778 = vmatpush1.bf16.msra.mxu0 0
  %5779 = vmatprep.subr.bf16.mxu0 0
  %5780 = vmatpush1.bf16.msra.mxu0 0
  %5781 = vmatprep.subr.bf16.mxu0 0
  %5782 = vmatpush1.bf16.msra.mxu0 0
  %5783 = vmatprep.subr.bf16.mxu0 0
  %5784 = vmatpush1.bf16.msra.mxu0 %v5767
  %5785 = vmatprep.subr.bf16.mxu0 0
  %5786 = vmatpush2.bf16.msra.mxu0 0
  %5787 = vmatprep.subr.bf16.mxu0 0
  %5788 = vmatpush2.bf16.msra.mxu0 0
  %5789 = vmatprep.subr.bf16.mxu0 0
  %5790 = vmatpush2.bf16.msra.mxu0 0
  %5791 = vmatprep.subr.bf16.mxu0 0
  %5792 = vmatpush2.bf16.msra.mxu0 0
  %5793 = vmatprep.subr.bf16.mxu0 0
  %5794 = vmatpush2.bf16.msra.mxu0 0
  %5795 = vmatprep.subr.bf16.mxu0 0
  %5796 = vmatpush2.bf16.msra.mxu0 0
  %5797 = vmatprep.subr.bf16.mxu0 0
  %5798 = vmatpush2.bf16.msra.mxu0 0
  %5799 = vmatprep.subr.bf16.mxu0 0
  %5800 = vmatpush2.bf16.msra.mxu0 0
  %5801 = vmatprep.mubr.bf16.mxu0 0
  %5802 = vmatmul.mubr.bf16.gmra.mxu0 %v5764
  %v5803 = vpop.f32.mrf.mxu0
  %v5804 = vadd.f32 0.0, %v5803
  %v5805 = vpop.f32.mrf.mxu0
  %v5806 = vpop.f32.mrf.mxu0
  %v5807 = vpop.f32.mrf.mxu0
  %5808 = vdwg.mxu0
  %v5810 = vsel %vm1688, %v5567, 0
  %v5813 = vsel %vm2164, %v5576, 0
  %5815 = vmatprep.subr.bf16.mxu0 0
  %5816 = vmatpush1.bf16.msra.mxu0 0
  %5817 = vmatprep.subr.bf16.mxu0 0
  %5818 = vmatpush1.bf16.msra.mxu0 0
  %5819 = vmatprep.subr.bf16.mxu0 0
  %5820 = vmatpush1.bf16.msra.mxu0 0
  %5821 = vmatprep.subr.bf16.mxu0 0
  %5822 = vmatpush1.bf16.msra.mxu0 0
  %5823 = vmatprep.subr.bf16.mxu0 0
  %5824 = vmatpush1.bf16.msra.mxu0 0
  %5825 = vmatprep.subr.bf16.mxu0 0
  %5826 = vmatpush1.bf16.msra.mxu0 0
  %5827 = vmatprep.subr.bf16.mxu0 0
  %5828 = vmatpush1.bf16.msra.mxu0 0
  %5829 = vmatprep.subr.bf16.mxu0 0
  %5830 = vmatpush1.bf16.msra.mxu0 %v5813
  %5831 = vmatprep.subr.bf16.mxu0 0
  %5832 = vmatpush2.bf16.msra.mxu0 0
  %5833 = vmatprep.subr.bf16.mxu0 0
  %5834 = vmatpush2.bf16.msra.mxu0 0
  %5835 = vmatprep.subr.bf16.mxu0 0
  %5836 = vmatpush2.bf16.msra.mxu0 0
  %5837 = vmatprep.subr.bf16.mxu0 0
  %5838 = vmatpush2.bf16.msra.mxu0 0
  %5839 = vmatprep.subr.bf16.mxu0 0
  %5840 = vmatpush2.bf16.msra.mxu0 0
  %5841 = vmatprep.subr.bf16.mxu0 0
  %5842 = vmatpush2.bf16.msra.mxu0 0
  %5843 = vmatprep.subr.bf16.mxu0 0
  %5844 = vmatpush2.bf16.msra.mxu0 0
  %5845 = vmatprep.subr.bf16.mxu0 0
  %5846 = vmatpush2.bf16.msra.mxu0 0
  %5847 = vmatprep.mubr.bf16.mxu0 0
  %5848 = vmatmul.mubr.bf16.gmra.mxu0 %v5810
  %v5849 = vpop.f32.mrf.mxu0
  %v5850 = vadd.f32 0.0, %v5849
  %v5851 = vpop.f32.mrf.mxu0
  %v5852 = vpop.f32.mrf.mxu0
  %v5853 = vpop.f32.mrf.mxu0
  %5854 = vdwg.mxu0
  %v5856 = vsel %vm1688, %v5568, 0
  %v5859 = vsel %vm2164, %v5577, 0
  %5861 = vmatprep.subr.bf16.mxu0 0
  %5862 = vmatpush1.bf16.msra.mxu0 0
  %5863 = vmatprep.subr.bf16.mxu0 0
  %5864 = vmatpush1.bf16.msra.mxu0 0
  %5865 = vmatprep.subr.bf16.mxu0 0
  %5866 = vmatpush1.bf16.msra.mxu0 0
  %5867 = vmatprep.subr.bf16.mxu0 0
  %5868 = vmatpush1.bf16.msra.mxu0 0
  %5869 = vmatprep.subr.bf16.mxu0 0
  %5870 = vmatpush1.bf16.msra.mxu0 0
  %5871 = vmatprep.subr.bf16.mxu0 0
  %5872 = vmatpush1.bf16.msra.mxu0 0
  %5873 = vmatprep.subr.bf16.mxu0 0
  %5874 = vmatpush1.bf16.msra.mxu0 0
  %5875 = vmatprep.subr.bf16.mxu0 0
  %5876 = vmatpush1.bf16.msra.mxu0 %v5859
  %5877 = vmatprep.subr.bf16.mxu0 0
  %5878 = vmatpush2.bf16.msra.mxu0 0
  %5879 = vmatprep.subr.bf16.mxu0 0
  %5880 = vmatpush2.bf16.msra.mxu0 0
  %5881 = vmatprep.subr.bf16.mxu0 0
  %5882 = vmatpush2.bf16.msra.mxu0 0
  %5883 = vmatprep.subr.bf16.mxu0 0
  %5884 = vmatpush2.bf16.msra.mxu0 0
  %5885 = vmatprep.subr.bf16.mxu0 0
  %5886 = vmatpush2.bf16.msra.mxu0 0
  %5887 = vmatprep.subr.bf16.mxu0 0
  %5888 = vmatpush2.bf16.msra.mxu0 0
  %5889 = vmatprep.subr.bf16.mxu0 0
  %5890 = vmatpush2.bf16.msra.mxu0 0
  %5891 = vmatprep.subr.bf16.mxu0 0
  %5892 = vmatpush2.bf16.msra.mxu0 0
  %5893 = vmatprep.mubr.bf16.mxu0 0
  %5894 = vmatmul.mubr.bf16.gmra.mxu0 %v5856
  %v5895 = vpop.f32.mrf.mxu0
  %v5896 = vadd.f32 0.0, %v5895
  %v5897 = vpop.f32.mrf.mxu0
  %v5898 = vpop.f32.mrf.mxu0
  %v5899 = vpop.f32.mrf.mxu0
  %5900 = vdwg.mxu0
  %v5902 = vsel %vm1688, %v5569, 0
  %v5905 = vsel %vm2164, %v5578, 0
  %5907 = vmatprep.subr.bf16.mxu0 0
  %5908 = vmatpush1.bf16.msra.mxu0 0
  %5909 = vmatprep.subr.bf16.mxu0 0
  %5910 = vmatpush1.bf16.msra.mxu0 0
  %5911 = vmatprep.subr.bf16.mxu0 0
  %5912 = vmatpush1.bf16.msra.mxu0 0
  %5913 = vmatprep.subr.bf16.mxu0 0
  %5914 = vmatpush1.bf16.msra.mxu0 0
  %5915 = vmatprep.subr.bf16.mxu0 0
  %5916 = vmatpush1.bf16.msra.mxu0 0
  %5917 = vmatprep.subr.bf16.mxu0 0
  %5918 = vmatpush1.bf16.msra.mxu0 0
  %5919 = vmatprep.subr.bf16.mxu0 0
  %5920 = vmatpush1.bf16.msra.mxu0 0
  %5921 = vmatprep.subr.bf16.mxu0 0
  %5922 = vmatpush1.bf16.msra.mxu0 %v5905
  %5923 = vmatprep.subr.bf16.mxu0 0
  %5924 = vmatpush2.bf16.msra.mxu0 0
  %5925 = vmatprep.subr.bf16.mxu0 0
  %5926 = vmatpush2.bf16.msra.mxu0 0
  %5927 = vmatprep.subr.bf16.mxu0 0
  %5928 = vmatpush2.bf16.msra.mxu0 0
  %5929 = vmatprep.subr.bf16.mxu0 0
  %5930 = vmatpush2.bf16.msra.mxu0 0
  %5931 = vmatprep.subr.bf16.mxu0 0
  %5932 = vmatpush2.bf16.msra.mxu0 0
  %5933 = vmatprep.subr.bf16.mxu0 0
  %5934 = vmatpush2.bf16.msra.mxu0 0
  %5935 = vmatprep.subr.bf16.mxu0 0
  %5936 = vmatpush2.bf16.msra.mxu0 0
  %5937 = vmatprep.subr.bf16.mxu0 0
  %5938 = vmatpush2.bf16.msra.mxu0 0
  %5939 = vmatprep.mubr.bf16.mxu0 0
  %5940 = vmatmul.mubr.bf16.gmra.mxu0 %v5902
  %v5941 = vpop.f32.mrf.mxu0
  %v5942 = vadd.f32 0.0, %v5941
  %v5943 = vpop.f32.mrf.mxu0
  %v5944 = vpop.f32.mrf.mxu0
  %v5945 = vpop.f32.mrf.mxu0
  %5946 = vdwg.mxu0
  %v5947 = vadd.f32 %v5620, %v5666
  %v5948 = vadd.f32 %v5804, %v5850
  %v5949 = vadd.f32 %v5947, %v5712
  %v5950 = vadd.f32 %v5948, %v5896
  %v5951 = vadd.f32 %v5949, %v5758
  %v5952 = vadd.f32 %v5950, %v5942
  %s5953 = scalar_lea.vmem %s6, 8
  %v5954 = vld [vmem:[%s5953] sm:$0x1]
  %v5955 = vlaneseq
  %v5956 = vshrl.u32 %v5955, 7
  %v5957 = vsub.s32 0, %v5956
  %v5958 = vrot.slane %v5954, %v5957
  %v5959 = vadd.f32 %v5951, %v5958
  %v5960 = vadd.f32 %v5952, %v5958
  %v5961 = vadd.f32 %v5959, %v3178
  %v5962 = vadd.f32 %v5960, %v3179
  %v5963 = vld [vmem:[%s5953 + $0x2] sm:$0x1]
  %v5964 = vld [vmem:[%s5953 + $0x3] sm:$0x1]
  %v5965 = vsel %vm60, %v5961, 0.0
  %5966 = vadd.xlane.f32.xlu0 %v5965
  %v5967 = vpop.xlane.xlu0 %5966
  %v5968 = vsel %vm60, %v5962, 0.0
  %5969 = vadd.xlane.f32.xlu0 %v5968
  %v5970 = vpop.xlane.xlu0 %5969
  %v5971 = vmul.f32 %v5967, %v67
  %v5972 = vmul.f32 %v5970, %v67
  %v5973 = vsub.f32 %v5961, %v5971
  %v5974 = vsub.f32 %v5962, %v5972
  %v5975 = vmul.f32 %v5973, %v5973
  %v5976 = vmul.f32 %v5974, %v5974
  %v5977 = vsel %vm60, %v5975, 0.0
  %5978 = vadd.xlane.f32.xlu0 %v5977
  %v5979 = vpop.xlane.xlu0 %5978
  %v5980 = vsel %vm60, %v5976, 0.0
  %5981 = vadd.xlane.f32.xlu0 %v5980
  %v5982 = vpop.xlane.xlu0 %5981
  %v5983 = vmul.f32 %v5979, %v67
  %v5984 = vmul.f32 %v5982, %v67
  %v5985 = vadd.f32 %v5983, 1e-12
  %v5986 = vadd.f32 %v5984, 1e-12
  %v5987 = vrsqrt.pop %v5985
  %v5988 = vrsqrt.pop %v5986
  %v5989 = vmul.f32 %v5973, %v5987
  %v5990 = vmul.f32 %v5974, %v5988
  %v5991 = vlaneseq
  %v5992 = vshrl.u32 %v5991, 7
  %v5993 = vsub.s32 0, %v5992
  %v5994 = vrot.slane %v5963, %v5993
  %v5995 = vmul.f32 %v5989, %v5994
  %v5996 = vmul.f32 %v5990, %v5994
  %v5997 = vlaneseq
  %v5998 = vshrl.u32 %v5997, 7
  %v5999 = vsub.s32 0, %v5998
  %v6000 = vrot.slane %v5964, %v5999
  %v6001 = vadd.f32 %v5995, %v6000
  %v6002 = vadd.f32 %v5996, %v6000
  %v6003 = vpack.c.bf16 %v6002, %v6001
  %s6004 = scalar_lea.vmem %s7, 16
  %v6005 = vld [vmem:[%s6004] sm:$0xf]
  %v6006 = vld [vmem:[%s6004 + $0x4] sm:$0xf]
  %v6007 = vld [vmem:[%s6004 + $0x8] sm:$0xf]
  %v6008 = vld [vmem:[%s6004 + $0xc] sm:$0xf]
  %s6009 = scalar_lea.vmem %s8, 1
  %v6010 = vld [vmem:[%s6009] sm:$0x1]
  %v6012 = vlaneseq
  %v6013 = vshrl.u32 %v6012, 7
  %v6014 = vsub.s32 0, %v6013
  %v6015 = vrot.slane %v6010, %v6014
  %v6021 = vunpack.c.l.b16 %v6005
  %v6022 = vunpack.c.l.b16 %v6006
  %v6023 = vunpack.c.l.b16 %v6007
  %v6024 = vunpack.c.l.b16 %v6008
  %v6025 = vpack.c.b16 %v6022, %v6021
  %v6026 = vpack.c.b16 %v6024, %v6023
  %v6030 = vsel %vm60, %v6003, 0
  %6032 = vmatprep.subr.bf16.mxu0 0
  %6033 = vmatpush1.bf16.msra.mxu0 0
  %6034 = vmatprep.subr.bf16.mxu0 0
  %6035 = vmatpush1.bf16.msra.mxu0 0
  %6036 = vmatprep.subr.bf16.mxu0 0
  %6037 = vmatpush1.bf16.msra.mxu0 0
  %6038 = vmatprep.subr.bf16.mxu0 0
  %6039 = vmatpush1.bf16.msra.mxu0 0
  %6040 = vmatprep.subr.bf16.mxu0 0
  %6041 = vmatpush1.bf16.msra.mxu0 0
  %6042 = vmatprep.subr.bf16.mxu0 0
  %6043 = vmatpush1.bf16.msra.mxu0 0
  %6044 = vmatprep.subr.bf16.mxu0 0
  %6045 = vmatpush1.bf16.msra.mxu0 %v6026
  %6046 = vmatprep.subr.bf16.mxu0 0
  %6047 = vmatpush1.bf16.msra.mxu0 %v6025
  %6048 = vmatprep.subr.bf16.mxu0 0
  %6049 = vmatpush2.bf16.msra.mxu0 0
  %6050 = vmatprep.subr.bf16.mxu0 0
  %6051 = vmatpush2.bf16.msra.mxu0 0
  %6052 = vmatprep.subr.bf16.mxu0 0
  %6053 = vmatpush2.bf16.msra.mxu0 0
  %6054 = vmatprep.subr.bf16.mxu0 0
  %6055 = vmatpush2.bf16.msra.mxu0 0
  %6056 = vmatprep.subr.bf16.mxu0 0
  %6057 = vmatpush2.bf16.msra.mxu0 0
  %6058 = vmatprep.subr.bf16.mxu0 0
  %6059 = vmatpush2.bf16.msra.mxu0 0
  %6060 = vmatprep.subr.bf16.mxu0 0
  %6061 = vmatpush2.bf16.msra.mxu0 0
  %6062 = vmatprep.subr.bf16.mxu0 0
  %6063 = vmatpush2.bf16.msra.mxu0 0
  %6064 = vmatprep.mubr.bf16.mxu0 0
  %6065 = vmatmul.mubr.bf16.gmra.mxu0 %v6030
  %v6066 = vpop.f32.mrf.mxu0
  %v6067 = vadd.f32 %v6015, %v6066
  %v6068 = vpop.f32.mrf.mxu0
  %v6069 = vpop.f32.mrf.mxu0
  %v6070 = vadd.f32 %v6015, %v6069
  %v6071 = vpop.f32.mrf.mxu0
  %6072 = vdwg.mxu0
  %v6073 = vmul.f32 %v6067, 0.5
  %v6074 = vmul.f32 %v6070, 0.5
  %v6075 = vmul.f32 %v6067, 0.044715
  %v6076 = vmul.f32 %v6070, 0.044715
  %v6077 = vmul.f32 %v6075, %v6067
  %v6078 = vmul.f32 %v6076, %v6070
  %v6079 = vmul.f32 %v6077, %v6067
  %v6080 = vmul.f32 %v6078, %v6070
  %v6081 = vadd.f32 %v6067, %v6079
  %v6082 = vadd.f32 %v6070, %v6080
  %v6083 = vmul.f32 %v6081, 0.7978846
  %v6084 = vmul.f32 %v6082, 0.7978846
  %v6085 = vtanh.pop %v6083
  %v6086 = vtanh.pop %v6084
  %v6087 = vadd.f32 %v6085, 1.0
  %v6088 = vadd.f32 %v6086, 1.0
  %v6089 = vmul.f32 %v6073, %v6087
  %v6090 = vmul.f32 %v6074, %v6088
  %v6091 = vpack.c.bf16 %v6090, %v6089
  %s6092 = scalar_lea.vmem %s9, 32
  %v6093 = vld [vmem:[%s6092] sm:$0xf]
  %v6094 = vld [vmem:[%s6092 + $0x4] sm:$0xf]
  %v6095 = vld [vmem:[%s6092 + $0x8] sm:$0xf]
  %v6096 = vld [vmem:[%s6092 + $0xc] sm:$0xf]
  %v6097 = vld [vmem:[%s6092 + $0x10] sm:$0xf]
  %v6098 = vld [vmem:[%s6092 + $0x14] sm:$0xf]
  %v6099 = vld [vmem:[%s6092 + $0x18] sm:$0xf]
  %v6100 = vld [vmem:[%s6092 + $0x1c] sm:$0xf]
  %v6101 = vld [vmem:[%s5953 + $0x1] sm:$0x1]
  %v6102 = vlaneseq
  %v6103 = vshrl.u32 %v6102, 7
  %v6104 = vsub.s32 0, %v6103
  %v6105 = vrot.slane %v6101, %v6104
  %v6114 = vunpack.c.l.b16 %v6093
  %v6115 = vunpack.c.l.b16 %v6094
  %v6116 = vunpack.c.l.b16 %v6095
  %v6117 = vunpack.c.l.b16 %v6096
  %v6118 = vunpack.c.l.b16 %v6097
  %v6119 = vunpack.c.l.b16 %v6098
  %v6120 = vunpack.c.l.b16 %v6099
  %v6121 = vunpack.c.l.b16 %v6100
  %v6122 = vpack.c.b16 %v6115, %v6114
  %v6123 = vpack.c.b16 %v6117, %v6116
  %v6124 = vpack.c.b16 %v6119, %v6118
  %v6125 = vpack.c.b16 %v6121, %v6120
  %v6131 = vsel %vm3093, %v6091, 0
  %6133 = vmatprep.subr.bf16.mxu0 0
  %6134 = vmatpush1.bf16.msra.mxu0 0
  %6135 = vmatprep.subr.bf16.mxu0 0
  %6136 = vmatpush1.bf16.msra.mxu0 0
  %6137 = vmatprep.subr.bf16.mxu0 0
  %6138 = vmatpush1.bf16.msra.mxu0 0
  %6139 = vmatprep.subr.bf16.mxu0 0
  %6140 = vmatpush1.bf16.msra.mxu0 0
  %6141 = vmatprep.subr.bf16.mxu0 0
  %6142 = vmatpush1.bf16.msra.mxu0 %v6125
  %6143 = vmatprep.subr.bf16.mxu0 0
  %6144 = vmatpush1.bf16.msra.mxu0 %v6124
  %6145 = vmatprep.subr.bf16.mxu0 0
  %6146 = vmatpush1.bf16.msra.mxu0 %v6123
  %6147 = vmatprep.subr.bf16.mxu0 0
  %6148 = vmatpush1.bf16.msra.mxu0 %v6122
  %6149 = vmatprep.subr.bf16.mxu0 0
  %6150 = vmatpush2.bf16.msra.mxu0 0
  %6151 = vmatprep.subr.bf16.mxu0 0
  %6152 = vmatpush2.bf16.msra.mxu0 0
  %6153 = vmatprep.subr.bf16.mxu0 0
  %6154 = vmatpush2.bf16.msra.mxu0 0
  %6155 = vmatprep.subr.bf16.mxu0 0
  %6156 = vmatpush2.bf16.msra.mxu0 0
  %6157 = vmatprep.subr.bf16.mxu0 0
  %6158 = vmatpush2.bf16.msra.mxu0 0
  %6159 = vmatprep.subr.bf16.mxu0 0
  %6160 = vmatpush2.bf16.msra.mxu0 0
  %6161 = vmatprep.subr.bf16.mxu0 0
  %6162 = vmatpush2.bf16.msra.mxu0 0
  %6163 = vmatprep.subr.bf16.mxu0 0
  %6164 = vmatpush2.bf16.msra.mxu0 0
  %6165 = vmatprep.mubr.bf16.mxu0 0
  %6166 = vmatmul.mubr.bf16.gmra.mxu0 %v6131
  %v6167 = vpop.f32.mrf.mxu0
  %v6168 = vadd.f32 %v6105, %v6167
  %v6169 = vpop.f32.mrf.mxu0
  %v6170 = vpop.f32.mrf.mxu0
  %v6171 = vadd.f32 %v6105, %v6170
  %v6172 = vpop.f32.mrf.mxu0
  %6173 = vdwg.mxu0
  %v6174 = vadd.f32 %v6168, %v6001
  %v6175 = vadd.f32 %v6171, %v6002
  %v6176 = vld [vmem:[%s5953 + $0x4] sm:$0x1]
  %v6177 = vld [vmem:[%s5953 + $0x5] sm:$0x1]
  %v6178 = vsel %vm60, %v6174, 0.0
  %6179 = vadd.xlane.f32.xlu0 %v6178
  %v6180 = vpop.xlane.xlu0 %6179
  %v6181 = vsel %vm60, %v6175, 0.0
  %6182 = vadd.xlane.f32.xlu0 %v6181
  %v6183 = vpop.xlane.xlu0 %6182
  %v6184 = vmul.f32 %v6180, %v67
  %v6185 = vmul.f32 %v6183, %v67
  %v6186 = vsub.f32 %v6174, %v6184
  %v6187 = vsub.f32 %v6175, %v6185
  %v6188 = vmul.f32 %v6186, %v6186
  %v6189 = vmul.f32 %v6187, %v6187
  %v6190 = vsel %vm60, %v6188, 0.0
  %6191 = vadd.xlane.f32.xlu0 %v6190
  %v6192 = vpop.xlane.xlu0 %6191
  %v6193 = vsel %vm60, %v6189, 0.0
  %6194 = vadd.xlane.f32.xlu0 %v6193
  %v6195 = vpop.xlane.xlu0 %6194
  %v6196 = vmul.f32 %v6192, %v67
  %v6197 = vmul.f32 %v6195, %v67
  %v6198 = vadd.f32 %v6196, 1e-12
  %v6199 = vadd.f32 %v6197, 1e-12
  %v6200 = vrsqrt.pop %v6198
  %v6201 = vrsqrt.pop %v6199
  %v6202 = vmul.f32 %v6186, %v6200
  %v6203 = vmul.f32 %v6187, %v6201
  %v6204 = vlaneseq
  %v6205 = vshrl.u32 %v6204, 7
  %v6206 = vsub.s32 0, %v6205
  %v6207 = vrot.slane %v6176, %v6206
  %v6208 = vmul.f32 %v6202, %v6207
  %v6209 = vmul.f32 %v6203, %v6207
  %v6210 = vlaneseq
  %v6211 = vshrl.u32 %v6210, 7
  %v6212 = vsub.s32 0, %v6211
  %v6213 = vrot.slane %v6177, %v6212
  %v6214 = vadd.f32 %v6208, %v6213
  %v6215 = vadd.f32 %v6209, %v6213
  %v6216 = vpack.c.bf16 %v6214, %v6214
  %v6217 = vpack.c.bf16 %v6215, %v6215
  %v6218 = vld [vmem:[%s10] sm:$0xf]
  %v6219 = vld [vmem:[%s10 + $0x4] sm:$0xf]
  %v6220 = vld [vmem:[%s10 + $0x8] sm:$0xf]
  %v6221 = vld [vmem:[%s10 + $0xc] sm:$0xf]
  %v6222 = vld [vmem:[%s11] sm:$0x1]
  %v6224 = vlaneseq
  %v6225 = vshrl.u32 %v6224, 7
  %v6226 = vsub.s32 0, %v6225
  %v6227 = vrot.slane %v6222, %v6226
  %v6231 = vunpack.c.l.b16 %v6216
  %v6232 = vunpack.c.l.b16 %v6217
  %v6233 = vrot.slane %v6232, 7
  %vm6234 = vcmask 1041409
  %v6235 = vsel %vm6234, %v6233, %v6231
  %v6236 = vpack.c.b16 %v6235, %v6235
  %v6241 = vunpack.c.l.b16 %v6218
  %v6242 = vunpack.c.l.b16 %v6219
  %v6243 = vunpack.c.l.b16 %v6220
  %v6244 = vunpack.c.l.b16 %v6221
  %v6245 = vpack.c.b16 %v6242, %v6241
  %v6246 = vpack.c.b16 %v6244, %v6243
  %v6250 = vsel %vm60, %v6236, 0
  %6252 = vmatprep.subr.bf16.mxu0 0
  %6253 = vmatpush1.bf16.msra.mxu0 0
  %6254 = vmatprep.subr.bf16.mxu0 0
  %6255 = vmatpush1.bf16.msra.mxu0 0
  %6256 = vmatprep.subr.bf16.mxu0 0
  %6257 = vmatpush1.bf16.msra.mxu0 0
  %6258 = vmatprep.subr.bf16.mxu0 0
  %6259 = vmatpush1.bf16.msra.mxu0 0
  %6260 = vmatprep.subr.bf16.mxu0 0
  %6261 = vmatpush1.bf16.msra.mxu0 0
  %6262 = vmatprep.subr.bf16.mxu0 0
  %6263 = vmatpush1.bf16.msra.mxu0 0
  %6264 = vmatprep.subr.bf16.mxu0 0
  %6265 = vmatpush1.bf16.msra.mxu0 %v6246
  %6266 = vmatprep.subr.bf16.mxu0 0
  %6267 = vmatpush1.bf16.msra.mxu0 %v6245
  %6268 = vmatprep.subr.bf16.mxu0 0
  %6269 = vmatpush2.bf16.msra.mxu0 0
  %6270 = vmatprep.subr.bf16.mxu0 0
  %6271 = vmatpush2.bf16.msra.mxu0 0
  %6272 = vmatprep.subr.bf16.mxu0 0
  %6273 = vmatpush2.bf16.msra.mxu0 0
  %6274 = vmatprep.subr.bf16.mxu0 0
  %6275 = vmatpush2.bf16.msra.mxu0 0
  %6276 = vmatprep.subr.bf16.mxu0 0
  %6277 = vmatpush2.bf16.msra.mxu0 0
  %6278 = vmatprep.subr.bf16.mxu0 0
  %6279 = vmatpush2.bf16.msra.mxu0 0
  %6280 = vmatprep.subr.bf16.mxu0 0
  %6281 = vmatpush2.bf16.msra.mxu0 0
  %6282 = vmatprep.subr.bf16.mxu0 0
  %6283 = vmatpush2.bf16.msra.mxu0 0
  %6284 = vmatprep.mubr.bf16.mxu0 0
  %6285 = vmatmul.mubr.bf16.gmra.mxu0 %v6250
  %v6286 = vpop.f32.mrf.mxu0
  %v6287 = vadd.f32 %v6227, %v6286
  %v6288 = vpop.f32.mrf.mxu0
  %v6289 = vpop.f32.mrf.mxu0
  %v6290 = vpop.f32.mrf.mxu0
  %6291 = vdwg.mxu0
  %v6292 = vtanh.pop %v6287
  %v6293 = vpack.c.bf16 %v6292, %v6292
  %v6294 = vld [vmem:[%s12] sm:$0xf]
  %v6295 = vld [vmem:[%s12 + $0x4] sm:$0xf]
  %v6296 = vld [vmem:[%s12 + $0x8] sm:$0xf]
  %v6297 = vld [vmem:[%s12 + $0xc] sm:$0xf]
  %v6298 = vld [vmem:[%s13] sm:$0x1]
  %v6300 = vlaneseq
  %v6301 = vshrl.u32 %v6300, 7
  %v6302 = vsub.s32 0, %v6301
  %v6303 = vrot.slane %v6298, %v6302
  %v6309 = vunpack.c.l.b16 %v6294
  %v6310 = vunpack.c.l.b16 %v6295
  %v6311 = vunpack.c.l.b16 %v6296
  %v6312 = vunpack.c.l.b16 %v6297
  %v6313 = vpack.c.b16 %v6310, %v6309
  %v6314 = vpack.c.b16 %v6312, %v6311
  %v6318 = vsel %vm60, %v6293, 0
  %6320 = vmatprep.subr.bf16.mxu0 0
  %6321 = vmatpush1.bf16.msra.mxu0 0
  %6322 = vmatprep.subr.bf16.mxu0 0
  %6323 = vmatpush1.bf16.msra.mxu0 0
  %6324 = vmatprep.subr.bf16.mxu0 0
  %6325 = vmatpush1.bf16.msra.mxu0 0
  %6326 = vmatprep.subr.bf16.mxu0 0
  %6327 = vmatpush1.bf16.msra.mxu0 0
  %6328 = vmatprep.subr.bf16.mxu0 0
  %6329 = vmatpush1.bf16.msra.mxu0 0
  %6330 = vmatprep.subr.bf16.mxu0 0
  %6331 = vmatpush1.bf16.msra.mxu0 0
  %6332 = vmatprep.subr.bf16.mxu0 0
  %6333 = vmatpush1.bf16.msra.mxu0 %v6314
  %6334 = vmatprep.subr.bf16.mxu0 0
  %6335 = vmatpush1.bf16.msra.mxu0 %v6313
  %6336 = vmatprep.subr.bf16.mxu0 0
  %6337 = vmatpush2.bf16.msra.mxu0 0
  %6338 = vmatprep.subr.bf16.mxu0 0
  %6339 = vmatpush2.bf16.msra.mxu0 0
  %6340 = vmatprep.subr.bf16.mxu0 0
  %6341 = vmatpush2.bf16.msra.mxu0 0
  %6342 = vmatprep.subr.bf16.mxu0 0
  %6343 = vmatpush2.bf16.msra.mxu0 0
  %6344 = vmatprep.subr.bf16.mxu0 0
  %6345 = vmatpush2.bf16.msra.mxu0 0
  %6346 = vmatprep.subr.bf16.mxu0 0
  %6347 = vmatpush2.bf16.msra.mxu0 0
  %6348 = vmatprep.subr.bf16.mxu0 0
  %6349 = vmatpush2.bf16.msra.mxu0 0
  %6350 = vmatprep.subr.bf16.mxu0 0
  %6351 = vmatpush2.bf16.msra.mxu0 0
  %6352 = vmatprep.mubr.bf16.mxu0 0
  %6353 = vmatmul.mubr.bf16.gmra.mxu0 %v6318
  %v6354 = vpop.f32.mrf.mxu0
  %v6355 = vadd.f32 %v6303, %v6354
  %v6356 = vpop.f32.mrf.mxu0
  %v6357 = vpop.f32.mrf.mxu0
  %v6358 = vpop.f32.mrf.mxu0
  %6359 = vdwg.mxu0
  %6361 = vrot.lane.b32.xlu0 %v6355, 32
  %v6362 = vpop.permute.xlu0 %6361
  %v6364 = vsel %vm60, %v6292, %v6362
  %6365 = vst [vmem:[%s14] sm:$0x3] %v6364
  // Predicated region
  $region58: #{bert_class_forward.1} parent=0 // pred_check
    _
  $region59: #{bert_class_forward.1} parent=0 // pred_check_branch
    %6367 = sbr.rel (0) target = $region61
  $region60: #{bert_class_forward.1} parent=0 // pred_region
    _
  $region61: #{bert_class_forward.1} parent=0 // pred_fallthru
    _
  // Predicated region
  $region62: #{bert_class_forward.1} parent=0 // pred_check
    _
  $region63: #{bert_class_forward.1} parent=0 // pred_check_branch
    %6369 = sbr.rel (0) target = $region65
  $region64: #{bert_class_forward.1} parent=0 // pred_region
    _
  $region65: #{bert_class_forward.1} parent=0 // pred_fallthru
    _

</llo_original>
